<compile_context>
chip_gen: v6e
topology: v6e:2x2x1
jax: 0.10.0
libtpu: 0.0.40
codegen_flags: <defaults>
</compile_context>

<pallas_src>
import functools
import math

import jax
import jax.numpy as jnp
from jax import lax
from jax.experimental import pallas as pl
from jax.experimental.pallas import tpu as pltpu

LANE = 128


def _round_up(x, m):
    return ((x + m - 1) // m) * m


def _choose_tm(m):
    """Row-tile: single block for small M, >=2 tiles for M>=256 (v7x megacore)."""
    if m < 256:
        return _round_up(m, 8)
    if m <= 2048:
        return 256
    return 512


def _tap_offsets(k, pad, wp):
    """Flat row offsets of the kh*kw taps on the padded (Hp, Wp) grid."""
    return tuple((dy - pad) * wp + (dx - pad) for dy in range(k) for dx in range(k))


# ---------------------------------------------------------------------------
# Pallas kernels
# ---------------------------------------------------------------------------
def _conv_shift_kernel(x_ref, w_ref, b_ref, m_ref, o_ref, *, offsets, sentinel, tm,
                       single_block, pixel_norm, lrelu, inv_true_co):
    """Shift-and-accumulate conv: one MXU dot per tap + fused bias/mask/PN/LReLU.

    x_ref : (rows, K)    bf16, whole padded activation resident in VMEM
    w_ref : (T, K, Co)   bf16, per-tap weights (resident)
    b_ref : (1, Co)      f32 bias
    m_ref : (tm, 1)      f32 interior mask (zeroes the padded border rows)
    o_ref : (tm, Co)     bf16 output tile (lane-dense, Co multiple of 128)
    """
    if single_block:
        base = sentinel                                   # fully static slices
    else:
        base = pl.program_id(0) * tm + sentinel
    acc = jnp.dot(x_ref[pl.ds(base + offsets[0], tm), :], w_ref[0],
                  preferred_element_type=jnp.float32)
    for t in range(1, len(offsets)):
        acc = acc + jnp.dot(x_ref[pl.ds(base + offsets[t], tm), :], w_ref[t],
                            preferred_element_type=jnp.float32)
    acc = (acc + b_ref[...]) * m_ref[...]                 # bias, then zero borders
    if pixel_norm:
        # padded lanes are exactly zero -> sum over all lanes == sum over true Co
        ms = jnp.sum(acc * acc, axis=-1, keepdims=True) * inv_true_co
        acc = acc * lax.rsqrt(ms + 1e-8)                  # rsqrt -> EUP slot
    if lrelu:
        acc = jnp.where(acc >= 0, acc, 0.2 * acc)
    o_ref[...] = acc.astype(o_ref.dtype)


def _mbstd_kernel(x_ref, o_ref):
    """Minibatch std: mean over features of sqrt(population var over batch + 1e-8)."""
    x = x_ref[...].astype(jnp.float32)
    mu = jnp.mean(x, axis=0, keepdims=True)
    var = jnp.mean((x - mu) ** 2, axis=0, keepdims=True)
    std = jnp.sqrt(var + 1e-8)
    o_ref[...] = jnp.mean(std, axis=-1, keepdims=True)


def _final_head_kernel(x_ref, w_ref, b_ref, e_ref, lw_ref, lb_ref, o_ref, *, inv_true_co):
    """Fused tail: 4x4 VALID conv (as matmul) + PixelNorm + LeakyReLU +
    EqualLinear + class projection, in one kernel.

    final = sum(feat * (normalize(embed) + lin_w_row), -1) + lin_b
    """
    acc = jnp.dot(x_ref[...], w_ref[...], preferred_element_type=jnp.float32)
    acc = acc + b_ref[...]
    ms = jnp.sum(acc * acc, axis=-1, keepdims=True) * inv_true_co
    acc = acc * lax.rsqrt(ms + 1e-8)
    acc = jnp.where(acc >= 0, acc, 0.2 * acc)
    e = e_ref[...]
    inv = lax.rsqrt(jnp.maximum(jnp.sum(e * e, axis=-1, keepdims=True), 1e-24))
    o_ref[...] = jnp.sum(acc * (e * inv + lw_ref[...]), axis=-1, keepdims=True) + lb_ref[...]


# ---------------------------------------------------------------------------
# pallas_call wrappers
# ---------------------------------------------------------------------------
def _conv_layer(x_flat, mask, w_taps, bias, *, offsets, sentinel,
                pixel_norm, lrelu, true_co, out_dtype=jnp.bfloat16):
    M, Kp = x_flat.shape
    T, _, Cop = w_taps.shape
    tm = _choose_tm(M)
    grid = pl.cdiv(M, tm)
    single = (grid == 1)
    rows_needed = grid * tm + 2 * sentinel
    # sentinel halo rows so every tap's row slice stays in bounds (one small pad
    # of the flat activation -- NOT a 9x patch copy).
    x_full = jnp.pad(x_flat, ((sentinel, rows_needed - M - sentinel), (0, 0)))
    if grid * tm > M:
        mask = jnp.pad(mask, ((0, grid * tm - M), (0, 0)))

    kern = functools.partial(
        _conv_shift_kernel, offsets=tuple(offsets), sentinel=sentinel, tm=tm,
        single_block=single, pixel_norm=pixel_norm, lrelu=lrelu,
        inv_true_co=1.0 / float(true_co))

    # explicit VMEM budget (resident x + resident weights + double-buffered out)
    vmem_need = (x_full.size * x_full.dtype.itemsize + w_taps.size * 2
                 + 2 * tm * Cop * 6 + 4 * Cop + 8 * tm)
    vmem_limit = int(min(max(4 * vmem_need, 32 * 1024 * 1024), 64 * 1024 * 1024))

    return pl.pallas_call(
        kern,
        out_shape=jax.ShapeDtypeStruct((M, Cop), out_dtype),
        grid=(grid,),
        in_specs=[
            pl.BlockSpec((rows_needed, Kp), lambda i: (0, 0)),   # resident activation
            pl.BlockSpec((T, Kp, Cop), lambda i: (0, 0, 0)),     # resident weights
            pl.BlockSpec((1, Cop), lambda i: (0, 0)),
            pl.BlockSpec((tm, 1), lambda i: (i, 0)),
        ],
        out_specs=pl.BlockSpec((tm, Cop), lambda i: (i, 0)),
        compiler_params=pltpu.CompilerParams(
            dimension_semantics=("parallel",),       # shard M across v7x's 2 TCs
            vmem_limit_bytes=vmem_limit),
    )(x_full, w_taps, bias, mask)


def _minibatch_std(flat):
    N, D = flat.shape
    return pl.pallas_call(
        _mbstd_kernel,
        out_shape=jax.ShapeDtypeStruct((1, 1), jnp.float32),
        grid=(1,),
        in_specs=[pl.BlockSpec((N, D), lambda i: (0, 0))],
        out_specs=pl.BlockSpec((1, 1), lambda i: (0, 0)),
    )(flat)


def _final_head(patches, w2, b2, embed, lin_w, lin_b, *, true_co):
    N, K2 = patches.shape
    Cop = w2.shape[-1]
    kern = functools.partial(_final_head_kernel, inv_true_co=1.0 / float(true_co))
    return pl.pallas_call(
        kern,
        out_shape=jax.ShapeDtypeStruct((N, 1), jnp.float32),
        grid=(1,),
        in_specs=[
            pl.BlockSpec((N, K2), lambda i: (0, 0)),
            pl.BlockSpec((K2, Cop), lambda i: (0, 0)),
            pl.BlockSpec((1, Cop), lambda i: (0, 0)),
            pl.BlockSpec((N, Cop), lambda i: (0, 0)),
            pl.BlockSpec((1, Cop), lambda i: (0, 0)),
            pl.BlockSpec((1, 1), lambda i: (0, 0)),
        ],
        out_specs=pl.BlockSpec((N, 1), lambda i: (0, 0)),
    )(patches, w2, b2, embed, lin_w, lin_b)


# ---------------------------------------------------------------------------
# Plain-JAX glue (layout plumbing only; all static shapes)
# ---------------------------------------------------------------------------
def _border_mask(N, Hp, Wp):
    h = jnp.arange(Hp)
    w = jnp.arange(Wp)
    interior = ((h[:, None] >= 1) & (h[:, None] <= Hp - 2) &
                (w[None, :] >= 1) & (w[None, :] <= Wp - 2)).astype(jnp.float32)
    return jnp.broadcast_to(interior[None], (N, Hp, Wp)).reshape(N * Hp * Wp, 1)


def _to_padded_flat(x_nhwc, kp):
    """NHWC -> zero-pad 1px border + channels to kp -> flat (N*Hp*Wp, kp) bf16."""
    N, H, W, C = x_nhwc.shape
    xp = jnp.pad(x_nhwc, ((0, 0), (1, 1), (1, 1), (0, kp - C)))
    return xp.reshape(N * (H + 2) * (W + 2), kp).astype(jnp.bfloat16), (N, H + 2, W + 2)


def _from_padded_flat(x_flat, N, Hp, Wp):
    return x_flat.reshape(N, Hp, Wp, -1)[:, 1:Hp - 1, 1:Wp - 1, :]


def _repad_flat(x_nhwc):
    N, H, W, C = x_nhwc.shape
    xp = jnp.pad(x_nhwc, ((0, 0), (1, 1), (1, 1), (0, 0)))
    return xp.reshape(N * (H + 2) * (W + 2), C), (N, H + 2, W + 2)


def _avg_pool2(x):
    # F.interpolate(scale_factor=0.5, bilinear, align_corners=False) on even
    # sizes is exactly 2x2 average pooling.
    N, H, W, C = x.shape
    y = x.astype(jnp.float32).reshape(N, H // 2, 2, W // 2, 2, C).mean(axis=(2, 4))
    return y.astype(x.dtype)


# ---------------------------------------------------------------------------
# Parameters: raw torch-layout init + one-time Pallas-ready preparation
# ---------------------------------------------------------------------------
def init_params(key, feat_dim, num_classes):
    F = feat_dim
    keys = iter(jax.random.split(key, 32))

    def conv(co, ci, kh, kw):
        w = jax.random.normal(next(keys), (co, ci, kh, kw), jnp.float32)
        w = w * math.sqrt(2.0 / (ci * kh * kw))          # EqualLR: fan_in = ci*kh*kw
        return w, jnp.zeros((co,), jnp.float32)

    from_rgb = []
    for _ in range(4):
        w, b = conv(F, 3, 1, 1)
        from_rgb.append({"w": w, "b": b})

    prog = []
    for _ in range(3):
        w1, b1 = conv(F, F, 3, 3)
        w2, b2 = conv(F, F, 3, 3)
        prog.append({"w1": w1, "b1": b1, "w2": w2, "b2": b2})
    w1, b1 = conv(F, F + 1, 3, 3)
    w2, b2 = conv(F, F, 4, 4)
    prog.append({"w1": w1, "b1": b1, "w2": w2, "b2": b2})

    embedding = jax.random.normal(next(keys), (num_classes, F), jnp.float32)
    lin_w = jax.random.normal(next(keys), (1, F), jnp.float32) * math.sqrt(2.0 / F)
    lin_b = jnp.zeros((1, 1), jnp.float32)
    return {"feat_dim": F, "from_rgb": from_rgb, "prog": prog,
            "embedding": embedding, "lin_w": lin_w, "lin_b": lin_b}


def prepare_params(raw):
    """One-time weight re-layout: per-tap (T,K,Co) bf16, lane-padded to 128."""
    F = raw["feat_dim"]
    cop = _round_up(F, LANE)
    rgb_kp = _round_up(3, 8)

    def conv_taps(w, b, kp):
        co, ci, kh, kw = w.shape
        wt = jnp.transpose(w, (2, 3, 1, 0)).reshape(kh * kw, ci, co)
        wt = jnp.pad(wt, ((0, 0), (0, kp - ci), (0, cop - co)))
        bias = jnp.pad(b.reshape(1, -1), ((0, 0), (0, cop - co)))
        return wt.astype(jnp.bfloat16), bias.astype(jnp.float32)

    prepared = {"from_rgb": [], "prog": []}
    for fr in raw["from_rgb"]:
        w, b = conv_taps(fr["w"], fr["b"], rgb_kp)
        prepared["from_rgb"].append({"w": w, "b": b})

    for bi, blk in enumerate(raw["prog"]):
        w1, b1 = conv_taps(blk["w1"], blk["b1"], cop)
        if bi < 3:
            w2, b2 = conv_taps(blk["w2"], blk["b2"], cop)
        else:
            # final 4x4 VALID conv as one (16*cop, cop) matrix, (h, w, ci) row order
            w = blk["w2"]
            co, ci, kh, kw = w.shape
            wt = jnp.transpose(w, (2, 3, 1, 0))                     # (4,4,Ci,Co)
            wt = jnp.pad(wt, ((0, 0), (0, 0), (0, cop - ci), (0, cop - co)))
            w2 = wt.reshape(kh * kw * cop, cop).astype(jnp.bfloat16)
            b2 = jnp.pad(blk["b2"].reshape(1, -1),
                         ((0, 0), (0, cop - co))).astype(jnp.float32)
        prepared["prog"].append({"w1": w1, "b1": b1, "w2": w2, "b2": b2})

    prepared["embedding"] = jnp.pad(raw["embedding"],
                                    ((0, 0), (0, cop - F))).astype(jnp.float32)
    prepared["lin_w"] = jnp.pad(raw["lin_w"], ((0, 0), (0, cop - F))).astype(jnp.float32)
    prepared["lin_b"] = raw["lin_b"].astype(jnp.float32)
    return prepared


# ---------------------------------------------------------------------------
# Forward pass (Pallas version).  feat_dim / step / alpha are static kwargs.
# ---------------------------------------------------------------------------
def forward(params, input_nchw, label, *, feat_dim, step, alpha):
    n_layer = 4
    F = feat_dim
    x_nhwc = jnp.transpose(input_nchw, (0, 2, 3, 1)).astype(jnp.float32)  # NCHW->NHWC

    out, geom = None, None
    for i in range(step, 0, -1):
        index = n_layer - i
        if i == step:
            fr = params["from_rgb"][index]
            xf, geom = _to_padded_flat(x_nhwc, fr["w"].shape[1])
            out = _conv_layer(xf, _border_mask(*geom), fr["w"], fr["b"],
                              offsets=(0,), sentinel=0,
                              pixel_norm=False, lrelu=False, true_co=F)
        N, Hp, Wp = geom
        msk = _border_mask(N, Hp, Wp)

        if i == 1:
            # minibatch-std channel (interior positions, true channels only)
            interior = _from_padded_flat(out, N, Hp, Wp)[..., :F]
            mean_std = _minibatch_std(
                interior.astype(jnp.float32).reshape(interior.shape[0], -1))
            std_col = (mean_std[0, 0] * msk).astype(out.dtype)
            out = jnp.concatenate([out[:, :F], std_col, out[:, F + 1:]], axis=-1)

        blk = params["prog"][index]
        off3 = _tap_offsets(3, 1, Wp)
        sent = Wp + 1
        out = _conv_layer(out, msk, blk["w1"], blk["b1"], offsets=off3, sentinel=sent,
                          pixel_norm=True, lrelu=True, true_co=F)

        if i > 1:
            out = _conv_layer(out, msk, blk["w2"], blk["b2"], offsets=off3,
                              sentinel=sent, pixel_norm=True, lrelu=True, true_co=F)
            pooled = _avg_pool2(_from_padded_flat(out, N, Hp, Wp))
            out, geom = _repad_flat(pooled)
            if i == step and 0 <= alpha < 1:
                fr = params["from_rgb"][index + 1]
                xs, geom_s = _to_padded_flat(_avg_pool2(x_nhwc), fr["w"].shape[1])
                skip = _conv_layer(xs, _border_mask(*geom_s), fr["w"], fr["b"],
                                   offsets=(0,), sentinel=0,
                                   pixel_norm=False, lrelu=False, true_co=F)
                out = ((1.0 - alpha) * skip.astype(jnp.float32)
                       + alpha * out.astype(jnp.float32)).astype(jnp.bfloat16)
        else:
            # fused tail: 4x4 VALID conv + PixelNorm + LReLU + EqualLinear + projection
            inner = _from_padded_flat(out, N, Hp, Wp)            # (N, 4, 4, Cop)
            patches = inner.reshape(inner.shape[0], -1)          # (N, 16*Cop)
            # TODO(synk): embedding row gather kept as plain-JAX glue.
            embed = params["embedding"][label]
            final = _final_head(patches, blk["w2"], blk["b2"], embed,
                                params["lin_w"], params["lin_b"], true_co=F)
            return final.reshape(-1)


# ---------------------------------------------------------------------------
# Pure-JAX f32 reference (mirrors the PyTorch forward) for verification
# ---------------------------------------------------------------------------
def ref_forward(raw, input_nchw, label, step, alpha):
    def conv(xx, w, b, pad):
        y = lax.conv_general_dilated(xx, w, (1, 1), [(pad, pad), (pad, pad)],
                                     dimension_numbers=("NCHW", "OIHW", "NCHW"))
        return y + b.reshape(1, -1, 1, 1)

    def pixelnorm(xx):
        return xx / jnp.sqrt(jnp.mean(xx * xx, axis=1, keepdims=True) + 1e-8)

    def lrelu(xx):
        return jnp.where(xx >= 0, xx, 0.2 * xx)

    def down2(xx):
        N, C, H, W = xx.shape
        return xx.reshape(N, C, H // 2, 2, W // 2, 2).mean(axis=(3, 5))

    n_layer = 4
    out = None
    for i in range(step, 0, -1):
        index = n_layer - i
        if i == step:
            fr = raw["from_rgb"][index]
            out = conv(input_nchw, fr["w"], fr["b"], 0)
        if i == 1:
            std = jnp.sqrt(jnp.var(out, axis=0) + 1e-8)
            ms = jnp.broadcast_to(jnp.mean(std), (out.shape[0], 1, 4, 4))
            out = jnp.concatenate([out, ms], axis=1)
        blk = raw["prog"][index]
        p2 = 1 if index < 3 else 0
        out = lrelu(pixelnorm(conv(out, blk["w1"], blk["b1"], 1)))
        out = lrelu(pixelnorm(conv(out, blk["w2"], blk["b2"], p2)))
        if i > 1:
            out = down2(out)
            if i == step and 0 <= alpha < 1:
                fr = raw["from_rgb"][index + 1]
                skip = conv(down2(input_nchw), fr["w"], fr["b"], 0)
                out = (1 - alpha) * skip + alpha * out
    feat = out.reshape(out.shape[0], -1)
    e = raw["embedding"][label]
    en = e / jnp.maximum(jnp.sqrt(jnp.sum(e * e, axis=-1, keepdims=True)), 1e-12)
    proj = jnp.sum(feat * en, axis=-1)
    lin = feat @ raw["lin_w"].T + raw["lin_b"]
    return lin.reshape(-1) + proj


# ---------------------------------------------------------------------------
if __name__ == "__main__":
    FEAT = 32
    NUM_CLASSES = 10
    B = 2

    root = jax.random.PRNGKey(0)
    kp, kx1, kx2, kl = jax.random.split(root, 4)
    raw = init_params(kp, FEAT, NUM_CLASSES)
    params = prepare_params(raw)          # one-time weight re-layout (bf16, per-tap)
    label = jax.random.randint(kl, (B,), 0, NUM_CLASSES)

    # bf16 MXU inputs + bf16 stored activations vs f32 reference -> loose tolerances.
    RTOL, ATOL = 1e-1, 1e-1

    # step=2 with alpha blending (8x8 RGB): from_rgb, conv blocks, pixelnorm,
    # leaky relu, downsample, skip blend, minibatch-std, fused tail/head.
    x2 = jax.random.normal(kx1, (B, 3, 8, 8), jnp.float32)
    fwd2 = jax.jit(functools.partial(forward, feat_dim=FEAT, step=2, alpha=0.7))
    out2 = jax.block_until_ready(fwd2(params, x2, label))
    ref2 = ref_forward(raw, x2, label, 2, 0.7)
    assert out2.shape == (B,)
    assert jnp.allclose(out2, ref2, rtol=RTOL, atol=ATOL), (out2, ref2)

    # step=1 (4x4 RGB), no alpha blending.
    x1 = jax.random.normal(kx2, (B, 3, 4, 4), jnp.float32)
    fwd1 = jax.jit(functools.partial(forward, feat_dim=FEAT, step=1, alpha=-1.0))
    out1 = jax.block_until_ready(fwd1(params, x1, label))
    ref1 = ref_forward(raw, x1, label, 1, -1.0)
    assert out1.shape == (B,)
    assert jnp.allclose(out1, ref1, rtol=RTOL, atol=ATOL), (out1, ref1)

    print("KERNEL_OK")
</pallas_src>

<mosaic_0001>
module attributes {stable_mosaic.version = 11 : i64} {
  func.func @_conv_shift_kernel(%arg0: i32, %arg1: memref<200x8xbf16, #tpu.memory_space<vmem>>, %arg2: memref<1x8x128xbf16, #tpu.memory_space<vmem>>, %arg3: memref<1x128xf32, #tpu.memory_space<vmem>>, %arg4: memref<200x1xf32, #tpu.memory_space<vmem>>, %arg5: memref<200x128xbf16, #tpu.memory_space<vmem>>) attributes {dimension_semantics = [#tpu.dimension_semantics<parallel>], iteration_bounds = array<i64: 1>, scalar_prefetch = 0 : i64, scratch_operands = 0 : i64, tpu.core_type = #tpu.core_type<tc>, window_params = [{pipeline_mode = #tpu.pipeline_mode<synchronous>, transform_indices = @transform_0, window_bounds = array<i64: 200, 8>}, {pipeline_mode = #tpu.pipeline_mode<synchronous>, transform_indices = @transform_1, window_bounds = array<i64: 1, 8, 128>}, {pipeline_mode = #tpu.pipeline_mode<synchronous>, transform_indices = @transform_2, window_bounds = array<i64: 1, 128>}, {transform_indices = @transform_3, window_bounds = array<i64: 200, 1>}, {transform_indices = @transform_4, window_bounds = array<i64: 200, 128>}]} {
    %c0 = arith.constant 0 : index
    %c0_0 = arith.constant 0 : index
    %0 = vector.load %arg1[%c0, %c0_0] : memref<200x8xbf16, #tpu.memory_space<vmem>>, vector<200x8xbf16>
    %c0_1 = arith.constant 0 : index
    %c0_2 = arith.constant 0 : index
    %c0_3 = arith.constant 0 : index
    %1 = vector.load %arg2[%c0_1, %c0_2, %c0_3] : memref<1x8x128xbf16, #tpu.memory_space<vmem>>, vector<1x8x128xbf16>
    %2 = vector.shape_cast %1 : vector<1x8x128xbf16> to vector<8x128xbf16>
    %cst = arith.constant dense<0.000000e+00> : vector<200x128xf32>
    %3 = tpu.matmul %0, %2, %cst {dimension_numbers = #tpu.dot_dimension_numbers<[1], [0], [0], [1], [0, 0, 1, 1], [], []>} : vector<200x8xbf16>, vector<8x128xbf16>, vector<200x128xf32> -> vector<200x128xf32>
    %c0_4 = arith.constant 0 : index
    %c0_5 = arith.constant 0 : index
    %4 = vector.load %arg3[%c0_4, %c0_5] : memref<1x128xf32, #tpu.memory_space<vmem>>, vector<1x128xf32>
    %5 = vector.broadcast %4 : vector<1x128xf32> to vector<200x128xf32>
    %6 = arith.addf %3, %5 : vector<200x128xf32>
    %c0_6 = arith.constant 0 : index
    %c0_7 = arith.constant 0 : index
    %7 = vector.load %arg4[%c0_6, %c0_7] : memref<200x1xf32, #tpu.memory_space<vmem>>, vector<200x1xf32>
    %8 = vector.broadcast %7 : vector<200x1xf32> to vector<200x128xf32>
    %9 = arith.mulf %6, %8 : vector<200x128xf32>
    %10 = arith.truncf %9 : vector<200x128xf32> to vector<200x128xbf16>
    %c0_8 = arith.constant 0 : index
    %c0_9 = arith.constant 0 : index
    %11 = vector.load %arg5[%c0_8, %c0_9] : memref<200x128xbf16, #tpu.memory_space<vmem>>, vector<200x128xbf16>
    tpu.vector_store %arg5[%c0_8, %c0_9], %10 {strides = array<i32>} : memref<200x128xbf16, #tpu.memory_space<vmem>>, vector<200x128xbf16>,
    return
  }
  func.func @transform_0(%arg0: i32) -> (i32, i32) {
    %c0_i32 = arith.constant 0 : i32
    %c0_i32_0 = arith.constant 0 : i32
    %c0_i32_1 = arith.constant 0 : i32
    return %c0_i32, %c0_i32_0 : i32, i32
  }
  func.func @transform_1(%arg0: i32) -> (i32, i32, i32) {
    %c0_i32 = arith.constant 0 : i32
    %c0_i32_0 = arith.constant 0 : i32
    %c0_i32_1 = arith.constant 0 : i32
    %c0_i32_2 = arith.constant 0 : i32
    return %c0_i32, %c0_i32_0, %c0_i32_1 : i32, i32, i32
  }
  func.func @transform_2(%arg0: i32) -> (i32, i32) {
    %c0_i32 = arith.constant 0 : i32
    %c0_i32_0 = arith.constant 0 : i32
    %c0_i32_1 = arith.constant 0 : i32
    return %c0_i32, %c0_i32_0 : i32, i32
  }
  func.func @transform_3(%arg0: i32) -> (i32, i32) {
    %c0_i32 = arith.constant 0 : i32
    %c0_i32_0 = arith.constant 0 : i32
    return %arg0, %c0_i32 : i32, i32
  }
  func.func @transform_4(%arg0: i32) -> (i32, i32) {
    %c0_i32 = arith.constant 0 : i32
    %c0_i32_0 = arith.constant 0 : i32
    return %arg0, %c0_i32 : i32, i32
  }
}

module attributes {stable_mosaic.version = 11 : i64} {
  func.func @_conv_shift_kernel(%arg0: i32, %arg1: memref<222x128xbf16, #tpu.memory_space<vmem>>, %arg2: memref<9x128x128xbf16, #tpu.memory_space<vmem>>, %arg3: memref<1x128xf32, #tpu.memory_space<vmem>>, %arg4: memref<200x1xf32, #tpu.memory_space<vmem>>, %arg5: memref<200x128xbf16, #tpu.memory_space<vmem>>) attributes {dimension_semantics = [#tpu.dimension_semantics<parallel>], iteration_bounds = array<i64: 1>, scalar_prefetch = 0 : i64, scratch_operands = 0 : i64, tpu.core_type = #tpu.core_type<tc>, window_params = [{pipeline_mode = #tpu.pipeline_mode<synchronous>, transform_indices = @transform_0, window_bounds = array<i64: 222, 128>}, {pipeline_mode = #tpu.pipeline_mode<synchronous>, transform_indices = @transform_1, window_bounds = array<i64: 9, 128, 128>}, {pipeline_mode = #tpu.pipeline_mode<synchronous>, transform_indices = @transform_2, window_bounds = array<i64: 1, 128>}, {transform_indices = @transform_3, window_bounds = array<i64: 200, 1>}, {transform_indices = @transform_4, window_bounds = array<i64: 200, 128>}]} {
    %c0 = arith.constant 0 : index
    %c0_0 = arith.constant 0 : index
    %0 = vector.load %arg1[%c0, %c0_0] : memref<222x128xbf16, #tpu.memory_space<vmem>>, vector<200x128xbf16>
    %c0_1 = arith.constant 0 : index
    %c0_2 = arith.constant 0 : index
    %c0_3 = arith.constant 0 : index
    %1 = vector.load %arg2[%c0_1, %c0_2, %c0_3] : memref<9x128x128xbf16, #tpu.memory_space<vmem>>, vector<1x128x128xbf16>
    %2 = vector.shape_cast %1 : vector<1x128x128xbf16> to vector<128x128xbf16>
    %cst = arith.constant dense<0.000000e+00> : vector<200x128xf32>
    %3 = tpu.matmul %0, %2, %cst {dimension_numbers = #tpu.dot_dimension_numbers<[1], [0], [0], [1], [0, 0, 1, 1], [], []>} : vector<200x128xbf16>, vector<128x128xbf16>, vector<200x128xf32> -> vector<200x128xf32>
    %c1 = arith.constant 1 : index
    %c0_4 = arith.constant 0 : index
    %4 = vector.load %arg1[%c1, %c0_4] : memref<222x128xbf16, #tpu.memory_space<vmem>>, vector<200x128xbf16>
    %c1_5 = arith.constant 1 : index
    %c0_6 = arith.constant 0 : index
    %c0_7 = arith.constant 0 : index
    %5 = vector.load %arg2[%c1_5, %c0_6, %c0_7] : memref<9x128x128xbf16, #tpu.memory_space<vmem>>, vector<1x128x128xbf16>
    %6 = vector.shape_cast %5 : vector<1x128x128xbf16> to vector<128x128xbf16>
    %cst_8 = arith.constant dense<0.000000e+00> : vector<200x128xf32>
    %7 = tpu.matmul %4, %6, %cst_8 {dimension_numbers = #tpu.dot_dimension_numbers<[1], [0], [0], [1], [0, 0, 1, 1], [], []>} : vector<200x128xbf16>, vector<128x128xbf16>, vector<200x128xf32> -> vector<200x128xf32>
    %8 = arith.addf %3, %7 : vector<200x128xf32>
    %c2 = arith.constant 2 : index
    %c0_9 = arith.constant 0 : index
    %9 = vector.load %arg1[%c2, %c0_9] : memref<222x128xbf16, #tpu.memory_space<vmem>>, vector<200x128xbf16>
    %c2_10 = arith.constant 2 : index
    %c0_11 = arith.constant 0 : index
    %c0_12 = arith.constant 0 : index
    %10 = vector.load %arg2[%c2_10, %c0_11, %c0_12] : memref<9x128x128xbf16, #tpu.memory_space<vmem>>, vector<1x128x128xbf16>
    %11 = vector.shape_cast %10 : vector<1x128x128xbf16> to vector<128x128xbf16>
    %cst_13 = arith.constant dense<0.000000e+00> : vector<200x128xf32>
    %12 = tpu.matmul %9, %11, %cst_13 {dimension_numbers = #tpu.dot_dimension_numbers<[1], [0], [0], [1], [0, 0, 1, 1], [], []>} : vector<200x128xbf16>, vector<128x128xbf16>, vector<200x128xf32> -> vector<200x128xf32>
    %13 = arith.addf %8, %12 : vector<200x128xf32>
    %c10 = arith.constant 10 : index
    %c0_14 = arith.constant 0 : index
    %14 = vector.load %arg1[%c10, %c0_14] : memref<222x128xbf16, #tpu.memory_space<vmem>>, vector<200x128xbf16>
    %c3 = arith.constant 3 : index
    %c0_15 = arith.constant 0 : index
    %c0_16 = arith.constant 0 : index
    %15 = vector.load %arg2[%c3, %c0_15, %c0_16] : memref<9x128x128xbf16, #tpu.memory_space<vmem>>, vector<1x128x128xbf16>
    %16 = vector.shape_cast %15 : vector<1x128x128xbf16> to vector<128x128xbf16>
    %cst_17 = arith.constant dense<0.000000e+00> : vector<200x128xf32>
    %17 = tpu.matmul %14, %16, %cst_17 {dimension_numbers = #tpu.dot_dimension_numbers<[1], [0], [0], [1], [0, 0, 1, 1], [], []>} : vector<200x128xbf16>, vector<128x128xbf16>, vector<200x128xf32> -> vector<200x128xf32>
    %18 = arith.addf %13, %17 : vector<200x128xf32>
    %c11 = arith.constant 11 : index
    %c0_18 = arith.constant 0 : index
    %19 = vector.load %arg1[%c11, %c0_18] : memref<222x128xbf16, #tpu.memory_space<vmem>>, vector<200x128xbf16>
    %c4 = arith.constant 4 : index
    %c0_19 = arith.constant 0 : index
    %c0_20 = arith.constant 0 : index
    %20 = vector.load %arg2[%c4, %c0_19, %c0_20] : memref<9x128x128xbf16, #tpu.memory_space<vmem>>, vector<1x128x128xbf16>
    %21 = vector.shape_cast %20 : vector<1x128x128xbf16> to vector<128x128xbf16>
    %cst_21 = arith.constant dense<0.000000e+00> : vector<200x128xf32>
    %22 = tpu.matmul %19, %21, %cst_21 {dimension_numbers = #tpu.dot_dimension_numbers<[1], [0], [0], [1], [0, 0, 1, 1], [], []>} : vector<200x128xbf16>, vector<128x128xbf16>, vector<200x128xf32> -> vector<200x128xf32>
    %23 = arith.addf %18, %22 : vector<200x128xf32>
    %c12 = arith.constant 12 : index
    %c0_22 = arith.constant 0 : index
    %24 = vector.load %arg1[%c12, %c0_22] : memref<222x128xbf16, #tpu.memory_space<vmem>>, vector<200x128xbf16>
    %c5 = arith.constant 5 : index
    %c0_23 = arith.constant 0 : index
    %c0_24 = arith.constant 0 : index
    %25 = vector.load %arg2[%c5, %c0_23, %c0_24] : memref<9x128x128xbf16, #tpu.memory_space<vmem>>, vector<1x128x128xbf16>
    %26 = vector.shape_cast %25 : vector<1x128x128xbf16> to vector<128x128xbf16>
    %cst_25 = arith.constant dense<0.000000e+00> : vector<200x128xf32>
    %27 = tpu.matmul %24, %26, %cst_25 {dimension_numbers = #tpu.dot_dimension_numbers<[1], [0], [0], [1], [0, 0, 1, 1], [], []>} : vector<200x128xbf16>, vector<128x128xbf16>, vector<200x128xf32> -> vector<200x128xf32>
    %28 = arith.addf %23, %27 : vector<200x128xf32>
    %c20 = arith.constant 20 : index
    %c0_26 = arith.constant 0 : index
    %29 = vector.load %arg1[%c20, %c0_26] : memref<222x128xbf16, #tpu.memory_space<vmem>>, vector<200x128xbf16>
    %c6 = arith.constant 6 : index
    %c0_27 = arith.constant 0 : index
    %c0_28 = arith.constant 0 : index
    %30 = vector.load %arg2[%c6, %c0_27, %c0_28] : memref<9x128x128xbf16, #tpu.memory_space<vmem>>, vector<1x128x128xbf16>
    %31 = vector.shape_cast %30 : vector<1x128x128xbf16> to vector<128x128xbf16>
    %cst_29 = arith.constant dense<0.000000e+00> : vector<200x128xf32>
    %32 = tpu.matmul %29, %31, %cst_29 {dimension_numbers = #tpu.dot_dimension_numbers<[1], [0], [0], [1], [0, 0, 1, 1], [], []>} : vector<200x128xbf16>, vector<128x128xbf16>, vector<200x128xf32> -> vector<200x128xf32>
    %33 = arith.addf %28, %32 : vector<200x128xf32>
    %c21 = arith.constant 21 : index
    %c0_30 = arith.constant 0 : index
    %34 = vector.load %arg1[%c21, %c0_30] : memref<222x128xbf16, #tpu.memory_space<vmem>>, vector<200x128xbf16>
    %c7 = arith.constant 7 : index
    %c0_31 = arith.constant 0 : index
    %c0_32 = arith.constant 0 : index
    %35 = vector.load %arg2[%c7, %c0_31, %c0_32] : memref<9x128x128xbf16, #tpu.memory_space<vmem>>, vector<1x128x128xbf16>
    %36 = vector.shape_cast %35 : vector<1x128x128xbf16> to vector<128x128xbf16>
    %cst_33 = arith.constant dense<0.000000e+00> : vector<200x128xf32>
    %37 = tpu.matmul %34, %36, %cst_33 {dimension_numbers = #tpu.dot_dimension_numbers<[1], [0], [0], [1], [0, 0, 1, 1], [], []>} : vector<200x128xbf16>, vector<128x128xbf16>, vector<200x128xf32> -> vector<200x128xf32>
    %38 = arith.addf %33, %37 : vector<200x128xf32>
    %c22 = arith.constant 22 : index
    %c0_34 = arith.constant 0 : index
    %39 = vector.load %arg1[%c22, %c0_34] : memref<222x128xbf16, #tpu.memory_space<vmem>>, vector<200x128xbf16>
    %c8 = arith.constant 8 : index
    %c0_35 = arith.constant 0 : index
    %c0_36 = arith.constant 0 : index
    %40 = vector.load %arg2[%c8, %c0_35, %c0_36] : memref<9x128x128xbf16, #tpu.memory_space<vmem>>, vector<1x128x128xbf16>
    %41 = vector.shape_cast %40 : vector<1x128x128xbf16> to vector<128x128xbf16>
    %cst_37 = arith.constant dense<0.000000e+00> : vector<200x128xf32>
    %42 = tpu.matmul %39, %41, %cst_37 {dimension_numbers = #tpu.dot_dimension_numbers<[1], [0], [0], [1], [0, 0, 1, 1], [], []>} : vector<200x128xbf16>, vector<128x128xbf16>, vector<200x128xf32> -> vector<200x128xf32>
    %43 = arith.addf %38, %42 : vector<200x128xf32>
    %c0_38 = arith.constant 0 : index
    %c0_39 = arith.constant 0 : index
    %44 = vector.load %arg3[%c0_38, %c0_39] : memref<1x128xf32, #tpu.memory_space<vmem>>, vector<1x128xf32>
    %45 = vector.broadcast %44 : vector<1x128xf32> to vector<200x128xf32>
    %46 = arith.addf %43, %45 : vector<200x128xf32>
    %c0_40 = arith.constant 0 : index
    %c0_41 = arith.constant 0 : index
    %47 = vector.load %arg4[%c0_40, %c0_41] : memref<200x1xf32, #tpu.memory_space<vmem>>, vector<200x1xf32>
    %48 = vector.broadcast %47 : vector<200x1xf32> to vector<200x128xf32>
    %49 = arith.mulf %46, %48 : vector<200x128xf32>
    %50 = arith.mulf %49, %49 : vector<200x128xf32>
    %cst_42 = arith.constant dense<0.000000e+00> : vector<200xf32>
    %51 = vector.multi_reduction <add>, %50, %cst_42 [1] : vector<200x128xf32> to vector<200xf32>
    %52 = vector.shape_cast %51 : vector<200xf32> to vector<200x1xf32>
    %cst_43 = arith.constant 3.125000e-02 : f32
    %53 = vector.broadcast %cst_43 : f32 to vector<200x1xf32>
    %54 = arith.mulf %52, %53 : vector<200x1xf32>
    %cst_44 = arith.constant 9.99999993E-9 : f32
    %55 = vector.broadcast %cst_44 : f32 to vector<200x1xf32>
    %56 = arith.addf %54, %55 : vector<200x1xf32>
    %57 = math.rsqrt %56 : vector<200x1xf32>
    %58 = vector.broadcast %57 : vector<200x1xf32> to vector<200x128xf32>
    %59 = arith.mulf %49, %58 : vector<200x128xf32>
    %cst_45 = arith.constant 0.000000e+00 : f32
    %60 = vector.broadcast %cst_45 : f32 to vector<200x128xf32>
    %61 = arith.cmpf oge, %59, %60 : vector<200x128xf32>
    %cst_46 = arith.constant 2.000000e-01 : f32
    %62 = vector.broadcast %cst_46 : f32 to vector<200x128xf32>
    %63 = arith.mulf %62, %59 : vector<200x128xf32>
    %64 = arith.select %61, %59, %63 : vector<200x128xi1>, vector<200x128xf32>
    %65 = arith.truncf %64 : vector<200x128xf32> to vector<200x128xbf16>
    %c0_47 = arith.constant 0 : index
    %c0_48 = arith.constant 0 : index
    %66 = vector.load %arg5[%c0_47, %c0_48] : memref<200x128xbf16, #tpu.memory_space<vmem>>, vector<200x128xbf16>
    tpu.vector_store %arg5[%c0_47, %c0_48], %65 {strides = array<i32>} : memref<200x128xbf16, #tpu.memory_space<vmem>>, vector<200x128xbf16>,
    return
  }
  func.func @transform_0(%arg0: i32) -> (i32, i32) {
    %c0_i32 = arith.constant 0 : i32
    %c0_i32_0 = arith.constant 0 : i32
    %c0_i32_1 = arith.constant 0 : i32
    return %c0_i32, %c0_i32_0 : i32, i32
  }
  func.func @transform_1(%arg0: i32) -> (i32, i32, i32) {
    %c0_i32 = arith.constant 0 : i32
    %c0_i32_0 = arith.constant 0 : i32
    %c0_i32_1 = arith.constant 0 : i32
    %c0_i32_2 = arith.constant 0 : i32
    return %c0_i32, %c0_i32_0, %c0_i32_1 : i32, i32, i32
  }
  func.func @transform_2(%arg0: i32) -> (i32, i32) {
    %c0_i32 = arith.constant 0 : i32
    %c0_i32_0 = arith.constant 0 : i32
    %c0_i32_1 = arith.constant 0 : i32
    return %c0_i32, %c0_i32_0 : i32, i32
  }
  func.func @transform_3(%arg0: i32) -> (i32, i32) {
    %c0_i32 = arith.constant 0 : i32
    %c0_i32_0 = arith.constant 0 : i32
    return %arg0, %c0_i32 : i32, i32
  }
  func.func @transform_4(%arg0: i32) -> (i32, i32) {
    %c0_i32 = arith.constant 0 : i32
    %c0_i32_0 = arith.constant 0 : i32
    return %arg0, %c0_i32 : i32, i32
  }
}

module attributes {stable_mosaic.version = 11 : i64} {
  func.func @_conv_shift_kernel(%arg0: i32, %arg1: memref<72x8xbf16, #tpu.memory_space<vmem>>, %arg2: memref<1x8x128xbf16, #tpu.memory_space<vmem>>, %arg3: memref<1x128xf32, #tpu.memory_space<vmem>>, %arg4: memref<72x1xf32, #tpu.memory_space<vmem>>, %arg5: memref<72x128xbf16, #tpu.memory_space<vmem>>) attributes {dimension_semantics = [#tpu.dimension_semantics<parallel>], iteration_bounds = array<i64: 1>, scalar_prefetch = 0 : i64, scratch_operands = 0 : i64, tpu.core_type = #tpu.core_type<tc>, window_params = [{pipeline_mode = #tpu.pipeline_mode<synchronous>, transform_indices = @transform_0, window_bounds = array<i64: 72, 8>}, {pipeline_mode = #tpu.pipeline_mode<synchronous>, transform_indices = @transform_1, window_bounds = array<i64: 1, 8, 128>}, {pipeline_mode = #tpu.pipeline_mode<synchronous>, transform_indices = @transform_2, window_bounds = array<i64: 1, 128>}, {transform_indices = @transform_3, window_bounds = array<i64: 72, 1>}, {transform_indices = @transform_4, window_bounds = array<i64: 72, 128>}]} {
    %c0 = arith.constant 0 : index
    %c0_0 = arith.constant 0 : index
    %0 = vector.load %arg1[%c0, %c0_0] : memref<72x8xbf16, #tpu.memory_space<vmem>>, vector<72x8xbf16>
    %c0_1 = arith.constant 0 : index
    %c0_2 = arith.constant 0 : index
    %c0_3 = arith.constant 0 : index
    %1 = vector.load %arg2[%c0_1, %c0_2, %c0_3] : memref<1x8x128xbf16, #tpu.memory_space<vmem>>, vector<1x8x128xbf16>
    %2 = vector.shape_cast %1 : vector<1x8x128xbf16> to vector<8x128xbf16>
    %cst = arith.constant dense<0.000000e+00> : vector<72x128xf32>
    %3 = tpu.matmul %0, %2, %cst {dimension_numbers = #tpu.dot_dimension_numbers<[1], [0], [0], [1], [0, 0, 1, 1], [], []>} : vector<72x8xbf16>, vector<8x128xbf16>, vector<72x128xf32> -> vector<72x128xf32>
    %c0_4 = arith.constant 0 : index
    %c0_5 = arith.constant 0 : index
    %4 = vector.load %arg3[%c0_4, %c0_5] : memref<1x128xf32, #tpu.memory_space<vmem>>, vector<1x128xf32>
    %5 = vector.broadcast %4 : vector<1x128xf32> to vector<72x128xf32>
    %6 = arith.addf %3, %5 : vector<72x128xf32>
    %c0_6 = arith.constant 0 : index
    %c0_7 = arith.constant 0 : index
    %7 = vector.load %arg4[%c0_6, %c0_7] : memref<72x1xf32, #tpu.memory_space<vmem>>, vector<72x1xf32>
    %8 = vector.broadcast %7 : vector<72x1xf32> to vector<72x128xf32>
    %9 = arith.mulf %6, %8 : vector<72x128xf32>
    %10 = arith.truncf %9 : vector<72x128xf32> to vector<72x128xbf16>
    %c0_8 = arith.constant 0 : index
    %c0_9 = arith.constant 0 : index
    %11 = vector.load %arg5[%c0_8, %c0_9] : memref<72x128xbf16, #tpu.memory_space<vmem>>, vector<72x128xbf16>
    tpu.vector_store %arg5[%c0_8, %c0_9], %10 {strides = array<i32>} : memref<72x128xbf16, #tpu.memory_space<vmem>>, vector<72x128xbf16>,
    return
  }
  func.func @transform_0(%arg0: i32) -> (i32, i32) {
    %c0_i32 = arith.constant 0 : i32
    %c0_i32_0 = arith.constant 0 : i32
    %c0_i32_1 = arith.constant 0 : i32
    return %c0_i32, %c0_i32_0 : i32, i32
  }
  func.func @transform_1(%arg0: i32) -> (i32, i32, i32) {
    %c0_i32 = arith.constant 0 : i32
    %c0_i32_0 = arith.constant 0 : i32
    %c0_i32_1 = arith.constant 0 : i32
    %c0_i32_2 = arith.constant 0 : i32
    return %c0_i32, %c0_i32_0, %c0_i32_1 : i32, i32, i32
  }
  func.func @transform_2(%arg0: i32) -> (i32, i32) {
    %c0_i32 = arith.constant 0 : i32
    %c0_i32_0 = arith.constant 0 : i32
    %c0_i32_1 = arith.constant 0 : i32
    return %c0_i32, %c0_i32_0 : i32, i32
  }
  func.func @transform_3(%arg0: i32) -> (i32, i32) {
    %c0_i32 = arith.constant 0 : i32
    %c0_i32_0 = arith.constant 0 : i32
    return %arg0, %c0_i32 : i32, i32
  }
  func.func @transform_4(%arg0: i32) -> (i32, i32) {
    %c0_i32 = arith.constant 0 : i32
    %c0_i32_0 = arith.constant 0 : i32
    return %arg0, %c0_i32 : i32, i32
  }
}

module attributes {stable_mosaic.version = 11 : i64} {
  func.func @_mbstd_kernel(%arg0: i32, %arg1: memref<2x512xf32, #tpu.memory_space<vmem>>, %arg2: memref<1x1xf32, #tpu.memory_space<vmem>>) attributes {dimension_semantics = [#tpu.dimension_semantics<arbitrary>], iteration_bounds = array<i64: 1>, scalar_prefetch = 0 : i64, scratch_operands = 0 : i64, tpu.core_type = #tpu.core_type<tc>, window_params = [{pipeline_mode = #tpu.pipeline_mode<synchronous>, transform_indices = @transform_0, window_bounds = array<i64: 2, 512>}, {pipeline_mode = #tpu.pipeline_mode<synchronous>, transform_indices = @transform_1, window_bounds = array<i64: 1, 1>}]} {
    %c0 = arith.constant 0 : index
    %c0_0 = arith.constant 0 : index
    %0 = vector.load %arg1[%c0, %c0_0] : memref<2x512xf32, #tpu.memory_space<vmem>>, vector<2x512xf32>
    %cst = arith.constant dense<0.000000e+00> : vector<512xf32>
    %1 = vector.multi_reduction <add>, %0, %cst [0] : vector<2x512xf32> to vector<512xf32>
    %2 = vector.shape_cast %1 : vector<512xf32> to vector<1x512xf32>
    %cst_1 = arith.constant 2.000000e+00 : f32
    %3 = vector.broadcast %cst_1 : f32 to vector<1x512xf32>
    %4 = arith.divf %2, %3 : vector<1x512xf32>
    %5 = vector.broadcast %4 : vector<1x512xf32> to vector<2x512xf32>
    %6 = arith.subf %0, %5 : vector<2x512xf32>
    %7 = arith.mulf %6, %6 : vector<2x512xf32>
    %cst_2 = arith.constant dense<0.000000e+00> : vector<512xf32>
    %8 = vector.multi_reduction <add>, %7, %cst_2 [0] : vector<2x512xf32> to vector<512xf32>
    %9 = vector.shape_cast %8 : vector<512xf32> to vector<1x512xf32>
    %cst_3 = arith.constant 2.000000e+00 : f32
    %10 = vector.broadcast %cst_3 : f32 to vector<1x512xf32>
    %11 = arith.divf %9, %10 : vector<1x512xf32>
    %cst_4 = arith.constant 9.99999993E-9 : f32
    %12 = vector.broadcast %cst_4 : f32 to vector<1x512xf32>
    %13 = arith.addf %11, %12 : vector<1x512xf32>
    %14 = math.sqrt %13 : vector<1x512xf32>
    %cst_5 = arith.constant dense<0.000000e+00> : vector<1xf32>
    %15 = vector.multi_reduction <add>, %14, %cst_5 [1] : vector<1x512xf32> to vector<1xf32>
    %16 = vector.shape_cast %15 : vector<1xf32> to vector<1x1xf32>
    %cst_6 = arith.constant 5.120000e+02 : f32
    %17 = vector.broadcast %cst_6 : f32 to vector<1x1xf32>
    %18 = arith.divf %16, %17 : vector<1x1xf32>
    %c0_7 = arith.constant 0 : index
    %c0_8 = arith.constant 0 : index
    %19 = vector.load %arg2[%c0_7, %c0_8] : memref<1x1xf32, #tpu.memory_space<vmem>>, vector<1x1xf32>
    tpu.vector_store %arg2[%c0_7, %c0_8], %18 {strides = array<i32>} : memref<1x1xf32, #tpu.memory_space<vmem>>, vector<1x1xf32>,
    return
  }
  func.func @transform_0(%arg0: i32) -> (i32, i32) {
    %c0_i32 = arith.constant 0 : i32
    %c0_i32_0 = arith.constant 0 : i32
    %c0_i32_1 = arith.constant 0 : i32
    return %c0_i32, %c0_i32_0 : i32, i32
  }
  func.func @transform_1(%arg0: i32) -> (i32, i32) {
    %c0_i32 = arith.constant 0 : i32
    %c0_i32_0 = arith.constant 0 : i32
    %c0_i32_1 = arith.constant 0 : i32
    return %c0_i32, %c0_i32_0 : i32, i32
  }
}

module attributes {stable_mosaic.version = 11 : i64} {
  func.func @_conv_shift_kernel(%arg0: i32, %arg1: memref<86x128xbf16, #tpu.memory_space<vmem>>, %arg2: memref<9x128x128xbf16, #tpu.memory_space<vmem>>, %arg3: memref<1x128xf32, #tpu.memory_space<vmem>>, %arg4: memref<72x1xf32, #tpu.memory_space<vmem>>, %arg5: memref<72x128xbf16, #tpu.memory_space<vmem>>) attributes {dimension_semantics = [#tpu.dimension_semantics<parallel>], iteration_bounds = array<i64: 1>, scalar_prefetch = 0 : i64, scratch_operands = 0 : i64, tpu.core_type = #tpu.core_type<tc>, window_params = [{pipeline_mode = #tpu.pipeline_mode<synchronous>, transform_indices = @transform_0, window_bounds = array<i64: 86, 128>}, {pipeline_mode = #tpu.pipeline_mode<synchronous>, transform_indices = @transform_1, window_bounds = array<i64: 9, 128, 128>}, {pipeline_mode = #tpu.pipeline_mode<synchronous>, transform_indices = @transform_2, window_bounds = array<i64: 1, 128>}, {transform_indices = @transform_3, window_bounds = array<i64: 72, 1>}, {transform_indices = @transform_4, window_bounds = array<i64: 72, 128>}]} {
    %c0 = arith.constant 0 : index
    %c0_0 = arith.constant 0 : index
    %0 = vector.load %arg1[%c0, %c0_0] : memref<86x128xbf16, #tpu.memory_space<vmem>>, vector<72x128xbf16>
    %c0_1 = arith.constant 0 : index
    %c0_2 = arith.constant 0 : index
    %c0_3 = arith.constant 0 : index
    %1 = vector.load %arg2[%c0_1, %c0_2, %c0_3] : memref<9x128x128xbf16, #tpu.memory_space<vmem>>, vector<1x128x128xbf16>
    %2 = vector.shape_cast %1 : vector<1x128x128xbf16> to vector<128x128xbf16>
    %cst = arith.constant dense<0.000000e+00> : vector<72x128xf32>
    %3 = tpu.matmul %0, %2, %cst {dimension_numbers = #tpu.dot_dimension_numbers<[1], [0], [0], [1], [0, 0, 1, 1], [], []>} : vector<72x128xbf16>, vector<128x128xbf16>, vector<72x128xf32> -> vector<72x128xf32>
    %c1 = arith.constant 1 : index
    %c0_4 = arith.constant 0 : index
    %4 = vector.load %arg1[%c1, %c0_4] : memref<86x128xbf16, #tpu.memory_space<vmem>>, vector<72x128xbf16>
    %c1_5 = arith.constant 1 : index
    %c0_6 = arith.constant 0 : index
    %c0_7 = arith.constant 0 : index
    %5 = vector.load %arg2[%c1_5, %c0_6, %c0_7] : memref<9x128x128xbf16, #tpu.memory_space<vmem>>, vector<1x128x128xbf16>
    %6 = vector.shape_cast %5 : vector<1x128x128xbf16> to vector<128x128xbf16>
    %cst_8 = arith.constant dense<0.000000e+00> : vector<72x128xf32>
    %7 = tpu.matmul %4, %6, %cst_8 {dimension_numbers = #tpu.dot_dimension_numbers<[1], [0], [0], [1], [0, 0, 1, 1], [], []>} : vector<72x128xbf16>, vector<128x128xbf16>, vector<72x128xf32> -> vector<72x128xf32>
    %8 = arith.addf %3, %7 : vector<72x128xf32>
    %c2 = arith.constant 2 : index
    %c0_9 = arith.constant 0 : index
    %9 = vector.load %arg1[%c2, %c0_9] : memref<86x128xbf16, #tpu.memory_space<vmem>>, vector<72x128xbf16>
    %c2_10 = arith.constant 2 : index
    %c0_11 = arith.constant 0 : index
    %c0_12 = arith.constant 0 : index
    %10 = vector.load %arg2[%c2_10, %c0_11, %c0_12] : memref<9x128x128xbf16, #tpu.memory_space<vmem>>, vector<1x128x128xbf16>
    %11 = vector.shape_cast %10 : vector<1x128x128xbf16> to vector<128x128xbf16>
    %cst_13 = arith.constant dense<0.000000e+00> : vector<72x128xf32>
    %12 = tpu.matmul %9, %11, %cst_13 {dimension_numbers = #tpu.dot_dimension_numbers<[1], [0], [0], [1], [0, 0, 1, 1], [], []>} : vector<72x128xbf16>, vector<128x128xbf16>, vector<72x128xf32> -> vector<72x128xf32>
    %13 = arith.addf %8, %12 : vector<72x128xf32>
    %c6 = arith.constant 6 : index
    %c0_14 = arith.constant 0 : index
    %14 = vector.load %arg1[%c6, %c0_14] : memref<86x128xbf16, #tpu.memory_space<vmem>>, vector<72x128xbf16>
    %c3 = arith.constant 3 : index
    %c0_15 = arith.constant 0 : index
    %c0_16 = arith.constant 0 : index
    %15 = vector.load %arg2[%c3, %c0_15, %c0_16] : memref<9x128x128xbf16, #tpu.memory_space<vmem>>, vector<1x128x128xbf16>
    %16 = vector.shape_cast %15 : vector<1x128x128xbf16> to vector<128x128xbf16>
    %cst_17 = arith.constant dense<0.000000e+00> : vector<72x128xf32>
    %17 = tpu.matmul %14, %16, %cst_17 {dimension_numbers = #tpu.dot_dimension_numbers<[1], [0], [0], [1], [0, 0, 1, 1], [], []>} : vector<72x128xbf16>, vector<128x128xbf16>, vector<72x128xf32> -> vector<72x128xf32>
    %18 = arith.addf %13, %17 : vector<72x128xf32>
    %c7 = arith.constant 7 : index
    %c0_18 = arith.constant 0 : index
    %19 = vector.load %arg1[%c7, %c0_18] : memref<86x128xbf16, #tpu.memory_space<vmem>>, vector<72x128xbf16>
    %c4 = arith.constant 4 : index
    %c0_19 = arith.constant 0 : index
    %c0_20 = arith.constant 0 : index
    %20 = vector.load %arg2[%c4, %c0_19, %c0_20] : memref<9x128x128xbf16, #tpu.memory_space<vmem>>, vector<1x128x128xbf16>
    %21 = vector.shape_cast %20 : vector<1x128x128xbf16> to vector<128x128xbf16>
    %cst_21 = arith.constant dense<0.000000e+00> : vector<72x128xf32>
    %22 = tpu.matmul %19, %21, %cst_21 {dimension_numbers = #tpu.dot_dimension_numbers<[1], [0], [0], [1], [0, 0, 1, 1], [], []>} : vector<72x128xbf16>, vector<128x128xbf16>, vector<72x128xf32> -> vector<72x128xf32>
    %23 = arith.addf %18, %22 : vector<72x128xf32>
    %c8 = arith.constant 8 : index
    %c0_22 = arith.constant 0 : index
    %24 = vector.load %arg1[%c8, %c0_22] : memref<86x128xbf16, #tpu.memory_space<vmem>>, vector<72x128xbf16>
    %c5 = arith.constant 5 : index
    %c0_23 = arith.constant 0 : index
    %c0_24 = arith.constant 0 : index
    %25 = vector.load %arg2[%c5, %c0_23, %c0_24] : memref<9x128x128xbf16, #tpu.memory_space<vmem>>, vector<1x128x128xbf16>
    %26 = vector.shape_cast %25 : vector<1x128x128xbf16> to vector<128x128xbf16>
    %cst_25 = arith.constant dense<0.000000e+00> : vector<72x128xf32>
    %27 = tpu.matmul %24, %26, %cst_25 {dimension_numbers = #tpu.dot_dimension_numbers<[1], [0], [0], [1], [0, 0, 1, 1], [], []>} : vector<72x128xbf16>, vector<128x128xbf16>, vector<72x128xf32> -> vector<72x128xf32>
    %28 = arith.addf %23, %27 : vector<72x128xf32>
    %c12 = arith.constant 12 : index
    %c0_26 = arith.constant 0 : index
    %29 = vector.load %arg1[%c12, %c0_26] : memref<86x128xbf16, #tpu.memory_space<vmem>>, vector<72x128xbf16>
    %c6_27 = arith.constant 6 : index
    %c0_28 = arith.constant 0 : index
    %c0_29 = arith.constant 0 : index
    %30 = vector.load %arg2[%c6_27, %c0_28, %c0_29] : memref<9x128x128xbf16, #tpu.memory_space<vmem>>, vector<1x128x128xbf16>
    %31 = vector.shape_cast %30 : vector<1x128x128xbf16> to vector<128x128xbf16>
    %cst_30 = arith.constant dense<0.000000e+00> : vector<72x128xf32>
    %32 = tpu.matmul %29, %31, %cst_30 {dimension_numbers = #tpu.dot_dimension_numbers<[1], [0], [0], [1], [0, 0, 1, 1], [], []>} : vector<72x128xbf16>, vector<128x128xbf16>, vector<72x128xf32> -> vector<72x128xf32>
    %33 = arith.addf %28, %32 : vector<72x128xf32>
    %c13 = arith.constant 13 : index
    %c0_31 = arith.constant 0 : index
    %34 = vector.load %arg1[%c13, %c0_31] : memref<86x128xbf16, #tpu.memory_space<vmem>>, vector<72x128xbf16>
    %c7_32 = arith.constant 7 : index
    %c0_33 = arith.constant 0 : index
    %c0_34 = arith.constant 0 : index
    %35 = vector.load %arg2[%c7_32, %c0_33, %c0_34] : memref<9x128x128xbf16, #tpu.memory_space<vmem>>, vector<1x128x128xbf16>
    %36 = vector.shape_cast %35 : vector<1x128x128xbf16> to vector<128x128xbf16>
    %cst_35 = arith.constant dense<0.000000e+00> : vector<72x128xf32>
    %37 = tpu.matmul %34, %36, %cst_35 {dimension_numbers = #tpu.dot_dimension_numbers<[1], [0], [0], [1], [0, 0, 1, 1], [], []>} : vector<72x128xbf16>, vector<128x128xbf16>, vector<72x128xf32> -> vector<72x128xf32>
    %38 = arith.addf %33, %37 : vector<72x128xf32>
    %c14 = arith.constant 14 : index
    %c0_36 = arith.constant 0 : index
    %39 = vector.load %arg1[%c14, %c0_36] : memref<86x128xbf16, #tpu.memory_space<vmem>>, vector<72x128xbf16>
    %c8_37 = arith.constant 8 : index
    %c0_38 = arith.constant 0 : index
    %c0_39 = arith.constant 0 : index
    %40 = vector.load %arg2[%c8_37, %c0_38, %c0_39] : memref<9x128x128xbf16, #tpu.memory_space<vmem>>, vector<1x128x128xbf16>
    %41 = vector.shape_cast %40 : vector<1x128x128xbf16> to vector<128x128xbf16>
    %cst_40 = arith.constant dense<0.000000e+00> : vector<72x128xf32>
    %42 = tpu.matmul %39, %41, %cst_40 {dimension_numbers = #tpu.dot_dimension_numbers<[1], [0], [0], [1], [0, 0, 1, 1], [], []>} : vector<72x128xbf16>, vector<128x128xbf16>, vector<72x128xf32> -> vector<72x128xf32>
    %43 = arith.addf %38, %42 : vector<72x128xf32>
    %c0_41 = arith.constant 0 : index
    %c0_42 = arith.constant 0 : index
    %44 = vector.load %arg3[%c0_41, %c0_42] : memref<1x128xf32, #tpu.memory_space<vmem>>, vector<1x128xf32>
    %45 = vector.broadcast %44 : vector<1x128xf32> to vector<72x128xf32>
    %46 = arith.addf %43, %45 : vector<72x128xf32>
    %c0_43 = arith.constant 0 : index
    %c0_44 = arith.constant 0 : index
    %47 = vector.load %arg4[%c0_43, %c0_44] : memref<72x1xf32, #tpu.memory_space<vmem>>, vector<72x1xf32>
    %48 = vector.broadcast %47 : vector<72x1xf32> to vector<72x128xf32>
    %49 = arith.mulf %46, %48 : vector<72x128xf32>
    %50 = arith.mulf %49, %49 : vector<72x128xf32>
    %cst_45 = arith.constant dense<0.000000e+00> : vector<72xf32>
    %51 = vector.multi_reduction <add>, %50, %cst_45 [1] : vector<72x128xf32> to vector<72xf32>
    %52 = vector.shape_cast %51 : vector<72xf32> to vector<72x1xf32>
    %cst_46 = arith.constant 3.125000e-02 : f32
    %53 = vector.broadcast %cst_46 : f32 to vector<72x1xf32>
    %54 = arith.mulf %52, %53 : vector<72x1xf32>
    %cst_47 = arith.constant 9.99999993E-9 : f32
    %55 = vector.broadcast %cst_47 : f32 to vector<72x1xf32>
    %56 = arith.addf %54, %55 : vector<72x1xf32>
    %57 = math.rsqrt %56 : vector<72x1xf32>
    %58 = vector.broadcast %57 : vector<72x1xf32> to vector<72x128xf32>
    %59 = arith.mulf %49, %58 : vector<72x128xf32>
    %cst_48 = arith.constant 0.000000e+00 : f32
    %60 = vector.broadcast %cst_48 : f32 to vector<72x128xf32>
    %61 = arith.cmpf oge, %59, %60 : vector<72x128xf32>
    %cst_49 = arith.constant 2.000000e-01 : f32
    %62 = vector.broadcast %cst_49 : f32 to vector<72x128xf32>
    %63 = arith.mulf %62, %59 : vector<72x128xf32>
    %64 = arith.select %61, %59, %63 : vector<72x128xi1>, vector<72x128xf32>
    %65 = arith.truncf %64 : vector<72x128xf32> to vector<72x128xbf16>
    %c0_50 = arith.constant 0 : index
    %c0_51 = arith.constant 0 : index
    %66 = vector.load %arg5[%c0_50, %c0_51] : memref<72x128xbf16, #tpu.memory_space<vmem>>, vector<72x128xbf16>
    tpu.vector_store %arg5[%c0_50, %c0_51], %65 {strides = array<i32>} : memref<72x128xbf16, #tpu.memory_space<vmem>>, vector<72x128xbf16>,
    return
  }
  func.func @transform_0(%arg0: i32) -> (i32, i32) {
    %c0_i32 = arith.constant 0 : i32
    %c0_i32_0 = arith.constant 0 : i32
    %c0_i32_1 = arith.constant 0 : i32
    return %c0_i32, %c0_i32_0 : i32, i32
  }
  func.func @transform_1(%arg0: i32) -> (i32, i32, i32) {
    %c0_i32 = arith.constant 0 : i32
    %c0_i32_0 = arith.constant 0 : i32
    %c0_i32_1 = arith.constant 0 : i32
    %c0_i32_2 = arith.constant 0 : i32
    return %c0_i32, %c0_i32_0, %c0_i32_1 : i32, i32, i32
  }
  func.func @transform_2(%arg0: i32) -> (i32, i32) {
    %c0_i32 = arith.constant 0 : i32
    %c0_i32_0 = arith.constant 0 : i32
    %c0_i32_1 = arith.constant 0 : i32
    return %c0_i32, %c0_i32_0 : i32, i32
  }
  func.func @transform_3(%arg0: i32) -> (i32, i32) {
    %c0_i32 = arith.constant 0 : i32
    %c0_i32_0 = arith.constant 0 : i32
    return %arg0, %c0_i32 : i32, i32
  }
  func.func @transform_4(%arg0: i32) -> (i32, i32) {
    %c0_i32 = arith.constant 0 : i32
    %c0_i32_0 = arith.constant 0 : i32
    return %arg0, %c0_i32 : i32, i32
  }
}

module attributes {stable_mosaic.version = 11 : i64} {
  func.func @_final_head_kernel(%arg0: i32, %arg1: memref<2x2048xbf16, #tpu.memory_space<vmem>>, %arg2: memref<2048x128xbf16, #tpu.memory_space<vmem>>, %arg3: memref<1x128xf32, #tpu.memory_space<vmem>>, %arg4: memref<2x128xf32, #tpu.memory_space<vmem>>, %arg5: memref<1x128xf32, #tpu.memory_space<vmem>>, %arg6: memref<1x1xf32, #tpu.memory_space<vmem>>, %arg7: memref<2x1xf32, #tpu.memory_space<vmem>>) attributes {dimension_semantics = [#tpu.dimension_semantics<arbitrary>], iteration_bounds = array<i64: 1>, scalar_prefetch = 0 : i64, scratch_operands = 0 : i64, tpu.core_type = #tpu.core_type<tc>, window_params = [{pipeline_mode = #tpu.pipeline_mode<synchronous>, transform_indices = @transform_0, window_bounds = array<i64: 2, 2048>}, {pipeline_mode = #tpu.pipeline_mode<synchronous>, transform_indices = @transform_1, window_bounds = array<i64: 2048, 128>}, {pipeline_mode = #tpu.pipeline_mode<synchronous>, transform_indices = @transform_2, window_bounds = array<i64: 1, 128>}, {pipeline_mode = #tpu.pipeline_mode<synchronous>, transform_indices = @transform_3, window_bounds = array<i64: 2, 128>}, {pipeline_mode = #tpu.pipeline_mode<synchronous>, transform_indices = @transform_4, window_bounds = array<i64: 1, 128>}, {pipeline_mode = #tpu.pipeline_mode<synchronous>, transform_indices = @transform_5, window_bounds = array<i64: 1, 1>}, {pipeline_mode = #tpu.pipeline_mode<synchronous>, transform_indices = @transform_6, window_bounds = array<i64: 2, 1>}]} {
    %c0 = arith.constant 0 : index
    %c0_0 = arith.constant 0 : index
    %0 = vector.load %arg1[%c0, %c0_0] : memref<2x2048xbf16, #tpu.memory_space<vmem>>, vector<2x2048xbf16>
    %c0_1 = arith.constant 0 : index
    %c0_2 = arith.constant 0 : index
    %1 = vector.load %arg2[%c0_1, %c0_2] : memref<2048x128xbf16, #tpu.memory_space<vmem>>, vector<2048x128xbf16>
    %cst = arith.constant dense<0.000000e+00> : vector<2x128xf32>
    %2 = tpu.matmul %0, %1, %cst {dimension_numbers = #tpu.dot_dimension_numbers<[1], [0], [0], [1], [0, 0, 1, 1], [], []>} : vector<2x2048xbf16>, vector<2048x128xbf16>, vector<2x128xf32> -> vector<2x128xf32>
    %c0_3 = arith.constant 0 : index
    %c0_4 = arith.constant 0 : index
    %3 = vector.load %arg3[%c0_3, %c0_4] : memref<1x128xf32, #tpu.memory_space<vmem>>, vector<1x128xf32>
    %4 = vector.broadcast %3 : vector<1x128xf32> to vector<2x128xf32>
    %5 = arith.addf %2, %4 : vector<2x128xf32>
    %6 = arith.mulf %5, %5 : vector<2x128xf32>
    %cst_5 = arith.constant dense<0.000000e+00> : vector<2xf32>
    %7 = vector.multi_reduction <add>, %6, %cst_5 [1] : vector<2x128xf32> to vector<2xf32>
    %8 = vector.shape_cast %7 : vector<2xf32> to vector<2x1xf32>
    %cst_6 = arith.constant 3.125000e-02 : f32
    %9 = vector.broadcast %cst_6 : f32 to vector<2x1xf32>
    %10 = arith.mulf %8, %9 : vector<2x1xf32>
    %cst_7 = arith.constant 9.99999993E-9 : f32
    %11 = vector.broadcast %cst_7 : f32 to vector<2x1xf32>
    %12 = arith.addf %10, %11 : vector<2x1xf32>
    %13 = math.rsqrt %12 : vector<2x1xf32>
    %14 = vector.broadcast %13 : vector<2x1xf32> to vector<2x128xf32>
    %15 = arith.mulf %5, %14 : vector<2x128xf32>
    %cst_8 = arith.constant 0.000000e+00 : f32
    %16 = vector.broadcast %cst_8 : f32 to vector<2x128xf32>
    %17 = arith.cmpf oge, %15, %16 : vector<2x128xf32>
    %cst_9 = arith.constant 2.000000e-01 : f32
    %18 = vector.broadcast %cst_9 : f32 to vector<2x128xf32>
    %19 = arith.mulf %18, %15 : vector<2x128xf32>
    %20 = arith.select %17, %15, %19 : vector<2x128xi1>, vector<2x128xf32>
    %c0_10 = arith.constant 0 : index
    %c0_11 = arith.constant 0 : index
    %21 = vector.load %arg4[%c0_10, %c0_11] : memref<2x128xf32, #tpu.memory_space<vmem>>, vector<2x128xf32>
    %22 = arith.mulf %21, %21 : vector<2x128xf32>
    %cst_12 = arith.constant dense<0.000000e+00> : vector<2xf32>
    %23 = vector.multi_reduction <add>, %22, %cst_12 [1] : vector<2x128xf32> to vector<2xf32>
    %24 = vector.shape_cast %23 : vector<2xf32> to vector<2x1xf32>
    %cst_13 = arith.constant 1.000000e-24 : f32
    %25 = vector.broadcast %cst_13 : f32 to vector<2x1xf32>
    %26 = arith.maximumf %24, %25 : vector<2x1xf32>
    %27 = math.rsqrt %26 : vector<2x1xf32>
    %28 = vector.broadcast %27 : vector<2x1xf32> to vector<2x128xf32>
    %29 = arith.mulf %21, %28 : vector<2x128xf32>
    %c0_14 = arith.constant 0 : index
    %c0_15 = arith.constant 0 : index
    %30 = vector.load %arg5[%c0_14, %c0_15] : memref<1x128xf32, #tpu.memory_space<vmem>>, vector<1x128xf32>
    %31 = vector.broadcast %30 : vector<1x128xf32> to vector<2x128xf32>
    %32 = arith.addf %29, %31 : vector<2x128xf32>
    %33 = arith.mulf %20, %32 : vector<2x128xf32>
    %cst_16 = arith.constant dense<0.000000e+00> : vector<2xf32>
    %34 = vector.multi_reduction <add>, %33, %cst_16 [1] : vector<2x128xf32> to vector<2xf32>
    %35 = vector.shape_cast %34 : vector<2xf32> to vector<2x1xf32>
    %c0_17 = arith.constant 0 : index
    %c0_18 = arith.constant 0 : index
    %36 = vector.load %arg6[%c0_17, %c0_18] : memref<1x1xf32, #tpu.memory_space<vmem>>, vector<1x1xf32>
    %37 = vector.broadcast %36 : vector<1x1xf32> to vector<2x1xf32>
    %38 = arith.addf %35, %37 : vector<2x1xf32>
    %c0_19 = arith.constant 0 : index
    %c0_20 = arith.constant 0 : index
    %39 = vector.load %arg7[%c0_19, %c0_20] : memref<2x1xf32, #tpu.memory_space<vmem>>, vector<2x1xf32>
    tpu.vector_store %arg7[%c0_19, %c0_20], %38 {strides = array<i32>} : memref<2x1xf32, #tpu.memory_space<vmem>>, vector<2x1xf32>,
    return
  }
  func.func @transform_0(%arg0: i32) -> (i32, i32) {
    %c0_i32 = arith.constant 0 : i32
    %c0_i32_0 = arith.constant 0 : i32
    %c0_i32_1 = arith.constant 0 : i32
    return %c0_i32, %c0_i32_0 : i32, i32
  }
  func.func @transform_1(%arg0: i32) -> (i32, i32) {
    %c0_i32 = arith.constant 0 : i32
    %c0_i32_0 = arith.constant 0 : i32
    %c0_i32_1 = arith.constant 0 : i32
    return %c0_i32, %c0_i32_0 : i32, i32
  }
  func.func @transform_2(%arg0: i32) -> (i32, i32) {
    %c0_i32 = arith.constant 0 : i32
    %c0_i32_0 = arith.constant 0 : i32
    %c0_i32_1 = arith.constant 0 : i32
    return %c0_i32, %c0_i32_0 : i32, i32
  }
  func.func @transform_3(%arg0: i32) -> (i32, i32) {
    %c0_i32 = arith.constant 0 : i32
    %c0_i32_0 = arith.constant 0 : i32
    %c0_i32_1 = arith.constant 0 : i32
    return %c0_i32, %c0_i32_0 : i32, i32
  }
  func.func @transform_4(%arg0: i32) -> (i32, i32) {
    %c0_i32 = arith.constant 0 : i32
    %c0_i32_0 = arith.constant 0 : i32
    %c0_i32_1 = arith.constant 0 : i32
    return %c0_i32, %c0_i32_0 : i32, i32
  }
  func.func @transform_5(%arg0: i32) -> (i32, i32) {
    %c0_i32 = arith.constant 0 : i32
    %c0_i32_0 = arith.constant 0 : i32
    %c0_i32_1 = arith.constant 0 : i32
    return %c0_i32, %c0_i32_0 : i32, i32
  }
  func.func @transform_6(%arg0: i32) -> (i32, i32) {
    %c0_i32 = arith.constant 0 : i32
    %c0_i32_0 = arith.constant 0 : i32
    %c0_i32_1 = arith.constant 0 : i32
    return %c0_i32, %c0_i32_0 : i32, i32
  }
}

</mosaic_0001>

<llo_original>
// kernel: forward.7
$region0: #{forward.7}
  #allocation0 [shape = 'u32[]', space=smem, size = 0x4, offset = 0x4, fixed_abs, tag = 'smem constant byte address 0x4 - core index']
  #allocation1 [shape = 'u32[144,128]{1,0:T(1,128)}', space=vmem, size = 0x12000, scoped, tag = 'internal scratch']
  %s0 = inlined_call_operand.vmem [shape: bf16[200,8], index: 0, kind: input, shape index: {}]
  %s1 = inlined_call_operand.vmem [shape: bf16[1,8,128], index: 1, kind: input, shape index: {}]
  %s2 = inlined_call_operand.vmem [shape: f32[1,128], index: 2, kind: input, shape index: {}]
  %s3 = inlined_call_operand.vmem [shape: f32[200,1], index: 3, kind: input, shape index: {}]
  %s4 = inlined_call_operand.vmem [shape: bf16[200,128], index: 4, kind: output, shape index: {}]
  %s5 = sld [smem:[#allocation0]]
  $region26: #{forward.7} parent=0
    _
  %s7 = ssub.s32 1, %s5
  %s8 = scalar_select 0, %s7, %s5
  // Predicated region
  $region2: #{forward.7} parent=0 // pred_check
    _
  $region3: #{forward.7} parent=0 // pred_check_branch
    %10 = sbr.rel (0) target = $region5
  $region4: #{forward.7} parent=0 // pred_region
    _
  $region5: #{forward.7} parent=0 // pred_fallthru
    _
  // Predicated region
  $region6: #{forward.7} parent=0 // pred_check
    _
  $region7: #{forward.7} parent=0 // pred_check_branch
    %12 = sbr.rel (0) target = $region9
  $region8: #{forward.7} parent=0 // pred_region
    _
  $region9: #{forward.7} parent=0 // pred_fallthru
    _
  // Predicated region
  $region10: #{forward.7} parent=0 // pred_check
    _
  $region11: #{forward.7} parent=0 // pred_check_branch
    %14 = sbr.rel (0) target = $region13
  $region12: #{forward.7} parent=0 // pred_region
    _
  $region13: #{forward.7} parent=0 // pred_fallthru
    _
  // Predicated region
  $region14: #{forward.7} parent=0 // pred_check
    _
  $region15: #{forward.7} parent=0 // pred_check_branch
    %16 = sbr.rel (0) target = $region17
  $region16: #{forward.7} parent=0 // pred_region
    _
  $region17: #{forward.7} parent=0 // pred_fallthru
    _
  %v18 = vld [vmem:[%s0] sm:$0xf]
  %v19 = vld [vmem:[%s0 + $0x4] sm:$0xf]
  %v20 = vld [vmem:[%s0 + $0x8] sm:$0xf]
  %v21 = vld [vmem:[%s0 + $0xc] sm:$0xf]
  %v22 = vld [vmem:[%s0 + $0x10] sm:$0xf]
  %v23 = vld [vmem:[%s0 + $0x14] sm:$0xf]
  %v24 = vld [vmem:[%s0 + $0x18] sm:$0xf]
  %v25 = vld [vmem:[%s0 + $0x1c] sm:$0xf]
  %v26 = vld [vmem:[%s0 + $0x20] sm:$0xf]
  %v27 = vld [vmem:[%s0 + $0x24] sm:$0xf]
  %v28 = vld [vmem:[%s0 + $0x28] sm:$0xf]
  %v29 = vld [vmem:[%s0 + $0x2c] sm:$0xf]
  %v30 = vld [vmem:[%s0 + $0x30] sm:$0xf]
  %v31 = vld [vmem:[%s0 + $0x34] sm:$0xf]
  %v32 = vld [vmem:[%s0 + $0x38] sm:$0xf]
  %v33 = vld [vmem:[%s0 + $0x3c] sm:$0xf]
  %v34 = vld [vmem:[%s0 + $0x40] sm:$0xf]
  %v35 = vld [vmem:[%s0 + $0x44] sm:$0xf]
  %v36 = vld [vmem:[%s0 + $0x48] sm:$0xf]
  %v37 = vld [vmem:[%s0 + $0x4c] sm:$0xf]
  %v38 = vld [vmem:[%s0 + $0x50] sm:$0xf]
  %v39 = vld [vmem:[%s0 + $0x54] sm:$0xf]
  %v40 = vld [vmem:[%s0 + $0x58] sm:$0xf]
  %v41 = vld [vmem:[%s0 + $0x5c] sm:$0xf]
  %v42 = vld [vmem:[%s0 + $0x60] sm:$0xf]
  %v43 = vld [vmem:[%s1] sm:$0xf]
  %v44 = vld [vmem:[%s2] sm:$0x1]
  %v46 = vlaneseq
  %v47 = vshrl.u32 %v46, 7
  %v48 = vsub.s32 0, %v47
  %v49 = vrot.slane %v44, %v48
  %v76 = vunpack.c.l.b16 %v18
  %v77 = vunpack.c.l.b16 %v19
  %v78 = vunpack.c.l.b16 %v20
  %v79 = vunpack.c.l.b16 %v21
  %v80 = vunpack.c.l.b16 %v22
  %v81 = vunpack.c.l.b16 %v23
  %v82 = vunpack.c.l.b16 %v24
  %v83 = vunpack.c.l.b16 %v25
  %v84 = vunpack.c.l.b16 %v26
  %v85 = vunpack.c.l.b16 %v27
  %v86 = vunpack.c.l.b16 %v28
  %v87 = vunpack.c.l.b16 %v29
  %v88 = vunpack.c.l.b16 %v30
  %v89 = vunpack.c.l.b16 %v31
  %v90 = vunpack.c.l.b16 %v32
  %v91 = vunpack.c.l.b16 %v33
  %v92 = vunpack.c.l.b16 %v34
  %v93 = vunpack.c.l.b16 %v35
  %v94 = vunpack.c.l.b16 %v36
  %v95 = vunpack.c.l.b16 %v37
  %v96 = vunpack.c.l.b16 %v38
  %v97 = vunpack.c.l.b16 %v39
  %v98 = vunpack.c.l.b16 %v40
  %v99 = vunpack.c.l.b16 %v41
  %v100 = vunpack.c.l.b16 %v42
  %v101 = vpack.c.b16 %v77, %v76
  %v102 = vpack.c.b16 %v79, %v78
  %v103 = vpack.c.b16 %v81, %v80
  %v104 = vpack.c.b16 %v83, %v82
  %v105 = vpack.c.b16 %v85, %v84
  %v106 = vpack.c.b16 %v87, %v86
  %v107 = vpack.c.b16 %v89, %v88
  %v108 = vpack.c.b16 %v91, %v90
  %v109 = vpack.c.b16 %v93, %v92
  %v110 = vpack.c.b16 %v95, %v94
  %v111 = vpack.c.b16 %v97, %v96
  %v112 = vpack.c.b16 %v99, %v98
  %v113 = vpack.c.b16 %v100, %v100
  %vm114 = vcmask 64512
  %v116 = vsel %vm114, %v101, 0
  %v119 = vsel %vm114, %v102, 0
  %v122 = vsel %vm114, %v103, 0
  %v125 = vsel %vm114, %v104, 0
  %v128 = vsel %vm114, %v105, 0
  %v131 = vsel %vm114, %v106, 0
  %v134 = vsel %vm114, %v107, 0
  %v137 = vsel %vm114, %v108, 0
  %v140 = vsel %vm114, %v109, 0
  %v143 = vsel %vm114, %v110, 0
  %v146 = vsel %vm114, %v111, 0
  %v149 = vsel %vm114, %v112, 0
  %v152 = vsel %vm114, %v113, 0
  %vm154 = vcmask 1043456
  %v156 = vsel %vm154, %v43, 0
  %158 = vmatprep.subr.bf16.mxu0 0
  %159 = vmatpush1.bf16.msra.mxu0 0
  %160 = vmatprep.subr.bf16.mxu0 0
  %161 = vmatpush1.bf16.msra.mxu0 0
  %162 = vmatprep.subr.bf16.mxu0 0
  %163 = vmatpush1.bf16.msra.mxu0 0
  %164 = vmatprep.subr.bf16.mxu0 0
  %165 = vmatpush1.bf16.msra.mxu0 0
  %166 = vmatprep.subr.bf16.mxu0 0
  %167 = vmatpush1.bf16.msra.mxu0 0
  %168 = vmatprep.subr.bf16.mxu0 0
  %169 = vmatpush1.bf16.msra.mxu0 0
  %170 = vmatprep.subr.bf16.mxu0 0
  %171 = vmatpush1.bf16.msra.mxu0 0
  %172 = vmatprep.subr.bf16.mxu0 0
  %173 = vmatpush1.bf16.msra.mxu0 %v156
  %174 = vmatprep.subr.bf16.mxu0 0
  %175 = vmatpush2.bf16.msra.mxu0 0
  %176 = vmatprep.subr.bf16.mxu0 0
  %177 = vmatpush2.bf16.msra.mxu0 0
  %178 = vmatprep.subr.bf16.mxu0 0
  %179 = vmatpush2.bf16.msra.mxu0 0
  %180 = vmatprep.subr.bf16.mxu0 0
  %181 = vmatpush2.bf16.msra.mxu0 0
  %182 = vmatprep.subr.bf16.mxu0 0
  %183 = vmatpush2.bf16.msra.mxu0 0
  %184 = vmatprep.subr.bf16.mxu0 0
  %185 = vmatpush2.bf16.msra.mxu0 0
  %186 = vmatprep.subr.bf16.mxu0 0
  %187 = vmatpush2.bf16.msra.mxu0 0
  %188 = vmatprep.subr.bf16.mxu0 0
  %189 = vmatpush2.bf16.msra.mxu0 0
  %190 = vmatprep.mubr.bf16.mxu0 0
  %191 = vmatmul.mubr.bf16.gmra.mxu0 %v116
  %v192 = vpop.f32.mrf.mxu0
  %v193 = vadd.f32 %v49, %v192
  %v194 = vpop.f32.mrf.mxu0
  %v195 = vpop.f32.mrf.mxu0
  %v196 = vadd.f32 %v49, %v195
  %v197 = vpop.f32.mrf.mxu0
  %198 = vmatprep.mubr.bf16.mxu0 0
  %199 = vmatmul.mubr.bf16.gmra.mxu0 %v119
  %v200 = vpop.f32.mrf.mxu0
  %v201 = vadd.f32 %v49, %v200
  %v202 = vpop.f32.mrf.mxu0
  %v203 = vpop.f32.mrf.mxu0
  %v204 = vadd.f32 %v49, %v203
  %v205 = vpop.f32.mrf.mxu0
  %206 = vmatprep.mubr.bf16.mxu0 0
  %207 = vmatmul.mubr.bf16.gmra.mxu0 %v122
  %v208 = vpop.f32.mrf.mxu0
  %v209 = vadd.f32 %v49, %v208
  %v210 = vpop.f32.mrf.mxu0
  %v211 = vpop.f32.mrf.mxu0
  %v212 = vadd.f32 %v49, %v211
  %v213 = vpop.f32.mrf.mxu0
  %214 = vmatprep.mubr.bf16.mxu0 0
  %215 = vmatmul.mubr.bf16.gmra.mxu0 %v125
  %v216 = vpop.f32.mrf.mxu0
  %v217 = vadd.f32 %v49, %v216
  %v218 = vpop.f32.mrf.mxu0
  %v219 = vpop.f32.mrf.mxu0
  %v220 = vadd.f32 %v49, %v219
  %v221 = vpop.f32.mrf.mxu0
  %222 = vmatprep.mubr.bf16.mxu0 0
  %223 = vmatmul.mubr.bf16.gmra.mxu0 %v128
  %v224 = vpop.f32.mrf.mxu0
  %v225 = vadd.f32 %v49, %v224
  %v226 = vpop.f32.mrf.mxu0
  %v227 = vpop.f32.mrf.mxu0
  %v228 = vadd.f32 %v49, %v227
  %v229 = vpop.f32.mrf.mxu0
  %230 = vmatprep.mubr.bf16.mxu0 0
  %231 = vmatmul.mubr.bf16.gmra.mxu0 %v131
  %v232 = vpop.f32.mrf.mxu0
  %v233 = vadd.f32 %v49, %v232
  %v234 = vpop.f32.mrf.mxu0
  %v235 = vpop.f32.mrf.mxu0
  %v236 = vadd.f32 %v49, %v235
  %v237 = vpop.f32.mrf.mxu0
  %238 = vmatprep.mubr.bf16.mxu0 0
  %239 = vmatmul.mubr.bf16.gmra.mxu0 %v134
  %v240 = vpop.f32.mrf.mxu0
  %v241 = vadd.f32 %v49, %v240
  %v242 = vpop.f32.mrf.mxu0
  %v243 = vpop.f32.mrf.mxu0
  %v244 = vadd.f32 %v49, %v243
  %v245 = vpop.f32.mrf.mxu0
  %246 = vmatprep.mubr.bf16.mxu0 0
  %247 = vmatmul.mubr.bf16.gmra.mxu0 %v137
  %v248 = vpop.f32.mrf.mxu0
  %v249 = vadd.f32 %v49, %v248
  %v250 = vpop.f32.mrf.mxu0
  %v251 = vpop.f32.mrf.mxu0
  %v252 = vadd.f32 %v49, %v251
  %v253 = vpop.f32.mrf.mxu0
  %254 = vmatprep.mubr.bf16.mxu0 0
  %255 = vmatmul.mubr.bf16.gmra.mxu0 %v140
  %v256 = vpop.f32.mrf.mxu0
  %v257 = vadd.f32 %v49, %v256
  %v258 = vpop.f32.mrf.mxu0
  %v259 = vpop.f32.mrf.mxu0
  %v260 = vadd.f32 %v49, %v259
  %v261 = vpop.f32.mrf.mxu0
  %262 = vmatprep.mubr.bf16.mxu0 0
  %263 = vmatmul.mubr.bf16.gmra.mxu0 %v143
  %v264 = vpop.f32.mrf.mxu0
  %v265 = vadd.f32 %v49, %v264
  %v266 = vpop.f32.mrf.mxu0
  %v267 = vpop.f32.mrf.mxu0
  %v268 = vadd.f32 %v49, %v267
  %v269 = vpop.f32.mrf.mxu0
  %270 = vmatprep.mubr.bf16.mxu0 0
  %271 = vmatmul.mubr.bf16.gmra.mxu0 %v146
  %v272 = vpop.f32.mrf.mxu0
  %v273 = vadd.f32 %v49, %v272
  %v274 = vpop.f32.mrf.mxu0
  %v275 = vpop.f32.mrf.mxu0
  %v276 = vadd.f32 %v49, %v275
  %v277 = vpop.f32.mrf.mxu0
  %278 = vmatprep.mubr.bf16.mxu0 0
  %279 = vmatmul.mubr.bf16.gmra.mxu0 %v149
  %v280 = vpop.f32.mrf.mxu0
  %v281 = vadd.f32 %v49, %v280
  %v282 = vpop.f32.mrf.mxu0
  %v283 = vpop.f32.mrf.mxu0
  %v284 = vadd.f32 %v49, %v283
  %v285 = vpop.f32.mrf.mxu0
  %286 = vmatprep.mubr.bf16.mxu0 0
  %287 = vmatmul.mubr.bf16.gmra.mxu0 %v152
  %v288 = vpop.f32.mrf.mxu0
  %v289 = vadd.f32 %v49, %v288
  %v290 = vpop.f32.mrf.mxu0
  %v291 = vpop.f32.mrf.mxu0
  %v292 = vpop.f32.mrf.mxu0
  %293 = vdwg.mxu0
  %v294 = vld [vmem:[%s3] sm:$0xff]
  %v295 = vld [vmem:[%s3 + $0x8] sm:$0xff]
  %v296 = vld [vmem:[%s3 + $0x10] sm:$0xff]
  %v297 = vld [vmem:[%s3 + $0x18] sm:$0xff]
  %v298 = vld [vmem:[%s3 + $0x20] sm:$0xff]
  %v299 = vld [vmem:[%s3 + $0x28] sm:$0xff]
  %v300 = vld [vmem:[%s3 + $0x30] sm:$0xff]
  %v301 = vld [vmem:[%s3 + $0x38] sm:$0xff]
  %v302 = vld [vmem:[%s3 + $0x40] sm:$0xff]
  %v303 = vld [vmem:[%s3 + $0x48] sm:$0xff]
  %v304 = vld [vmem:[%s3 + $0x50] sm:$0xff]
  %v305 = vld [vmem:[%s3 + $0x58] sm:$0xff]
  %v306 = vld [vmem:[%s3 + $0x60] sm:$0xff]
  %v307 = vld [vmem:[%s3 + $0x68] sm:$0xff]
  %v308 = vld [vmem:[%s3 + $0x70] sm:$0xff]
  %v309 = vld [vmem:[%s3 + $0x78] sm:$0xff]
  %v310 = vld [vmem:[%s3 + $0x80] sm:$0xff]
  %v311 = vld [vmem:[%s3 + $0x88] sm:$0xff]
  %v312 = vld [vmem:[%s3 + $0x90] sm:$0xff]
  %v313 = vld [vmem:[%s3 + $0x98] sm:$0xff]
  %v314 = vld [vmem:[%s3 + $0xa0] sm:$0xff]
  %v315 = vld [vmem:[%s3 + $0xa8] sm:$0xff]
  %v316 = vld [vmem:[%s3 + $0xb0] sm:$0xff]
  %v317 = vld [vmem:[%s3 + $0xb8] sm:$0xff]
  %v318 = vld [vmem:[%s3 + $0xc0] sm:$0xff]
  %320 = vset.pattern.permute.xlu0 0
  %321 = vperm.xlu0 %320, %v294
  %v322 = vpop.permute.xlu0 %321
  %325 = vset.pattern.permute.xlu0 0
  %326 = vperm.xlu0 %325, %v295
  %v327 = vpop.permute.xlu0 %326
  %330 = vset.pattern.permute.xlu0 0
  %331 = vperm.xlu0 %330, %v296
  %v332 = vpop.permute.xlu0 %331
  %335 = vset.pattern.permute.xlu0 0
  %336 = vperm.xlu0 %335, %v297
  %v337 = vpop.permute.xlu0 %336
  %340 = vset.pattern.permute.xlu0 0
  %341 = vperm.xlu0 %340, %v298
  %v342 = vpop.permute.xlu0 %341
  %345 = vset.pattern.permute.xlu0 0
  %346 = vperm.xlu0 %345, %v299
  %v347 = vpop.permute.xlu0 %346
  %350 = vset.pattern.permute.xlu0 0
  %351 = vperm.xlu0 %350, %v300
  %v352 = vpop.permute.xlu0 %351
  %355 = vset.pattern.permute.xlu0 0
  %356 = vperm.xlu0 %355, %v301
  %v357 = vpop.permute.xlu0 %356
  %360 = vset.pattern.permute.xlu0 0
  %361 = vperm.xlu0 %360, %v302
  %v362 = vpop.permute.xlu0 %361
  %365 = vset.pattern.permute.xlu0 0
  %366 = vperm.xlu0 %365, %v303
  %v367 = vpop.permute.xlu0 %366
  %370 = vset.pattern.permute.xlu0 0
  %371 = vperm.xlu0 %370, %v304
  %v372 = vpop.permute.xlu0 %371
  %375 = vset.pattern.permute.xlu0 0
  %376 = vperm.xlu0 %375, %v305
  %v377 = vpop.permute.xlu0 %376
  %380 = vset.pattern.permute.xlu0 0
  %381 = vperm.xlu0 %380, %v306
  %v382 = vpop.permute.xlu0 %381
  %385 = vset.pattern.permute.xlu0 0
  %386 = vperm.xlu0 %385, %v307
  %v387 = vpop.permute.xlu0 %386
  %390 = vset.pattern.permute.xlu0 0
  %391 = vperm.xlu0 %390, %v308
  %v392 = vpop.permute.xlu0 %391
  %395 = vset.pattern.permute.xlu0 0
  %396 = vperm.xlu0 %395, %v309
  %v397 = vpop.permute.xlu0 %396
  %400 = vset.pattern.permute.xlu0 0
  %401 = vperm.xlu0 %400, %v310
  %v402 = vpop.permute.xlu0 %401
  %405 = vset.pattern.permute.xlu0 0
  %406 = vperm.xlu0 %405, %v311
  %v407 = vpop.permute.xlu0 %406
  %410 = vset.pattern.permute.xlu0 0
  %411 = vperm.xlu0 %410, %v312
  %v412 = vpop.permute.xlu0 %411
  %415 = vset.pattern.permute.xlu0 0
  %416 = vperm.xlu0 %415, %v313
  %v417 = vpop.permute.xlu0 %416
  %420 = vset.pattern.permute.xlu0 0
  %421 = vperm.xlu0 %420, %v314
  %v422 = vpop.permute.xlu0 %421
  %425 = vset.pattern.permute.xlu0 0
  %426 = vperm.xlu0 %425, %v315
  %v427 = vpop.permute.xlu0 %426
  %430 = vset.pattern.permute.xlu0 0
  %431 = vperm.xlu0 %430, %v316
  %v432 = vpop.permute.xlu0 %431
  %435 = vset.pattern.permute.xlu0 0
  %436 = vperm.xlu0 %435, %v317
  %v437 = vpop.permute.xlu0 %436
  %440 = vset.pattern.permute.xlu0 0
  %441 = vperm.xlu0 %440, %v318
  %v442 = vpop.permute.xlu0 %441
  %v444 = vmul.f32 %v193, %v322
  %v445 = vmul.f32 %v196, %v327
  %v446 = vmul.f32 %v201, %v332
  %v447 = vmul.f32 %v204, %v337
  %v448 = vmul.f32 %v209, %v342
  %v449 = vmul.f32 %v212, %v347
  %v450 = vmul.f32 %v217, %v352
  %v451 = vmul.f32 %v220, %v357
  %v452 = vmul.f32 %v225, %v362
  %v453 = vmul.f32 %v228, %v367
  %v454 = vmul.f32 %v233, %v372
  %v455 = vmul.f32 %v236, %v377
  %v456 = vmul.f32 %v241, %v382
  %v457 = vmul.f32 %v244, %v387
  %v458 = vmul.f32 %v249, %v392
  %v459 = vmul.f32 %v252, %v397
  %v460 = vmul.f32 %v257, %v402
  %v461 = vmul.f32 %v260, %v407
  %v462 = vmul.f32 %v265, %v412
  %v463 = vmul.f32 %v268, %v417
  %v464 = vmul.f32 %v273, %v422
  %v465 = vmul.f32 %v276, %v427
  %v466 = vmul.f32 %v281, %v432
  %v467 = vmul.f32 %v284, %v437
  %v468 = vmul.f32 %v289, %v442
  %v469 = vpack.c.bf16 %v445, %v444
  %v470 = vpack.c.bf16 %v447, %v446
  %v471 = vpack.c.bf16 %v449, %v448
  %v472 = vpack.c.bf16 %v451, %v450
  %v473 = vpack.c.bf16 %v453, %v452
  %v474 = vpack.c.bf16 %v455, %v454
  %v475 = vpack.c.bf16 %v457, %v456
  %v476 = vpack.c.bf16 %v459, %v458
  %v477 = vpack.c.bf16 %v461, %v460
  %v478 = vpack.c.bf16 %v463, %v462
  %v479 = vpack.c.bf16 %v465, %v464
  %v480 = vpack.c.bf16 %v467, %v466
  %v481 = vpack.c.bf16 %v468, %v468
  %v495 = vunpack.c.l.b16 %v469
  %v496 = vunpack.c.h.b16 %v469
  %v497 = vunpack.c.l.b16 %v470
  %v498 = vunpack.c.h.b16 %v470
  %v499 = vunpack.c.l.b16 %v471
  %v500 = vunpack.c.h.b16 %v471
  %v501 = vunpack.c.l.b16 %v472
  %v502 = vunpack.c.h.b16 %v472
  %v503 = vunpack.c.l.b16 %v473
  %v504 = vunpack.c.h.b16 %v473
  %v505 = vunpack.c.l.b16 %v474
  %v506 = vunpack.c.h.b16 %v474
  %v507 = vunpack.c.l.b16 %v475
  %v508 = vunpack.c.h.b16 %v475
  %v509 = vunpack.c.l.b16 %v476
  %v510 = vunpack.c.h.b16 %v476
  %v511 = vunpack.c.l.b16 %v477
  %v512 = vunpack.c.h.b16 %v477
  %v513 = vunpack.c.l.b16 %v478
  %v514 = vunpack.c.h.b16 %v478
  %v515 = vunpack.c.l.b16 %v479
  %v516 = vunpack.c.h.b16 %v479
  %v517 = vunpack.c.l.b16 %v480
  %v518 = vunpack.c.h.b16 %v480
  %v519 = vunpack.c.l.b16 %v481
  %v520 = vpack.c.b16 %v495, %v495
  %v521 = vpack.c.b16 %v496, %v496
  %v522 = vpack.c.b16 %v497, %v497
  %v523 = vpack.c.b16 %v498, %v498
  %v524 = vpack.c.b16 %v499, %v499
  %v525 = vpack.c.b16 %v500, %v500
  %v526 = vpack.c.b16 %v501, %v501
  %v527 = vpack.c.b16 %v502, %v502
  %v528 = vpack.c.b16 %v503, %v503
  %v529 = vpack.c.b16 %v504, %v504
  %v530 = vpack.c.b16 %v505, %v505
  %v531 = vpack.c.b16 %v506, %v506
  %v532 = vpack.c.b16 %v507, %v507
  %v533 = vpack.c.b16 %v508, %v508
  %v534 = vpack.c.b16 %v509, %v509
  %v535 = vpack.c.b16 %v510, %v510
  %v536 = vpack.c.b16 %v511, %v511
  %v537 = vpack.c.b16 %v512, %v512
  %v538 = vpack.c.b16 %v513, %v513
  %v539 = vpack.c.b16 %v514, %v514
  %v540 = vpack.c.b16 %v515, %v515
  %v541 = vpack.c.b16 %v516, %v516
  %v542 = vpack.c.b16 %v517, %v517
  %v543 = vpack.c.b16 %v518, %v518
  %v544 = vpack.c.b16 %v519, %v519
  %570 = vst [vmem:[%s4] sm:$0xf] %v520
  %571 = vst [vmem:[%s4 + $0x4] sm:$0xf] %v521
  %572 = vst [vmem:[%s4 + $0x8] sm:$0xf] %v522
  %573 = vst [vmem:[%s4 + $0xc] sm:$0xf] %v523
  %574 = vst [vmem:[%s4 + $0x10] sm:$0xf] %v524
  %575 = vst [vmem:[%s4 + $0x14] sm:$0xf] %v525
  %576 = vst [vmem:[%s4 + $0x18] sm:$0xf] %v526
  %577 = vst [vmem:[%s4 + $0x1c] sm:$0xf] %v527
  %578 = vst [vmem:[%s4 + $0x20] sm:$0xf] %v528
  %579 = vst [vmem:[%s4 + $0x24] sm:$0xf] %v529
  %580 = vst [vmem:[%s4 + $0x28] sm:$0xf] %v530
  %581 = vst [vmem:[%s4 + $0x2c] sm:$0xf] %v531
  %582 = vst [vmem:[%s4 + $0x30] sm:$0xf] %v532
  %583 = vst [vmem:[%s4 + $0x34] sm:$0xf] %v533
  %584 = vst [vmem:[%s4 + $0x38] sm:$0xf] %v534
  %585 = vst [vmem:[%s4 + $0x3c] sm:$0xf] %v535
  %586 = vst [vmem:[%s4 + $0x40] sm:$0xf] %v536
  %587 = vst [vmem:[%s4 + $0x44] sm:$0xf] %v537
  %588 = vst [vmem:[%s4 + $0x48] sm:$0xf] %v538
  %589 = vst [vmem:[%s4 + $0x4c] sm:$0xf] %v539
  %590 = vst [vmem:[%s4 + $0x50] sm:$0xf] %v540
  %591 = vst [vmem:[%s4 + $0x54] sm:$0xf] %v541
  %592 = vst [vmem:[%s4 + $0x58] sm:$0xf] %v542
  %593 = vst [vmem:[%s4 + $0x5c] sm:$0xf] %v543
  %594 = vst [vmem:[%s4 + $0x60] sm:$0xf] %v544
  // Predicated region
  $region18: #{forward.7} parent=0 // pred_check
    _
  $region19: #{forward.7} parent=0 // pred_check_branch
    %596 = sbr.rel (0) target = $region21
  $region20: #{forward.7} parent=0 // pred_region
    _
  $region21: #{forward.7} parent=0 // pred_fallthru
    _
  // Predicated region
  $region22: #{forward.7} parent=0 // pred_check
    _
  $region23: #{forward.7} parent=0 // pred_check_branch
    %598 = sbr.rel (0) target = $region25
  $region24: #{forward.7} parent=0 // pred_region
    _
  $region25: #{forward.7} parent=0 // pred_fallthru
    _

// kernel: forward.10
$region0: #{forward.10}
  #allocation0 [shape = 'u32[]', space=smem, size = 0x4, offset = 0x4, fixed_abs, tag = 'smem constant byte address 0x4 - core index']
  #allocation1 [shape = 'u32[144,128]{1,0:T(1,128)}', space=vmem, size = 0x12000, scoped, tag = 'internal scratch']
  %s0 = inlined_call_operand.vmem [shape: bf16[72,8], index: 0, kind: input, shape index: {}]
  %s1 = inlined_call_operand.vmem [shape: bf16[1,8,128], index: 1, kind: input, shape index: {}]
  %s2 = inlined_call_operand.vmem [shape: f32[1,128], index: 2, kind: input, shape index: {}]
  %s3 = inlined_call_operand.vmem [shape: f32[72,1], index: 3, kind: input, shape index: {}]
  %s4 = inlined_call_operand.vmem [shape: bf16[72,128], index: 4, kind: output, shape index: {}]
  %s5 = sld [smem:[#allocation0]]
  $region26: #{forward.10} parent=0
    _
  %s7 = ssub.s32 1, %s5
  %s8 = scalar_select 0, %s7, %s5
  // Predicated region
  $region2: #{forward.10} parent=0 // pred_check
    _
  $region3: #{forward.10} parent=0 // pred_check_branch
    %10 = sbr.rel (0) target = $region5
  $region4: #{forward.10} parent=0 // pred_region
    _
  $region5: #{forward.10} parent=0 // pred_fallthru
    _
  // Predicated region
  $region6: #{forward.10} parent=0 // pred_check
    _
  $region7: #{forward.10} parent=0 // pred_check_branch
    %12 = sbr.rel (0) target = $region9
  $region8: #{forward.10} parent=0 // pred_region
    _
  $region9: #{forward.10} parent=0 // pred_fallthru
    _
  // Predicated region
  $region10: #{forward.10} parent=0 // pred_check
    _
  $region11: #{forward.10} parent=0 // pred_check_branch
    %14 = sbr.rel (0) target = $region13
  $region12: #{forward.10} parent=0 // pred_region
    _
  $region13: #{forward.10} parent=0 // pred_fallthru
    _
  // Predicated region
  $region14: #{forward.10} parent=0 // pred_check
    _
  $region15: #{forward.10} parent=0 // pred_check_branch
    %16 = sbr.rel (0) target = $region17
  $region16: #{forward.10} parent=0 // pred_region
    _
  $region17: #{forward.10} parent=0 // pred_fallthru
    _
  %v18 = vld [vmem:[%s0] sm:$0xf]
  %v19 = vld [vmem:[%s0 + $0x4] sm:$0xf]
  %v20 = vld [vmem:[%s0 + $0x8] sm:$0xf]
  %v21 = vld [vmem:[%s0 + $0xc] sm:$0xf]
  %v22 = vld [vmem:[%s0 + $0x10] sm:$0xf]
  %v23 = vld [vmem:[%s0 + $0x14] sm:$0xf]
  %v24 = vld [vmem:[%s0 + $0x18] sm:$0xf]
  %v25 = vld [vmem:[%s0 + $0x1c] sm:$0xf]
  %v26 = vld [vmem:[%s0 + $0x20] sm:$0xf]
  %v27 = vld [vmem:[%s1] sm:$0xf]
  %v28 = vld [vmem:[%s2] sm:$0x1]
  %v30 = vlaneseq
  %v31 = vshrl.u32 %v30, 7
  %v32 = vsub.s32 0, %v31
  %v33 = vrot.slane %v28, %v32
  %v44 = vunpack.c.l.b16 %v18
  %v45 = vunpack.c.l.b16 %v19
  %v46 = vunpack.c.l.b16 %v20
  %v47 = vunpack.c.l.b16 %v21
  %v48 = vunpack.c.l.b16 %v22
  %v49 = vunpack.c.l.b16 %v23
  %v50 = vunpack.c.l.b16 %v24
  %v51 = vunpack.c.l.b16 %v25
  %v52 = vunpack.c.l.b16 %v26
  %v53 = vpack.c.b16 %v45, %v44
  %v54 = vpack.c.b16 %v47, %v46
  %v55 = vpack.c.b16 %v49, %v48
  %v56 = vpack.c.b16 %v51, %v50
  %v57 = vpack.c.b16 %v52, %v52
  %vm58 = vcmask 64512
  %v60 = vsel %vm58, %v53, 0
  %v63 = vsel %vm58, %v54, 0
  %v66 = vsel %vm58, %v55, 0
  %v69 = vsel %vm58, %v56, 0
  %v72 = vsel %vm58, %v57, 0
  %vm74 = vcmask 1043456
  %v76 = vsel %vm74, %v27, 0
  %78 = vmatprep.subr.bf16.mxu0 0
  %79 = vmatpush1.bf16.msra.mxu0 0
  %80 = vmatprep.subr.bf16.mxu0 0
  %81 = vmatpush1.bf16.msra.mxu0 0
  %82 = vmatprep.subr.bf16.mxu0 0
  %83 = vmatpush1.bf16.msra.mxu0 0
  %84 = vmatprep.subr.bf16.mxu0 0
  %85 = vmatpush1.bf16.msra.mxu0 0
  %86 = vmatprep.subr.bf16.mxu0 0
  %87 = vmatpush1.bf16.msra.mxu0 0
  %88 = vmatprep.subr.bf16.mxu0 0
  %89 = vmatpush1.bf16.msra.mxu0 0
  %90 = vmatprep.subr.bf16.mxu0 0
  %91 = vmatpush1.bf16.msra.mxu0 0
  %92 = vmatprep.subr.bf16.mxu0 0
  %93 = vmatpush1.bf16.msra.mxu0 %v76
  %94 = vmatprep.subr.bf16.mxu0 0
  %95 = vmatpush2.bf16.msra.mxu0 0
  %96 = vmatprep.subr.bf16.mxu0 0
  %97 = vmatpush2.bf16.msra.mxu0 0
  %98 = vmatprep.subr.bf16.mxu0 0
  %99 = vmatpush2.bf16.msra.mxu0 0
  %100 = vmatprep.subr.bf16.mxu0 0
  %101 = vmatpush2.bf16.msra.mxu0 0
  %102 = vmatprep.subr.bf16.mxu0 0
  %103 = vmatpush2.bf16.msra.mxu0 0
  %104 = vmatprep.subr.bf16.mxu0 0
  %105 = vmatpush2.bf16.msra.mxu0 0
  %106 = vmatprep.subr.bf16.mxu0 0
  %107 = vmatpush2.bf16.msra.mxu0 0
  %108 = vmatprep.subr.bf16.mxu0 0
  %109 = vmatpush2.bf16.msra.mxu0 0
  %110 = vmatprep.mubr.bf16.mxu0 0
  %111 = vmatmul.mubr.bf16.gmra.mxu0 %v60
  %v112 = vpop.f32.mrf.mxu0
  %v113 = vadd.f32 %v33, %v112
  %v114 = vpop.f32.mrf.mxu0
  %v115 = vpop.f32.mrf.mxu0
  %v116 = vadd.f32 %v33, %v115
  %v117 = vpop.f32.mrf.mxu0
  %118 = vmatprep.mubr.bf16.mxu0 0
  %119 = vmatmul.mubr.bf16.gmra.mxu0 %v63
  %v120 = vpop.f32.mrf.mxu0
  %v121 = vadd.f32 %v33, %v120
  %v122 = vpop.f32.mrf.mxu0
  %v123 = vpop.f32.mrf.mxu0
  %v124 = vadd.f32 %v33, %v123
  %v125 = vpop.f32.mrf.mxu0
  %126 = vmatprep.mubr.bf16.mxu0 0
  %127 = vmatmul.mubr.bf16.gmra.mxu0 %v66
  %v128 = vpop.f32.mrf.mxu0
  %v129 = vadd.f32 %v33, %v128
  %v130 = vpop.f32.mrf.mxu0
  %v131 = vpop.f32.mrf.mxu0
  %v132 = vadd.f32 %v33, %v131
  %v133 = vpop.f32.mrf.mxu0
  %134 = vmatprep.mubr.bf16.mxu0 0
  %135 = vmatmul.mubr.bf16.gmra.mxu0 %v69
  %v136 = vpop.f32.mrf.mxu0
  %v137 = vadd.f32 %v33, %v136
  %v138 = vpop.f32.mrf.mxu0
  %v139 = vpop.f32.mrf.mxu0
  %v140 = vadd.f32 %v33, %v139
  %v141 = vpop.f32.mrf.mxu0
  %142 = vmatprep.mubr.bf16.mxu0 0
  %143 = vmatmul.mubr.bf16.gmra.mxu0 %v72
  %v144 = vpop.f32.mrf.mxu0
  %v145 = vadd.f32 %v33, %v144
  %v146 = vpop.f32.mrf.mxu0
  %v147 = vpop.f32.mrf.mxu0
  %v148 = vpop.f32.mrf.mxu0
  %149 = vdwg.mxu0
  %v150 = vld [vmem:[%s3] sm:$0xff]
  %v151 = vld [vmem:[%s3 + $0x8] sm:$0xff]
  %v152 = vld [vmem:[%s3 + $0x10] sm:$0xff]
  %v153 = vld [vmem:[%s3 + $0x18] sm:$0xff]
  %v154 = vld [vmem:[%s3 + $0x20] sm:$0xff]
  %v155 = vld [vmem:[%s3 + $0x28] sm:$0xff]
  %v156 = vld [vmem:[%s3 + $0x30] sm:$0xff]
  %v157 = vld [vmem:[%s3 + $0x38] sm:$0xff]
  %v158 = vld [vmem:[%s3 + $0x40] sm:$0xff]
  %160 = vset.pattern.permute.xlu0 0
  %161 = vperm.xlu0 %160, %v150
  %v162 = vpop.permute.xlu0 %161
  %165 = vset.pattern.permute.xlu0 0
  %166 = vperm.xlu0 %165, %v151
  %v167 = vpop.permute.xlu0 %166
  %170 = vset.pattern.permute.xlu0 0
  %171 = vperm.xlu0 %170, %v152
  %v172 = vpop.permute.xlu0 %171
  %175 = vset.pattern.permute.xlu0 0
  %176 = vperm.xlu0 %175, %v153
  %v177 = vpop.permute.xlu0 %176
  %180 = vset.pattern.permute.xlu0 0
  %181 = vperm.xlu0 %180, %v154
  %v182 = vpop.permute.xlu0 %181
  %185 = vset.pattern.permute.xlu0 0
  %186 = vperm.xlu0 %185, %v155
  %v187 = vpop.permute.xlu0 %186
  %190 = vset.pattern.permute.xlu0 0
  %191 = vperm.xlu0 %190, %v156
  %v192 = vpop.permute.xlu0 %191
  %195 = vset.pattern.permute.xlu0 0
  %196 = vperm.xlu0 %195, %v157
  %v197 = vpop.permute.xlu0 %196
  %200 = vset.pattern.permute.xlu0 0
  %201 = vperm.xlu0 %200, %v158
  %v202 = vpop.permute.xlu0 %201
  %v204 = vmul.f32 %v113, %v162
  %v205 = vmul.f32 %v116, %v167
  %v206 = vmul.f32 %v121, %v172
  %v207 = vmul.f32 %v124, %v177
  %v208 = vmul.f32 %v129, %v182
  %v209 = vmul.f32 %v132, %v187
  %v210 = vmul.f32 %v137, %v192
  %v211 = vmul.f32 %v140, %v197
  %v212 = vmul.f32 %v145, %v202
  %v213 = vpack.c.bf16 %v205, %v204
  %v214 = vpack.c.bf16 %v207, %v206
  %v215 = vpack.c.bf16 %v209, %v208
  %v216 = vpack.c.bf16 %v211, %v210
  %v217 = vpack.c.bf16 %v212, %v212
  %v223 = vunpack.c.l.b16 %v213
  %v224 = vunpack.c.h.b16 %v213
  %v225 = vunpack.c.l.b16 %v214
  %v226 = vunpack.c.h.b16 %v214
  %v227 = vunpack.c.l.b16 %v215
  %v228 = vunpack.c.h.b16 %v215
  %v229 = vunpack.c.l.b16 %v216
  %v230 = vunpack.c.h.b16 %v216
  %v231 = vunpack.c.l.b16 %v217
  %v232 = vpack.c.b16 %v223, %v223
  %v233 = vpack.c.b16 %v224, %v224
  %v234 = vpack.c.b16 %v225, %v225
  %v235 = vpack.c.b16 %v226, %v226
  %v236 = vpack.c.b16 %v227, %v227
  %v237 = vpack.c.b16 %v228, %v228
  %v238 = vpack.c.b16 %v229, %v229
  %v239 = vpack.c.b16 %v230, %v230
  %v240 = vpack.c.b16 %v231, %v231
  %250 = vst [vmem:[%s4] sm:$0xf] %v232
  %251 = vst [vmem:[%s4 + $0x4] sm:$0xf] %v233
  %252 = vst [vmem:[%s4 + $0x8] sm:$0xf] %v234
  %253 = vst [vmem:[%s4 + $0xc] sm:$0xf] %v235
  %254 = vst [vmem:[%s4 + $0x10] sm:$0xf] %v236
  %255 = vst [vmem:[%s4 + $0x14] sm:$0xf] %v237
  %256 = vst [vmem:[%s4 + $0x18] sm:$0xf] %v238
  %257 = vst [vmem:[%s4 + $0x1c] sm:$0xf] %v239
  %258 = vst [vmem:[%s4 + $0x20] sm:$0xf] %v240
  // Predicated region
  $region18: #{forward.10} parent=0 // pred_check
    _
  $region19: #{forward.10} parent=0 // pred_check_branch
    %260 = sbr.rel (0) target = $region21
  $region20: #{forward.10} parent=0 // pred_region
    _
  $region21: #{forward.10} parent=0 // pred_fallthru
    _
  // Predicated region
  $region22: #{forward.10} parent=0 // pred_check
    _
  $region23: #{forward.10} parent=0 // pred_check_branch
    %262 = sbr.rel (0) target = $region25
  $region24: #{forward.10} parent=0 // pred_region
    _
  $region25: #{forward.10} parent=0 // pred_fallthru
    _

// kernel: forward.11
$region0: #{forward.11}
  #allocation0 [shape = 'u32[]', space=smem, size = 0x4, offset = 0x4, fixed_abs, tag = 'smem constant byte address 0x4 - core index']
  #allocation1 [shape = 'u32[144,128]{1,0:T(1,128)}', space=vmem, size = 0x12000, scoped, tag = 'internal scratch']
  %s0 = inlined_call_operand.vmem [shape: f32[2,512], index: 0, kind: input, shape index: {}]
  %s1 = inlined_call_operand.hbm [shape: f32[1,1], index: 1, kind: output, shape index: {}]
  %s2 = sld [smem:[#allocation0]]
  $region14: #{forward.11} parent=0
    _
  %s4 = ssub.s32 1, %s2
  %s5 = scalar_select 0, %s4, %s2
  $region1: #{forward.11} parent=0
    #allocation2 [shape = 'u8[512]{0}', space=vmem, size = 0x400, scoped, tag = 'output window, operand 0, single buffered']
    #allocation3 [shape = 's32[1]{0}', space=sflag, size = 0x4, scoped, tag = 'scoped memory for forward.11']
    %6 = vsyncpa [#allocation3], 0
    // Predicated region
    $region2: #{forward.11} parent=1 // pred_check
      _
    $region3: #{forward.11} parent=1 // pred_check_branch
      %8 = sbr.rel (0) target = $region5
    $region4: #{forward.11} parent=1 // pred_region
      _
    $region5: #{forward.11} parent=1 // pred_fallthru
      _
    %v9 = vld [vmem:[%s0] sm:$0xff]
    %v11 = vcombine.high %v9, %v9
    %v13 = vunpack.c.l.s4 1983009808
    %v14 = vunpack.c.0.s8 %v13
    %v15 = vlaneseq
    %v16 = vshrl.u32 %v15, 7
    %v17 = vsub.s32 %v14, %v16
    %v18 = vrot.slane %v9, %v17
    %v20 = vunpack.c.l.s4 1983009808
    %v21 = vunpack.c.0.s8 %v20
    %v22 = vlaneseq
    %v23 = vshrl.u32 %v22, 7
    %v24 = vsub.s32 %v21, %v23
    %v25 = vrot.slane %v11, %v24
    %v26 = vcombine.high %v18, %v18
    %v27 = vcombine.high %v25, %v25
    %vm32 = vcmask 1041408
    %v33 = vsel %vm32, %v18, 0.0
    %v34 = vrot.slane %v33, 4
    %v35 = vadd.f32 %v33, %v34
    %v36 = vrot.slane %v35, 2
    %v37 = vadd.f32 %v35, %v36
    %v38 = vrot.slane %v37, 1
    %v39 = vadd.f32 %v37, %v38
    %v40 = vsel %vm32, %v26, 0.0
    %v41 = vrot.slane %v40, 4
    %v42 = vadd.f32 %v40, %v41
    %v43 = vrot.slane %v42, 2
    %v44 = vadd.f32 %v42, %v43
    %v45 = vrot.slane %v44, 1
    %v46 = vadd.f32 %v44, %v45
    %v47 = vsel %vm32, %v25, 0.0
    %v48 = vrot.slane %v47, 4
    %v49 = vadd.f32 %v47, %v48
    %v50 = vrot.slane %v49, 2
    %v51 = vadd.f32 %v49, %v50
    %v52 = vrot.slane %v51, 1
    %v53 = vadd.f32 %v51, %v52
    %v54 = vsel %vm32, %v27, 0.0
    %v55 = vrot.slane %v54, 4
    %v56 = vadd.f32 %v54, %v55
    %v57 = vrot.slane %v56, 2
    %v58 = vadd.f32 %v56, %v57
    %v59 = vrot.slane %v58, 1
    %v60 = vadd.f32 %v58, %v59
    %v61 = vrcp.pop 2.0
    %v62 = vmul.f32 %v39, %v61
    %v63 = vmul.f32 %v46, %v61
    %v64 = vmul.f32 %v53, %v61
    %v65 = vmul.f32 %v60, %v61
    %v70 = vcombine.low %v62, %v63
    %v71 = vcombine.low %v64, %v65
    %v73 = vunpack.c.l.s4 1983009808
    %v74 = vunpack.c.0.s8 %v73
    %v75 = vlaneseq
    %v76 = vshrl.u32 %v75, 7
    %v77 = vsub.s32 %v74, %v76
    %v78 = vrot.slane %v70, %v77
    %v80 = vunpack.c.l.s4 1983009808
    %v81 = vunpack.c.0.s8 %v80
    %v82 = vlaneseq
    %v83 = vshrl.u32 %v82, 7
    %v84 = vsub.s32 %v81, %v83
    %v85 = vrot.slane %v71, %v84
    %v86 = vcombine.low %v78, %v85
    %v88 = vsub.f32 %v9, %v86
    %v89 = vmul.f32 %v88, %v88
    %v91 = vcombine.high %v89, %v89
    %v93 = vunpack.c.l.s4 1983009808
    %v94 = vunpack.c.0.s8 %v93
    %v95 = vlaneseq
    %v96 = vshrl.u32 %v95, 7
    %v97 = vsub.s32 %v94, %v96
    %v98 = vrot.slane %v89, %v97
    %v100 = vunpack.c.l.s4 1983009808
    %v101 = vunpack.c.0.s8 %v100
    %v102 = vlaneseq
    %v103 = vshrl.u32 %v102, 7
    %v104 = vsub.s32 %v101, %v103
    %v105 = vrot.slane %v91, %v104
    %v106 = vcombine.high %v98, %v98
    %v107 = vcombine.high %v105, %v105
    %v112 = vsel %vm32, %v98, 0.0
    %v113 = vrot.slane %v112, 4
    %v114 = vadd.f32 %v112, %v113
    %v115 = vrot.slane %v114, 2
    %v116 = vadd.f32 %v114, %v115
    %v117 = vrot.slane %v116, 1
    %v118 = vadd.f32 %v116, %v117
    %v119 = vsel %vm32, %v106, 0.0
    %v120 = vrot.slane %v119, 4
    %v121 = vadd.f32 %v119, %v120
    %v122 = vrot.slane %v121, 2
    %v123 = vadd.f32 %v121, %v122
    %v124 = vrot.slane %v123, 1
    %v125 = vadd.f32 %v123, %v124
    %v126 = vsel %vm32, %v105, 0.0
    %v127 = vrot.slane %v126, 4
    %v128 = vadd.f32 %v126, %v127
    %v129 = vrot.slane %v128, 2
    %v130 = vadd.f32 %v128, %v129
    %v131 = vrot.slane %v130, 1
    %v132 = vadd.f32 %v130, %v131
    %v133 = vsel %vm32, %v107, 0.0
    %v134 = vrot.slane %v133, 4
    %v135 = vadd.f32 %v133, %v134
    %v136 = vrot.slane %v135, 2
    %v137 = vadd.f32 %v135, %v136
    %v138 = vrot.slane %v137, 1
    %v139 = vadd.f32 %v137, %v138
    %v140 = vmul.f32 %v118, %v61
    %v141 = vmul.f32 %v125, %v61
    %v142 = vmul.f32 %v132, %v61
    %v143 = vmul.f32 %v139, %v61
    %v144 = vadd.f32 %v140, 1e-08
    %v145 = vadd.f32 %v141, 1e-08
    %v146 = vadd.f32 %v142, 1e-08
    %v147 = vadd.f32 %v143, 1e-08
    %v148 = vrsqrt.pop %v144
    %v149 = vmul.f32 %v144, %v148
    %vm150 = vcmp.eq.f32.partialorder %v144, inf
    %v151 = vsel %vm150, %v144, %v149
    %vm152 = vcmp.eq.f32.partialorder %v144, 0.0
    %v153 = vand.u32 %v144, 2147483648
    %v154 = vsel %vm152, %v153, %v151
    %v155 = vrsqrt.pop %v145
    %v156 = vmul.f32 %v145, %v155
    %vm157 = vcmp.eq.f32.partialorder %v145, inf
    %v158 = vsel %vm157, %v145, %v156
    %vm159 = vcmp.eq.f32.partialorder %v145, 0.0
    %v160 = vand.u32 %v145, 2147483648
    %v161 = vsel %vm159, %v160, %v158
    %v162 = vrsqrt.pop %v146
    %v163 = vmul.f32 %v146, %v162
    %vm164 = vcmp.eq.f32.partialorder %v146, inf
    %v165 = vsel %vm164, %v146, %v163
    %vm166 = vcmp.eq.f32.partialorder %v146, 0.0
    %v167 = vand.u32 %v146, 2147483648
    %v168 = vsel %vm166, %v167, %v165
    %v169 = vrsqrt.pop %v147
    %v170 = vmul.f32 %v147, %v169
    %vm171 = vcmp.eq.f32.partialorder %v147, inf
    %v172 = vsel %vm171, %v147, %v170
    %vm173 = vcmp.eq.f32.partialorder %v147, 0.0
    %v174 = vand.u32 %v147, 2147483648
    %v175 = vsel %vm173, %v174, %v172
    %v176 = vadd.f32 %v154, %v161
    %v177 = vadd.f32 %v176, %v168
    %v178 = vadd.f32 %v177, %v175
    %179 = vadd.xlane.f32.xlu0 %v178
    %v180 = vpop.xlane.xlu0 %179
    %v181 = vrcp.pop 512.0
    %v182 = vmul.f32 %v180, %v181
    %vm183 = vcmask 0
    %184 = vst.msk [vmem:[#allocation2] sm:$0x1] %vm183, %v182
    // Predicated region
    $region6: #{forward.11} parent=1 // pred_check
      _
    $region7: #{forward.11} parent=1 // pred_check_branch
      %186 = sbr.rel (0) target = $region9
    $region8: #{forward.11} parent=1 // pred_region
      %s188 = ssub.s32 16, 16
      %189 = vsyncadd [#allocation3], %s188
      %s191 = sshll.u32 [#allocation2], 4
      %s192 = int_to_ptr.vmem [resolvable:$true] %s191
      %194 = dma.vmem_to_hbm [thread:$0]  %s192, 16, %s1, [#allocation3]
    $region9: #{forward.11} parent=1 // pred_fallthru
      _
    // Predicated region
    $region10: #{forward.11} parent=1 // pred_check
      _
    $region11: #{forward.11} parent=1 // pred_check_branch
      %196 = sbr.rel (0) target = $region13
    $region12: #{forward.11} parent=1 // pred_region
      %197 = dma.done [#allocation3], 16
    $region13: #{forward.11} parent=1 // pred_fallthru
      _
    %198 = vsyncpa [#allocation3], 1

// kernel: forward.8
$region0: #{forward.8}
  #allocation0 [shape = 'u32[]', space=smem, size = 0x4, offset = 0x4, fixed_abs, tag = 'smem constant byte address 0x4 - core index']
  #allocation1 [shape = 'u32[144,128]{1,0:T(1,128)}', space=vmem, size = 0x12000, scoped, tag = 'internal scratch']
  %s0 = inlined_call_operand.vmem [shape: bf16[222,128], index: 0, kind: input, shape index: {}]
  %s1 = inlined_call_operand.vmem [shape: bf16[9,128,128], index: 1, kind: input, shape index: {}]
  %s2 = inlined_call_operand.vmem [shape: f32[1,128], index: 2, kind: input, shape index: {}]
  %s3 = inlined_call_operand.vmem [shape: f32[200,1], index: 3, kind: input, shape index: {}]
  %s4 = inlined_call_operand.vmem [shape: bf16[200,128], index: 4, kind: output, shape index: {}]
  %s5 = sld [smem:[#allocation0]]
  $region26: #{forward.8} parent=0
    _
  %s7 = ssub.s32 1, %s5
  %s8 = scalar_select 0, %s7, %s5
  // Predicated region
  $region2: #{forward.8} parent=0 // pred_check
    _
  $region3: #{forward.8} parent=0 // pred_check_branch
    %10 = sbr.rel (0) target = $region5
  $region4: #{forward.8} parent=0 // pred_region
    _
  $region5: #{forward.8} parent=0 // pred_fallthru
    _
  // Predicated region
  $region6: #{forward.8} parent=0 // pred_check
    _
  $region7: #{forward.8} parent=0 // pred_check_branch
    %12 = sbr.rel (0) target = $region9
  $region8: #{forward.8} parent=0 // pred_region
    _
  $region9: #{forward.8} parent=0 // pred_fallthru
    _
  // Predicated region
  $region10: #{forward.8} parent=0 // pred_check
    _
  $region11: #{forward.8} parent=0 // pred_check_branch
    %14 = sbr.rel (0) target = $region13
  $region12: #{forward.8} parent=0 // pred_region
    _
  $region13: #{forward.8} parent=0 // pred_fallthru
    _
  // Predicated region
  $region14: #{forward.8} parent=0 // pred_check
    _
  $region15: #{forward.8} parent=0 // pred_check_branch
    %16 = sbr.rel (0) target = $region17
  $region16: #{forward.8} parent=0 // pred_region
    _
  $region17: #{forward.8} parent=0 // pred_fallthru
    _
  %v18 = vld [vmem:[%s0] sm:$0xf]
  %v19 = vld [vmem:[%s0 + $0x4] sm:$0xf]
  %v20 = vld [vmem:[%s0 + $0x8] sm:$0xf]
  %v21 = vld [vmem:[%s0 + $0xc] sm:$0xf]
  %v22 = vld [vmem:[%s0 + $0x10] sm:$0xf]
  %v23 = vld [vmem:[%s0 + $0x14] sm:$0xf]
  %v24 = vld [vmem:[%s0 + $0x18] sm:$0xf]
  %v25 = vld [vmem:[%s0 + $0x1c] sm:$0xf]
  %v26 = vld [vmem:[%s0 + $0x20] sm:$0xf]
  %v27 = vld [vmem:[%s0 + $0x24] sm:$0xf]
  %v28 = vld [vmem:[%s0 + $0x28] sm:$0xf]
  %v29 = vld [vmem:[%s0 + $0x2c] sm:$0xf]
  %v30 = vld [vmem:[%s0 + $0x30] sm:$0xf]
  %v31 = vld [vmem:[%s0 + $0x34] sm:$0xf]
  %v32 = vld [vmem:[%s0 + $0x38] sm:$0xf]
  %v33 = vld [vmem:[%s0 + $0x3c] sm:$0xf]
  %v34 = vld [vmem:[%s0 + $0x40] sm:$0xf]
  %v35 = vld [vmem:[%s0 + $0x44] sm:$0xf]
  %v36 = vld [vmem:[%s0 + $0x48] sm:$0xf]
  %v37 = vld [vmem:[%s0 + $0x4c] sm:$0xf]
  %v38 = vld [vmem:[%s0 + $0x50] sm:$0xf]
  %v39 = vld [vmem:[%s0 + $0x54] sm:$0xf]
  %v40 = vld [vmem:[%s0 + $0x58] sm:$0xf]
  %v41 = vld [vmem:[%s0 + $0x5c] sm:$0xf]
  %v42 = vld [vmem:[%s0 + $0x60] sm:$0xf]
  %v43 = vld [vmem:[%s1] sm:$0xf]
  %v44 = vld [vmem:[%s1 + $0x4] sm:$0xf]
  %v45 = vld [vmem:[%s1 + $0x8] sm:$0xf]
  %v46 = vld [vmem:[%s1 + $0xc] sm:$0xf]
  %v47 = vld [vmem:[%s1 + $0x10] sm:$0xf]
  %v48 = vld [vmem:[%s1 + $0x14] sm:$0xf]
  %v49 = vld [vmem:[%s1 + $0x18] sm:$0xf]
  %v50 = vld [vmem:[%s1 + $0x1c] sm:$0xf]
  %v51 = vld [vmem:[%s1 + $0x20] sm:$0xf]
  %v52 = vld [vmem:[%s1 + $0x24] sm:$0xf]
  %v53 = vld [vmem:[%s1 + $0x28] sm:$0xf]
  %v54 = vld [vmem:[%s1 + $0x2c] sm:$0xf]
  %v55 = vld [vmem:[%s1 + $0x30] sm:$0xf]
  %v56 = vld [vmem:[%s1 + $0x34] sm:$0xf]
  %v57 = vld [vmem:[%s1 + $0x38] sm:$0xf]
  %v58 = vld [vmem:[%s1 + $0x3c] sm:$0xf]
  %v59 = vld [vmem:[%s0 + $0x64] sm:$0x1]
  %s60 = scalar_lea.vmem %s1, 64
  %v61 = vld [vmem:[%s60] sm:$0xf]
  %v62 = vld [vmem:[%s60 + $0x4] sm:$0xf]
  %v63 = vld [vmem:[%s60 + $0x8] sm:$0xf]
  %v64 = vld [vmem:[%s60 + $0xc] sm:$0xf]
  %v65 = vld [vmem:[%s60 + $0x10] sm:$0xf]
  %v66 = vld [vmem:[%s60 + $0x14] sm:$0xf]
  %v67 = vld [vmem:[%s60 + $0x18] sm:$0xf]
  %v68 = vld [vmem:[%s60 + $0x1c] sm:$0xf]
  %v69 = vld [vmem:[%s60 + $0x20] sm:$0xf]
  %v70 = vld [vmem:[%s60 + $0x24] sm:$0xf]
  %v71 = vld [vmem:[%s60 + $0x28] sm:$0xf]
  %v72 = vld [vmem:[%s60 + $0x2c] sm:$0xf]
  %v73 = vld [vmem:[%s60 + $0x30] sm:$0xf]
  %v74 = vld [vmem:[%s60 + $0x34] sm:$0xf]
  %v75 = vld [vmem:[%s60 + $0x38] sm:$0xf]
  %v76 = vld [vmem:[%s60 + $0x3c] sm:$0xf]
  %v103 = vunpack.c.l.b16 %v18
  %v104 = vunpack.c.l.b16 %v19
  %v105 = vunpack.c.l.b16 %v20
  %v106 = vunpack.c.l.b16 %v21
  %v107 = vunpack.c.l.b16 %v22
  %v108 = vunpack.c.l.b16 %v23
  %v109 = vunpack.c.l.b16 %v24
  %v110 = vunpack.c.l.b16 %v25
  %v111 = vunpack.c.l.b16 %v26
  %v112 = vunpack.c.l.b16 %v27
  %v113 = vunpack.c.l.b16 %v28
  %v114 = vunpack.c.l.b16 %v29
  %v115 = vunpack.c.l.b16 %v30
  %v116 = vunpack.c.l.b16 %v31
  %v117 = vunpack.c.l.b16 %v32
  %v118 = vunpack.c.l.b16 %v33
  %v119 = vunpack.c.l.b16 %v34
  %v120 = vunpack.c.l.b16 %v35
  %v121 = vunpack.c.l.b16 %v36
  %v122 = vunpack.c.l.b16 %v37
  %v123 = vunpack.c.l.b16 %v38
  %v124 = vunpack.c.l.b16 %v39
  %v125 = vunpack.c.l.b16 %v40
  %v126 = vunpack.c.l.b16 %v41
  %v127 = vunpack.c.l.b16 %v42
  %v128 = vunpack.c.l.b16 %v59
  %v129 = vpack.c.b16 %v104, %v103
  %v130 = vpack.c.b16 %v106, %v105
  %v131 = vpack.c.b16 %v108, %v107
  %v132 = vpack.c.b16 %v110, %v109
  %v133 = vpack.c.b16 %v112, %v111
  %v134 = vpack.c.b16 %v114, %v113
  %v135 = vpack.c.b16 %v116, %v115
  %v136 = vpack.c.b16 %v118, %v117
  %v137 = vpack.c.b16 %v120, %v119
  %v138 = vpack.c.b16 %v122, %v121
  %v139 = vpack.c.b16 %v124, %v123
  %v140 = vpack.c.b16 %v126, %v125
  %v141 = vpack.c.b16 %v128, %v127
  %vm142 = vsmask.f32 7424
  %v144 = vshrl.u32 %v129, 16
  %v146 = vshll.u32 %v129, 16
  %v148 = vrot.slane %v146, 1
  %v149 = vor.u32 %v144, %v148
  %v151 = vshll.u32 %v130, 16
  %v153 = vrot.slane %v151, 1
  %v154 = vsel %vm142, %v149, %v153
  %v155 = vshrl.u32 %v130, 16
  %v157 = vor.u32 %v155, %v153
  %v159 = vshll.u32 %v131, 16
  %v161 = vrot.slane %v159, 1
  %v162 = vsel %vm142, %v157, %v161
  %v163 = vshrl.u32 %v131, 16
  %v165 = vor.u32 %v163, %v161
  %v167 = vshll.u32 %v132, 16
  %v169 = vrot.slane %v167, 1
  %v170 = vsel %vm142, %v165, %v169
  %v171 = vshrl.u32 %v132, 16
  %v173 = vor.u32 %v171, %v169
  %v175 = vshll.u32 %v133, 16
  %v177 = vrot.slane %v175, 1
  %v178 = vsel %vm142, %v173, %v177
  %v179 = vshrl.u32 %v133, 16
  %v181 = vor.u32 %v179, %v177
  %v183 = vshll.u32 %v134, 16
  %v185 = vrot.slane %v183, 1
  %v186 = vsel %vm142, %v181, %v185
  %v187 = vshrl.u32 %v134, 16
  %v189 = vor.u32 %v187, %v185
  %v191 = vshll.u32 %v135, 16
  %v193 = vrot.slane %v191, 1
  %v194 = vsel %vm142, %v189, %v193
  %v195 = vshrl.u32 %v135, 16
  %v197 = vor.u32 %v195, %v193
  %v199 = vshll.u32 %v136, 16
  %v201 = vrot.slane %v199, 1
  %v202 = vsel %vm142, %v197, %v201
  %v203 = vshrl.u32 %v136, 16
  %v205 = vor.u32 %v203, %v201
  %v207 = vshll.u32 %v137, 16
  %v209 = vrot.slane %v207, 1
  %v210 = vsel %vm142, %v205, %v209
  %v211 = vshrl.u32 %v137, 16
  %v213 = vor.u32 %v211, %v209
  %v215 = vshll.u32 %v138, 16
  %v217 = vrot.slane %v215, 1
  %v218 = vsel %vm142, %v213, %v217
  %v219 = vshrl.u32 %v138, 16
  %v221 = vor.u32 %v219, %v217
  %v223 = vshll.u32 %v139, 16
  %v225 = vrot.slane %v223, 1
  %v226 = vsel %vm142, %v221, %v225
  %v227 = vshrl.u32 %v139, 16
  %v229 = vor.u32 %v227, %v225
  %v231 = vshll.u32 %v140, 16
  %v233 = vrot.slane %v231, 1
  %v234 = vsel %vm142, %v229, %v233
  %v235 = vshrl.u32 %v140, 16
  %v237 = vor.u32 %v235, %v233
  %v239 = vshll.u32 %v141, 16
  %v241 = vrot.slane %v239, 1
  %v242 = vsel %vm142, %v237, %v241
  %v243 = vshrl.u32 %v141, 16
  %v245 = vor.u32 %v243, %v241
  %v275 = vunpack.c.l.b16 %v61
  %v276 = vunpack.c.l.b16 %v62
  %v277 = vunpack.c.l.b16 %v63
  %v278 = vunpack.c.l.b16 %v64
  %v279 = vunpack.c.l.b16 %v65
  %v280 = vunpack.c.l.b16 %v66
  %v281 = vunpack.c.l.b16 %v67
  %v282 = vunpack.c.l.b16 %v68
  %v283 = vunpack.c.l.b16 %v69
  %v284 = vunpack.c.l.b16 %v70
  %v285 = vunpack.c.l.b16 %v71
  %v286 = vunpack.c.l.b16 %v72
  %v287 = vunpack.c.l.b16 %v73
  %v288 = vunpack.c.l.b16 %v74
  %v289 = vunpack.c.l.b16 %v75
  %v290 = vunpack.c.l.b16 %v76
  %v291 = vpack.c.b16 %v276, %v275
  %v292 = vpack.c.b16 %v278, %v277
  %v293 = vpack.c.b16 %v280, %v279
  %v294 = vpack.c.b16 %v282, %v281
  %v295 = vpack.c.b16 %v284, %v283
  %v296 = vpack.c.b16 %v286, %v285
  %v297 = vpack.c.b16 %v288, %v287
  %v298 = vpack.c.b16 %v290, %v289
  %307 = vmatprep.subr.bf16.mxu0 0
  %308 = vmatpush1.bf16.msra.mxu0 %v298
  %309 = vmatprep.subr.bf16.mxu0 0
  %310 = vmatpush1.bf16.msra.mxu0 %v297
  %311 = vmatprep.subr.bf16.mxu0 0
  %312 = vmatpush1.bf16.msra.mxu0 %v296
  %313 = vmatprep.subr.bf16.mxu0 0
  %314 = vmatpush1.bf16.msra.mxu0 %v295
  %315 = vmatprep.subr.bf16.mxu0 0
  %316 = vmatpush1.bf16.msra.mxu0 %v294
  %317 = vmatprep.subr.bf16.mxu0 0
  %318 = vmatpush1.bf16.msra.mxu0 %v293
  %319 = vmatprep.subr.bf16.mxu0 0
  %320 = vmatpush1.bf16.msra.mxu0 %v292
  %321 = vmatprep.subr.bf16.mxu0 0
  %322 = vmatpush1.bf16.msra.mxu0 %v291
  %323 = vmatprep.subr.bf16.mxu0 0
  %324 = vmatpush2.bf16.msra.mxu0 0
  %325 = vmatprep.subr.bf16.mxu0 0
  %326 = vmatpush2.bf16.msra.mxu0 0
  %327 = vmatprep.subr.bf16.mxu0 0
  %328 = vmatpush2.bf16.msra.mxu0 0
  %329 = vmatprep.subr.bf16.mxu0 0
  %330 = vmatpush2.bf16.msra.mxu0 0
  %331 = vmatprep.subr.bf16.mxu0 0
  %332 = vmatpush2.bf16.msra.mxu0 0
  %333 = vmatprep.subr.bf16.mxu0 0
  %334 = vmatpush2.bf16.msra.mxu0 0
  %335 = vmatprep.subr.bf16.mxu0 0
  %336 = vmatpush2.bf16.msra.mxu0 0
  %337 = vmatprep.subr.bf16.mxu0 0
  %338 = vmatpush2.bf16.msra.mxu0 0
  %339 = vmatprep.mubr.bf16.mxu0 0
  %340 = vmatmul.mubr.bf16.gmra.mxu0 %v154
  %v341 = vpop.f32.mrf.mxu0
  %v342 = vadd.f32 0.0, %v341
  %v343 = vpop.f32.mrf.mxu0
  %v344 = vpop.f32.mrf.mxu0
  %v345 = vadd.f32 0.0, %v344
  %v346 = vpop.f32.mrf.mxu0
  %347 = vmatprep.mubr.bf16.mxu0 0
  %348 = vmatmul.mubr.bf16.gmra.mxu0 %v162
  %v349 = vpop.f32.mrf.mxu0
  %v350 = vadd.f32 0.0, %v349
  %v351 = vpop.f32.mrf.mxu0
  %v352 = vpop.f32.mrf.mxu0
  %v353 = vadd.f32 0.0, %v352
  %v354 = vpop.f32.mrf.mxu0
  %355 = vmatprep.mubr.bf16.mxu0 0
  %356 = vmatmul.mubr.bf16.gmra.mxu0 %v170
  %v357 = vpop.f32.mrf.mxu0
  %v358 = vadd.f32 0.0, %v357
  %v359 = vpop.f32.mrf.mxu0
  %v360 = vpop.f32.mrf.mxu0
  %v361 = vadd.f32 0.0, %v360
  %v362 = vpop.f32.mrf.mxu0
  %363 = vmatprep.mubr.bf16.mxu0 0
  %364 = vmatmul.mubr.bf16.gmra.mxu0 %v178
  %v365 = vpop.f32.mrf.mxu0
  %v366 = vadd.f32 0.0, %v365
  %v367 = vpop.f32.mrf.mxu0
  %v368 = vpop.f32.mrf.mxu0
  %v369 = vadd.f32 0.0, %v368
  %v370 = vpop.f32.mrf.mxu0
  %371 = vmatprep.mubr.bf16.mxu0 0
  %372 = vmatmul.mubr.bf16.gmra.mxu0 %v186
  %v373 = vpop.f32.mrf.mxu0
  %v374 = vadd.f32 0.0, %v373
  %v375 = vpop.f32.mrf.mxu0
  %v376 = vpop.f32.mrf.mxu0
  %v377 = vadd.f32 0.0, %v376
  %v378 = vpop.f32.mrf.mxu0
  %379 = vmatprep.mubr.bf16.mxu0 0
  %380 = vmatmul.mubr.bf16.gmra.mxu0 %v194
  %v381 = vpop.f32.mrf.mxu0
  %v382 = vadd.f32 0.0, %v381
  %v383 = vpop.f32.mrf.mxu0
  %v384 = vpop.f32.mrf.mxu0
  %v385 = vadd.f32 0.0, %v384
  %v386 = vpop.f32.mrf.mxu0
  %387 = vmatprep.mubr.bf16.mxu0 0
  %388 = vmatmul.mubr.bf16.gmra.mxu0 %v202
  %v389 = vpop.f32.mrf.mxu0
  %v390 = vadd.f32 0.0, %v389
  %v391 = vpop.f32.mrf.mxu0
  %v392 = vpop.f32.mrf.mxu0
  %v393 = vadd.f32 0.0, %v392
  %v394 = vpop.f32.mrf.mxu0
  %395 = vmatprep.mubr.bf16.mxu0 0
  %396 = vmatmul.mubr.bf16.gmra.mxu0 %v210
  %v397 = vpop.f32.mrf.mxu0
  %v398 = vadd.f32 0.0, %v397
  %v399 = vpop.f32.mrf.mxu0
  %v400 = vpop.f32.mrf.mxu0
  %v401 = vadd.f32 0.0, %v400
  %v402 = vpop.f32.mrf.mxu0
  %403 = vmatprep.mubr.bf16.mxu0 0
  %404 = vmatmul.mubr.bf16.gmra.mxu0 %v218
  %v405 = vpop.f32.mrf.mxu0
  %v406 = vadd.f32 0.0, %v405
  %v407 = vpop.f32.mrf.mxu0
  %v408 = vpop.f32.mrf.mxu0
  %v409 = vadd.f32 0.0, %v408
  %v410 = vpop.f32.mrf.mxu0
  %411 = vmatprep.mubr.bf16.mxu0 0
  %412 = vmatmul.mubr.bf16.gmra.mxu0 %v226
  %v413 = vpop.f32.mrf.mxu0
  %v414 = vadd.f32 0.0, %v413
  %v415 = vpop.f32.mrf.mxu0
  %v416 = vpop.f32.mrf.mxu0
  %v417 = vadd.f32 0.0, %v416
  %v418 = vpop.f32.mrf.mxu0
  %419 = vmatprep.mubr.bf16.mxu0 0
  %420 = vmatmul.mubr.bf16.gmra.mxu0 %v234
  %v421 = vpop.f32.mrf.mxu0
  %v422 = vadd.f32 0.0, %v421
  %v423 = vpop.f32.mrf.mxu0
  %v424 = vpop.f32.mrf.mxu0
  %v425 = vadd.f32 0.0, %v424
  %v426 = vpop.f32.mrf.mxu0
  %427 = vmatprep.mubr.bf16.mxu0 0
  %428 = vmatmul.mubr.bf16.gmra.mxu0 %v242
  %v429 = vpop.f32.mrf.mxu0
  %v430 = vadd.f32 0.0, %v429
  %v431 = vpop.f32.mrf.mxu0
  %v432 = vpop.f32.mrf.mxu0
  %v433 = vadd.f32 0.0, %v432
  %v434 = vpop.f32.mrf.mxu0
  %435 = vmatprep.mubr.bf16.mxu0 0
  %436 = vmatmul.mubr.bf16.gmra.mxu0 %v245
  %v437 = vpop.f32.mrf.mxu0
  %v438 = vadd.f32 0.0, %v437
  %v439 = vpop.f32.mrf.mxu0
  %v440 = vpop.f32.mrf.mxu0
  %v441 = vpop.f32.mrf.mxu0
  %442 = vdwg.mxu0
  %v443 = vpack.c.b16 %v127, %v127
  %v473 = vunpack.c.l.b16 %v43
  %v474 = vunpack.c.l.b16 %v44
  %v475 = vunpack.c.l.b16 %v45
  %v476 = vunpack.c.l.b16 %v46
  %v477 = vunpack.c.l.b16 %v47
  %v478 = vunpack.c.l.b16 %v48
  %v479 = vunpack.c.l.b16 %v49
  %v480 = vunpack.c.l.b16 %v50
  %v481 = vunpack.c.l.b16 %v51
  %v482 = vunpack.c.l.b16 %v52
  %v483 = vunpack.c.l.b16 %v53
  %v484 = vunpack.c.l.b16 %v54
  %v485 = vunpack.c.l.b16 %v55
  %v486 = vunpack.c.l.b16 %v56
  %v487 = vunpack.c.l.b16 %v57
  %v488 = vunpack.c.l.b16 %v58
  %v489 = vpack.c.b16 %v474, %v473
  %v490 = vpack.c.b16 %v476, %v475
  %v491 = vpack.c.b16 %v478, %v477
  %v492 = vpack.c.b16 %v480, %v479
  %v493 = vpack.c.b16 %v482, %v481
  %v494 = vpack.c.b16 %v484, %v483
  %v495 = vpack.c.b16 %v486, %v485
  %v496 = vpack.c.b16 %v488, %v487
  %505 = vmatprep.subr.bf16.mxu0 0
  %506 = vmatpush1.bf16.msra.mxu0 %v496
  %507 = vmatprep.subr.bf16.mxu0 0
  %508 = vmatpush1.bf16.msra.mxu0 %v495
  %509 = vmatprep.subr.bf16.mxu0 0
  %510 = vmatpush1.bf16.msra.mxu0 %v494
  %511 = vmatprep.subr.bf16.mxu0 0
  %512 = vmatpush1.bf16.msra.mxu0 %v493
  %513 = vmatprep.subr.bf16.mxu0 0
  %514 = vmatpush1.bf16.msra.mxu0 %v492
  %515 = vmatprep.subr.bf16.mxu0 0
  %516 = vmatpush1.bf16.msra.mxu0 %v491
  %517 = vmatprep.subr.bf16.mxu0 0
  %518 = vmatpush1.bf16.msra.mxu0 %v490
  %519 = vmatprep.subr.bf16.mxu0 0
  %520 = vmatpush1.bf16.msra.mxu0 %v489
  %521 = vmatprep.subr.bf16.mxu0 0
  %522 = vmatpush2.bf16.msra.mxu0 0
  %523 = vmatprep.subr.bf16.mxu0 0
  %524 = vmatpush2.bf16.msra.mxu0 0
  %525 = vmatprep.subr.bf16.mxu0 0
  %526 = vmatpush2.bf16.msra.mxu0 0
  %527 = vmatprep.subr.bf16.mxu0 0
  %528 = vmatpush2.bf16.msra.mxu0 0
  %529 = vmatprep.subr.bf16.mxu0 0
  %530 = vmatpush2.bf16.msra.mxu0 0
  %531 = vmatprep.subr.bf16.mxu0 0
  %532 = vmatpush2.bf16.msra.mxu0 0
  %533 = vmatprep.subr.bf16.mxu0 0
  %534 = vmatpush2.bf16.msra.mxu0 0
  %535 = vmatprep.subr.bf16.mxu0 0
  %536 = vmatpush2.bf16.msra.mxu0 0
  %537 = vmatprep.mubr.bf16.mxu0 0
  %538 = vmatmul.mubr.bf16.gmra.mxu0 %v129
  %v539 = vpop.f32.mrf.mxu0
  %v540 = vadd.f32 %v342, %v539
  %v541 = vpop.f32.mrf.mxu0
  %v542 = vpop.f32.mrf.mxu0
  %v543 = vadd.f32 %v345, %v542
  %v544 = vpop.f32.mrf.mxu0
  %545 = vmatprep.mubr.bf16.mxu0 0
  %546 = vmatmul.mubr.bf16.gmra.mxu0 %v130
  %v547 = vpop.f32.mrf.mxu0
  %v548 = vadd.f32 %v350, %v547
  %v549 = vpop.f32.mrf.mxu0
  %v550 = vpop.f32.mrf.mxu0
  %v551 = vadd.f32 %v353, %v550
  %v552 = vpop.f32.mrf.mxu0
  %553 = vmatprep.mubr.bf16.mxu0 0
  %554 = vmatmul.mubr.bf16.gmra.mxu0 %v131
  %v555 = vpop.f32.mrf.mxu0
  %v556 = vadd.f32 %v358, %v555
  %v557 = vpop.f32.mrf.mxu0
  %v558 = vpop.f32.mrf.mxu0
  %v559 = vadd.f32 %v361, %v558
  %v560 = vpop.f32.mrf.mxu0
  %561 = vmatprep.mubr.bf16.mxu0 0
  %562 = vmatmul.mubr.bf16.gmra.mxu0 %v132
  %v563 = vpop.f32.mrf.mxu0
  %v564 = vadd.f32 %v366, %v563
  %v565 = vpop.f32.mrf.mxu0
  %v566 = vpop.f32.mrf.mxu0
  %v567 = vadd.f32 %v369, %v566
  %v568 = vpop.f32.mrf.mxu0
  %569 = vmatprep.mubr.bf16.mxu0 0
  %570 = vmatmul.mubr.bf16.gmra.mxu0 %v133
  %v571 = vpop.f32.mrf.mxu0
  %v572 = vadd.f32 %v374, %v571
  %v573 = vpop.f32.mrf.mxu0
  %v574 = vpop.f32.mrf.mxu0
  %v575 = vadd.f32 %v377, %v574
  %v576 = vpop.f32.mrf.mxu0
  %577 = vmatprep.mubr.bf16.mxu0 0
  %578 = vmatmul.mubr.bf16.gmra.mxu0 %v134
  %v579 = vpop.f32.mrf.mxu0
  %v580 = vadd.f32 %v382, %v579
  %v581 = vpop.f32.mrf.mxu0
  %v582 = vpop.f32.mrf.mxu0
  %v583 = vadd.f32 %v385, %v582
  %v584 = vpop.f32.mrf.mxu0
  %585 = vmatprep.mubr.bf16.mxu0 0
  %586 = vmatmul.mubr.bf16.gmra.mxu0 %v135
  %v587 = vpop.f32.mrf.mxu0
  %v588 = vadd.f32 %v390, %v587
  %v589 = vpop.f32.mrf.mxu0
  %v590 = vpop.f32.mrf.mxu0
  %v591 = vadd.f32 %v393, %v590
  %v592 = vpop.f32.mrf.mxu0
  %593 = vmatprep.mubr.bf16.mxu0 0
  %594 = vmatmul.mubr.bf16.gmra.mxu0 %v136
  %v595 = vpop.f32.mrf.mxu0
  %v596 = vadd.f32 %v398, %v595
  %v597 = vpop.f32.mrf.mxu0
  %v598 = vpop.f32.mrf.mxu0
  %v599 = vadd.f32 %v401, %v598
  %v600 = vpop.f32.mrf.mxu0
  %601 = vmatprep.mubr.bf16.mxu0 0
  %602 = vmatmul.mubr.bf16.gmra.mxu0 %v137
  %v603 = vpop.f32.mrf.mxu0
  %v604 = vadd.f32 %v406, %v603
  %v605 = vpop.f32.mrf.mxu0
  %v606 = vpop.f32.mrf.mxu0
  %v607 = vadd.f32 %v409, %v606
  %v608 = vpop.f32.mrf.mxu0
  %609 = vmatprep.mubr.bf16.mxu0 0
  %610 = vmatmul.mubr.bf16.gmra.mxu0 %v138
  %v611 = vpop.f32.mrf.mxu0
  %v612 = vadd.f32 %v414, %v611
  %v613 = vpop.f32.mrf.mxu0
  %v614 = vpop.f32.mrf.mxu0
  %v615 = vadd.f32 %v417, %v614
  %v616 = vpop.f32.mrf.mxu0
  %617 = vmatprep.mubr.bf16.mxu0 0
  %618 = vmatmul.mubr.bf16.gmra.mxu0 %v139
  %v619 = vpop.f32.mrf.mxu0
  %v620 = vadd.f32 %v422, %v619
  %v621 = vpop.f32.mrf.mxu0
  %v622 = vpop.f32.mrf.mxu0
  %v623 = vadd.f32 %v425, %v622
  %v624 = vpop.f32.mrf.mxu0
  %625 = vmatprep.mubr.bf16.mxu0 0
  %626 = vmatmul.mubr.bf16.gmra.mxu0 %v140
  %v627 = vpop.f32.mrf.mxu0
  %v628 = vadd.f32 %v430, %v627
  %v629 = vpop.f32.mrf.mxu0
  %v630 = vpop.f32.mrf.mxu0
  %v631 = vadd.f32 %v433, %v630
  %v632 = vpop.f32.mrf.mxu0
  %633 = vmatprep.mubr.bf16.mxu0 0
  %634 = vmatmul.mubr.bf16.gmra.mxu0 %v443
  %v635 = vpop.f32.mrf.mxu0
  %v636 = vadd.f32 %v438, %v635
  %v637 = vpop.f32.mrf.mxu0
  %v638 = vpop.f32.mrf.mxu0
  %v639 = vpop.f32.mrf.mxu0
  %640 = vdwg.mxu0
  %v641 = vld [vmem:[%s0] sm:$0xe]
  %s642 = scalar_lea.vmem %s1, 128
  %v643 = vld [vmem:[%s642] sm:$0xf]
  %v644 = vld [vmem:[%s642 + $0x4] sm:$0xf]
  %v645 = vld [vmem:[%s642 + $0x8] sm:$0xf]
  %v646 = vld [vmem:[%s642 + $0xc] sm:$0xf]
  %v647 = vld [vmem:[%s642 + $0x10] sm:$0xf]
  %v648 = vld [vmem:[%s642 + $0x14] sm:$0xf]
  %v649 = vld [vmem:[%s642 + $0x18] sm:$0xf]
  %v650 = vld [vmem:[%s642 + $0x1c] sm:$0xf]
  %v651 = vld [vmem:[%s642 + $0x20] sm:$0xf]
  %v652 = vld [vmem:[%s642 + $0x24] sm:$0xf]
  %v653 = vld [vmem:[%s642 + $0x28] sm:$0xf]
  %v654 = vld [vmem:[%s642 + $0x2c] sm:$0xf]
  %v655 = vld [vmem:[%s642 + $0x30] sm:$0xf]
  %v656 = vld [vmem:[%s642 + $0x34] sm:$0xf]
  %v657 = vld [vmem:[%s642 + $0x38] sm:$0xf]
  %v658 = vld [vmem:[%s642 + $0x3c] sm:$0xf]
  %v660 = vunpack.c.l.b16 %v641
  %v661 = vpack.c.b16 %v104, %v660
  %vm662 = vcmask 1046528
  %v663 = vrot.slane %v661, 1
  %v664 = vrot.slane %v130, 1
  %v665 = vsel %vm662, %v663, %v664
  %v666 = vrot.slane %v131, 1
  %v667 = vsel %vm662, %v664, %v666
  %v668 = vrot.slane %v132, 1
  %v669 = vsel %vm662, %v666, %v668
  %v670 = vrot.slane %v133, 1
  %v671 = vsel %vm662, %v668, %v670
  %v672 = vrot.slane %v134, 1
  %v673 = vsel %vm662, %v670, %v672
  %v674 = vrot.slane %v135, 1
  %v675 = vsel %vm662, %v672, %v674
  %v676 = vrot.slane %v136, 1
  %v677 = vsel %vm662, %v674, %v676
  %v678 = vrot.slane %v137, 1
  %v679 = vsel %vm662, %v676, %v678
  %v680 = vrot.slane %v138, 1
  %v681 = vsel %vm662, %v678, %v680
  %v682 = vrot.slane %v139, 1
  %v683 = vsel %vm662, %v680, %v682
  %v684 = vrot.slane %v140, 1
  %v685 = vsel %vm662, %v682, %v684
  %v686 = vrot.slane %v141, 1
  %v687 = vsel %vm662, %v684, %v686
  %v717 = vunpack.c.l.b16 %v643
  %v718 = vunpack.c.l.b16 %v644
  %v719 = vunpack.c.l.b16 %v645
  %v720 = vunpack.c.l.b16 %v646
  %v721 = vunpack.c.l.b16 %v647
  %v722 = vunpack.c.l.b16 %v648
  %v723 = vunpack.c.l.b16 %v649
  %v724 = vunpack.c.l.b16 %v650
  %v725 = vunpack.c.l.b16 %v651
  %v726 = vunpack.c.l.b16 %v652
  %v727 = vunpack.c.l.b16 %v653
  %v728 = vunpack.c.l.b16 %v654
  %v729 = vunpack.c.l.b16 %v655
  %v730 = vunpack.c.l.b16 %v656
  %v731 = vunpack.c.l.b16 %v657
  %v732 = vunpack.c.l.b16 %v658
  %v733 = vpack.c.b16 %v718, %v717
  %v734 = vpack.c.b16 %v720, %v719
  %v735 = vpack.c.b16 %v722, %v721
  %v736 = vpack.c.b16 %v724, %v723
  %v737 = vpack.c.b16 %v726, %v725
  %v738 = vpack.c.b16 %v728, %v727
  %v739 = vpack.c.b16 %v730, %v729
  %v740 = vpack.c.b16 %v732, %v731
  %749 = vmatprep.subr.bf16.mxu0 0
  %750 = vmatpush1.bf16.msra.mxu0 %v740
  %751 = vmatprep.subr.bf16.mxu0 0
  %752 = vmatpush1.bf16.msra.mxu0 %v739
  %753 = vmatprep.subr.bf16.mxu0 0
  %754 = vmatpush1.bf16.msra.mxu0 %v738
  %755 = vmatprep.subr.bf16.mxu0 0
  %756 = vmatpush1.bf16.msra.mxu0 %v737
  %757 = vmatprep.subr.bf16.mxu0 0
  %758 = vmatpush1.bf16.msra.mxu0 %v736
  %759 = vmatprep.subr.bf16.mxu0 0
  %760 = vmatpush1.bf16.msra.mxu0 %v735
  %761 = vmatprep.subr.bf16.mxu0 0
  %762 = vmatpush1.bf16.msra.mxu0 %v734
  %763 = vmatprep.subr.bf16.mxu0 0
  %764 = vmatpush1.bf16.msra.mxu0 %v733
  %765 = vmatprep.subr.bf16.mxu0 0
  %766 = vmatpush2.bf16.msra.mxu0 0
  %767 = vmatprep.subr.bf16.mxu0 0
  %768 = vmatpush2.bf16.msra.mxu0 0
  %769 = vmatprep.subr.bf16.mxu0 0
  %770 = vmatpush2.bf16.msra.mxu0 0
  %771 = vmatprep.subr.bf16.mxu0 0
  %772 = vmatpush2.bf16.msra.mxu0 0
  %773 = vmatprep.subr.bf16.mxu0 0
  %774 = vmatpush2.bf16.msra.mxu0 0
  %775 = vmatprep.subr.bf16.mxu0 0
  %776 = vmatpush2.bf16.msra.mxu0 0
  %777 = vmatprep.subr.bf16.mxu0 0
  %778 = vmatpush2.bf16.msra.mxu0 0
  %779 = vmatprep.subr.bf16.mxu0 0
  %780 = vmatpush2.bf16.msra.mxu0 0
  %781 = vmatprep.mubr.bf16.mxu0 0
  %782 = vmatmul.mubr.bf16.gmra.mxu0 %v665
  %v783 = vpop.f32.mrf.mxu0
  %v784 = vadd.f32 0.0, %v783
  %v785 = vpop.f32.mrf.mxu0
  %v786 = vpop.f32.mrf.mxu0
  %v787 = vadd.f32 0.0, %v786
  %v788 = vpop.f32.mrf.mxu0
  %789 = vmatprep.mubr.bf16.mxu0 0
  %790 = vmatmul.mubr.bf16.gmra.mxu0 %v667
  %v791 = vpop.f32.mrf.mxu0
  %v792 = vadd.f32 0.0, %v791
  %v793 = vpop.f32.mrf.mxu0
  %v794 = vpop.f32.mrf.mxu0
  %v795 = vadd.f32 0.0, %v794
  %v796 = vpop.f32.mrf.mxu0
  %797 = vmatprep.mubr.bf16.mxu0 0
  %798 = vmatmul.mubr.bf16.gmra.mxu0 %v669
  %v799 = vpop.f32.mrf.mxu0
  %v800 = vadd.f32 0.0, %v799
  %v801 = vpop.f32.mrf.mxu0
  %v802 = vpop.f32.mrf.mxu0
  %v803 = vadd.f32 0.0, %v802
  %v804 = vpop.f32.mrf.mxu0
  %805 = vmatprep.mubr.bf16.mxu0 0
  %806 = vmatmul.mubr.bf16.gmra.mxu0 %v671
  %v807 = vpop.f32.mrf.mxu0
  %v808 = vadd.f32 0.0, %v807
  %v809 = vpop.f32.mrf.mxu0
  %v810 = vpop.f32.mrf.mxu0
  %v811 = vadd.f32 0.0, %v810
  %v812 = vpop.f32.mrf.mxu0
  %813 = vmatprep.mubr.bf16.mxu0 0
  %814 = vmatmul.mubr.bf16.gmra.mxu0 %v673
  %v815 = vpop.f32.mrf.mxu0
  %v816 = vadd.f32 0.0, %v815
  %v817 = vpop.f32.mrf.mxu0
  %v818 = vpop.f32.mrf.mxu0
  %v819 = vadd.f32 0.0, %v818
  %v820 = vpop.f32.mrf.mxu0
  %821 = vmatprep.mubr.bf16.mxu0 0
  %822 = vmatmul.mubr.bf16.gmra.mxu0 %v675
  %v823 = vpop.f32.mrf.mxu0
  %v824 = vadd.f32 0.0, %v823
  %v825 = vpop.f32.mrf.mxu0
  %v826 = vpop.f32.mrf.mxu0
  %v827 = vadd.f32 0.0, %v826
  %v828 = vpop.f32.mrf.mxu0
  %829 = vmatprep.mubr.bf16.mxu0 0
  %830 = vmatmul.mubr.bf16.gmra.mxu0 %v677
  %v831 = vpop.f32.mrf.mxu0
  %v832 = vadd.f32 0.0, %v831
  %v833 = vpop.f32.mrf.mxu0
  %v834 = vpop.f32.mrf.mxu0
  %v835 = vadd.f32 0.0, %v834
  %v836 = vpop.f32.mrf.mxu0
  %837 = vmatprep.mubr.bf16.mxu0 0
  %838 = vmatmul.mubr.bf16.gmra.mxu0 %v679
  %v839 = vpop.f32.mrf.mxu0
  %v840 = vadd.f32 0.0, %v839
  %v841 = vpop.f32.mrf.mxu0
  %v842 = vpop.f32.mrf.mxu0
  %v843 = vadd.f32 0.0, %v842
  %v844 = vpop.f32.mrf.mxu0
  %845 = vmatprep.mubr.bf16.mxu0 0
  %846 = vmatmul.mubr.bf16.gmra.mxu0 %v681
  %v847 = vpop.f32.mrf.mxu0
  %v848 = vadd.f32 0.0, %v847
  %v849 = vpop.f32.mrf.mxu0
  %v850 = vpop.f32.mrf.mxu0
  %v851 = vadd.f32 0.0, %v850
  %v852 = vpop.f32.mrf.mxu0
  %853 = vmatprep.mubr.bf16.mxu0 0
  %854 = vmatmul.mubr.bf16.gmra.mxu0 %v683
  %v855 = vpop.f32.mrf.mxu0
  %v856 = vadd.f32 0.0, %v855
  %v857 = vpop.f32.mrf.mxu0
  %v858 = vpop.f32.mrf.mxu0
  %v859 = vadd.f32 0.0, %v858
  %v860 = vpop.f32.mrf.mxu0
  %861 = vmatprep.mubr.bf16.mxu0 0
  %862 = vmatmul.mubr.bf16.gmra.mxu0 %v685
  %v863 = vpop.f32.mrf.mxu0
  %v864 = vadd.f32 0.0, %v863
  %v865 = vpop.f32.mrf.mxu0
  %v866 = vpop.f32.mrf.mxu0
  %v867 = vadd.f32 0.0, %v866
  %v868 = vpop.f32.mrf.mxu0
  %869 = vmatprep.mubr.bf16.mxu0 0
  %870 = vmatmul.mubr.bf16.gmra.mxu0 %v687
  %v871 = vpop.f32.mrf.mxu0
  %v872 = vadd.f32 0.0, %v871
  %v873 = vpop.f32.mrf.mxu0
  %v874 = vpop.f32.mrf.mxu0
  %v875 = vadd.f32 0.0, %v874
  %v876 = vpop.f32.mrf.mxu0
  %877 = vmatprep.mubr.bf16.mxu0 0
  %878 = vmatmul.mubr.bf16.gmra.mxu0 %v686
  %v879 = vpop.f32.mrf.mxu0
  %v880 = vadd.f32 0.0, %v879
  %v881 = vpop.f32.mrf.mxu0
  %v882 = vpop.f32.mrf.mxu0
  %v883 = vpop.f32.mrf.mxu0
  %884 = vdwg.mxu0
  %v885 = vadd.f32 %v540, %v784
  %v886 = vadd.f32 %v543, %v787
  %v887 = vadd.f32 %v548, %v792
  %v888 = vadd.f32 %v551, %v795
  %v889 = vadd.f32 %v556, %v800
  %v890 = vadd.f32 %v559, %v803
  %v891 = vadd.f32 %v564, %v808
  %v892 = vadd.f32 %v567, %v811
  %v893 = vadd.f32 %v572, %v816
  %v894 = vadd.f32 %v575, %v819
  %v895 = vadd.f32 %v580, %v824
  %v896 = vadd.f32 %v583, %v827
  %v897 = vadd.f32 %v588, %v832
  %v898 = vadd.f32 %v591, %v835
  %v899 = vadd.f32 %v596, %v840
  %v900 = vadd.f32 %v599, %v843
  %v901 = vadd.f32 %v604, %v848
  %v902 = vadd.f32 %v607, %v851
  %v903 = vadd.f32 %v612, %v856
  %v904 = vadd.f32 %v615, %v859
  %v905 = vadd.f32 %v620, %v864
  %v906 = vadd.f32 %v623, %v867
  %v907 = vadd.f32 %v628, %v872
  %v908 = vadd.f32 %v631, %v875
  %v909 = vadd.f32 %v636, %v880
  %v910 = vld [vmem:[%s0 + $0x4] sm:$0xe]
  %v911 = vld [vmem:[%s0 + $0x8] sm:$0xf]
  %v912 = vld [vmem:[%s0 + $0xc] sm:$0xf]
  %v913 = vld [vmem:[%s0 + $0x10] sm:$0xf]
  %v914 = vld [vmem:[%s0 + $0x14] sm:$0xf]
  %v915 = vld [vmem:[%s0 + $0x18] sm:$0xf]
  %v916 = vld [vmem:[%s0 + $0x1c] sm:$0xf]
  %v917 = vld [vmem:[%s0 + $0x20] sm:$0xf]
  %v918 = vld [vmem:[%s0 + $0x24] sm:$0xf]
  %v919 = vld [vmem:[%s0 + $0x28] sm:$0xf]
  %v920 = vld [vmem:[%s0 + $0x2c] sm:$0xf]
  %v921 = vld [vmem:[%s0 + $0x30] sm:$0xf]
  %v922 = vld [vmem:[%s0 + $0x34] sm:$0xf]
  %v923 = vld [vmem:[%s0 + $0x38] sm:$0xf]
  %v924 = vld [vmem:[%s0 + $0x3c] sm:$0xf]
  %v925 = vld [vmem:[%s0 + $0x40] sm:$0xf]
  %v926 = vld [vmem:[%s0 + $0x44] sm:$0xf]
  %v927 = vld [vmem:[%s0 + $0x48] sm:$0xf]
  %v928 = vld [vmem:[%s0 + $0x4c] sm:$0xf]
  %v929 = vld [vmem:[%s0 + $0x50] sm:$0xf]
  %v930 = vld [vmem:[%s0 + $0x54] sm:$0xf]
  %v931 = vld [vmem:[%s0 + $0x58] sm:$0xf]
  %v932 = vld [vmem:[%s0 + $0x5c] sm:$0xf]
  %v933 = vld [vmem:[%s0 + $0x60] sm:$0xf]
  %v934 = vld [vmem:[%s0 + $0x64] sm:$0xf]
  %v935 = vld [vmem:[%s0 + $0x68] sm:$0x1]
  %s936 = scalar_lea.vmem %s1, 192
  %v937 = vld [vmem:[%s936] sm:$0xf]
  %v938 = vld [vmem:[%s936 + $0x4] sm:$0xf]
  %v939 = vld [vmem:[%s936 + $0x8] sm:$0xf]
  %v940 = vld [vmem:[%s936 + $0xc] sm:$0xf]
  %v941 = vld [vmem:[%s936 + $0x10] sm:$0xf]
  %v942 = vld [vmem:[%s936 + $0x14] sm:$0xf]
  %v943 = vld [vmem:[%s936 + $0x18] sm:$0xf]
  %v944 = vld [vmem:[%s936 + $0x1c] sm:$0xf]
  %v945 = vld [vmem:[%s936 + $0x20] sm:$0xf]
  %v946 = vld [vmem:[%s936 + $0x24] sm:$0xf]
  %v947 = vld [vmem:[%s936 + $0x28] sm:$0xf]
  %v948 = vld [vmem:[%s936 + $0x2c] sm:$0xf]
  %v949 = vld [vmem:[%s936 + $0x30] sm:$0xf]
  %v950 = vld [vmem:[%s936 + $0x34] sm:$0xf]
  %v951 = vld [vmem:[%s936 + $0x38] sm:$0xf]
  %v952 = vld [vmem:[%s936 + $0x3c] sm:$0xf]
  %v979 = vunpack.c.l.b16 %v910
  %v980 = vunpack.c.l.b16 %v911
  %v981 = vunpack.c.l.b16 %v912
  %v982 = vunpack.c.l.b16 %v913
  %v983 = vunpack.c.l.b16 %v914
  %v984 = vunpack.c.l.b16 %v915
  %v985 = vunpack.c.l.b16 %v916
  %v986 = vunpack.c.l.b16 %v917
  %v987 = vunpack.c.l.b16 %v918
  %v988 = vunpack.c.l.b16 %v919
  %v989 = vunpack.c.l.b16 %v920
  %v990 = vunpack.c.l.b16 %v921
  %v991 = vunpack.c.l.b16 %v922
  %v992 = vunpack.c.l.b16 %v923
  %v993 = vunpack.c.l.b16 %v924
  %v994 = vunpack.c.l.b16 %v925
  %v995 = vunpack.c.l.b16 %v926
  %v996 = vunpack.c.l.b16 %v927
  %v997 = vunpack.c.l.b16 %v928
  %v998 = vunpack.c.l.b16 %v929
  %v999 = vunpack.c.l.b16 %v930
  %v1000 = vunpack.c.l.b16 %v931
  %v1001 = vunpack.c.l.b16 %v932
  %v1002 = vunpack.c.l.b16 %v933
  %v1003 = vunpack.c.l.b16 %v934
  %v1004 = vunpack.c.l.b16 %v935
  %v1005 = vpack.c.b16 %v980, %v979
  %v1006 = vpack.c.b16 %v982, %v981
  %v1007 = vpack.c.b16 %v984, %v983
  %v1008 = vpack.c.b16 %v986, %v985
  %v1009 = vpack.c.b16 %v988, %v987
  %v1010 = vpack.c.b16 %v990, %v989
  %v1011 = vpack.c.b16 %v992, %v991
  %v1012 = vpack.c.b16 %v994, %v993
  %v1013 = vpack.c.b16 %v996, %v995
  %v1014 = vpack.c.b16 %v998, %v997
  %v1015 = vpack.c.b16 %v1000, %v999
  %v1016 = vpack.c.b16 %v1002, %v1001
  %v1017 = vpack.c.b16 %v1004, %v1003
  %v1018 = vrot.slane %v1005, 1
  %v1019 = vrot.slane %v1006, 1
  %v1020 = vsel %vm662, %v1018, %v1019
  %v1021 = vrot.slane %v1007, 1
  %v1022 = vsel %vm662, %v1019, %v1021
  %v1023 = vrot.slane %v1008, 1
  %v1024 = vsel %vm662, %v1021, %v1023
  %v1025 = vrot.slane %v1009, 1
  %v1026 = vsel %vm662, %v1023, %v1025
  %v1027 = vrot.slane %v1010, 1
  %v1028 = vsel %vm662, %v1025, %v1027
  %v1029 = vrot.slane %v1011, 1
  %v1030 = vsel %vm662, %v1027, %v1029
  %v1031 = vrot.slane %v1012, 1
  %v1032 = vsel %vm662, %v1029, %v1031
  %v1033 = vrot.slane %v1013, 1
  %v1034 = vsel %vm662, %v1031, %v1033
  %v1035 = vrot.slane %v1014, 1
  %v1036 = vsel %vm662, %v1033, %v1035
  %v1037 = vrot.slane %v1015, 1
  %v1038 = vsel %vm662, %v1035, %v1037
  %v1039 = vrot.slane %v1016, 1
  %v1040 = vsel %vm662, %v1037, %v1039
  %v1041 = vrot.slane %v1017, 1
  %v1042 = vsel %vm662, %v1039, %v1041
  %v1072 = vunpack.c.l.b16 %v937
  %v1073 = vunpack.c.l.b16 %v938
  %v1074 = vunpack.c.l.b16 %v939
  %v1075 = vunpack.c.l.b16 %v940
  %v1076 = vunpack.c.l.b16 %v941
  %v1077 = vunpack.c.l.b16 %v942
  %v1078 = vunpack.c.l.b16 %v943
  %v1079 = vunpack.c.l.b16 %v944
  %v1080 = vunpack.c.l.b16 %v945
  %v1081 = vunpack.c.l.b16 %v946
  %v1082 = vunpack.c.l.b16 %v947
  %v1083 = vunpack.c.l.b16 %v948
  %v1084 = vunpack.c.l.b16 %v949
  %v1085 = vunpack.c.l.b16 %v950
  %v1086 = vunpack.c.l.b16 %v951
  %v1087 = vunpack.c.l.b16 %v952
  %v1088 = vpack.c.b16 %v1073, %v1072
  %v1089 = vpack.c.b16 %v1075, %v1074
  %v1090 = vpack.c.b16 %v1077, %v1076
  %v1091 = vpack.c.b16 %v1079, %v1078
  %v1092 = vpack.c.b16 %v1081, %v1080
  %v1093 = vpack.c.b16 %v1083, %v1082
  %v1094 = vpack.c.b16 %v1085, %v1084
  %v1095 = vpack.c.b16 %v1087, %v1086
  %1104 = vmatprep.subr.bf16.mxu0 0
  %1105 = vmatpush1.bf16.msra.mxu0 %v1095
  %1106 = vmatprep.subr.bf16.mxu0 0
  %1107 = vmatpush1.bf16.msra.mxu0 %v1094
  %1108 = vmatprep.subr.bf16.mxu0 0
  %1109 = vmatpush1.bf16.msra.mxu0 %v1093
  %1110 = vmatprep.subr.bf16.mxu0 0
  %1111 = vmatpush1.bf16.msra.mxu0 %v1092
  %1112 = vmatprep.subr.bf16.mxu0 0
  %1113 = vmatpush1.bf16.msra.mxu0 %v1091
  %1114 = vmatprep.subr.bf16.mxu0 0
  %1115 = vmatpush1.bf16.msra.mxu0 %v1090
  %1116 = vmatprep.subr.bf16.mxu0 0
  %1117 = vmatpush1.bf16.msra.mxu0 %v1089
  %1118 = vmatprep.subr.bf16.mxu0 0
  %1119 = vmatpush1.bf16.msra.mxu0 %v1088
  %1120 = vmatprep.subr.bf16.mxu0 0
  %1121 = vmatpush2.bf16.msra.mxu0 0
  %1122 = vmatprep.subr.bf16.mxu0 0
  %1123 = vmatpush2.bf16.msra.mxu0 0
  %1124 = vmatprep.subr.bf16.mxu0 0
  %1125 = vmatpush2.bf16.msra.mxu0 0
  %1126 = vmatprep.subr.bf16.mxu0 0
  %1127 = vmatpush2.bf16.msra.mxu0 0
  %1128 = vmatprep.subr.bf16.mxu0 0
  %1129 = vmatpush2.bf16.msra.mxu0 0
  %1130 = vmatprep.subr.bf16.mxu0 0
  %1131 = vmatpush2.bf16.msra.mxu0 0
  %1132 = vmatprep.subr.bf16.mxu0 0
  %1133 = vmatpush2.bf16.msra.mxu0 0
  %1134 = vmatprep.subr.bf16.mxu0 0
  %1135 = vmatpush2.bf16.msra.mxu0 0
  %1136 = vmatprep.mubr.bf16.mxu0 0
  %1137 = vmatmul.mubr.bf16.gmra.mxu0 %v1020
  %v1138 = vpop.f32.mrf.mxu0
  %v1139 = vadd.f32 0.0, %v1138
  %v1140 = vpop.f32.mrf.mxu0
  %v1141 = vpop.f32.mrf.mxu0
  %v1142 = vadd.f32 0.0, %v1141
  %v1143 = vpop.f32.mrf.mxu0
  %1144 = vmatprep.mubr.bf16.mxu0 0
  %1145 = vmatmul.mubr.bf16.gmra.mxu0 %v1022
  %v1146 = vpop.f32.mrf.mxu0
  %v1147 = vadd.f32 0.0, %v1146
  %v1148 = vpop.f32.mrf.mxu0
  %v1149 = vpop.f32.mrf.mxu0
  %v1150 = vadd.f32 0.0, %v1149
  %v1151 = vpop.f32.mrf.mxu0
  %1152 = vmatprep.mubr.bf16.mxu0 0
  %1153 = vmatmul.mubr.bf16.gmra.mxu0 %v1024
  %v1154 = vpop.f32.mrf.mxu0
  %v1155 = vadd.f32 0.0, %v1154
  %v1156 = vpop.f32.mrf.mxu0
  %v1157 = vpop.f32.mrf.mxu0
  %v1158 = vadd.f32 0.0, %v1157
  %v1159 = vpop.f32.mrf.mxu0
  %1160 = vmatprep.mubr.bf16.mxu0 0
  %1161 = vmatmul.mubr.bf16.gmra.mxu0 %v1026
  %v1162 = vpop.f32.mrf.mxu0
  %v1163 = vadd.f32 0.0, %v1162
  %v1164 = vpop.f32.mrf.mxu0
  %v1165 = vpop.f32.mrf.mxu0
  %v1166 = vadd.f32 0.0, %v1165
  %v1167 = vpop.f32.mrf.mxu0
  %1168 = vmatprep.mubr.bf16.mxu0 0
  %1169 = vmatmul.mubr.bf16.gmra.mxu0 %v1028
  %v1170 = vpop.f32.mrf.mxu0
  %v1171 = vadd.f32 0.0, %v1170
  %v1172 = vpop.f32.mrf.mxu0
  %v1173 = vpop.f32.mrf.mxu0
  %v1174 = vadd.f32 0.0, %v1173
  %v1175 = vpop.f32.mrf.mxu0
  %1176 = vmatprep.mubr.bf16.mxu0 0
  %1177 = vmatmul.mubr.bf16.gmra.mxu0 %v1030
  %v1178 = vpop.f32.mrf.mxu0
  %v1179 = vadd.f32 0.0, %v1178
  %v1180 = vpop.f32.mrf.mxu0
  %v1181 = vpop.f32.mrf.mxu0
  %v1182 = vadd.f32 0.0, %v1181
  %v1183 = vpop.f32.mrf.mxu0
  %1184 = vmatprep.mubr.bf16.mxu0 0
  %1185 = vmatmul.mubr.bf16.gmra.mxu0 %v1032
  %v1186 = vpop.f32.mrf.mxu0
  %v1187 = vadd.f32 0.0, %v1186
  %v1188 = vpop.f32.mrf.mxu0
  %v1189 = vpop.f32.mrf.mxu0
  %v1190 = vadd.f32 0.0, %v1189
  %v1191 = vpop.f32.mrf.mxu0
  %1192 = vmatprep.mubr.bf16.mxu0 0
  %1193 = vmatmul.mubr.bf16.gmra.mxu0 %v1034
  %v1194 = vpop.f32.mrf.mxu0
  %v1195 = vadd.f32 0.0, %v1194
  %v1196 = vpop.f32.mrf.mxu0
  %v1197 = vpop.f32.mrf.mxu0
  %v1198 = vadd.f32 0.0, %v1197
  %v1199 = vpop.f32.mrf.mxu0
  %1200 = vmatprep.mubr.bf16.mxu0 0
  %1201 = vmatmul.mubr.bf16.gmra.mxu0 %v1036
  %v1202 = vpop.f32.mrf.mxu0
  %v1203 = vadd.f32 0.0, %v1202
  %v1204 = vpop.f32.mrf.mxu0
  %v1205 = vpop.f32.mrf.mxu0
  %v1206 = vadd.f32 0.0, %v1205
  %v1207 = vpop.f32.mrf.mxu0
  %1208 = vmatprep.mubr.bf16.mxu0 0
  %1209 = vmatmul.mubr.bf16.gmra.mxu0 %v1038
  %v1210 = vpop.f32.mrf.mxu0
  %v1211 = vadd.f32 0.0, %v1210
  %v1212 = vpop.f32.mrf.mxu0
  %v1213 = vpop.f32.mrf.mxu0
  %v1214 = vadd.f32 0.0, %v1213
  %v1215 = vpop.f32.mrf.mxu0
  %1216 = vmatprep.mubr.bf16.mxu0 0
  %1217 = vmatmul.mubr.bf16.gmra.mxu0 %v1040
  %v1218 = vpop.f32.mrf.mxu0
  %v1219 = vadd.f32 0.0, %v1218
  %v1220 = vpop.f32.mrf.mxu0
  %v1221 = vpop.f32.mrf.mxu0
  %v1222 = vadd.f32 0.0, %v1221
  %v1223 = vpop.f32.mrf.mxu0
  %1224 = vmatprep.mubr.bf16.mxu0 0
  %1225 = vmatmul.mubr.bf16.gmra.mxu0 %v1042
  %v1226 = vpop.f32.mrf.mxu0
  %v1227 = vadd.f32 0.0, %v1226
  %v1228 = vpop.f32.mrf.mxu0
  %v1229 = vpop.f32.mrf.mxu0
  %v1230 = vadd.f32 0.0, %v1229
  %v1231 = vpop.f32.mrf.mxu0
  %1232 = vmatprep.mubr.bf16.mxu0 0
  %1233 = vmatmul.mubr.bf16.gmra.mxu0 %v1041
  %v1234 = vpop.f32.mrf.mxu0
  %v1235 = vadd.f32 0.0, %v1234
  %v1236 = vpop.f32.mrf.mxu0
  %v1237 = vpop.f32.mrf.mxu0
  %v1238 = vpop.f32.mrf.mxu0
  %1239 = vdwg.mxu0
  %v1240 = vadd.f32 %v885, %v1139
  %v1241 = vadd.f32 %v886, %v1142
  %v1242 = vadd.f32 %v887, %v1147
  %v1243 = vadd.f32 %v888, %v1150
  %v1244 = vadd.f32 %v889, %v1155
  %v1245 = vadd.f32 %v890, %v1158
  %v1246 = vadd.f32 %v891, %v1163
  %v1247 = vadd.f32 %v892, %v1166
  %v1248 = vadd.f32 %v893, %v1171
  %v1249 = vadd.f32 %v894, %v1174
  %v1250 = vadd.f32 %v895, %v1179
  %v1251 = vadd.f32 %v896, %v1182
  %v1252 = vadd.f32 %v897, %v1187
  %v1253 = vadd.f32 %v898, %v1190
  %v1254 = vadd.f32 %v899, %v1195
  %v1255 = vadd.f32 %v900, %v1198
  %v1256 = vadd.f32 %v901, %v1203
  %v1257 = vadd.f32 %v902, %v1206
  %v1258 = vadd.f32 %v903, %v1211
  %v1259 = vadd.f32 %v904, %v1214
  %v1260 = vadd.f32 %v905, %v1219
  %v1261 = vadd.f32 %v906, %v1222
  %v1262 = vadd.f32 %v907, %v1227
  %v1263 = vadd.f32 %v908, %v1230
  %v1264 = vadd.f32 %v909, %v1235
  %v1265 = vld [vmem:[%s0 + $0x68] sm:$0x3]
  %s1266 = scalar_lea.vmem %s1, 256
  %v1267 = vld [vmem:[%s1266] sm:$0xf]
  %v1268 = vld [vmem:[%s1266 + $0x4] sm:$0xf]
  %v1269 = vld [vmem:[%s1266 + $0x8] sm:$0xf]
  %v1270 = vld [vmem:[%s1266 + $0xc] sm:$0xf]
  %v1271 = vld [vmem:[%s1266 + $0x10] sm:$0xf]
  %v1272 = vld [vmem:[%s1266 + $0x14] sm:$0xf]
  %v1273 = vld [vmem:[%s1266 + $0x18] sm:$0xf]
  %v1274 = vld [vmem:[%s1266 + $0x1c] sm:$0xf]
  %v1275 = vld [vmem:[%s1266 + $0x20] sm:$0xf]
  %v1276 = vld [vmem:[%s1266 + $0x24] sm:$0xf]
  %v1277 = vld [vmem:[%s1266 + $0x28] sm:$0xf]
  %v1278 = vld [vmem:[%s1266 + $0x2c] sm:$0xf]
  %v1279 = vld [vmem:[%s1266 + $0x30] sm:$0xf]
  %v1280 = vld [vmem:[%s1266 + $0x34] sm:$0xf]
  %v1281 = vld [vmem:[%s1266 + $0x38] sm:$0xf]
  %v1282 = vld [vmem:[%s1266 + $0x3c] sm:$0xf]
  %v1284 = vunpack.c.l.b16 %v1265
  %v1285 = vpack.c.b16 %v1284, %v1003
  %vm1286 = vsmask.f32 6400
  %v1288 = vshrl.u32 %v1005, 16
  %v1290 = vrot.slane %v1288, 1
  %v1291 = vshll.u32 %v1005, 16
  %v1293 = vrot.slane %v1291, 2
  %v1294 = vor.u32 %v1290, %v1293
  %v1296 = vshrl.u32 %v1006, 16
  %v1298 = vrot.slane %v1296, 1
  %v1299 = vshll.u32 %v1006, 16
  %v1301 = vrot.slane %v1299, 2
  %v1302 = vor.u32 %v1298, %v1301
  %v1303 = vsel %vm1286, %v1294, %v1302
  %v1305 = vshrl.u32 %v1007, 16
  %v1307 = vrot.slane %v1305, 1
  %v1308 = vshll.u32 %v1007, 16
  %v1310 = vrot.slane %v1308, 2
  %v1311 = vor.u32 %v1307, %v1310
  %v1312 = vsel %vm1286, %v1302, %v1311
  %v1314 = vshrl.u32 %v1008, 16
  %v1316 = vrot.slane %v1314, 1
  %v1317 = vshll.u32 %v1008, 16
  %v1319 = vrot.slane %v1317, 2
  %v1320 = vor.u32 %v1316, %v1319
  %v1321 = vsel %vm1286, %v1311, %v1320
  %v1323 = vshrl.u32 %v1009, 16
  %v1325 = vrot.slane %v1323, 1
  %v1326 = vshll.u32 %v1009, 16
  %v1328 = vrot.slane %v1326, 2
  %v1329 = vor.u32 %v1325, %v1328
  %v1330 = vsel %vm1286, %v1320, %v1329
  %v1332 = vshrl.u32 %v1010, 16
  %v1334 = vrot.slane %v1332, 1
  %v1335 = vshll.u32 %v1010, 16
  %v1337 = vrot.slane %v1335, 2
  %v1338 = vor.u32 %v1334, %v1337
  %v1339 = vsel %vm1286, %v1329, %v1338
  %v1341 = vshrl.u32 %v1011, 16
  %v1343 = vrot.slane %v1341, 1
  %v1344 = vshll.u32 %v1011, 16
  %v1346 = vrot.slane %v1344, 2
  %v1347 = vor.u32 %v1343, %v1346
  %v1348 = vsel %vm1286, %v1338, %v1347
  %v1350 = vshrl.u32 %v1012, 16
  %v1352 = vrot.slane %v1350, 1
  %v1353 = vshll.u32 %v1012, 16
  %v1355 = vrot.slane %v1353, 2
  %v1356 = vor.u32 %v1352, %v1355
  %v1357 = vsel %vm1286, %v1347, %v1356
  %v1359 = vshrl.u32 %v1013, 16
  %v1361 = vrot.slane %v1359, 1
  %v1362 = vshll.u32 %v1013, 16
  %v1364 = vrot.slane %v1362, 2
  %v1365 = vor.u32 %v1361, %v1364
  %v1366 = vsel %vm1286, %v1356, %v1365
  %v1368 = vshrl.u32 %v1014, 16
  %v1370 = vrot.slane %v1368, 1
  %v1371 = vshll.u32 %v1014, 16
  %v1373 = vrot.slane %v1371, 2
  %v1374 = vor.u32 %v1370, %v1373
  %v1375 = vsel %vm1286, %v1365, %v1374
  %v1377 = vshrl.u32 %v1015, 16
  %v1379 = vrot.slane %v1377, 1
  %v1380 = vshll.u32 %v1015, 16
  %v1382 = vrot.slane %v1380, 2
  %v1383 = vor.u32 %v1379, %v1382
  %v1384 = vsel %vm1286, %v1374, %v1383
  %v1386 = vshrl.u32 %v1016, 16
  %v1388 = vrot.slane %v1386, 1
  %v1389 = vshll.u32 %v1016, 16
  %v1391 = vrot.slane %v1389, 2
  %v1392 = vor.u32 %v1388, %v1391
  %v1393 = vsel %vm1286, %v1383, %v1392
  %v1395 = vshrl.u32 %v1285, 16
  %v1397 = vrot.slane %v1395, 1
  %v1398 = vshll.u32 %v1285, 16
  %v1400 = vrot.slane %v1398, 2
  %v1401 = vor.u32 %v1397, %v1400
  %v1402 = vsel %vm1286, %v1392, %v1401
  %v1432 = vunpack.c.l.b16 %v1267
  %v1433 = vunpack.c.l.b16 %v1268
  %v1434 = vunpack.c.l.b16 %v1269
  %v1435 = vunpack.c.l.b16 %v1270
  %v1436 = vunpack.c.l.b16 %v1271
  %v1437 = vunpack.c.l.b16 %v1272
  %v1438 = vunpack.c.l.b16 %v1273
  %v1439 = vunpack.c.l.b16 %v1274
  %v1440 = vunpack.c.l.b16 %v1275
  %v1441 = vunpack.c.l.b16 %v1276
  %v1442 = vunpack.c.l.b16 %v1277
  %v1443 = vunpack.c.l.b16 %v1278
  %v1444 = vunpack.c.l.b16 %v1279
  %v1445 = vunpack.c.l.b16 %v1280
  %v1446 = vunpack.c.l.b16 %v1281
  %v1447 = vunpack.c.l.b16 %v1282
  %v1448 = vpack.c.b16 %v1433, %v1432
  %v1449 = vpack.c.b16 %v1435, %v1434
  %v1450 = vpack.c.b16 %v1437, %v1436
  %v1451 = vpack.c.b16 %v1439, %v1438
  %v1452 = vpack.c.b16 %v1441, %v1440
  %v1453 = vpack.c.b16 %v1443, %v1442
  %v1454 = vpack.c.b16 %v1445, %v1444
  %v1455 = vpack.c.b16 %v1447, %v1446
  %1464 = vmatprep.subr.bf16.mxu0 0
  %1465 = vmatpush1.bf16.msra.mxu0 %v1455
  %1466 = vmatprep.subr.bf16.mxu0 0
  %1467 = vmatpush1.bf16.msra.mxu0 %v1454
  %1468 = vmatprep.subr.bf16.mxu0 0
  %1469 = vmatpush1.bf16.msra.mxu0 %v1453
  %1470 = vmatprep.subr.bf16.mxu0 0
  %1471 = vmatpush1.bf16.msra.mxu0 %v1452
  %1472 = vmatprep.subr.bf16.mxu0 0
  %1473 = vmatpush1.bf16.msra.mxu0 %v1451
  %1474 = vmatprep.subr.bf16.mxu0 0
  %1475 = vmatpush1.bf16.msra.mxu0 %v1450
  %1476 = vmatprep.subr.bf16.mxu0 0
  %1477 = vmatpush1.bf16.msra.mxu0 %v1449
  %1478 = vmatprep.subr.bf16.mxu0 0
  %1479 = vmatpush1.bf16.msra.mxu0 %v1448
  %1480 = vmatprep.subr.bf16.mxu0 0
  %1481 = vmatpush2.bf16.msra.mxu0 0
  %1482 = vmatprep.subr.bf16.mxu0 0
  %1483 = vmatpush2.bf16.msra.mxu0 0
  %1484 = vmatprep.subr.bf16.mxu0 0
  %1485 = vmatpush2.bf16.msra.mxu0 0
  %1486 = vmatprep.subr.bf16.mxu0 0
  %1487 = vmatpush2.bf16.msra.mxu0 0
  %1488 = vmatprep.subr.bf16.mxu0 0
  %1489 = vmatpush2.bf16.msra.mxu0 0
  %1490 = vmatprep.subr.bf16.mxu0 0
  %1491 = vmatpush2.bf16.msra.mxu0 0
  %1492 = vmatprep.subr.bf16.mxu0 0
  %1493 = vmatpush2.bf16.msra.mxu0 0
  %1494 = vmatprep.subr.bf16.mxu0 0
  %1495 = vmatpush2.bf16.msra.mxu0 0
  %1496 = vmatprep.mubr.bf16.mxu0 0
  %1497 = vmatmul.mubr.bf16.gmra.mxu0 %v1303
  %v1498 = vpop.f32.mrf.mxu0
  %v1499 = vadd.f32 0.0, %v1498
  %v1500 = vpop.f32.mrf.mxu0
  %v1501 = vpop.f32.mrf.mxu0
  %v1502 = vadd.f32 0.0, %v1501
  %v1503 = vpop.f32.mrf.mxu0
  %1504 = vmatprep.mubr.bf16.mxu0 0
  %1505 = vmatmul.mubr.bf16.gmra.mxu0 %v1312
  %v1506 = vpop.f32.mrf.mxu0
  %v1507 = vadd.f32 0.0, %v1506
  %v1508 = vpop.f32.mrf.mxu0
  %v1509 = vpop.f32.mrf.mxu0
  %v1510 = vadd.f32 0.0, %v1509
  %v1511 = vpop.f32.mrf.mxu0
  %1512 = vmatprep.mubr.bf16.mxu0 0
  %1513 = vmatmul.mubr.bf16.gmra.mxu0 %v1321
  %v1514 = vpop.f32.mrf.mxu0
  %v1515 = vadd.f32 0.0, %v1514
  %v1516 = vpop.f32.mrf.mxu0
  %v1517 = vpop.f32.mrf.mxu0
  %v1518 = vadd.f32 0.0, %v1517
  %v1519 = vpop.f32.mrf.mxu0
  %1520 = vmatprep.mubr.bf16.mxu0 0
  %1521 = vmatmul.mubr.bf16.gmra.mxu0 %v1330
  %v1522 = vpop.f32.mrf.mxu0
  %v1523 = vadd.f32 0.0, %v1522
  %v1524 = vpop.f32.mrf.mxu0
  %v1525 = vpop.f32.mrf.mxu0
  %v1526 = vadd.f32 0.0, %v1525
  %v1527 = vpop.f32.mrf.mxu0
  %1528 = vmatprep.mubr.bf16.mxu0 0
  %1529 = vmatmul.mubr.bf16.gmra.mxu0 %v1339
  %v1530 = vpop.f32.mrf.mxu0
  %v1531 = vadd.f32 0.0, %v1530
  %v1532 = vpop.f32.mrf.mxu0
  %v1533 = vpop.f32.mrf.mxu0
  %v1534 = vadd.f32 0.0, %v1533
  %v1535 = vpop.f32.mrf.mxu0
  %1536 = vmatprep.mubr.bf16.mxu0 0
  %1537 = vmatmul.mubr.bf16.gmra.mxu0 %v1348
  %v1538 = vpop.f32.mrf.mxu0
  %v1539 = vadd.f32 0.0, %v1538
  %v1540 = vpop.f32.mrf.mxu0
  %v1541 = vpop.f32.mrf.mxu0
  %v1542 = vadd.f32 0.0, %v1541
  %v1543 = vpop.f32.mrf.mxu0
  %1544 = vmatprep.mubr.bf16.mxu0 0
  %1545 = vmatmul.mubr.bf16.gmra.mxu0 %v1357
  %v1546 = vpop.f32.mrf.mxu0
  %v1547 = vadd.f32 0.0, %v1546
  %v1548 = vpop.f32.mrf.mxu0
  %v1549 = vpop.f32.mrf.mxu0
  %v1550 = vadd.f32 0.0, %v1549
  %v1551 = vpop.f32.mrf.mxu0
  %1552 = vmatprep.mubr.bf16.mxu0 0
  %1553 = vmatmul.mubr.bf16.gmra.mxu0 %v1366
  %v1554 = vpop.f32.mrf.mxu0
  %v1555 = vadd.f32 0.0, %v1554
  %v1556 = vpop.f32.mrf.mxu0
  %v1557 = vpop.f32.mrf.mxu0
  %v1558 = vadd.f32 0.0, %v1557
  %v1559 = vpop.f32.mrf.mxu0
  %1560 = vmatprep.mubr.bf16.mxu0 0
  %1561 = vmatmul.mubr.bf16.gmra.mxu0 %v1375
  %v1562 = vpop.f32.mrf.mxu0
  %v1563 = vadd.f32 0.0, %v1562
  %v1564 = vpop.f32.mrf.mxu0
  %v1565 = vpop.f32.mrf.mxu0
  %v1566 = vadd.f32 0.0, %v1565
  %v1567 = vpop.f32.mrf.mxu0
  %1568 = vmatprep.mubr.bf16.mxu0 0
  %1569 = vmatmul.mubr.bf16.gmra.mxu0 %v1384
  %v1570 = vpop.f32.mrf.mxu0
  %v1571 = vadd.f32 0.0, %v1570
  %v1572 = vpop.f32.mrf.mxu0
  %v1573 = vpop.f32.mrf.mxu0
  %v1574 = vadd.f32 0.0, %v1573
  %v1575 = vpop.f32.mrf.mxu0
  %1576 = vmatprep.mubr.bf16.mxu0 0
  %1577 = vmatmul.mubr.bf16.gmra.mxu0 %v1393
  %v1578 = vpop.f32.mrf.mxu0
  %v1579 = vadd.f32 0.0, %v1578
  %v1580 = vpop.f32.mrf.mxu0
  %v1581 = vpop.f32.mrf.mxu0
  %v1582 = vadd.f32 0.0, %v1581
  %v1583 = vpop.f32.mrf.mxu0
  %1584 = vmatprep.mubr.bf16.mxu0 0
  %1585 = vmatmul.mubr.bf16.gmra.mxu0 %v1402
  %v1586 = vpop.f32.mrf.mxu0
  %v1587 = vadd.f32 0.0, %v1586
  %v1588 = vpop.f32.mrf.mxu0
  %v1589 = vpop.f32.mrf.mxu0
  %v1590 = vadd.f32 0.0, %v1589
  %v1591 = vpop.f32.mrf.mxu0
  %1592 = vmatprep.mubr.bf16.mxu0 0
  %1593 = vmatmul.mubr.bf16.gmra.mxu0 %v1401
  %v1594 = vpop.f32.mrf.mxu0
  %v1595 = vadd.f32 0.0, %v1594
  %v1596 = vpop.f32.mrf.mxu0
  %v1597 = vpop.f32.mrf.mxu0
  %v1598 = vpop.f32.mrf.mxu0
  %1599 = vdwg.mxu0
  %v1600 = vadd.f32 %v1240, %v1499
  %v1601 = vadd.f32 %v1241, %v1502
  %v1602 = vadd.f32 %v1242, %v1507
  %v1603 = vadd.f32 %v1243, %v1510
  %v1604 = vadd.f32 %v1244, %v1515
  %v1605 = vadd.f32 %v1245, %v1518
  %v1606 = vadd.f32 %v1246, %v1523
  %v1607 = vadd.f32 %v1247, %v1526
  %v1608 = vadd.f32 %v1248, %v1531
  %v1609 = vadd.f32 %v1249, %v1534
  %v1610 = vadd.f32 %v1250, %v1539
  %v1611 = vadd.f32 %v1251, %v1542
  %v1612 = vadd.f32 %v1252, %v1547
  %v1613 = vadd.f32 %v1253, %v1550
  %v1614 = vadd.f32 %v1254, %v1555
  %v1615 = vadd.f32 %v1255, %v1558
  %v1616 = vadd.f32 %v1256, %v1563
  %v1617 = vadd.f32 %v1257, %v1566
  %v1618 = vadd.f32 %v1258, %v1571
  %v1619 = vadd.f32 %v1259, %v1574
  %v1620 = vadd.f32 %v1260, %v1579
  %v1621 = vadd.f32 %v1261, %v1582
  %v1622 = vadd.f32 %v1262, %v1587
  %v1623 = vadd.f32 %v1263, %v1590
  %v1624 = vadd.f32 %v1264, %v1595
  %v1625 = vld [vmem:[%s0 + $0x4] sm:$0xc]
  %s1626 = scalar_lea.vmem %s1, 320
  %v1627 = vld [vmem:[%s1626] sm:$0xf]
  %v1628 = vld [vmem:[%s1626 + $0x4] sm:$0xf]
  %v1629 = vld [vmem:[%s1626 + $0x8] sm:$0xf]
  %v1630 = vld [vmem:[%s1626 + $0xc] sm:$0xf]
  %v1631 = vld [vmem:[%s1626 + $0x10] sm:$0xf]
  %v1632 = vld [vmem:[%s1626 + $0x14] sm:$0xf]
  %v1633 = vld [vmem:[%s1626 + $0x18] sm:$0xf]
  %v1634 = vld [vmem:[%s1626 + $0x1c] sm:$0xf]
  %v1635 = vld [vmem:[%s1626 + $0x20] sm:$0xf]
  %v1636 = vld [vmem:[%s1626 + $0x24] sm:$0xf]
  %v1637 = vld [vmem:[%s1626 + $0x28] sm:$0xf]
  %v1638 = vld [vmem:[%s1626 + $0x2c] sm:$0xf]
  %v1639 = vld [vmem:[%s1626 + $0x30] sm:$0xf]
  %v1640 = vld [vmem:[%s1626 + $0x34] sm:$0xf]
  %v1641 = vld [vmem:[%s1626 + $0x38] sm:$0xf]
  %v1642 = vld [vmem:[%s1626 + $0x3c] sm:$0xf]
  %v1644 = vunpack.c.l.b16 %v1625
  %v1645 = vpack.c.b16 %v980, %v1644
  %vm1646 = vcmask 1045504
  %v1647 = vrot.slane %v1645, 2
  %v1648 = vrot.slane %v1006, 2
  %v1649 = vsel %vm1646, %v1647, %v1648
  %v1650 = vrot.slane %v1007, 2
  %v1651 = vsel %vm1646, %v1648, %v1650
  %v1652 = vrot.slane %v1008, 2
  %v1653 = vsel %vm1646, %v1650, %v1652
  %v1654 = vrot.slane %v1009, 2
  %v1655 = vsel %vm1646, %v1652, %v1654
  %v1656 = vrot.slane %v1010, 2
  %v1657 = vsel %vm1646, %v1654, %v1656
  %v1658 = vrot.slane %v1011, 2
  %v1659 = vsel %vm1646, %v1656, %v1658
  %v1660 = vrot.slane %v1012, 2
  %v1661 = vsel %vm1646, %v1658, %v1660
  %v1662 = vrot.slane %v1013, 2
  %v1663 = vsel %vm1646, %v1660, %v1662
  %v1664 = vrot.slane %v1014, 2
  %v1665 = vsel %vm1646, %v1662, %v1664
  %v1666 = vrot.slane %v1015, 2
  %v1667 = vsel %vm1646, %v1664, %v1666
  %v1668 = vrot.slane %v1016, 2
  %v1669 = vsel %vm1646, %v1666, %v1668
  %v1670 = vrot.slane %v1285, 2
  %v1671 = vsel %vm1646, %v1668, %v1670
  %v1701 = vunpack.c.l.b16 %v1627
  %v1702 = vunpack.c.l.b16 %v1628
  %v1703 = vunpack.c.l.b16 %v1629
  %v1704 = vunpack.c.l.b16 %v1630
  %v1705 = vunpack.c.l.b16 %v1631
  %v1706 = vunpack.c.l.b16 %v1632
  %v1707 = vunpack.c.l.b16 %v1633
  %v1708 = vunpack.c.l.b16 %v1634
  %v1709 = vunpack.c.l.b16 %v1635
  %v1710 = vunpack.c.l.b16 %v1636
  %v1711 = vunpack.c.l.b16 %v1637
  %v1712 = vunpack.c.l.b16 %v1638
  %v1713 = vunpack.c.l.b16 %v1639
  %v1714 = vunpack.c.l.b16 %v1640
  %v1715 = vunpack.c.l.b16 %v1641
  %v1716 = vunpack.c.l.b16 %v1642
  %v1717 = vpack.c.b16 %v1702, %v1701
  %v1718 = vpack.c.b16 %v1704, %v1703
  %v1719 = vpack.c.b16 %v1706, %v1705
  %v1720 = vpack.c.b16 %v1708, %v1707
  %v1721 = vpack.c.b16 %v1710, %v1709
  %v1722 = vpack.c.b16 %v1712, %v1711
  %v1723 = vpack.c.b16 %v1714, %v1713
  %v1724 = vpack.c.b16 %v1716, %v1715
  %1733 = vmatprep.subr.bf16.mxu0 0
  %1734 = vmatpush1.bf16.msra.mxu0 %v1724
  %1735 = vmatprep.subr.bf16.mxu0 0
  %1736 = vmatpush1.bf16.msra.mxu0 %v1723
  %1737 = vmatprep.subr.bf16.mxu0 0
  %1738 = vmatpush1.bf16.msra.mxu0 %v1722
  %1739 = vmatprep.subr.bf16.mxu0 0
  %1740 = vmatpush1.bf16.msra.mxu0 %v1721
  %1741 = vmatprep.subr.bf16.mxu0 0
  %1742 = vmatpush1.bf16.msra.mxu0 %v1720
  %1743 = vmatprep.subr.bf16.mxu0 0
  %1744 = vmatpush1.bf16.msra.mxu0 %v1719
  %1745 = vmatprep.subr.bf16.mxu0 0
  %1746 = vmatpush1.bf16.msra.mxu0 %v1718
  %1747 = vmatprep.subr.bf16.mxu0 0
  %1748 = vmatpush1.bf16.msra.mxu0 %v1717
  %1749 = vmatprep.subr.bf16.mxu0 0
  %1750 = vmatpush2.bf16.msra.mxu0 0
  %1751 = vmatprep.subr.bf16.mxu0 0
  %1752 = vmatpush2.bf16.msra.mxu0 0
  %1753 = vmatprep.subr.bf16.mxu0 0
  %1754 = vmatpush2.bf16.msra.mxu0 0
  %1755 = vmatprep.subr.bf16.mxu0 0
  %1756 = vmatpush2.bf16.msra.mxu0 0
  %1757 = vmatprep.subr.bf16.mxu0 0
  %1758 = vmatpush2.bf16.msra.mxu0 0
  %1759 = vmatprep.subr.bf16.mxu0 0
  %1760 = vmatpush2.bf16.msra.mxu0 0
  %1761 = vmatprep.subr.bf16.mxu0 0
  %1762 = vmatpush2.bf16.msra.mxu0 0
  %1763 = vmatprep.subr.bf16.mxu0 0
  %1764 = vmatpush2.bf16.msra.mxu0 0
  %1765 = vmatprep.mubr.bf16.mxu0 0
  %1766 = vmatmul.mubr.bf16.gmra.mxu0 %v1649
  %v1767 = vpop.f32.mrf.mxu0
  %v1768 = vadd.f32 0.0, %v1767
  %v1769 = vpop.f32.mrf.mxu0
  %v1770 = vpop.f32.mrf.mxu0
  %v1771 = vadd.f32 0.0, %v1770
  %v1772 = vpop.f32.mrf.mxu0
  %1773 = vmatprep.mubr.bf16.mxu0 0
  %1774 = vmatmul.mubr.bf16.gmra.mxu0 %v1651
  %v1775 = vpop.f32.mrf.mxu0
  %v1776 = vadd.f32 0.0, %v1775
  %v1777 = vpop.f32.mrf.mxu0
  %v1778 = vpop.f32.mrf.mxu0
  %v1779 = vadd.f32 0.0, %v1778
  %v1780 = vpop.f32.mrf.mxu0
  %1781 = vmatprep.mubr.bf16.mxu0 0
  %1782 = vmatmul.mubr.bf16.gmra.mxu0 %v1653
  %v1783 = vpop.f32.mrf.mxu0
  %v1784 = vadd.f32 0.0, %v1783
  %v1785 = vpop.f32.mrf.mxu0
  %v1786 = vpop.f32.mrf.mxu0
  %v1787 = vadd.f32 0.0, %v1786
  %v1788 = vpop.f32.mrf.mxu0
  %1789 = vmatprep.mubr.bf16.mxu0 0
  %1790 = vmatmul.mubr.bf16.gmra.mxu0 %v1655
  %v1791 = vpop.f32.mrf.mxu0
  %v1792 = vadd.f32 0.0, %v1791
  %v1793 = vpop.f32.mrf.mxu0
  %v1794 = vpop.f32.mrf.mxu0
  %v1795 = vadd.f32 0.0, %v1794
  %v1796 = vpop.f32.mrf.mxu0
  %1797 = vmatprep.mubr.bf16.mxu0 0
  %1798 = vmatmul.mubr.bf16.gmra.mxu0 %v1657
  %v1799 = vpop.f32.mrf.mxu0
  %v1800 = vadd.f32 0.0, %v1799
  %v1801 = vpop.f32.mrf.mxu0
  %v1802 = vpop.f32.mrf.mxu0
  %v1803 = vadd.f32 0.0, %v1802
  %v1804 = vpop.f32.mrf.mxu0
  %1805 = vmatprep.mubr.bf16.mxu0 0
  %1806 = vmatmul.mubr.bf16.gmra.mxu0 %v1659
  %v1807 = vpop.f32.mrf.mxu0
  %v1808 = vadd.f32 0.0, %v1807
  %v1809 = vpop.f32.mrf.mxu0
  %v1810 = vpop.f32.mrf.mxu0
  %v1811 = vadd.f32 0.0, %v1810
  %v1812 = vpop.f32.mrf.mxu0
  %1813 = vmatprep.mubr.bf16.mxu0 0
  %1814 = vmatmul.mubr.bf16.gmra.mxu0 %v1661
  %v1815 = vpop.f32.mrf.mxu0
  %v1816 = vadd.f32 0.0, %v1815
  %v1817 = vpop.f32.mrf.mxu0
  %v1818 = vpop.f32.mrf.mxu0
  %v1819 = vadd.f32 0.0, %v1818
  %v1820 = vpop.f32.mrf.mxu0
  %1821 = vmatprep.mubr.bf16.mxu0 0
  %1822 = vmatmul.mubr.bf16.gmra.mxu0 %v1663
  %v1823 = vpop.f32.mrf.mxu0
  %v1824 = vadd.f32 0.0, %v1823
  %v1825 = vpop.f32.mrf.mxu0
  %v1826 = vpop.f32.mrf.mxu0
  %v1827 = vadd.f32 0.0, %v1826
  %v1828 = vpop.f32.mrf.mxu0
  %1829 = vmatprep.mubr.bf16.mxu0 0
  %1830 = vmatmul.mubr.bf16.gmra.mxu0 %v1665
  %v1831 = vpop.f32.mrf.mxu0
  %v1832 = vadd.f32 0.0, %v1831
  %v1833 = vpop.f32.mrf.mxu0
  %v1834 = vpop.f32.mrf.mxu0
  %v1835 = vadd.f32 0.0, %v1834
  %v1836 = vpop.f32.mrf.mxu0
  %1837 = vmatprep.mubr.bf16.mxu0 0
  %1838 = vmatmul.mubr.bf16.gmra.mxu0 %v1667
  %v1839 = vpop.f32.mrf.mxu0
  %v1840 = vadd.f32 0.0, %v1839
  %v1841 = vpop.f32.mrf.mxu0
  %v1842 = vpop.f32.mrf.mxu0
  %v1843 = vadd.f32 0.0, %v1842
  %v1844 = vpop.f32.mrf.mxu0
  %1845 = vmatprep.mubr.bf16.mxu0 0
  %1846 = vmatmul.mubr.bf16.gmra.mxu0 %v1669
  %v1847 = vpop.f32.mrf.mxu0
  %v1848 = vadd.f32 0.0, %v1847
  %v1849 = vpop.f32.mrf.mxu0
  %v1850 = vpop.f32.mrf.mxu0
  %v1851 = vadd.f32 0.0, %v1850
  %v1852 = vpop.f32.mrf.mxu0
  %1853 = vmatprep.mubr.bf16.mxu0 0
  %1854 = vmatmul.mubr.bf16.gmra.mxu0 %v1671
  %v1855 = vpop.f32.mrf.mxu0
  %v1856 = vadd.f32 0.0, %v1855
  %v1857 = vpop.f32.mrf.mxu0
  %v1858 = vpop.f32.mrf.mxu0
  %v1859 = vadd.f32 0.0, %v1858
  %v1860 = vpop.f32.mrf.mxu0
  %1861 = vmatprep.mubr.bf16.mxu0 0
  %1862 = vmatmul.mubr.bf16.gmra.mxu0 %v1670
  %v1863 = vpop.f32.mrf.mxu0
  %v1864 = vadd.f32 0.0, %v1863
  %v1865 = vpop.f32.mrf.mxu0
  %v1866 = vpop.f32.mrf.mxu0
  %v1867 = vpop.f32.mrf.mxu0
  %1868 = vdwg.mxu0
  %v1869 = vadd.f32 %v1600, %v1768
  %v1870 = vadd.f32 %v1601, %v1771
  %v1871 = vadd.f32 %v1602, %v1776
  %v1872 = vadd.f32 %v1603, %v1779
  %v1873 = vadd.f32 %v1604, %v1784
  %v1874 = vadd.f32 %v1605, %v1787
  %v1875 = vadd.f32 %v1606, %v1792
  %v1876 = vadd.f32 %v1607, %v1795
  %v1877 = vadd.f32 %v1608, %v1800
  %v1878 = vadd.f32 %v1609, %v1803
  %v1879 = vadd.f32 %v1610, %v1808
  %v1880 = vadd.f32 %v1611, %v1811
  %v1881 = vadd.f32 %v1612, %v1816
  %v1882 = vadd.f32 %v1613, %v1819
  %v1883 = vadd.f32 %v1614, %v1824
  %v1884 = vadd.f32 %v1615, %v1827
  %v1885 = vadd.f32 %v1616, %v1832
  %v1886 = vadd.f32 %v1617, %v1835
  %v1887 = vadd.f32 %v1618, %v1840
  %v1888 = vadd.f32 %v1619, %v1843
  %v1889 = vadd.f32 %v1620, %v1848
  %v1890 = vadd.f32 %v1621, %v1851
  %v1891 = vadd.f32 %v1622, %v1856
  %v1892 = vadd.f32 %v1623, %v1859
  %v1893 = vadd.f32 %v1624, %v1864
  %v1894 = vld [vmem:[%s0 + $0x8] sm:$0xc]
  %v1895 = vld [vmem:[%s0 + $0xc] sm:$0xf]
  %v1896 = vld [vmem:[%s0 + $0x10] sm:$0xf]
  %v1897 = vld [vmem:[%s0 + $0x14] sm:$0xf]
  %v1898 = vld [vmem:[%s0 + $0x18] sm:$0xf]
  %v1899 = vld [vmem:[%s0 + $0x1c] sm:$0xf]
  %v1900 = vld [vmem:[%s0 + $0x20] sm:$0xf]
  %v1901 = vld [vmem:[%s0 + $0x24] sm:$0xf]
  %v1902 = vld [vmem:[%s0 + $0x28] sm:$0xf]
  %v1903 = vld [vmem:[%s0 + $0x2c] sm:$0xf]
  %v1904 = vld [vmem:[%s0 + $0x30] sm:$0xf]
  %v1905 = vld [vmem:[%s0 + $0x34] sm:$0xf]
  %v1906 = vld [vmem:[%s0 + $0x38] sm:$0xf]
  %v1907 = vld [vmem:[%s0 + $0x3c] sm:$0xf]
  %v1908 = vld [vmem:[%s0 + $0x40] sm:$0xf]
  %v1909 = vld [vmem:[%s0 + $0x44] sm:$0xf]
  %v1910 = vld [vmem:[%s0 + $0x48] sm:$0xf]
  %v1911 = vld [vmem:[%s0 + $0x4c] sm:$0xf]
  %v1912 = vld [vmem:[%s0 + $0x50] sm:$0xf]
  %v1913 = vld [vmem:[%s0 + $0x54] sm:$0xf]
  %v1914 = vld [vmem:[%s0 + $0x58] sm:$0xf]
  %v1915 = vld [vmem:[%s0 + $0x5c] sm:$0xf]
  %v1916 = vld [vmem:[%s0 + $0x60] sm:$0xf]
  %v1917 = vld [vmem:[%s0 + $0x64] sm:$0xf]
  %v1918 = vld [vmem:[%s0 + $0x68] sm:$0xf]
  %v1919 = vld [vmem:[%s0 + $0x6c] sm:$0x3]
  %s1920 = scalar_lea.vmem %s1, 384
  %v1921 = vld [vmem:[%s1920] sm:$0xf]
  %v1922 = vld [vmem:[%s1920 + $0x4] sm:$0xf]
  %v1923 = vld [vmem:[%s1920 + $0x8] sm:$0xf]
  %v1924 = vld [vmem:[%s1920 + $0xc] sm:$0xf]
  %v1925 = vld [vmem:[%s1920 + $0x10] sm:$0xf]
  %v1926 = vld [vmem:[%s1920 + $0x14] sm:$0xf]
  %v1927 = vld [vmem:[%s1920 + $0x18] sm:$0xf]
  %v1928 = vld [vmem:[%s1920 + $0x1c] sm:$0xf]
  %v1929 = vld [vmem:[%s1920 + $0x20] sm:$0xf]
  %v1930 = vld [vmem:[%s1920 + $0x24] sm:$0xf]
  %v1931 = vld [vmem:[%s1920 + $0x28] sm:$0xf]
  %v1932 = vld [vmem:[%s1920 + $0x2c] sm:$0xf]
  %v1933 = vld [vmem:[%s1920 + $0x30] sm:$0xf]
  %v1934 = vld [vmem:[%s1920 + $0x34] sm:$0xf]
  %v1935 = vld [vmem:[%s1920 + $0x38] sm:$0xf]
  %v1936 = vld [vmem:[%s1920 + $0x3c] sm:$0xf]
  %v1963 = vunpack.c.l.b16 %v1894
  %v1964 = vunpack.c.l.b16 %v1895
  %v1965 = vunpack.c.l.b16 %v1896
  %v1966 = vunpack.c.l.b16 %v1897
  %v1967 = vunpack.c.l.b16 %v1898
  %v1968 = vunpack.c.l.b16 %v1899
  %v1969 = vunpack.c.l.b16 %v1900
  %v1970 = vunpack.c.l.b16 %v1901
  %v1971 = vunpack.c.l.b16 %v1902
  %v1972 = vunpack.c.l.b16 %v1903
  %v1973 = vunpack.c.l.b16 %v1904
  %v1974 = vunpack.c.l.b16 %v1905
  %v1975 = vunpack.c.l.b16 %v1906
  %v1976 = vunpack.c.l.b16 %v1907
  %v1977 = vunpack.c.l.b16 %v1908
  %v1978 = vunpack.c.l.b16 %v1909
  %v1979 = vunpack.c.l.b16 %v1910
  %v1980 = vunpack.c.l.b16 %v1911
  %v1981 = vunpack.c.l.b16 %v1912
  %v1982 = vunpack.c.l.b16 %v1913
  %v1983 = vunpack.c.l.b16 %v1914
  %v1984 = vunpack.c.l.b16 %v1915
  %v1985 = vunpack.c.l.b16 %v1916
  %v1986 = vunpack.c.l.b16 %v1917
  %v1987 = vunpack.c.l.b16 %v1918
  %v1988 = vunpack.c.l.b16 %v1919
  %v1989 = vpack.c.b16 %v1964, %v1963
  %v1990 = vpack.c.b16 %v1966, %v1965
  %v1991 = vpack.c.b16 %v1968, %v1967
  %v1992 = vpack.c.b16 %v1970, %v1969
  %v1993 = vpack.c.b16 %v1972, %v1971
  %v1994 = vpack.c.b16 %v1974, %v1973
  %v1995 = vpack.c.b16 %v1976, %v1975
  %v1996 = vpack.c.b16 %v1978, %v1977
  %v1997 = vpack.c.b16 %v1980, %v1979
  %v1998 = vpack.c.b16 %v1982, %v1981
  %v1999 = vpack.c.b16 %v1984, %v1983
  %v2000 = vpack.c.b16 %v1986, %v1985
  %v2001 = vpack.c.b16 %v1988, %v1987
  %v2002 = vrot.slane %v1989, 2
  %v2003 = vrot.slane %v1990, 2
  %v2004 = vsel %vm1646, %v2002, %v2003
  %v2005 = vrot.slane %v1991, 2
  %v2006 = vsel %vm1646, %v2003, %v2005
  %v2007 = vrot.slane %v1992, 2
  %v2008 = vsel %vm1646, %v2005, %v2007
  %v2009 = vrot.slane %v1993, 2
  %v2010 = vsel %vm1646, %v2007, %v2009
  %v2011 = vrot.slane %v1994, 2
  %v2012 = vsel %vm1646, %v2009, %v2011
  %v2013 = vrot.slane %v1995, 2
  %v2014 = vsel %vm1646, %v2011, %v2013
  %v2015 = vrot.slane %v1996, 2
  %v2016 = vsel %vm1646, %v2013, %v2015
  %v2017 = vrot.slane %v1997, 2
  %v2018 = vsel %vm1646, %v2015, %v2017
  %v2019 = vrot.slane %v1998, 2
  %v2020 = vsel %vm1646, %v2017, %v2019
  %v2021 = vrot.slane %v1999, 2
  %v2022 = vsel %vm1646, %v2019, %v2021
  %v2023 = vrot.slane %v2000, 2
  %v2024 = vsel %vm1646, %v2021, %v2023
  %v2025 = vrot.slane %v2001, 2
  %v2026 = vsel %vm1646, %v2023, %v2025
  %v2056 = vunpack.c.l.b16 %v1921
  %v2057 = vunpack.c.l.b16 %v1922
  %v2058 = vunpack.c.l.b16 %v1923
  %v2059 = vunpack.c.l.b16 %v1924
  %v2060 = vunpack.c.l.b16 %v1925
  %v2061 = vunpack.c.l.b16 %v1926
  %v2062 = vunpack.c.l.b16 %v1927
  %v2063 = vunpack.c.l.b16 %v1928
  %v2064 = vunpack.c.l.b16 %v1929
  %v2065 = vunpack.c.l.b16 %v1930
  %v2066 = vunpack.c.l.b16 %v1931
  %v2067 = vunpack.c.l.b16 %v1932
  %v2068 = vunpack.c.l.b16 %v1933
  %v2069 = vunpack.c.l.b16 %v1934
  %v2070 = vunpack.c.l.b16 %v1935
  %v2071 = vunpack.c.l.b16 %v1936
  %v2072 = vpack.c.b16 %v2057, %v2056
  %v2073 = vpack.c.b16 %v2059, %v2058
  %v2074 = vpack.c.b16 %v2061, %v2060
  %v2075 = vpack.c.b16 %v2063, %v2062
  %v2076 = vpack.c.b16 %v2065, %v2064
  %v2077 = vpack.c.b16 %v2067, %v2066
  %v2078 = vpack.c.b16 %v2069, %v2068
  %v2079 = vpack.c.b16 %v2071, %v2070
  %2088 = vmatprep.subr.bf16.mxu0 0
  %2089 = vmatpush1.bf16.msra.mxu0 %v2079
  %2090 = vmatprep.subr.bf16.mxu0 0
  %2091 = vmatpush1.bf16.msra.mxu0 %v2078
  %2092 = vmatprep.subr.bf16.mxu0 0
  %2093 = vmatpush1.bf16.msra.mxu0 %v2077
  %2094 = vmatprep.subr.bf16.mxu0 0
  %2095 = vmatpush1.bf16.msra.mxu0 %v2076
  %2096 = vmatprep.subr.bf16.mxu0 0
  %2097 = vmatpush1.bf16.msra.mxu0 %v2075
  %2098 = vmatprep.subr.bf16.mxu0 0
  %2099 = vmatpush1.bf16.msra.mxu0 %v2074
  %2100 = vmatprep.subr.bf16.mxu0 0
  %2101 = vmatpush1.bf16.msra.mxu0 %v2073
  %2102 = vmatprep.subr.bf16.mxu0 0
  %2103 = vmatpush1.bf16.msra.mxu0 %v2072
  %2104 = vmatprep.subr.bf16.mxu0 0
  %2105 = vmatpush2.bf16.msra.mxu0 0
  %2106 = vmatprep.subr.bf16.mxu0 0
  %2107 = vmatpush2.bf16.msra.mxu0 0
  %2108 = vmatprep.subr.bf16.mxu0 0
  %2109 = vmatpush2.bf16.msra.mxu0 0
  %2110 = vmatprep.subr.bf16.mxu0 0
  %2111 = vmatpush2.bf16.msra.mxu0 0
  %2112 = vmatprep.subr.bf16.mxu0 0
  %2113 = vmatpush2.bf16.msra.mxu0 0
  %2114 = vmatprep.subr.bf16.mxu0 0
  %2115 = vmatpush2.bf16.msra.mxu0 0
  %2116 = vmatprep.subr.bf16.mxu0 0
  %2117 = vmatpush2.bf16.msra.mxu0 0
  %2118 = vmatprep.subr.bf16.mxu0 0
  %2119 = vmatpush2.bf16.msra.mxu0 0
  %2120 = vmatprep.mubr.bf16.mxu0 0
  %2121 = vmatmul.mubr.bf16.gmra.mxu0 %v2004
  %v2122 = vpop.f32.mrf.mxu0
  %v2123 = vadd.f32 0.0, %v2122
  %v2124 = vpop.f32.mrf.mxu0
  %v2125 = vpop.f32.mrf.mxu0
  %v2126 = vadd.f32 0.0, %v2125
  %v2127 = vpop.f32.mrf.mxu0
  %2128 = vmatprep.mubr.bf16.mxu0 0
  %2129 = vmatmul.mubr.bf16.gmra.mxu0 %v2006
  %v2130 = vpop.f32.mrf.mxu0
  %v2131 = vadd.f32 0.0, %v2130
  %v2132 = vpop.f32.mrf.mxu0
  %v2133 = vpop.f32.mrf.mxu0
  %v2134 = vadd.f32 0.0, %v2133
  %v2135 = vpop.f32.mrf.mxu0
  %2136 = vmatprep.mubr.bf16.mxu0 0
  %2137 = vmatmul.mubr.bf16.gmra.mxu0 %v2008
  %v2138 = vpop.f32.mrf.mxu0
  %v2139 = vadd.f32 0.0, %v2138
  %v2140 = vpop.f32.mrf.mxu0
  %v2141 = vpop.f32.mrf.mxu0
  %v2142 = vadd.f32 0.0, %v2141
  %v2143 = vpop.f32.mrf.mxu0
  %2144 = vmatprep.mubr.bf16.mxu0 0
  %2145 = vmatmul.mubr.bf16.gmra.mxu0 %v2010
  %v2146 = vpop.f32.mrf.mxu0
  %v2147 = vadd.f32 0.0, %v2146
  %v2148 = vpop.f32.mrf.mxu0
  %v2149 = vpop.f32.mrf.mxu0
  %v2150 = vadd.f32 0.0, %v2149
  %v2151 = vpop.f32.mrf.mxu0
  %2152 = vmatprep.mubr.bf16.mxu0 0
  %2153 = vmatmul.mubr.bf16.gmra.mxu0 %v2012
  %v2154 = vpop.f32.mrf.mxu0
  %v2155 = vadd.f32 0.0, %v2154
  %v2156 = vpop.f32.mrf.mxu0
  %v2157 = vpop.f32.mrf.mxu0
  %v2158 = vadd.f32 0.0, %v2157
  %v2159 = vpop.f32.mrf.mxu0
  %2160 = vmatprep.mubr.bf16.mxu0 0
  %2161 = vmatmul.mubr.bf16.gmra.mxu0 %v2014
  %v2162 = vpop.f32.mrf.mxu0
  %v2163 = vadd.f32 0.0, %v2162
  %v2164 = vpop.f32.mrf.mxu0
  %v2165 = vpop.f32.mrf.mxu0
  %v2166 = vadd.f32 0.0, %v2165
  %v2167 = vpop.f32.mrf.mxu0
  %2168 = vmatprep.mubr.bf16.mxu0 0
  %2169 = vmatmul.mubr.bf16.gmra.mxu0 %v2016
  %v2170 = vpop.f32.mrf.mxu0
  %v2171 = vadd.f32 0.0, %v2170
  %v2172 = vpop.f32.mrf.mxu0
  %v2173 = vpop.f32.mrf.mxu0
  %v2174 = vadd.f32 0.0, %v2173
  %v2175 = vpop.f32.mrf.mxu0
  %2176 = vmatprep.mubr.bf16.mxu0 0
  %2177 = vmatmul.mubr.bf16.gmra.mxu0 %v2018
  %v2178 = vpop.f32.mrf.mxu0
  %v2179 = vadd.f32 0.0, %v2178
  %v2180 = vpop.f32.mrf.mxu0
  %v2181 = vpop.f32.mrf.mxu0
  %v2182 = vadd.f32 0.0, %v2181
  %v2183 = vpop.f32.mrf.mxu0
  %2184 = vmatprep.mubr.bf16.mxu0 0
  %2185 = vmatmul.mubr.bf16.gmra.mxu0 %v2020
  %v2186 = vpop.f32.mrf.mxu0
  %v2187 = vadd.f32 0.0, %v2186
  %v2188 = vpop.f32.mrf.mxu0
  %v2189 = vpop.f32.mrf.mxu0
  %v2190 = vadd.f32 0.0, %v2189
  %v2191 = vpop.f32.mrf.mxu0
  %2192 = vmatprep.mubr.bf16.mxu0 0
  %2193 = vmatmul.mubr.bf16.gmra.mxu0 %v2022
  %v2194 = vpop.f32.mrf.mxu0
  %v2195 = vadd.f32 0.0, %v2194
  %v2196 = vpop.f32.mrf.mxu0
  %v2197 = vpop.f32.mrf.mxu0
  %v2198 = vadd.f32 0.0, %v2197
  %v2199 = vpop.f32.mrf.mxu0
  %2200 = vmatprep.mubr.bf16.mxu0 0
  %2201 = vmatmul.mubr.bf16.gmra.mxu0 %v2024
  %v2202 = vpop.f32.mrf.mxu0
  %v2203 = vadd.f32 0.0, %v2202
  %v2204 = vpop.f32.mrf.mxu0
  %v2205 = vpop.f32.mrf.mxu0
  %v2206 = vadd.f32 0.0, %v2205
  %v2207 = vpop.f32.mrf.mxu0
  %2208 = vmatprep.mubr.bf16.mxu0 0
  %2209 = vmatmul.mubr.bf16.gmra.mxu0 %v2026
  %v2210 = vpop.f32.mrf.mxu0
  %v2211 = vadd.f32 0.0, %v2210
  %v2212 = vpop.f32.mrf.mxu0
  %v2213 = vpop.f32.mrf.mxu0
  %v2214 = vadd.f32 0.0, %v2213
  %v2215 = vpop.f32.mrf.mxu0
  %2216 = vmatprep.mubr.bf16.mxu0 0
  %2217 = vmatmul.mubr.bf16.gmra.mxu0 %v2025
  %v2218 = vpop.f32.mrf.mxu0
  %v2219 = vadd.f32 0.0, %v2218
  %v2220 = vpop.f32.mrf.mxu0
  %v2221 = vpop.f32.mrf.mxu0
  %v2222 = vpop.f32.mrf.mxu0
  %2223 = vdwg.mxu0
  %v2224 = vadd.f32 %v1869, %v2123
  %v2225 = vadd.f32 %v1870, %v2126
  %v2226 = vadd.f32 %v1871, %v2131
  %v2227 = vadd.f32 %v1872, %v2134
  %v2228 = vadd.f32 %v1873, %v2139
  %v2229 = vadd.f32 %v1874, %v2142
  %v2230 = vadd.f32 %v1875, %v2147
  %v2231 = vadd.f32 %v1876, %v2150
  %v2232 = vadd.f32 %v1877, %v2155
  %v2233 = vadd.f32 %v1878, %v2158
  %v2234 = vadd.f32 %v1879, %v2163
  %v2235 = vadd.f32 %v1880, %v2166
  %v2236 = vadd.f32 %v1881, %v2171
  %v2237 = vadd.f32 %v1882, %v2174
  %v2238 = vadd.f32 %v1883, %v2179
  %v2239 = vadd.f32 %v1884, %v2182
  %v2240 = vadd.f32 %v1885, %v2187
  %v2241 = vadd.f32 %v1886, %v2190
  %v2242 = vadd.f32 %v1887, %v2195
  %v2243 = vadd.f32 %v1888, %v2198
  %v2244 = vadd.f32 %v1889, %v2203
  %v2245 = vadd.f32 %v1890, %v2206
  %v2246 = vadd.f32 %v1891, %v2211
  %v2247 = vadd.f32 %v1892, %v2214
  %v2248 = vadd.f32 %v1893, %v2219
  %v2249 = vld [vmem:[%s0 + $0x6c] sm:$0x7]
  %s2250 = scalar_lea.vmem %s1, 448
  %v2251 = vld [vmem:[%s2250] sm:$0xf]
  %v2252 = vld [vmem:[%s2250 + $0x4] sm:$0xf]
  %v2253 = vld [vmem:[%s2250 + $0x8] sm:$0xf]
  %v2254 = vld [vmem:[%s2250 + $0xc] sm:$0xf]
  %v2255 = vld [vmem:[%s2250 + $0x10] sm:$0xf]
  %v2256 = vld [vmem:[%s2250 + $0x14] sm:$0xf]
  %v2257 = vld [vmem:[%s2250 + $0x18] sm:$0xf]
  %v2258 = vld [vmem:[%s2250 + $0x1c] sm:$0xf]
  %v2259 = vld [vmem:[%s2250 + $0x20] sm:$0xf]
  %v2260 = vld [vmem:[%s2250 + $0x24] sm:$0xf]
  %v2261 = vld [vmem:[%s2250 + $0x28] sm:$0xf]
  %v2262 = vld [vmem:[%s2250 + $0x2c] sm:$0xf]
  %v2263 = vld [vmem:[%s2250 + $0x30] sm:$0xf]
  %v2264 = vld [vmem:[%s2250 + $0x34] sm:$0xf]
  %v2265 = vld [vmem:[%s2250 + $0x38] sm:$0xf]
  %v2266 = vld [vmem:[%s2250 + $0x3c] sm:$0xf]
  %v2268 = vunpack.c.l.b16 %v2249
  %v2269 = vpack.c.b16 %v2268, %v1987
  %vm2270 = vsmask.f32 5376
  %v2272 = vshrl.u32 %v1989, 16
  %v2274 = vrot.slane %v2272, 2
  %v2275 = vshll.u32 %v1989, 16
  %v2277 = vrot.slane %v2275, 3
  %v2278 = vor.u32 %v2274, %v2277
  %v2280 = vshrl.u32 %v1990, 16
  %v2282 = vrot.slane %v2280, 2
  %v2283 = vshll.u32 %v1990, 16
  %v2285 = vrot.slane %v2283, 3
  %v2286 = vor.u32 %v2282, %v2285
  %v2287 = vsel %vm2270, %v2278, %v2286
  %v2289 = vshrl.u32 %v1991, 16
  %v2291 = vrot.slane %v2289, 2
  %v2292 = vshll.u32 %v1991, 16
  %v2294 = vrot.slane %v2292, 3
  %v2295 = vor.u32 %v2291, %v2294
  %v2296 = vsel %vm2270, %v2286, %v2295
  %v2298 = vshrl.u32 %v1992, 16
  %v2300 = vrot.slane %v2298, 2
  %v2301 = vshll.u32 %v1992, 16
  %v2303 = vrot.slane %v2301, 3
  %v2304 = vor.u32 %v2300, %v2303
  %v2305 = vsel %vm2270, %v2295, %v2304
  %v2307 = vshrl.u32 %v1993, 16
  %v2309 = vrot.slane %v2307, 2
  %v2310 = vshll.u32 %v1993, 16
  %v2312 = vrot.slane %v2310, 3
  %v2313 = vor.u32 %v2309, %v2312
  %v2314 = vsel %vm2270, %v2304, %v2313
  %v2316 = vshrl.u32 %v1994, 16
  %v2318 = vrot.slane %v2316, 2
  %v2319 = vshll.u32 %v1994, 16
  %v2321 = vrot.slane %v2319, 3
  %v2322 = vor.u32 %v2318, %v2321
  %v2323 = vsel %vm2270, %v2313, %v2322
  %v2325 = vshrl.u32 %v1995, 16
  %v2327 = vrot.slane %v2325, 2
  %v2328 = vshll.u32 %v1995, 16
  %v2330 = vrot.slane %v2328, 3
  %v2331 = vor.u32 %v2327, %v2330
  %v2332 = vsel %vm2270, %v2322, %v2331
  %v2334 = vshrl.u32 %v1996, 16
  %v2336 = vrot.slane %v2334, 2
  %v2337 = vshll.u32 %v1996, 16
  %v2339 = vrot.slane %v2337, 3
  %v2340 = vor.u32 %v2336, %v2339
  %v2341 = vsel %vm2270, %v2331, %v2340
  %v2343 = vshrl.u32 %v1997, 16
  %v2345 = vrot.slane %v2343, 2
  %v2346 = vshll.u32 %v1997, 16
  %v2348 = vrot.slane %v2346, 3
  %v2349 = vor.u32 %v2345, %v2348
  %v2350 = vsel %vm2270, %v2340, %v2349
  %v2352 = vshrl.u32 %v1998, 16
  %v2354 = vrot.slane %v2352, 2
  %v2355 = vshll.u32 %v1998, 16
  %v2357 = vrot.slane %v2355, 3
  %v2358 = vor.u32 %v2354, %v2357
  %v2359 = vsel %vm2270, %v2349, %v2358
  %v2361 = vshrl.u32 %v1999, 16
  %v2363 = vrot.slane %v2361, 2
  %v2364 = vshll.u32 %v1999, 16
  %v2366 = vrot.slane %v2364, 3
  %v2367 = vor.u32 %v2363, %v2366
  %v2368 = vsel %vm2270, %v2358, %v2367
  %v2370 = vshrl.u32 %v2000, 16
  %v2372 = vrot.slane %v2370, 2
  %v2373 = vshll.u32 %v2000, 16
  %v2375 = vrot.slane %v2373, 3
  %v2376 = vor.u32 %v2372, %v2375
  %v2377 = vsel %vm2270, %v2367, %v2376
  %v2379 = vshrl.u32 %v2269, 16
  %v2381 = vrot.slane %v2379, 2
  %v2382 = vshll.u32 %v2269, 16
  %v2384 = vrot.slane %v2382, 3
  %v2385 = vor.u32 %v2381, %v2384
  %v2386 = vsel %vm2270, %v2376, %v2385
  %v2416 = vunpack.c.l.b16 %v2251
  %v2417 = vunpack.c.l.b16 %v2252
  %v2418 = vunpack.c.l.b16 %v2253
  %v2419 = vunpack.c.l.b16 %v2254
  %v2420 = vunpack.c.l.b16 %v2255
  %v2421 = vunpack.c.l.b16 %v2256
  %v2422 = vunpack.c.l.b16 %v2257
  %v2423 = vunpack.c.l.b16 %v2258
  %v2424 = vunpack.c.l.b16 %v2259
  %v2425 = vunpack.c.l.b16 %v2260
  %v2426 = vunpack.c.l.b16 %v2261
  %v2427 = vunpack.c.l.b16 %v2262
  %v2428 = vunpack.c.l.b16 %v2263
  %v2429 = vunpack.c.l.b16 %v2264
  %v2430 = vunpack.c.l.b16 %v2265
  %v2431 = vunpack.c.l.b16 %v2266
  %v2432 = vpack.c.b16 %v2417, %v2416
  %v2433 = vpack.c.b16 %v2419, %v2418
  %v2434 = vpack.c.b16 %v2421, %v2420
  %v2435 = vpack.c.b16 %v2423, %v2422
  %v2436 = vpack.c.b16 %v2425, %v2424
  %v2437 = vpack.c.b16 %v2427, %v2426
  %v2438 = vpack.c.b16 %v2429, %v2428
  %v2439 = vpack.c.b16 %v2431, %v2430
  %2448 = vmatprep.subr.bf16.mxu0 0
  %2449 = vmatpush1.bf16.msra.mxu0 %v2439
  %2450 = vmatprep.subr.bf16.mxu0 0
  %2451 = vmatpush1.bf16.msra.mxu0 %v2438
  %2452 = vmatprep.subr.bf16.mxu0 0
  %2453 = vmatpush1.bf16.msra.mxu0 %v2437
  %2454 = vmatprep.subr.bf16.mxu0 0
  %2455 = vmatpush1.bf16.msra.mxu0 %v2436
  %2456 = vmatprep.subr.bf16.mxu0 0
  %2457 = vmatpush1.bf16.msra.mxu0 %v2435
  %2458 = vmatprep.subr.bf16.mxu0 0
  %2459 = vmatpush1.bf16.msra.mxu0 %v2434
  %2460 = vmatprep.subr.bf16.mxu0 0
  %2461 = vmatpush1.bf16.msra.mxu0 %v2433
  %2462 = vmatprep.subr.bf16.mxu0 0
  %2463 = vmatpush1.bf16.msra.mxu0 %v2432
  %2464 = vmatprep.subr.bf16.mxu0 0
  %2465 = vmatpush2.bf16.msra.mxu0 0
  %2466 = vmatprep.subr.bf16.mxu0 0
  %2467 = vmatpush2.bf16.msra.mxu0 0
  %2468 = vmatprep.subr.bf16.mxu0 0
  %2469 = vmatpush2.bf16.msra.mxu0 0
  %2470 = vmatprep.subr.bf16.mxu0 0
  %2471 = vmatpush2.bf16.msra.mxu0 0
  %2472 = vmatprep.subr.bf16.mxu0 0
  %2473 = vmatpush2.bf16.msra.mxu0 0
  %2474 = vmatprep.subr.bf16.mxu0 0
  %2475 = vmatpush2.bf16.msra.mxu0 0
  %2476 = vmatprep.subr.bf16.mxu0 0
  %2477 = vmatpush2.bf16.msra.mxu0 0
  %2478 = vmatprep.subr.bf16.mxu0 0
  %2479 = vmatpush2.bf16.msra.mxu0 0
  %2480 = vmatprep.mubr.bf16.mxu0 0
  %2481 = vmatmul.mubr.bf16.gmra.mxu0 %v2287
  %v2482 = vpop.f32.mrf.mxu0
  %v2483 = vadd.f32 0.0, %v2482
  %v2484 = vpop.f32.mrf.mxu0
  %v2485 = vpop.f32.mrf.mxu0
  %v2486 = vadd.f32 0.0, %v2485
  %v2487 = vpop.f32.mrf.mxu0
  %2488 = vmatprep.mubr.bf16.mxu0 0
  %2489 = vmatmul.mubr.bf16.gmra.mxu0 %v2296
  %v2490 = vpop.f32.mrf.mxu0
  %v2491 = vadd.f32 0.0, %v2490
  %v2492 = vpop.f32.mrf.mxu0
  %v2493 = vpop.f32.mrf.mxu0
  %v2494 = vadd.f32 0.0, %v2493
  %v2495 = vpop.f32.mrf.mxu0
  %2496 = vmatprep.mubr.bf16.mxu0 0
  %2497 = vmatmul.mubr.bf16.gmra.mxu0 %v2305
  %v2498 = vpop.f32.mrf.mxu0
  %v2499 = vadd.f32 0.0, %v2498
  %v2500 = vpop.f32.mrf.mxu0
  %v2501 = vpop.f32.mrf.mxu0
  %v2502 = vadd.f32 0.0, %v2501
  %v2503 = vpop.f32.mrf.mxu0
  %2504 = vmatprep.mubr.bf16.mxu0 0
  %2505 = vmatmul.mubr.bf16.gmra.mxu0 %v2314
  %v2506 = vpop.f32.mrf.mxu0
  %v2507 = vadd.f32 0.0, %v2506
  %v2508 = vpop.f32.mrf.mxu0
  %v2509 = vpop.f32.mrf.mxu0
  %v2510 = vadd.f32 0.0, %v2509
  %v2511 = vpop.f32.mrf.mxu0
  %2512 = vmatprep.mubr.bf16.mxu0 0
  %2513 = vmatmul.mubr.bf16.gmra.mxu0 %v2323
  %v2514 = vpop.f32.mrf.mxu0
  %v2515 = vadd.f32 0.0, %v2514
  %v2516 = vpop.f32.mrf.mxu0
  %v2517 = vpop.f32.mrf.mxu0
  %v2518 = vadd.f32 0.0, %v2517
  %v2519 = vpop.f32.mrf.mxu0
  %2520 = vmatprep.mubr.bf16.mxu0 0
  %2521 = vmatmul.mubr.bf16.gmra.mxu0 %v2332
  %v2522 = vpop.f32.mrf.mxu0
  %v2523 = vadd.f32 0.0, %v2522
  %v2524 = vpop.f32.mrf.mxu0
  %v2525 = vpop.f32.mrf.mxu0
  %v2526 = vadd.f32 0.0, %v2525
  %v2527 = vpop.f32.mrf.mxu0
  %2528 = vmatprep.mubr.bf16.mxu0 0
  %2529 = vmatmul.mubr.bf16.gmra.mxu0 %v2341
  %v2530 = vpop.f32.mrf.mxu0
  %v2531 = vadd.f32 0.0, %v2530
  %v2532 = vpop.f32.mrf.mxu0
  %v2533 = vpop.f32.mrf.mxu0
  %v2534 = vadd.f32 0.0, %v2533
  %v2535 = vpop.f32.mrf.mxu0
  %2536 = vmatprep.mubr.bf16.mxu0 0
  %2537 = vmatmul.mubr.bf16.gmra.mxu0 %v2350
  %v2538 = vpop.f32.mrf.mxu0
  %v2539 = vadd.f32 0.0, %v2538
  %v2540 = vpop.f32.mrf.mxu0
  %v2541 = vpop.f32.mrf.mxu0
  %v2542 = vadd.f32 0.0, %v2541
  %v2543 = vpop.f32.mrf.mxu0
  %2544 = vmatprep.mubr.bf16.mxu0 0
  %2545 = vmatmul.mubr.bf16.gmra.mxu0 %v2359
  %v2546 = vpop.f32.mrf.mxu0
  %v2547 = vadd.f32 0.0, %v2546
  %v2548 = vpop.f32.mrf.mxu0
  %v2549 = vpop.f32.mrf.mxu0
  %v2550 = vadd.f32 0.0, %v2549
  %v2551 = vpop.f32.mrf.mxu0
  %2552 = vmatprep.mubr.bf16.mxu0 0
  %2553 = vmatmul.mubr.bf16.gmra.mxu0 %v2368
  %v2554 = vpop.f32.mrf.mxu0
  %v2555 = vadd.f32 0.0, %v2554
  %v2556 = vpop.f32.mrf.mxu0
  %v2557 = vpop.f32.mrf.mxu0
  %v2558 = vadd.f32 0.0, %v2557
  %v2559 = vpop.f32.mrf.mxu0
  %2560 = vmatprep.mubr.bf16.mxu0 0
  %2561 = vmatmul.mubr.bf16.gmra.mxu0 %v2377
  %v2562 = vpop.f32.mrf.mxu0
  %v2563 = vadd.f32 0.0, %v2562
  %v2564 = vpop.f32.mrf.mxu0
  %v2565 = vpop.f32.mrf.mxu0
  %v2566 = vadd.f32 0.0, %v2565
  %v2567 = vpop.f32.mrf.mxu0
  %2568 = vmatprep.mubr.bf16.mxu0 0
  %2569 = vmatmul.mubr.bf16.gmra.mxu0 %v2386
  %v2570 = vpop.f32.mrf.mxu0
  %v2571 = vadd.f32 0.0, %v2570
  %v2572 = vpop.f32.mrf.mxu0
  %v2573 = vpop.f32.mrf.mxu0
  %v2574 = vadd.f32 0.0, %v2573
  %v2575 = vpop.f32.mrf.mxu0
  %2576 = vmatprep.mubr.bf16.mxu0 0
  %2577 = vmatmul.mubr.bf16.gmra.mxu0 %v2385
  %v2578 = vpop.f32.mrf.mxu0
  %v2579 = vadd.f32 0.0, %v2578
  %v2580 = vpop.f32.mrf.mxu0
  %v2581 = vpop.f32.mrf.mxu0
  %v2582 = vpop.f32.mrf.mxu0
  %2583 = vdwg.mxu0
  %v2584 = vadd.f32 %v2224, %v2483
  %v2585 = vadd.f32 %v2225, %v2486
  %v2586 = vadd.f32 %v2226, %v2491
  %v2587 = vadd.f32 %v2227, %v2494
  %v2588 = vadd.f32 %v2228, %v2499
  %v2589 = vadd.f32 %v2229, %v2502
  %v2590 = vadd.f32 %v2230, %v2507
  %v2591 = vadd.f32 %v2231, %v2510
  %v2592 = vadd.f32 %v2232, %v2515
  %v2593 = vadd.f32 %v2233, %v2518
  %v2594 = vadd.f32 %v2234, %v2523
  %v2595 = vadd.f32 %v2235, %v2526
  %v2596 = vadd.f32 %v2236, %v2531
  %v2597 = vadd.f32 %v2237, %v2534
  %v2598 = vadd.f32 %v2238, %v2539
  %v2599 = vadd.f32 %v2239, %v2542
  %v2600 = vadd.f32 %v2240, %v2547
  %v2601 = vadd.f32 %v2241, %v2550
  %v2602 = vadd.f32 %v2242, %v2555
  %v2603 = vadd.f32 %v2243, %v2558
  %v2604 = vadd.f32 %v2244, %v2563
  %v2605 = vadd.f32 %v2245, %v2566
  %v2606 = vadd.f32 %v2246, %v2571
  %v2607 = vadd.f32 %v2247, %v2574
  %v2608 = vadd.f32 %v2248, %v2579
  %v2609 = vld [vmem:[%s0 + $0x8] sm:$0x8]
  %s2610 = scalar_lea.vmem %s1, 512
  %v2611 = vld [vmem:[%s2610] sm:$0xf]
  %v2612 = vld [vmem:[%s2610 + $0x4] sm:$0xf]
  %v2613 = vld [vmem:[%s2610 + $0x8] sm:$0xf]
  %v2614 = vld [vmem:[%s2610 + $0xc] sm:$0xf]
  %v2615 = vld [vmem:[%s2610 + $0x10] sm:$0xf]
  %v2616 = vld [vmem:[%s2610 + $0x14] sm:$0xf]
  %v2617 = vld [vmem:[%s2610 + $0x18] sm:$0xf]
  %v2618 = vld [vmem:[%s2610 + $0x1c] sm:$0xf]
  %v2619 = vld [vmem:[%s2610 + $0x20] sm:$0xf]
  %v2620 = vld [vmem:[%s2610 + $0x24] sm:$0xf]
  %v2621 = vld [vmem:[%s2610 + $0x28] sm:$0xf]
  %v2622 = vld [vmem:[%s2610 + $0x2c] sm:$0xf]
  %v2623 = vld [vmem:[%s2610 + $0x30] sm:$0xf]
  %v2624 = vld [vmem:[%s2610 + $0x34] sm:$0xf]
  %v2625 = vld [vmem:[%s2610 + $0x38] sm:$0xf]
  %v2626 = vld [vmem:[%s2610 + $0x3c] sm:$0xf]
  %v2628 = vunpack.c.l.b16 %v2609
  %v2629 = vpack.c.b16 %v1964, %v2628
  %vm2630 = vcmask 1044480
  %v2631 = vrot.slane %v2629, 3
  %v2632 = vrot.slane %v1990, 3
  %v2633 = vsel %vm2630, %v2631, %v2632
  %v2634 = vrot.slane %v1991, 3
  %v2635 = vsel %vm2630, %v2632, %v2634
  %v2636 = vrot.slane %v1992, 3
  %v2637 = vsel %vm2630, %v2634, %v2636
  %v2638 = vrot.slane %v1993, 3
  %v2639 = vsel %vm2630, %v2636, %v2638
  %v2640 = vrot.slane %v1994, 3
  %v2641 = vsel %vm2630, %v2638, %v2640
  %v2642 = vrot.slane %v1995, 3
  %v2643 = vsel %vm2630, %v2640, %v2642
  %v2644 = vrot.slane %v1996, 3
  %v2645 = vsel %vm2630, %v2642, %v2644
  %v2646 = vrot.slane %v1997, 3
  %v2647 = vsel %vm2630, %v2644, %v2646
  %v2648 = vrot.slane %v1998, 3
  %v2649 = vsel %vm2630, %v2646, %v2648
  %v2650 = vrot.slane %v1999, 3
  %v2651 = vsel %vm2630, %v2648, %v2650
  %v2652 = vrot.slane %v2000, 3
  %v2653 = vsel %vm2630, %v2650, %v2652
  %v2654 = vrot.slane %v2269, 3
  %v2655 = vsel %vm2630, %v2652, %v2654
  %v2685 = vunpack.c.l.b16 %v2611
  %v2686 = vunpack.c.l.b16 %v2612
  %v2687 = vunpack.c.l.b16 %v2613
  %v2688 = vunpack.c.l.b16 %v2614
  %v2689 = vunpack.c.l.b16 %v2615
  %v2690 = vunpack.c.l.b16 %v2616
  %v2691 = vunpack.c.l.b16 %v2617
  %v2692 = vunpack.c.l.b16 %v2618
  %v2693 = vunpack.c.l.b16 %v2619
  %v2694 = vunpack.c.l.b16 %v2620
  %v2695 = vunpack.c.l.b16 %v2621
  %v2696 = vunpack.c.l.b16 %v2622
  %v2697 = vunpack.c.l.b16 %v2623
  %v2698 = vunpack.c.l.b16 %v2624
  %v2699 = vunpack.c.l.b16 %v2625
  %v2700 = vunpack.c.l.b16 %v2626
  %v2701 = vpack.c.b16 %v2686, %v2685
  %v2702 = vpack.c.b16 %v2688, %v2687
  %v2703 = vpack.c.b16 %v2690, %v2689
  %v2704 = vpack.c.b16 %v2692, %v2691
  %v2705 = vpack.c.b16 %v2694, %v2693
  %v2706 = vpack.c.b16 %v2696, %v2695
  %v2707 = vpack.c.b16 %v2698, %v2697
  %v2708 = vpack.c.b16 %v2700, %v2699
  %2717 = vmatprep.subr.bf16.mxu0 0
  %2718 = vmatpush1.bf16.msra.mxu0 %v2708
  %2719 = vmatprep.subr.bf16.mxu0 0
  %2720 = vmatpush1.bf16.msra.mxu0 %v2707
  %2721 = vmatprep.subr.bf16.mxu0 0
  %2722 = vmatpush1.bf16.msra.mxu0 %v2706
  %2723 = vmatprep.subr.bf16.mxu0 0
  %2724 = vmatpush1.bf16.msra.mxu0 %v2705
  %2725 = vmatprep.subr.bf16.mxu0 0
  %2726 = vmatpush1.bf16.msra.mxu0 %v2704
  %2727 = vmatprep.subr.bf16.mxu0 0
  %2728 = vmatpush1.bf16.msra.mxu0 %v2703
  %2729 = vmatprep.subr.bf16.mxu0 0
  %2730 = vmatpush1.bf16.msra.mxu0 %v2702
  %2731 = vmatprep.subr.bf16.mxu0 0
  %2732 = vmatpush1.bf16.msra.mxu0 %v2701
  %2733 = vmatprep.subr.bf16.mxu0 0
  %2734 = vmatpush2.bf16.msra.mxu0 0
  %2735 = vmatprep.subr.bf16.mxu0 0
  %2736 = vmatpush2.bf16.msra.mxu0 0
  %2737 = vmatprep.subr.bf16.mxu0 0
  %2738 = vmatpush2.bf16.msra.mxu0 0
  %2739 = vmatprep.subr.bf16.mxu0 0
  %2740 = vmatpush2.bf16.msra.mxu0 0
  %2741 = vmatprep.subr.bf16.mxu0 0
  %2742 = vmatpush2.bf16.msra.mxu0 0
  %2743 = vmatprep.subr.bf16.mxu0 0
  %2744 = vmatpush2.bf16.msra.mxu0 0
  %2745 = vmatprep.subr.bf16.mxu0 0
  %2746 = vmatpush2.bf16.msra.mxu0 0
  %2747 = vmatprep.subr.bf16.mxu0 0
  %2748 = vmatpush2.bf16.msra.mxu0 0
  %2749 = vmatprep.mubr.bf16.mxu0 0
  %2750 = vmatmul.mubr.bf16.gmra.mxu0 %v2633
  %v2751 = vpop.f32.mrf.mxu0
  %v2752 = vadd.f32 0.0, %v2751
  %v2753 = vpop.f32.mrf.mxu0
  %v2754 = vpop.f32.mrf.mxu0
  %v2755 = vadd.f32 0.0, %v2754
  %v2756 = vpop.f32.mrf.mxu0
  %2757 = vmatprep.mubr.bf16.mxu0 0
  %2758 = vmatmul.mubr.bf16.gmra.mxu0 %v2635
  %v2759 = vpop.f32.mrf.mxu0
  %v2760 = vadd.f32 0.0, %v2759
  %v2761 = vpop.f32.mrf.mxu0
  %v2762 = vpop.f32.mrf.mxu0
  %v2763 = vadd.f32 0.0, %v2762
  %v2764 = vpop.f32.mrf.mxu0
  %2765 = vmatprep.mubr.bf16.mxu0 0
  %2766 = vmatmul.mubr.bf16.gmra.mxu0 %v2637
  %v2767 = vpop.f32.mrf.mxu0
  %v2768 = vadd.f32 0.0, %v2767
  %v2769 = vpop.f32.mrf.mxu0
  %v2770 = vpop.f32.mrf.mxu0
  %v2771 = vadd.f32 0.0, %v2770
  %v2772 = vpop.f32.mrf.mxu0
  %2773 = vmatprep.mubr.bf16.mxu0 0
  %2774 = vmatmul.mubr.bf16.gmra.mxu0 %v2639
  %v2775 = vpop.f32.mrf.mxu0
  %v2776 = vadd.f32 0.0, %v2775
  %v2777 = vpop.f32.mrf.mxu0
  %v2778 = vpop.f32.mrf.mxu0
  %v2779 = vadd.f32 0.0, %v2778
  %v2780 = vpop.f32.mrf.mxu0
  %2781 = vmatprep.mubr.bf16.mxu0 0
  %2782 = vmatmul.mubr.bf16.gmra.mxu0 %v2641
  %v2783 = vpop.f32.mrf.mxu0
  %v2784 = vadd.f32 0.0, %v2783
  %v2785 = vpop.f32.mrf.mxu0
  %v2786 = vpop.f32.mrf.mxu0
  %v2787 = vadd.f32 0.0, %v2786
  %v2788 = vpop.f32.mrf.mxu0
  %2789 = vmatprep.mubr.bf16.mxu0 0
  %2790 = vmatmul.mubr.bf16.gmra.mxu0 %v2643
  %v2791 = vpop.f32.mrf.mxu0
  %v2792 = vadd.f32 0.0, %v2791
  %v2793 = vpop.f32.mrf.mxu0
  %v2794 = vpop.f32.mrf.mxu0
  %v2795 = vadd.f32 0.0, %v2794
  %v2796 = vpop.f32.mrf.mxu0
  %2797 = vmatprep.mubr.bf16.mxu0 0
  %2798 = vmatmul.mubr.bf16.gmra.mxu0 %v2645
  %v2799 = vpop.f32.mrf.mxu0
  %v2800 = vadd.f32 0.0, %v2799
  %v2801 = vpop.f32.mrf.mxu0
  %v2802 = vpop.f32.mrf.mxu0
  %v2803 = vadd.f32 0.0, %v2802
  %v2804 = vpop.f32.mrf.mxu0
  %2805 = vmatprep.mubr.bf16.mxu0 0
  %2806 = vmatmul.mubr.bf16.gmra.mxu0 %v2647
  %v2807 = vpop.f32.mrf.mxu0
  %v2808 = vadd.f32 0.0, %v2807
  %v2809 = vpop.f32.mrf.mxu0
  %v2810 = vpop.f32.mrf.mxu0
  %v2811 = vadd.f32 0.0, %v2810
  %v2812 = vpop.f32.mrf.mxu0
  %2813 = vmatprep.mubr.bf16.mxu0 0
  %2814 = vmatmul.mubr.bf16.gmra.mxu0 %v2649
  %v2815 = vpop.f32.mrf.mxu0
  %v2816 = vadd.f32 0.0, %v2815
  %v2817 = vpop.f32.mrf.mxu0
  %v2818 = vpop.f32.mrf.mxu0
  %v2819 = vadd.f32 0.0, %v2818
  %v2820 = vpop.f32.mrf.mxu0
  %2821 = vmatprep.mubr.bf16.mxu0 0
  %2822 = vmatmul.mubr.bf16.gmra.mxu0 %v2651
  %v2823 = vpop.f32.mrf.mxu0
  %v2824 = vadd.f32 0.0, %v2823
  %v2825 = vpop.f32.mrf.mxu0
  %v2826 = vpop.f32.mrf.mxu0
  %v2827 = vadd.f32 0.0, %v2826
  %v2828 = vpop.f32.mrf.mxu0
  %2829 = vmatprep.mubr.bf16.mxu0 0
  %2830 = vmatmul.mubr.bf16.gmra.mxu0 %v2653
  %v2831 = vpop.f32.mrf.mxu0
  %v2832 = vadd.f32 0.0, %v2831
  %v2833 = vpop.f32.mrf.mxu0
  %v2834 = vpop.f32.mrf.mxu0
  %v2835 = vadd.f32 0.0, %v2834
  %v2836 = vpop.f32.mrf.mxu0
  %2837 = vmatprep.mubr.bf16.mxu0 0
  %2838 = vmatmul.mubr.bf16.gmra.mxu0 %v2655
  %v2839 = vpop.f32.mrf.mxu0
  %v2840 = vadd.f32 0.0, %v2839
  %v2841 = vpop.f32.mrf.mxu0
  %v2842 = vpop.f32.mrf.mxu0
  %v2843 = vadd.f32 0.0, %v2842
  %v2844 = vpop.f32.mrf.mxu0
  %2845 = vmatprep.mubr.bf16.mxu0 0
  %2846 = vmatmul.mubr.bf16.gmra.mxu0 %v2654
  %v2847 = vpop.f32.mrf.mxu0
  %v2848 = vadd.f32 0.0, %v2847
  %v2849 = vpop.f32.mrf.mxu0
  %v2850 = vpop.f32.mrf.mxu0
  %v2851 = vpop.f32.mrf.mxu0
  %2852 = vdwg.mxu0
  %v2853 = vadd.f32 %v2584, %v2752
  %v2854 = vadd.f32 %v2585, %v2755
  %v2855 = vadd.f32 %v2586, %v2760
  %v2856 = vadd.f32 %v2587, %v2763
  %v2857 = vadd.f32 %v2588, %v2768
  %v2858 = vadd.f32 %v2589, %v2771
  %v2859 = vadd.f32 %v2590, %v2776
  %v2860 = vadd.f32 %v2591, %v2779
  %v2861 = vadd.f32 %v2592, %v2784
  %v2862 = vadd.f32 %v2593, %v2787
  %v2863 = vadd.f32 %v2594, %v2792
  %v2864 = vadd.f32 %v2595, %v2795
  %v2865 = vadd.f32 %v2596, %v2800
  %v2866 = vadd.f32 %v2597, %v2803
  %v2867 = vadd.f32 %v2598, %v2808
  %v2868 = vadd.f32 %v2599, %v2811
  %v2869 = vadd.f32 %v2600, %v2816
  %v2870 = vadd.f32 %v2601, %v2819
  %v2871 = vadd.f32 %v2602, %v2824
  %v2872 = vadd.f32 %v2603, %v2827
  %v2873 = vadd.f32 %v2604, %v2832
  %v2874 = vadd.f32 %v2605, %v2835
  %v2875 = vadd.f32 %v2606, %v2840
  %v2876 = vadd.f32 %v2607, %v2843
  %v2877 = vadd.f32 %v2608, %v2848
  %v2878 = vld [vmem:[%s2] sm:$0x1]
  %v2880 = vlaneseq
  %v2881 = vshrl.u32 %v2880, 7
  %v2882 = vsub.s32 0, %v2881
  %v2883 = vrot.slane %v2878, %v2882
  %v2885 = vadd.f32 %v2853, %v2883
  %v2886 = vadd.f32 %v2854, %v2883
  %v2887 = vadd.f32 %v2855, %v2883
  %v2888 = vadd.f32 %v2856, %v2883
  %v2889 = vadd.f32 %v2857, %v2883
  %v2890 = vadd.f32 %v2858, %v2883
  %v2891 = vadd.f32 %v2859, %v2883
  %v2892 = vadd.f32 %v2860, %v2883
  %v2893 = vadd.f32 %v2861, %v2883
  %v2894 = vadd.f32 %v2862, %v2883
  %v2895 = vadd.f32 %v2863, %v2883
  %v2896 = vadd.f32 %v2864, %v2883
  %v2897 = vadd.f32 %v2865, %v2883
  %v2898 = vadd.f32 %v2866, %v2883
  %v2899 = vadd.f32 %v2867, %v2883
  %v2900 = vadd.f32 %v2868, %v2883
  %v2901 = vadd.f32 %v2869, %v2883
  %v2902 = vadd.f32 %v2870, %v2883
  %v2903 = vadd.f32 %v2871, %v2883
  %v2904 = vadd.f32 %v2872, %v2883
  %v2905 = vadd.f32 %v2873, %v2883
  %v2906 = vadd.f32 %v2874, %v2883
  %v2907 = vadd.f32 %v2875, %v2883
  %v2908 = vadd.f32 %v2876, %v2883
  %v2909 = vadd.f32 %v2877, %v2883
  %v2910 = vld [vmem:[%s3] sm:$0xff]
  %v2911 = vld [vmem:[%s3 + $0x8] sm:$0xff]
  %v2912 = vld [vmem:[%s3 + $0x10] sm:$0xff]
  %v2913 = vld [vmem:[%s3 + $0x18] sm:$0xff]
  %v2914 = vld [vmem:[%s3 + $0x20] sm:$0xff]
  %v2915 = vld [vmem:[%s3 + $0x28] sm:$0xff]
  %v2916 = vld [vmem:[%s3 + $0x30] sm:$0xff]
  %v2917 = vld [vmem:[%s3 + $0x38] sm:$0xff]
  %v2918 = vld [vmem:[%s3 + $0x40] sm:$0xff]
  %v2919 = vld [vmem:[%s3 + $0x48] sm:$0xff]
  %v2920 = vld [vmem:[%s3 + $0x50] sm:$0xff]
  %v2921 = vld [vmem:[%s3 + $0x58] sm:$0xff]
  %v2922 = vld [vmem:[%s3 + $0x60] sm:$0xff]
  %v2923 = vld [vmem:[%s3 + $0x68] sm:$0xff]
  %v2924 = vld [vmem:[%s3 + $0x70] sm:$0xff]
  %v2925 = vld [vmem:[%s3 + $0x78] sm:$0xff]
  %v2926 = vld [vmem:[%s3 + $0x80] sm:$0xff]
  %v2927 = vld [vmem:[%s3 + $0x88] sm:$0xff]
  %v2928 = vld [vmem:[%s3 + $0x90] sm:$0xff]
  %v2929 = vld [vmem:[%s3 + $0x98] sm:$0xff]
  %v2930 = vld [vmem:[%s3 + $0xa0] sm:$0xff]
  %v2931 = vld [vmem:[%s3 + $0xa8] sm:$0xff]
  %v2932 = vld [vmem:[%s3 + $0xb0] sm:$0xff]
  %v2933 = vld [vmem:[%s3 + $0xb8] sm:$0xff]
  %v2934 = vld [vmem:[%s3 + $0xc0] sm:$0xff]
  %2936 = vset.pattern.permute.xlu0 0
  %2937 = vperm.xlu0 %2936, %v2910
  %v2938 = vpop.permute.xlu0 %2937
  %2941 = vset.pattern.permute.xlu0 0
  %2942 = vperm.xlu0 %2941, %v2911
  %v2943 = vpop.permute.xlu0 %2942
  %2946 = vset.pattern.permute.xlu0 0
  %2947 = vperm.xlu0 %2946, %v2912
  %v2948 = vpop.permute.xlu0 %2947
  %2951 = vset.pattern.permute.xlu0 0
  %2952 = vperm.xlu0 %2951, %v2913
  %v2953 = vpop.permute.xlu0 %2952
  %2956 = vset.pattern.permute.xlu0 0
  %2957 = vperm.xlu0 %2956, %v2914
  %v2958 = vpop.permute.xlu0 %2957
  %2961 = vset.pattern.permute.xlu0 0
  %2962 = vperm.xlu0 %2961, %v2915
  %v2963 = vpop.permute.xlu0 %2962
  %2966 = vset.pattern.permute.xlu0 0
  %2967 = vperm.xlu0 %2966, %v2916
  %v2968 = vpop.permute.xlu0 %2967
  %2971 = vset.pattern.permute.xlu0 0
  %2972 = vperm.xlu0 %2971, %v2917
  %v2973 = vpop.permute.xlu0 %2972
  %2976 = vset.pattern.permute.xlu0 0
  %2977 = vperm.xlu0 %2976, %v2918
  %v2978 = vpop.permute.xlu0 %2977
  %2981 = vset.pattern.permute.xlu0 0
  %2982 = vperm.xlu0 %2981, %v2919
  %v2983 = vpop.permute.xlu0 %2982
  %2986 = vset.pattern.permute.xlu0 0
  %2987 = vperm.xlu0 %2986, %v2920
  %v2988 = vpop.permute.xlu0 %2987
  %2991 = vset.pattern.permute.xlu0 0
  %2992 = vperm.xlu0 %2991, %v2921
  %v2993 = vpop.permute.xlu0 %2992
  %2996 = vset.pattern.permute.xlu0 0
  %2997 = vperm.xlu0 %2996, %v2922
  %v2998 = vpop.permute.xlu0 %2997
  %3001 = vset.pattern.permute.xlu0 0
  %3002 = vperm.xlu0 %3001, %v2923
  %v3003 = vpop.permute.xlu0 %3002
  %3006 = vset.pattern.permute.xlu0 0
  %3007 = vperm.xlu0 %3006, %v2924
  %v3008 = vpop.permute.xlu0 %3007
  %3011 = vset.pattern.permute.xlu0 0
  %3012 = vperm.xlu0 %3011, %v2925
  %v3013 = vpop.permute.xlu0 %3012
  %3016 = vset.pattern.permute.xlu0 0
  %3017 = vperm.xlu0 %3016, %v2926
  %v3018 = vpop.permute.xlu0 %3017
  %3021 = vset.pattern.permute.xlu0 0
  %3022 = vperm.xlu0 %3021, %v2927
  %v3023 = vpop.permute.xlu0 %3022
  %3026 = vset.pattern.permute.xlu0 0
  %3027 = vperm.xlu0 %3026, %v2928
  %v3028 = vpop.permute.xlu0 %3027
  %3031 = vset.pattern.permute.xlu0 0
  %3032 = vperm.xlu0 %3031, %v2929
  %v3033 = vpop.permute.xlu0 %3032
  %3036 = vset.pattern.permute.xlu0 0
  %3037 = vperm.xlu0 %3036, %v2930
  %v3038 = vpop.permute.xlu0 %3037
  %3041 = vset.pattern.permute.xlu0 0
  %3042 = vperm.xlu0 %3041, %v2931
  %v3043 = vpop.permute.xlu0 %3042
  %3046 = vset.pattern.permute.xlu0 0
  %3047 = vperm.xlu0 %3046, %v2932
  %v3048 = vpop.permute.xlu0 %3047
  %3051 = vset.pattern.permute.xlu0 0
  %3052 = vperm.xlu0 %3051, %v2933
  %v3053 = vpop.permute.xlu0 %3052
  %3056 = vset.pattern.permute.xlu0 0
  %3057 = vperm.xlu0 %3056, %v2934
  %v3058 = vpop.permute.xlu0 %3057
  %v3060 = vmul.f32 %v2885, %v2938
  %v3061 = vmul.f32 %v2886, %v2943
  %v3062 = vmul.f32 %v2887, %v2948
  %v3063 = vmul.f32 %v2888, %v2953
  %v3064 = vmul.f32 %v2889, %v2958
  %v3065 = vmul.f32 %v2890, %v2963
  %v3066 = vmul.f32 %v2891, %v2968
  %v3067 = vmul.f32 %v2892, %v2973
  %v3068 = vmul.f32 %v2893, %v2978
  %v3069 = vmul.f32 %v2894, %v2983
  %v3070 = vmul.f32 %v2895, %v2988
  %v3071 = vmul.f32 %v2896, %v2993
  %v3072 = vmul.f32 %v2897, %v2998
  %v3073 = vmul.f32 %v2898, %v3003
  %v3074 = vmul.f32 %v2899, %v3008
  %v3075 = vmul.f32 %v2900, %v3013
  %v3076 = vmul.f32 %v2901, %v3018
  %v3077 = vmul.f32 %v2902, %v3023
  %v3078 = vmul.f32 %v2903, %v3028
  %v3079 = vmul.f32 %v2904, %v3033
  %v3080 = vmul.f32 %v2905, %v3038
  %v3081 = vmul.f32 %v2906, %v3043
  %v3082 = vmul.f32 %v2907, %v3048
  %v3083 = vmul.f32 %v2908, %v3053
  %v3084 = vmul.f32 %v2909, %v3058
  %v3085 = vmul.f32 %v3060, %v3060
  %v3086 = vmul.f32 %v3061, %v3061
  %v3087 = vmul.f32 %v3062, %v3062
  %v3088 = vmul.f32 %v3063, %v3063
  %v3089 = vmul.f32 %v3064, %v3064
  %v3090 = vmul.f32 %v3065, %v3065
  %v3091 = vmul.f32 %v3066, %v3066
  %v3092 = vmul.f32 %v3067, %v3067
  %v3093 = vmul.f32 %v3068, %v3068
  %v3094 = vmul.f32 %v3069, %v3069
  %v3095 = vmul.f32 %v3070, %v3070
  %v3096 = vmul.f32 %v3071, %v3071
  %v3097 = vmul.f32 %v3072, %v3072
  %v3098 = vmul.f32 %v3073, %v3073
  %v3099 = vmul.f32 %v3074, %v3074
  %v3100 = vmul.f32 %v3075, %v3075
  %v3101 = vmul.f32 %v3076, %v3076
  %v3102 = vmul.f32 %v3077, %v3077
  %v3103 = vmul.f32 %v3078, %v3078
  %v3104 = vmul.f32 %v3079, %v3079
  %v3105 = vmul.f32 %v3080, %v3080
  %v3106 = vmul.f32 %v3081, %v3081
  %v3107 = vmul.f32 %v3082, %v3082
  %v3108 = vmul.f32 %v3083, %v3083
  %v3109 = vmul.f32 %v3084, %v3084
  %3110 = vadd.xlane.f32.xlu0 %v3085
  %v3111 = vpop.xlane.xlu0 %3110
  %3112 = vadd.xlane.f32.xlu0 %v3086
  %v3113 = vpop.xlane.xlu0 %3112
  %3114 = vadd.xlane.f32.xlu0 %v3087
  %v3115 = vpop.xlane.xlu0 %3114
  %3116 = vadd.xlane.f32.xlu0 %v3088
  %v3117 = vpop.xlane.xlu0 %3116
  %3118 = vadd.xlane.f32.xlu0 %v3089
  %v3119 = vpop.xlane.xlu0 %3118
  %3120 = vadd.xlane.f32.xlu0 %v3090
  %v3121 = vpop.xlane.xlu0 %3120
  %3122 = vadd.xlane.f32.xlu0 %v3091
  %v3123 = vpop.xlane.xlu0 %3122
  %3124 = vadd.xlane.f32.xlu0 %v3092
  %v3125 = vpop.xlane.xlu0 %3124
  %3126 = vadd.xlane.f32.xlu0 %v3093
  %v3127 = vpop.xlane.xlu0 %3126
  %3128 = vadd.xlane.f32.xlu0 %v3094
  %v3129 = vpop.xlane.xlu0 %3128
  %3130 = vadd.xlane.f32.xlu0 %v3095
  %v3131 = vpop.xlane.xlu0 %3130
  %3132 = vadd.xlane.f32.xlu0 %v3096
  %v3133 = vpop.xlane.xlu0 %3132
  %3134 = vadd.xlane.f32.xlu0 %v3097
  %v3135 = vpop.xlane.xlu0 %3134
  %3136 = vadd.xlane.f32.xlu0 %v3098
  %v3137 = vpop.xlane.xlu0 %3136
  %3138 = vadd.xlane.f32.xlu0 %v3099
  %v3139 = vpop.xlane.xlu0 %3138
  %3140 = vadd.xlane.f32.xlu0 %v3100
  %v3141 = vpop.xlane.xlu0 %3140
  %3142 = vadd.xlane.f32.xlu0 %v3101
  %v3143 = vpop.xlane.xlu0 %3142
  %3144 = vadd.xlane.f32.xlu0 %v3102
  %v3145 = vpop.xlane.xlu0 %3144
  %3146 = vadd.xlane.f32.xlu0 %v3103
  %v3147 = vpop.xlane.xlu0 %3146
  %3148 = vadd.xlane.f32.xlu0 %v3104
  %v3149 = vpop.xlane.xlu0 %3148
  %3150 = vadd.xlane.f32.xlu0 %v3105
  %v3151 = vpop.xlane.xlu0 %3150
  %3152 = vadd.xlane.f32.xlu0 %v3106
  %v3153 = vpop.xlane.xlu0 %3152
  %3154 = vadd.xlane.f32.xlu0 %v3107
  %v3155 = vpop.xlane.xlu0 %3154
  %3156 = vadd.xlane.f32.xlu0 %v3108
  %v3157 = vpop.xlane.xlu0 %3156
  %3158 = vadd.xlane.f32.xlu0 %v3109
  %v3159 = vpop.xlane.xlu0 %3158
  %v3160 = vmul.f32 %v3111, 0.03125
  %v3161 = vmul.f32 %v3113, 0.03125
  %v3162 = vmul.f32 %v3115, 0.03125
  %v3163 = vmul.f32 %v3117, 0.03125
  %v3164 = vmul.f32 %v3119, 0.03125
  %v3165 = vmul.f32 %v3121, 0.03125
  %v3166 = vmul.f32 %v3123, 0.03125
  %v3167 = vmul.f32 %v3125, 0.03125
  %v3168 = vmul.f32 %v3127, 0.03125
  %v3169 = vmul.f32 %v3129, 0.03125
  %v3170 = vmul.f32 %v3131, 0.03125
  %v3171 = vmul.f32 %v3133, 0.03125
  %v3172 = vmul.f32 %v3135, 0.03125
  %v3173 = vmul.f32 %v3137, 0.03125
  %v3174 = vmul.f32 %v3139, 0.03125
  %v3175 = vmul.f32 %v3141, 0.03125
  %v3176 = vmul.f32 %v3143, 0.03125
  %v3177 = vmul.f32 %v3145, 0.03125
  %v3178 = vmul.f32 %v3147, 0.03125
  %v3179 = vmul.f32 %v3149, 0.03125
  %v3180 = vmul.f32 %v3151, 0.03125
  %v3181 = vmul.f32 %v3153, 0.03125
  %v3182 = vmul.f32 %v3155, 0.03125
  %v3183 = vmul.f32 %v3157, 0.03125
  %v3184 = vmul.f32 %v3159, 0.03125
  %v3185 = vadd.f32 %v3160, 1e-08
  %v3186 = vadd.f32 %v3161, 1e-08
  %v3187 = vadd.f32 %v3162, 1e-08
  %v3188 = vadd.f32 %v3163, 1e-08
  %v3189 = vadd.f32 %v3164, 1e-08
  %v3190 = vadd.f32 %v3165, 1e-08
  %v3191 = vadd.f32 %v3166, 1e-08
  %v3192 = vadd.f32 %v3167, 1e-08
  %v3193 = vadd.f32 %v3168, 1e-08
  %v3194 = vadd.f32 %v3169, 1e-08
  %v3195 = vadd.f32 %v3170, 1e-08
  %v3196 = vadd.f32 %v3171, 1e-08
  %v3197 = vadd.f32 %v3172, 1e-08
  %v3198 = vadd.f32 %v3173, 1e-08
  %v3199 = vadd.f32 %v3174, 1e-08
  %v3200 = vadd.f32 %v3175, 1e-08
  %v3201 = vadd.f32 %v3176, 1e-08
  %v3202 = vadd.f32 %v3177, 1e-08
  %v3203 = vadd.f32 %v3178, 1e-08
  %v3204 = vadd.f32 %v3179, 1e-08
  %v3205 = vadd.f32 %v3180, 1e-08
  %v3206 = vadd.f32 %v3181, 1e-08
  %v3207 = vadd.f32 %v3182, 1e-08
  %v3208 = vadd.f32 %v3183, 1e-08
  %v3209 = vadd.f32 %v3184, 1e-08
  %v3210 = vrsqrt.pop %v3185
  %v3211 = vrsqrt.pop %v3186
  %v3212 = vrsqrt.pop %v3187
  %v3213 = vrsqrt.pop %v3188
  %v3214 = vrsqrt.pop %v3189
  %v3215 = vrsqrt.pop %v3190
  %v3216 = vrsqrt.pop %v3191
  %v3217 = vrsqrt.pop %v3192
  %v3218 = vrsqrt.pop %v3193
  %v3219 = vrsqrt.pop %v3194
  %v3220 = vrsqrt.pop %v3195
  %v3221 = vrsqrt.pop %v3196
  %v3222 = vrsqrt.pop %v3197
  %v3223 = vrsqrt.pop %v3198
  %v3224 = vrsqrt.pop %v3199
  %v3225 = vrsqrt.pop %v3200
  %v3226 = vrsqrt.pop %v3201
  %v3227 = vrsqrt.pop %v3202
  %v3228 = vrsqrt.pop %v3203
  %v3229 = vrsqrt.pop %v3204
  %v3230 = vrsqrt.pop %v3205
  %v3231 = vrsqrt.pop %v3206
  %v3232 = vrsqrt.pop %v3207
  %v3233 = vrsqrt.pop %v3208
  %v3234 = vrsqrt.pop %v3209
  %v3235 = vmul.f32 %v3060, %v3210
  %v3236 = vmul.f32 %v3061, %v3211
  %v3237 = vmul.f32 %v3062, %v3212
  %v3238 = vmul.f32 %v3063, %v3213
  %v3239 = vmul.f32 %v3064, %v3214
  %v3240 = vmul.f32 %v3065, %v3215
  %v3241 = vmul.f32 %v3066, %v3216
  %v3242 = vmul.f32 %v3067, %v3217
  %v3243 = vmul.f32 %v3068, %v3218
  %v3244 = vmul.f32 %v3069, %v3219
  %v3245 = vmul.f32 %v3070, %v3220
  %v3246 = vmul.f32 %v3071, %v3221
  %v3247 = vmul.f32 %v3072, %v3222
  %v3248 = vmul.f32 %v3073, %v3223
  %v3249 = vmul.f32 %v3074, %v3224
  %v3250 = vmul.f32 %v3075, %v3225
  %v3251 = vmul.f32 %v3076, %v3226
  %v3252 = vmul.f32 %v3077, %v3227
  %v3253 = vmul.f32 %v3078, %v3228
  %v3254 = vmul.f32 %v3079, %v3229
  %v3255 = vmul.f32 %v3080, %v3230
  %v3256 = vmul.f32 %v3081, %v3231
  %v3257 = vmul.f32 %v3082, %v3232
  %v3258 = vmul.f32 %v3083, %v3233
  %v3259 = vmul.f32 %v3084, %v3234
  %vm3260 = vcmp.ge.f32.partialorder %v3235, 0.0
  %vm3261 = vcmp.ge.f32.partialorder %v3236, 0.0
  %vm3262 = vcmp.ge.f32.partialorder %v3237, 0.0
  %vm3263 = vcmp.ge.f32.partialorder %v3238, 0.0
  %vm3264 = vcmp.ge.f32.partialorder %v3239, 0.0
  %vm3265 = vcmp.ge.f32.partialorder %v3240, 0.0
  %vm3266 = vcmp.ge.f32.partialorder %v3241, 0.0
  %vm3267 = vcmp.ge.f32.partialorder %v3242, 0.0
  %vm3268 = vcmp.ge.f32.partialorder %v3243, 0.0
  %vm3269 = vcmp.ge.f32.partialorder %v3244, 0.0
  %vm3270 = vcmp.ge.f32.partialorder %v3245, 0.0
  %vm3271 = vcmp.ge.f32.partialorder %v3246, 0.0
  %vm3272 = vcmp.ge.f32.partialorder %v3247, 0.0
  %vm3273 = vcmp.ge.f32.partialorder %v3248, 0.0
  %vm3274 = vcmp.ge.f32.partialorder %v3249, 0.0
  %vm3275 = vcmp.ge.f32.partialorder %v3250, 0.0
  %vm3276 = vcmp.ge.f32.partialorder %v3251, 0.0
  %vm3277 = vcmp.ge.f32.partialorder %v3252, 0.0
  %vm3278 = vcmp.ge.f32.partialorder %v3253, 0.0
  %vm3279 = vcmp.ge.f32.partialorder %v3254, 0.0
  %vm3280 = vcmp.ge.f32.partialorder %v3255, 0.0
  %vm3281 = vcmp.ge.f32.partialorder %v3256, 0.0
  %vm3282 = vcmp.ge.f32.partialorder %v3257, 0.0
  %vm3283 = vcmp.ge.f32.partialorder %v3258, 0.0
  %vm3284 = vcmp.ge.f32.partialorder %v3259, 0.0
  %v3285 = vmul.f32 %v3235, 0.2
  %v3286 = vmul.f32 %v3236, 0.2
  %v3287 = vmul.f32 %v3237, 0.2
  %v3288 = vmul.f32 %v3238, 0.2
  %v3289 = vmul.f32 %v3239, 0.2
  %v3290 = vmul.f32 %v3240, 0.2
  %v3291 = vmul.f32 %v3241, 0.2
  %v3292 = vmul.f32 %v3242, 0.2
  %v3293 = vmul.f32 %v3243, 0.2
  %v3294 = vmul.f32 %v3244, 0.2
  %v3295 = vmul.f32 %v3245, 0.2
  %v3296 = vmul.f32 %v3246, 0.2
  %v3297 = vmul.f32 %v3247, 0.2
  %v3298 = vmul.f32 %v3248, 0.2
  %v3299 = vmul.f32 %v3249, 0.2
  %v3300 = vmul.f32 %v3250, 0.2
  %v3301 = vmul.f32 %v3251, 0.2
  %v3302 = vmul.f32 %v3252, 0.2
  %v3303 = vmul.f32 %v3253, 0.2
  %v3304 = vmul.f32 %v3254, 0.2
  %v3305 = vmul.f32 %v3255, 0.2
  %v3306 = vmul.f32 %v3256, 0.2
  %v3307 = vmul.f32 %v3257, 0.2
  %v3308 = vmul.f32 %v3258, 0.2
  %v3309 = vmul.f32 %v3259, 0.2
  %v3310 = vsel %vm3260, %v3235, %v3285
  %v3311 = vsel %vm3261, %v3236, %v3286
  %v3312 = vsel %vm3262, %v3237, %v3287
  %v3313 = vsel %vm3263, %v3238, %v3288
  %v3314 = vsel %vm3264, %v3239, %v3289
  %v3315 = vsel %vm3265, %v3240, %v3290
  %v3316 = vsel %vm3266, %v3241, %v3291
  %v3317 = vsel %vm3267, %v3242, %v3292
  %v3318 = vsel %vm3268, %v3243, %v3293
  %v3319 = vsel %vm3269, %v3244, %v3294
  %v3320 = vsel %vm3270, %v3245, %v3295
  %v3321 = vsel %vm3271, %v3246, %v3296
  %v3322 = vsel %vm3272, %v3247, %v3297
  %v3323 = vsel %vm3273, %v3248, %v3298
  %v3324 = vsel %vm3274, %v3249, %v3299
  %v3325 = vsel %vm3275, %v3250, %v3300
  %v3326 = vsel %vm3276, %v3251, %v3301
  %v3327 = vsel %vm3277, %v3252, %v3302
  %v3328 = vsel %vm3278, %v3253, %v3303
  %v3329 = vsel %vm3279, %v3254, %v3304
  %v3330 = vsel %vm3280, %v3255, %v3305
  %v3331 = vsel %vm3281, %v3256, %v3306
  %v3332 = vsel %vm3282, %v3257, %v3307
  %v3333 = vsel %vm3283, %v3258, %v3308
  %v3334 = vsel %vm3284, %v3259, %v3309
  %v3335 = vpack.c.bf16 %v3311, %v3310
  %v3336 = vpack.c.bf16 %v3313, %v3312
  %v3337 = vpack.c.bf16 %v3315, %v3314
  %v3338 = vpack.c.bf16 %v3317, %v3316
  %v3339 = vpack.c.bf16 %v3319, %v3318
  %v3340 = vpack.c.bf16 %v3321, %v3320
  %v3341 = vpack.c.bf16 %v3323, %v3322
  %v3342 = vpack.c.bf16 %v3325, %v3324
  %v3343 = vpack.c.bf16 %v3327, %v3326
  %v3344 = vpack.c.bf16 %v3329, %v3328
  %v3345 = vpack.c.bf16 %v3331, %v3330
  %v3346 = vpack.c.bf16 %v3333, %v3332
  %v3347 = vpack.c.bf16 %v3334, %v3334
  %v3361 = vunpack.c.l.b16 %v3335
  %v3362 = vunpack.c.h.b16 %v3335
  %v3363 = vunpack.c.l.b16 %v3336
  %v3364 = vunpack.c.h.b16 %v3336
  %v3365 = vunpack.c.l.b16 %v3337
  %v3366 = vunpack.c.h.b16 %v3337
  %v3367 = vunpack.c.l.b16 %v3338
  %v3368 = vunpack.c.h.b16 %v3338
  %v3369 = vunpack.c.l.b16 %v3339
  %v3370 = vunpack.c.h.b16 %v3339
  %v3371 = vunpack.c.l.b16 %v3340
  %v3372 = vunpack.c.h.b16 %v3340
  %v3373 = vunpack.c.l.b16 %v3341
  %v3374 = vunpack.c.h.b16 %v3341
  %v3375 = vunpack.c.l.b16 %v3342
  %v3376 = vunpack.c.h.b16 %v3342
  %v3377 = vunpack.c.l.b16 %v3343
  %v3378 = vunpack.c.h.b16 %v3343
  %v3379 = vunpack.c.l.b16 %v3344
  %v3380 = vunpack.c.h.b16 %v3344
  %v3381 = vunpack.c.l.b16 %v3345
  %v3382 = vunpack.c.h.b16 %v3345
  %v3383 = vunpack.c.l.b16 %v3346
  %v3384 = vunpack.c.h.b16 %v3346
  %v3385 = vunpack.c.l.b16 %v3347
  %v3386 = vpack.c.b16 %v3361, %v3361
  %v3387 = vpack.c.b16 %v3362, %v3362
  %v3388 = vpack.c.b16 %v3363, %v3363
  %v3389 = vpack.c.b16 %v3364, %v3364
  %v3390 = vpack.c.b16 %v3365, %v3365
  %v3391 = vpack.c.b16 %v3366, %v3366
  %v3392 = vpack.c.b16 %v3367, %v3367
  %v3393 = vpack.c.b16 %v3368, %v3368
  %v3394 = vpack.c.b16 %v3369, %v3369
  %v3395 = vpack.c.b16 %v3370, %v3370
  %v3396 = vpack.c.b16 %v3371, %v3371
  %v3397 = vpack.c.b16 %v3372, %v3372
  %v3398 = vpack.c.b16 %v3373, %v3373
  %v3399 = vpack.c.b16 %v3374, %v3374
  %v3400 = vpack.c.b16 %v3375, %v3375
  %v3401 = vpack.c.b16 %v3376, %v3376
  %v3402 = vpack.c.b16 %v3377, %v3377
  %v3403 = vpack.c.b16 %v3378, %v3378
  %v3404 = vpack.c.b16 %v3379, %v3379
  %v3405 = vpack.c.b16 %v3380, %v3380
  %v3406 = vpack.c.b16 %v3381, %v3381
  %v3407 = vpack.c.b16 %v3382, %v3382
  %v3408 = vpack.c.b16 %v3383, %v3383
  %v3409 = vpack.c.b16 %v3384, %v3384
  %v3410 = vpack.c.b16 %v3385, %v3385
  %3436 = vst [vmem:[%s4] sm:$0xf] %v3386
  %3437 = vst [vmem:[%s4 + $0x4] sm:$0xf] %v3387
  %3438 = vst [vmem:[%s4 + $0x8] sm:$0xf] %v3388
  %3439 = vst [vmem:[%s4 + $0xc] sm:$0xf] %v3389
  %3440 = vst [vmem:[%s4 + $0x10] sm:$0xf] %v3390
  %3441 = vst [vmem:[%s4 + $0x14] sm:$0xf] %v3391
  %3442 = vst [vmem:[%s4 + $0x18] sm:$0xf] %v3392
  %3443 = vst [vmem:[%s4 + $0x1c] sm:$0xf] %v3393
  %3444 = vst [vmem:[%s4 + $0x20] sm:$0xf] %v3394
  %3445 = vst [vmem:[%s4 + $0x24] sm:$0xf] %v3395
  %3446 = vst [vmem:[%s4 + $0x28] sm:$0xf] %v3396
  %3447 = vst [vmem:[%s4 + $0x2c] sm:$0xf] %v3397
  %3448 = vst [vmem:[%s4 + $0x30] sm:$0xf] %v3398
  %3449 = vst [vmem:[%s4 + $0x34] sm:$0xf] %v3399
  %3450 = vst [vmem:[%s4 + $0x38] sm:$0xf] %v3400
  %3451 = vst [vmem:[%s4 + $0x3c] sm:$0xf] %v3401
  %3452 = vst [vmem:[%s4 + $0x40] sm:$0xf] %v3402
  %3453 = vst [vmem:[%s4 + $0x44] sm:$0xf] %v3403
  %3454 = vst [vmem:[%s4 + $0x48] sm:$0xf] %v3404
  %3455 = vst [vmem:[%s4 + $0x4c] sm:$0xf] %v3405
  %3456 = vst [vmem:[%s4 + $0x50] sm:$0xf] %v3406
  %3457 = vst [vmem:[%s4 + $0x54] sm:$0xf] %v3407
  %3458 = vst [vmem:[%s4 + $0x58] sm:$0xf] %v3408
  %3459 = vst [vmem:[%s4 + $0x5c] sm:$0xf] %v3409
  %3460 = vst [vmem:[%s4 + $0x60] sm:$0xf] %v3410
  // Predicated region
  $region18: #{forward.8} parent=0 // pred_check
    _
  $region19: #{forward.8} parent=0 // pred_check_branch
    %3462 = sbr.rel (0) target = $region21
  $region20: #{forward.8} parent=0 // pred_region
    _
  $region21: #{forward.8} parent=0 // pred_fallthru
    _
  // Predicated region
  $region22: #{forward.8} parent=0 // pred_check
    _
  $region23: #{forward.8} parent=0 // pred_check_branch
    %3464 = sbr.rel (0) target = $region25
  $region24: #{forward.8} parent=0 // pred_region
    _
  $region25: #{forward.8} parent=0 // pred_fallthru
    _

// kernel: forward.12
$region0: #{forward.12}
  #allocation0 [shape = 'u32[]', space=smem, size = 0x4, offset = 0x4, fixed_abs, tag = 'smem constant byte address 0x4 - core index']
  #allocation1 [shape = 'u32[144,128]{1,0:T(1,128)}', space=vmem, size = 0x12000, scoped, tag = 'internal scratch']
  %s0 = inlined_call_operand.vmem [shape: bf16[86,128], index: 0, kind: input, shape index: {}]
  %s1 = inlined_call_operand.vmem [shape: bf16[9,128,128], index: 1, kind: input, shape index: {}]
  %s2 = inlined_call_operand.vmem [shape: f32[1,128], index: 2, kind: input, shape index: {}]
  %s3 = inlined_call_operand.vmem [shape: f32[72,1], index: 3, kind: input, shape index: {}]
  %s4 = inlined_call_operand.vmem [shape: bf16[72,128], index: 4, kind: output, shape index: {}]
  %s5 = sld [smem:[#allocation0]]
  $region26: #{forward.12} parent=0
    _
  %s7 = ssub.s32 1, %s5
  %s8 = scalar_select 0, %s7, %s5
  // Predicated region
  $region2: #{forward.12} parent=0 // pred_check
    _
  $region3: #{forward.12} parent=0 // pred_check_branch
    %10 = sbr.rel (0) target = $region5
  $region4: #{forward.12} parent=0 // pred_region
    _
  $region5: #{forward.12} parent=0 // pred_fallthru
    _
  // Predicated region
  $region6: #{forward.12} parent=0 // pred_check
    _
  $region7: #{forward.12} parent=0 // pred_check_branch
    %12 = sbr.rel (0) target = $region9
  $region8: #{forward.12} parent=0 // pred_region
    _
  $region9: #{forward.12} parent=0 // pred_fallthru
    _
  // Predicated region
  $region10: #{forward.12} parent=0 // pred_check
    _
  $region11: #{forward.12} parent=0 // pred_check_branch
    %14 = sbr.rel (0) target = $region13
  $region12: #{forward.12} parent=0 // pred_region
    _
  $region13: #{forward.12} parent=0 // pred_fallthru
    _
  // Predicated region
  $region14: #{forward.12} parent=0 // pred_check
    _
  $region15: #{forward.12} parent=0 // pred_check_branch
    %16 = sbr.rel (0) target = $region17
  $region16: #{forward.12} parent=0 // pred_region
    _
  $region17: #{forward.12} parent=0 // pred_fallthru
    _
  %v18 = vld [vmem:[%s0] sm:$0xf]
  %v19 = vld [vmem:[%s0 + $0x4] sm:$0xf]
  %v20 = vld [vmem:[%s0 + $0x8] sm:$0xf]
  %v21 = vld [vmem:[%s0 + $0xc] sm:$0xf]
  %v22 = vld [vmem:[%s0 + $0x10] sm:$0xf]
  %v23 = vld [vmem:[%s0 + $0x14] sm:$0xf]
  %v24 = vld [vmem:[%s0 + $0x18] sm:$0xf]
  %v25 = vld [vmem:[%s0 + $0x1c] sm:$0xf]
  %v26 = vld [vmem:[%s0 + $0x20] sm:$0xf]
  %v27 = vld [vmem:[%s1] sm:$0xf]
  %v28 = vld [vmem:[%s1 + $0x4] sm:$0xf]
  %v29 = vld [vmem:[%s1 + $0x8] sm:$0xf]
  %v30 = vld [vmem:[%s1 + $0xc] sm:$0xf]
  %v31 = vld [vmem:[%s1 + $0x10] sm:$0xf]
  %v32 = vld [vmem:[%s1 + $0x14] sm:$0xf]
  %v33 = vld [vmem:[%s1 + $0x18] sm:$0xf]
  %v34 = vld [vmem:[%s1 + $0x1c] sm:$0xf]
  %v35 = vld [vmem:[%s1 + $0x20] sm:$0xf]
  %v36 = vld [vmem:[%s1 + $0x24] sm:$0xf]
  %v37 = vld [vmem:[%s1 + $0x28] sm:$0xf]
  %v38 = vld [vmem:[%s1 + $0x2c] sm:$0xf]
  %v39 = vld [vmem:[%s1 + $0x30] sm:$0xf]
  %v40 = vld [vmem:[%s1 + $0x34] sm:$0xf]
  %v41 = vld [vmem:[%s1 + $0x38] sm:$0xf]
  %v42 = vld [vmem:[%s1 + $0x3c] sm:$0xf]
  %v43 = vld [vmem:[%s0 + $0x24] sm:$0x1]
  %s44 = scalar_lea.vmem %s1, 64
  %v45 = vld [vmem:[%s44] sm:$0xf]
  %v46 = vld [vmem:[%s44 + $0x4] sm:$0xf]
  %v47 = vld [vmem:[%s44 + $0x8] sm:$0xf]
  %v48 = vld [vmem:[%s44 + $0xc] sm:$0xf]
  %v49 = vld [vmem:[%s44 + $0x10] sm:$0xf]
  %v50 = vld [vmem:[%s44 + $0x14] sm:$0xf]
  %v51 = vld [vmem:[%s44 + $0x18] sm:$0xf]
  %v52 = vld [vmem:[%s44 + $0x1c] sm:$0xf]
  %v53 = vld [vmem:[%s44 + $0x20] sm:$0xf]
  %v54 = vld [vmem:[%s44 + $0x24] sm:$0xf]
  %v55 = vld [vmem:[%s44 + $0x28] sm:$0xf]
  %v56 = vld [vmem:[%s44 + $0x2c] sm:$0xf]
  %v57 = vld [vmem:[%s44 + $0x30] sm:$0xf]
  %v58 = vld [vmem:[%s44 + $0x34] sm:$0xf]
  %v59 = vld [vmem:[%s44 + $0x38] sm:$0xf]
  %v60 = vld [vmem:[%s44 + $0x3c] sm:$0xf]
  %v71 = vunpack.c.l.b16 %v18
  %v72 = vunpack.c.l.b16 %v19
  %v73 = vunpack.c.l.b16 %v20
  %v74 = vunpack.c.l.b16 %v21
  %v75 = vunpack.c.l.b16 %v22
  %v76 = vunpack.c.l.b16 %v23
  %v77 = vunpack.c.l.b16 %v24
  %v78 = vunpack.c.l.b16 %v25
  %v79 = vunpack.c.l.b16 %v26
  %v80 = vunpack.c.l.b16 %v43
  %v81 = vpack.c.b16 %v72, %v71
  %v82 = vpack.c.b16 %v74, %v73
  %v83 = vpack.c.b16 %v76, %v75
  %v84 = vpack.c.b16 %v78, %v77
  %v85 = vpack.c.b16 %v80, %v79
  %vm86 = vsmask.f32 7424
  %v88 = vshrl.u32 %v81, 16
  %v90 = vshll.u32 %v81, 16
  %v92 = vrot.slane %v90, 1
  %v93 = vor.u32 %v88, %v92
  %v95 = vshll.u32 %v82, 16
  %v97 = vrot.slane %v95, 1
  %v98 = vsel %vm86, %v93, %v97
  %v99 = vshrl.u32 %v82, 16
  %v101 = vor.u32 %v99, %v97
  %v103 = vshll.u32 %v83, 16
  %v105 = vrot.slane %v103, 1
  %v106 = vsel %vm86, %v101, %v105
  %v107 = vshrl.u32 %v83, 16
  %v109 = vor.u32 %v107, %v105
  %v111 = vshll.u32 %v84, 16
  %v113 = vrot.slane %v111, 1
  %v114 = vsel %vm86, %v109, %v113
  %v115 = vshrl.u32 %v84, 16
  %v117 = vor.u32 %v115, %v113
  %v119 = vshll.u32 %v85, 16
  %v121 = vrot.slane %v119, 1
  %v122 = vsel %vm86, %v117, %v121
  %v123 = vshrl.u32 %v85, 16
  %v125 = vor.u32 %v123, %v121
  %v147 = vunpack.c.l.b16 %v45
  %v148 = vunpack.c.l.b16 %v46
  %v149 = vunpack.c.l.b16 %v47
  %v150 = vunpack.c.l.b16 %v48
  %v151 = vunpack.c.l.b16 %v49
  %v152 = vunpack.c.l.b16 %v50
  %v153 = vunpack.c.l.b16 %v51
  %v154 = vunpack.c.l.b16 %v52
  %v155 = vunpack.c.l.b16 %v53
  %v156 = vunpack.c.l.b16 %v54
  %v157 = vunpack.c.l.b16 %v55
  %v158 = vunpack.c.l.b16 %v56
  %v159 = vunpack.c.l.b16 %v57
  %v160 = vunpack.c.l.b16 %v58
  %v161 = vunpack.c.l.b16 %v59
  %v162 = vunpack.c.l.b16 %v60
  %v163 = vpack.c.b16 %v148, %v147
  %v164 = vpack.c.b16 %v150, %v149
  %v165 = vpack.c.b16 %v152, %v151
  %v166 = vpack.c.b16 %v154, %v153
  %v167 = vpack.c.b16 %v156, %v155
  %v168 = vpack.c.b16 %v158, %v157
  %v169 = vpack.c.b16 %v160, %v159
  %v170 = vpack.c.b16 %v162, %v161
  %179 = vmatprep.subr.bf16.mxu0 0
  %180 = vmatpush1.bf16.msra.mxu0 %v170
  %181 = vmatprep.subr.bf16.mxu0 0
  %182 = vmatpush1.bf16.msra.mxu0 %v169
  %183 = vmatprep.subr.bf16.mxu0 0
  %184 = vmatpush1.bf16.msra.mxu0 %v168
  %185 = vmatprep.subr.bf16.mxu0 0
  %186 = vmatpush1.bf16.msra.mxu0 %v167
  %187 = vmatprep.subr.bf16.mxu0 0
  %188 = vmatpush1.bf16.msra.mxu0 %v166
  %189 = vmatprep.subr.bf16.mxu0 0
  %190 = vmatpush1.bf16.msra.mxu0 %v165
  %191 = vmatprep.subr.bf16.mxu0 0
  %192 = vmatpush1.bf16.msra.mxu0 %v164
  %193 = vmatprep.subr.bf16.mxu0 0
  %194 = vmatpush1.bf16.msra.mxu0 %v163
  %195 = vmatprep.subr.bf16.mxu0 0
  %196 = vmatpush2.bf16.msra.mxu0 0
  %197 = vmatprep.subr.bf16.mxu0 0
  %198 = vmatpush2.bf16.msra.mxu0 0
  %199 = vmatprep.subr.bf16.mxu0 0
  %200 = vmatpush2.bf16.msra.mxu0 0
  %201 = vmatprep.subr.bf16.mxu0 0
  %202 = vmatpush2.bf16.msra.mxu0 0
  %203 = vmatprep.subr.bf16.mxu0 0
  %204 = vmatpush2.bf16.msra.mxu0 0
  %205 = vmatprep.subr.bf16.mxu0 0
  %206 = vmatpush2.bf16.msra.mxu0 0
  %207 = vmatprep.subr.bf16.mxu0 0
  %208 = vmatpush2.bf16.msra.mxu0 0
  %209 = vmatprep.subr.bf16.mxu0 0
  %210 = vmatpush2.bf16.msra.mxu0 0
  %211 = vmatprep.mubr.bf16.mxu0 0
  %212 = vmatmul.mubr.bf16.gmra.mxu0 %v98
  %v213 = vpop.f32.mrf.mxu0
  %v214 = vadd.f32 0.0, %v213
  %v215 = vpop.f32.mrf.mxu0
  %v216 = vpop.f32.mrf.mxu0
  %v217 = vadd.f32 0.0, %v216
  %v218 = vpop.f32.mrf.mxu0
  %219 = vmatprep.mubr.bf16.mxu0 0
  %220 = vmatmul.mubr.bf16.gmra.mxu0 %v106
  %v221 = vpop.f32.mrf.mxu0
  %v222 = vadd.f32 0.0, %v221
  %v223 = vpop.f32.mrf.mxu0
  %v224 = vpop.f32.mrf.mxu0
  %v225 = vadd.f32 0.0, %v224
  %v226 = vpop.f32.mrf.mxu0
  %227 = vmatprep.mubr.bf16.mxu0 0
  %228 = vmatmul.mubr.bf16.gmra.mxu0 %v114
  %v229 = vpop.f32.mrf.mxu0
  %v230 = vadd.f32 0.0, %v229
  %v231 = vpop.f32.mrf.mxu0
  %v232 = vpop.f32.mrf.mxu0
  %v233 = vadd.f32 0.0, %v232
  %v234 = vpop.f32.mrf.mxu0
  %235 = vmatprep.mubr.bf16.mxu0 0
  %236 = vmatmul.mubr.bf16.gmra.mxu0 %v122
  %v237 = vpop.f32.mrf.mxu0
  %v238 = vadd.f32 0.0, %v237
  %v239 = vpop.f32.mrf.mxu0
  %v240 = vpop.f32.mrf.mxu0
  %v241 = vadd.f32 0.0, %v240
  %v242 = vpop.f32.mrf.mxu0
  %243 = vmatprep.mubr.bf16.mxu0 0
  %244 = vmatmul.mubr.bf16.gmra.mxu0 %v125
  %v245 = vpop.f32.mrf.mxu0
  %v246 = vadd.f32 0.0, %v245
  %v247 = vpop.f32.mrf.mxu0
  %v248 = vpop.f32.mrf.mxu0
  %v249 = vpop.f32.mrf.mxu0
  %250 = vdwg.mxu0
  %v251 = vpack.c.b16 %v79, %v79
  %v273 = vunpack.c.l.b16 %v27
  %v274 = vunpack.c.l.b16 %v28
  %v275 = vunpack.c.l.b16 %v29
  %v276 = vunpack.c.l.b16 %v30
  %v277 = vunpack.c.l.b16 %v31
  %v278 = vunpack.c.l.b16 %v32
  %v279 = vunpack.c.l.b16 %v33
  %v280 = vunpack.c.l.b16 %v34
  %v281 = vunpack.c.l.b16 %v35
  %v282 = vunpack.c.l.b16 %v36
  %v283 = vunpack.c.l.b16 %v37
  %v284 = vunpack.c.l.b16 %v38
  %v285 = vunpack.c.l.b16 %v39
  %v286 = vunpack.c.l.b16 %v40
  %v287 = vunpack.c.l.b16 %v41
  %v288 = vunpack.c.l.b16 %v42
  %v289 = vpack.c.b16 %v274, %v273
  %v290 = vpack.c.b16 %v276, %v275
  %v291 = vpack.c.b16 %v278, %v277
  %v292 = vpack.c.b16 %v280, %v279
  %v293 = vpack.c.b16 %v282, %v281
  %v294 = vpack.c.b16 %v284, %v283
  %v295 = vpack.c.b16 %v286, %v285
  %v296 = vpack.c.b16 %v288, %v287
  %305 = vmatprep.subr.bf16.mxu0 0
  %306 = vmatpush1.bf16.msra.mxu0 %v296
  %307 = vmatprep.subr.bf16.mxu0 0
  %308 = vmatpush1.bf16.msra.mxu0 %v295
  %309 = vmatprep.subr.bf16.mxu0 0
  %310 = vmatpush1.bf16.msra.mxu0 %v294
  %311 = vmatprep.subr.bf16.mxu0 0
  %312 = vmatpush1.bf16.msra.mxu0 %v293
  %313 = vmatprep.subr.bf16.mxu0 0
  %314 = vmatpush1.bf16.msra.mxu0 %v292
  %315 = vmatprep.subr.bf16.mxu0 0
  %316 = vmatpush1.bf16.msra.mxu0 %v291
  %317 = vmatprep.subr.bf16.mxu0 0
  %318 = vmatpush1.bf16.msra.mxu0 %v290
  %319 = vmatprep.subr.bf16.mxu0 0
  %320 = vmatpush1.bf16.msra.mxu0 %v289
  %321 = vmatprep.subr.bf16.mxu0 0
  %322 = vmatpush2.bf16.msra.mxu0 0
  %323 = vmatprep.subr.bf16.mxu0 0
  %324 = vmatpush2.bf16.msra.mxu0 0
  %325 = vmatprep.subr.bf16.mxu0 0
  %326 = vmatpush2.bf16.msra.mxu0 0
  %327 = vmatprep.subr.bf16.mxu0 0
  %328 = vmatpush2.bf16.msra.mxu0 0
  %329 = vmatprep.subr.bf16.mxu0 0
  %330 = vmatpush2.bf16.msra.mxu0 0
  %331 = vmatprep.subr.bf16.mxu0 0
  %332 = vmatpush2.bf16.msra.mxu0 0
  %333 = vmatprep.subr.bf16.mxu0 0
  %334 = vmatpush2.bf16.msra.mxu0 0
  %335 = vmatprep.subr.bf16.mxu0 0
  %336 = vmatpush2.bf16.msra.mxu0 0
  %337 = vmatprep.mubr.bf16.mxu0 0
  %338 = vmatmul.mubr.bf16.gmra.mxu0 %v81
  %v339 = vpop.f32.mrf.mxu0
  %v340 = vadd.f32 %v214, %v339
  %v341 = vpop.f32.mrf.mxu0
  %v342 = vpop.f32.mrf.mxu0
  %v343 = vadd.f32 %v217, %v342
  %v344 = vpop.f32.mrf.mxu0
  %345 = vmatprep.mubr.bf16.mxu0 0
  %346 = vmatmul.mubr.bf16.gmra.mxu0 %v82
  %v347 = vpop.f32.mrf.mxu0
  %v348 = vadd.f32 %v222, %v347
  %v349 = vpop.f32.mrf.mxu0
  %v350 = vpop.f32.mrf.mxu0
  %v351 = vadd.f32 %v225, %v350
  %v352 = vpop.f32.mrf.mxu0
  %353 = vmatprep.mubr.bf16.mxu0 0
  %354 = vmatmul.mubr.bf16.gmra.mxu0 %v83
  %v355 = vpop.f32.mrf.mxu0
  %v356 = vadd.f32 %v230, %v355
  %v357 = vpop.f32.mrf.mxu0
  %v358 = vpop.f32.mrf.mxu0
  %v359 = vadd.f32 %v233, %v358
  %v360 = vpop.f32.mrf.mxu0
  %361 = vmatprep.mubr.bf16.mxu0 0
  %362 = vmatmul.mubr.bf16.gmra.mxu0 %v84
  %v363 = vpop.f32.mrf.mxu0
  %v364 = vadd.f32 %v238, %v363
  %v365 = vpop.f32.mrf.mxu0
  %v366 = vpop.f32.mrf.mxu0
  %v367 = vadd.f32 %v241, %v366
  %v368 = vpop.f32.mrf.mxu0
  %369 = vmatprep.mubr.bf16.mxu0 0
  %370 = vmatmul.mubr.bf16.gmra.mxu0 %v251
  %v371 = vpop.f32.mrf.mxu0
  %v372 = vadd.f32 %v246, %v371
  %v373 = vpop.f32.mrf.mxu0
  %v374 = vpop.f32.mrf.mxu0
  %v375 = vpop.f32.mrf.mxu0
  %376 = vdwg.mxu0
  %v377 = vld [vmem:[%s0] sm:$0xe]
  %s378 = scalar_lea.vmem %s1, 128
  %v379 = vld [vmem:[%s378] sm:$0xf]
  %v380 = vld [vmem:[%s378 + $0x4] sm:$0xf]
  %v381 = vld [vmem:[%s378 + $0x8] sm:$0xf]
  %v382 = vld [vmem:[%s378 + $0xc] sm:$0xf]
  %v383 = vld [vmem:[%s378 + $0x10] sm:$0xf]
  %v384 = vld [vmem:[%s378 + $0x14] sm:$0xf]
  %v385 = vld [vmem:[%s378 + $0x18] sm:$0xf]
  %v386 = vld [vmem:[%s378 + $0x1c] sm:$0xf]
  %v387 = vld [vmem:[%s378 + $0x20] sm:$0xf]
  %v388 = vld [vmem:[%s378 + $0x24] sm:$0xf]
  %v389 = vld [vmem:[%s378 + $0x28] sm:$0xf]
  %v390 = vld [vmem:[%s378 + $0x2c] sm:$0xf]
  %v391 = vld [vmem:[%s378 + $0x30] sm:$0xf]
  %v392 = vld [vmem:[%s378 + $0x34] sm:$0xf]
  %v393 = vld [vmem:[%s378 + $0x38] sm:$0xf]
  %v394 = vld [vmem:[%s378 + $0x3c] sm:$0xf]
  %v396 = vunpack.c.l.b16 %v377
  %v397 = vpack.c.b16 %v72, %v396
  %vm398 = vcmask 1046528
  %v399 = vrot.slane %v397, 1
  %v400 = vrot.slane %v82, 1
  %v401 = vsel %vm398, %v399, %v400
  %v402 = vrot.slane %v83, 1
  %v403 = vsel %vm398, %v400, %v402
  %v404 = vrot.slane %v84, 1
  %v405 = vsel %vm398, %v402, %v404
  %v406 = vrot.slane %v85, 1
  %v407 = vsel %vm398, %v404, %v406
  %v429 = vunpack.c.l.b16 %v379
  %v430 = vunpack.c.l.b16 %v380
  %v431 = vunpack.c.l.b16 %v381
  %v432 = vunpack.c.l.b16 %v382
  %v433 = vunpack.c.l.b16 %v383
  %v434 = vunpack.c.l.b16 %v384
  %v435 = vunpack.c.l.b16 %v385
  %v436 = vunpack.c.l.b16 %v386
  %v437 = vunpack.c.l.b16 %v387
  %v438 = vunpack.c.l.b16 %v388
  %v439 = vunpack.c.l.b16 %v389
  %v440 = vunpack.c.l.b16 %v390
  %v441 = vunpack.c.l.b16 %v391
  %v442 = vunpack.c.l.b16 %v392
  %v443 = vunpack.c.l.b16 %v393
  %v444 = vunpack.c.l.b16 %v394
  %v445 = vpack.c.b16 %v430, %v429
  %v446 = vpack.c.b16 %v432, %v431
  %v447 = vpack.c.b16 %v434, %v433
  %v448 = vpack.c.b16 %v436, %v435
  %v449 = vpack.c.b16 %v438, %v437
  %v450 = vpack.c.b16 %v440, %v439
  %v451 = vpack.c.b16 %v442, %v441
  %v452 = vpack.c.b16 %v444, %v443
  %461 = vmatprep.subr.bf16.mxu0 0
  %462 = vmatpush1.bf16.msra.mxu0 %v452
  %463 = vmatprep.subr.bf16.mxu0 0
  %464 = vmatpush1.bf16.msra.mxu0 %v451
  %465 = vmatprep.subr.bf16.mxu0 0
  %466 = vmatpush1.bf16.msra.mxu0 %v450
  %467 = vmatprep.subr.bf16.mxu0 0
  %468 = vmatpush1.bf16.msra.mxu0 %v449
  %469 = vmatprep.subr.bf16.mxu0 0
  %470 = vmatpush1.bf16.msra.mxu0 %v448
  %471 = vmatprep.subr.bf16.mxu0 0
  %472 = vmatpush1.bf16.msra.mxu0 %v447
  %473 = vmatprep.subr.bf16.mxu0 0
  %474 = vmatpush1.bf16.msra.mxu0 %v446
  %475 = vmatprep.subr.bf16.mxu0 0
  %476 = vmatpush1.bf16.msra.mxu0 %v445
  %477 = vmatprep.subr.bf16.mxu0 0
  %478 = vmatpush2.bf16.msra.mxu0 0
  %479 = vmatprep.subr.bf16.mxu0 0
  %480 = vmatpush2.bf16.msra.mxu0 0
  %481 = vmatprep.subr.bf16.mxu0 0
  %482 = vmatpush2.bf16.msra.mxu0 0
  %483 = vmatprep.subr.bf16.mxu0 0
  %484 = vmatpush2.bf16.msra.mxu0 0
  %485 = vmatprep.subr.bf16.mxu0 0
  %486 = vmatpush2.bf16.msra.mxu0 0
  %487 = vmatprep.subr.bf16.mxu0 0
  %488 = vmatpush2.bf16.msra.mxu0 0
  %489 = vmatprep.subr.bf16.mxu0 0
  %490 = vmatpush2.bf16.msra.mxu0 0
  %491 = vmatprep.subr.bf16.mxu0 0
  %492 = vmatpush2.bf16.msra.mxu0 0
  %493 = vmatprep.mubr.bf16.mxu0 0
  %494 = vmatmul.mubr.bf16.gmra.mxu0 %v401
  %v495 = vpop.f32.mrf.mxu0
  %v496 = vadd.f32 0.0, %v495
  %v497 = vpop.f32.mrf.mxu0
  %v498 = vpop.f32.mrf.mxu0
  %v499 = vadd.f32 0.0, %v498
  %v500 = vpop.f32.mrf.mxu0
  %501 = vmatprep.mubr.bf16.mxu0 0
  %502 = vmatmul.mubr.bf16.gmra.mxu0 %v403
  %v503 = vpop.f32.mrf.mxu0
  %v504 = vadd.f32 0.0, %v503
  %v505 = vpop.f32.mrf.mxu0
  %v506 = vpop.f32.mrf.mxu0
  %v507 = vadd.f32 0.0, %v506
  %v508 = vpop.f32.mrf.mxu0
  %509 = vmatprep.mubr.bf16.mxu0 0
  %510 = vmatmul.mubr.bf16.gmra.mxu0 %v405
  %v511 = vpop.f32.mrf.mxu0
  %v512 = vadd.f32 0.0, %v511
  %v513 = vpop.f32.mrf.mxu0
  %v514 = vpop.f32.mrf.mxu0
  %v515 = vadd.f32 0.0, %v514
  %v516 = vpop.f32.mrf.mxu0
  %517 = vmatprep.mubr.bf16.mxu0 0
  %518 = vmatmul.mubr.bf16.gmra.mxu0 %v407
  %v519 = vpop.f32.mrf.mxu0
  %v520 = vadd.f32 0.0, %v519
  %v521 = vpop.f32.mrf.mxu0
  %v522 = vpop.f32.mrf.mxu0
  %v523 = vadd.f32 0.0, %v522
  %v524 = vpop.f32.mrf.mxu0
  %525 = vmatprep.mubr.bf16.mxu0 0
  %526 = vmatmul.mubr.bf16.gmra.mxu0 %v406
  %v527 = vpop.f32.mrf.mxu0
  %v528 = vadd.f32 0.0, %v527
  %v529 = vpop.f32.mrf.mxu0
  %v530 = vpop.f32.mrf.mxu0
  %v531 = vpop.f32.mrf.mxu0
  %532 = vdwg.mxu0
  %v533 = vadd.f32 %v340, %v496
  %v534 = vadd.f32 %v343, %v499
  %v535 = vadd.f32 %v348, %v504
  %v536 = vadd.f32 %v351, %v507
  %v537 = vadd.f32 %v356, %v512
  %v538 = vadd.f32 %v359, %v515
  %v539 = vadd.f32 %v364, %v520
  %v540 = vadd.f32 %v367, %v523
  %v541 = vadd.f32 %v372, %v528
  %v542 = vld [vmem:[%s0] sm:$0x8]
  %v543 = vld [vmem:[%s0 + $0x24] sm:$0x7]
  %s544 = scalar_lea.vmem %s1, 192
  %v545 = vld [vmem:[%s544] sm:$0xf]
  %v546 = vld [vmem:[%s544 + $0x4] sm:$0xf]
  %v547 = vld [vmem:[%s544 + $0x8] sm:$0xf]
  %v548 = vld [vmem:[%s544 + $0xc] sm:$0xf]
  %v549 = vld [vmem:[%s544 + $0x10] sm:$0xf]
  %v550 = vld [vmem:[%s544 + $0x14] sm:$0xf]
  %v551 = vld [vmem:[%s544 + $0x18] sm:$0xf]
  %v552 = vld [vmem:[%s544 + $0x1c] sm:$0xf]
  %v553 = vld [vmem:[%s544 + $0x20] sm:$0xf]
  %v554 = vld [vmem:[%s544 + $0x24] sm:$0xf]
  %v555 = vld [vmem:[%s544 + $0x28] sm:$0xf]
  %v556 = vld [vmem:[%s544 + $0x2c] sm:$0xf]
  %v557 = vld [vmem:[%s544 + $0x30] sm:$0xf]
  %v558 = vld [vmem:[%s544 + $0x34] sm:$0xf]
  %v559 = vld [vmem:[%s544 + $0x38] sm:$0xf]
  %v560 = vld [vmem:[%s544 + $0x3c] sm:$0xf]
  %v563 = vunpack.c.l.b16 %v542
  %v564 = vunpack.c.l.b16 %v543
  %v565 = vpack.c.b16 %v72, %v563
  %v566 = vpack.c.b16 %v564, %v79
  %vm567 = vcmask 1044480
  %v568 = vrot.slane %v565, 3
  %v569 = vrot.slane %v82, 3
  %v570 = vsel %vm567, %v568, %v569
  %v571 = vrot.slane %v83, 3
  %v572 = vsel %vm567, %v569, %v571
  %v573 = vrot.slane %v84, 3
  %v574 = vsel %vm567, %v571, %v573
  %v575 = vrot.slane %v566, 3
  %v576 = vsel %vm567, %v573, %v575
  %v598 = vunpack.c.l.b16 %v545
  %v599 = vunpack.c.l.b16 %v546
  %v600 = vunpack.c.l.b16 %v547
  %v601 = vunpack.c.l.b16 %v548
  %v602 = vunpack.c.l.b16 %v549
  %v603 = vunpack.c.l.b16 %v550
  %v604 = vunpack.c.l.b16 %v551
  %v605 = vunpack.c.l.b16 %v552
  %v606 = vunpack.c.l.b16 %v553
  %v607 = vunpack.c.l.b16 %v554
  %v608 = vunpack.c.l.b16 %v555
  %v609 = vunpack.c.l.b16 %v556
  %v610 = vunpack.c.l.b16 %v557
  %v611 = vunpack.c.l.b16 %v558
  %v612 = vunpack.c.l.b16 %v559
  %v613 = vunpack.c.l.b16 %v560
  %v614 = vpack.c.b16 %v599, %v598
  %v615 = vpack.c.b16 %v601, %v600
  %v616 = vpack.c.b16 %v603, %v602
  %v617 = vpack.c.b16 %v605, %v604
  %v618 = vpack.c.b16 %v607, %v606
  %v619 = vpack.c.b16 %v609, %v608
  %v620 = vpack.c.b16 %v611, %v610
  %v621 = vpack.c.b16 %v613, %v612
  %630 = vmatprep.subr.bf16.mxu0 0
  %631 = vmatpush1.bf16.msra.mxu0 %v621
  %632 = vmatprep.subr.bf16.mxu0 0
  %633 = vmatpush1.bf16.msra.mxu0 %v620
  %634 = vmatprep.subr.bf16.mxu0 0
  %635 = vmatpush1.bf16.msra.mxu0 %v619
  %636 = vmatprep.subr.bf16.mxu0 0
  %637 = vmatpush1.bf16.msra.mxu0 %v618
  %638 = vmatprep.subr.bf16.mxu0 0
  %639 = vmatpush1.bf16.msra.mxu0 %v617
  %640 = vmatprep.subr.bf16.mxu0 0
  %641 = vmatpush1.bf16.msra.mxu0 %v616
  %642 = vmatprep.subr.bf16.mxu0 0
  %643 = vmatpush1.bf16.msra.mxu0 %v615
  %644 = vmatprep.subr.bf16.mxu0 0
  %645 = vmatpush1.bf16.msra.mxu0 %v614
  %646 = vmatprep.subr.bf16.mxu0 0
  %647 = vmatpush2.bf16.msra.mxu0 0
  %648 = vmatprep.subr.bf16.mxu0 0
  %649 = vmatpush2.bf16.msra.mxu0 0
  %650 = vmatprep.subr.bf16.mxu0 0
  %651 = vmatpush2.bf16.msra.mxu0 0
  %652 = vmatprep.subr.bf16.mxu0 0
  %653 = vmatpush2.bf16.msra.mxu0 0
  %654 = vmatprep.subr.bf16.mxu0 0
  %655 = vmatpush2.bf16.msra.mxu0 0
  %656 = vmatprep.subr.bf16.mxu0 0
  %657 = vmatpush2.bf16.msra.mxu0 0
  %658 = vmatprep.subr.bf16.mxu0 0
  %659 = vmatpush2.bf16.msra.mxu0 0
  %660 = vmatprep.subr.bf16.mxu0 0
  %661 = vmatpush2.bf16.msra.mxu0 0
  %662 = vmatprep.mubr.bf16.mxu0 0
  %663 = vmatmul.mubr.bf16.gmra.mxu0 %v570
  %v664 = vpop.f32.mrf.mxu0
  %v665 = vadd.f32 0.0, %v664
  %v666 = vpop.f32.mrf.mxu0
  %v667 = vpop.f32.mrf.mxu0
  %v668 = vadd.f32 0.0, %v667
  %v669 = vpop.f32.mrf.mxu0
  %670 = vmatprep.mubr.bf16.mxu0 0
  %671 = vmatmul.mubr.bf16.gmra.mxu0 %v572
  %v672 = vpop.f32.mrf.mxu0
  %v673 = vadd.f32 0.0, %v672
  %v674 = vpop.f32.mrf.mxu0
  %v675 = vpop.f32.mrf.mxu0
  %v676 = vadd.f32 0.0, %v675
  %v677 = vpop.f32.mrf.mxu0
  %678 = vmatprep.mubr.bf16.mxu0 0
  %679 = vmatmul.mubr.bf16.gmra.mxu0 %v574
  %v680 = vpop.f32.mrf.mxu0
  %v681 = vadd.f32 0.0, %v680
  %v682 = vpop.f32.mrf.mxu0
  %v683 = vpop.f32.mrf.mxu0
  %v684 = vadd.f32 0.0, %v683
  %v685 = vpop.f32.mrf.mxu0
  %686 = vmatprep.mubr.bf16.mxu0 0
  %687 = vmatmul.mubr.bf16.gmra.mxu0 %v576
  %v688 = vpop.f32.mrf.mxu0
  %v689 = vadd.f32 0.0, %v688
  %v690 = vpop.f32.mrf.mxu0
  %v691 = vpop.f32.mrf.mxu0
  %v692 = vadd.f32 0.0, %v691
  %v693 = vpop.f32.mrf.mxu0
  %694 = vmatprep.mubr.bf16.mxu0 0
  %695 = vmatmul.mubr.bf16.gmra.mxu0 %v575
  %v696 = vpop.f32.mrf.mxu0
  %v697 = vadd.f32 0.0, %v696
  %v698 = vpop.f32.mrf.mxu0
  %v699 = vpop.f32.mrf.mxu0
  %v700 = vpop.f32.mrf.mxu0
  %701 = vdwg.mxu0
  %v702 = vadd.f32 %v533, %v665
  %v703 = vadd.f32 %v534, %v668
  %v704 = vadd.f32 %v535, %v673
  %v705 = vadd.f32 %v536, %v676
  %v706 = vadd.f32 %v537, %v681
  %v707 = vadd.f32 %v538, %v684
  %v708 = vadd.f32 %v539, %v689
  %v709 = vadd.f32 %v540, %v692
  %v710 = vadd.f32 %v541, %v697
  %v711 = vld [vmem:[%s0 + $0x24] sm:$0xf]
  %s712 = scalar_lea.vmem %s1, 256
  %v713 = vld [vmem:[%s712] sm:$0xf]
  %v714 = vld [vmem:[%s712 + $0x4] sm:$0xf]
  %v715 = vld [vmem:[%s712 + $0x8] sm:$0xf]
  %v716 = vld [vmem:[%s712 + $0xc] sm:$0xf]
  %v717 = vld [vmem:[%s712 + $0x10] sm:$0xf]
  %v718 = vld [vmem:[%s712 + $0x14] sm:$0xf]
  %v719 = vld [vmem:[%s712 + $0x18] sm:$0xf]
  %v720 = vld [vmem:[%s712 + $0x1c] sm:$0xf]
  %v721 = vld [vmem:[%s712 + $0x20] sm:$0xf]
  %v722 = vld [vmem:[%s712 + $0x24] sm:$0xf]
  %v723 = vld [vmem:[%s712 + $0x28] sm:$0xf]
  %v724 = vld [vmem:[%s712 + $0x2c] sm:$0xf]
  %v725 = vld [vmem:[%s712 + $0x30] sm:$0xf]
  %v726 = vld [vmem:[%s712 + $0x34] sm:$0xf]
  %v727 = vld [vmem:[%s712 + $0x38] sm:$0xf]
  %v728 = vld [vmem:[%s712 + $0x3c] sm:$0xf]
  %v730 = vunpack.c.l.b16 %v711
  %v731 = vpack.c.b16 %v730, %v79
  %vm732 = vsmask.f32 4352
  %v734 = vshrl.u32 %v565, 16
  %v736 = vrot.slane %v734, 3
  %v737 = vshll.u32 %v565, 16
  %v739 = vrot.slane %v737, 4
  %v740 = vor.u32 %v736, %v739
  %v741 = vrot.slane %v99, 3
  %v742 = vrot.slane %v95, 4
  %v743 = vor.u32 %v741, %v742
  %v744 = vsel %vm732, %v740, %v743
  %v745 = vrot.slane %v107, 3
  %v746 = vrot.slane %v103, 4
  %v747 = vor.u32 %v745, %v746
  %v748 = vsel %vm732, %v743, %v747
  %v749 = vrot.slane %v115, 3
  %v750 = vrot.slane %v111, 4
  %v751 = vor.u32 %v749, %v750
  %v752 = vsel %vm732, %v747, %v751
  %v754 = vshrl.u32 %v731, 16
  %v756 = vrot.slane %v754, 3
  %v757 = vshll.u32 %v731, 16
  %v759 = vrot.slane %v757, 4
  %v760 = vor.u32 %v756, %v759
  %v761 = vsel %vm732, %v751, %v760
  %v783 = vunpack.c.l.b16 %v713
  %v784 = vunpack.c.l.b16 %v714
  %v785 = vunpack.c.l.b16 %v715
  %v786 = vunpack.c.l.b16 %v716
  %v787 = vunpack.c.l.b16 %v717
  %v788 = vunpack.c.l.b16 %v718
  %v789 = vunpack.c.l.b16 %v719
  %v790 = vunpack.c.l.b16 %v720
  %v791 = vunpack.c.l.b16 %v721
  %v792 = vunpack.c.l.b16 %v722
  %v793 = vunpack.c.l.b16 %v723
  %v794 = vunpack.c.l.b16 %v724
  %v795 = vunpack.c.l.b16 %v725
  %v796 = vunpack.c.l.b16 %v726
  %v797 = vunpack.c.l.b16 %v727
  %v798 = vunpack.c.l.b16 %v728
  %v799 = vpack.c.b16 %v784, %v783
  %v800 = vpack.c.b16 %v786, %v785
  %v801 = vpack.c.b16 %v788, %v787
  %v802 = vpack.c.b16 %v790, %v789
  %v803 = vpack.c.b16 %v792, %v791
  %v804 = vpack.c.b16 %v794, %v793
  %v805 = vpack.c.b16 %v796, %v795
  %v806 = vpack.c.b16 %v798, %v797
  %815 = vmatprep.subr.bf16.mxu0 0
  %816 = vmatpush1.bf16.msra.mxu0 %v806
  %817 = vmatprep.subr.bf16.mxu0 0
  %818 = vmatpush1.bf16.msra.mxu0 %v805
  %819 = vmatprep.subr.bf16.mxu0 0
  %820 = vmatpush1.bf16.msra.mxu0 %v804
  %821 = vmatprep.subr.bf16.mxu0 0
  %822 = vmatpush1.bf16.msra.mxu0 %v803
  %823 = vmatprep.subr.bf16.mxu0 0
  %824 = vmatpush1.bf16.msra.mxu0 %v802
  %825 = vmatprep.subr.bf16.mxu0 0
  %826 = vmatpush1.bf16.msra.mxu0 %v801
  %827 = vmatprep.subr.bf16.mxu0 0
  %828 = vmatpush1.bf16.msra.mxu0 %v800
  %829 = vmatprep.subr.bf16.mxu0 0
  %830 = vmatpush1.bf16.msra.mxu0 %v799
  %831 = vmatprep.subr.bf16.mxu0 0
  %832 = vmatpush2.bf16.msra.mxu0 0
  %833 = vmatprep.subr.bf16.mxu0 0
  %834 = vmatpush2.bf16.msra.mxu0 0
  %835 = vmatprep.subr.bf16.mxu0 0
  %836 = vmatpush2.bf16.msra.mxu0 0
  %837 = vmatprep.subr.bf16.mxu0 0
  %838 = vmatpush2.bf16.msra.mxu0 0
  %839 = vmatprep.subr.bf16.mxu0 0
  %840 = vmatpush2.bf16.msra.mxu0 0
  %841 = vmatprep.subr.bf16.mxu0 0
  %842 = vmatpush2.bf16.msra.mxu0 0
  %843 = vmatprep.subr.bf16.mxu0 0
  %844 = vmatpush2.bf16.msra.mxu0 0
  %845 = vmatprep.subr.bf16.mxu0 0
  %846 = vmatpush2.bf16.msra.mxu0 0
  %847 = vmatprep.mubr.bf16.mxu0 0
  %848 = vmatmul.mubr.bf16.gmra.mxu0 %v744
  %v849 = vpop.f32.mrf.mxu0
  %v850 = vadd.f32 0.0, %v849
  %v851 = vpop.f32.mrf.mxu0
  %v852 = vpop.f32.mrf.mxu0
  %v853 = vadd.f32 0.0, %v852
  %v854 = vpop.f32.mrf.mxu0
  %855 = vmatprep.mubr.bf16.mxu0 0
  %856 = vmatmul.mubr.bf16.gmra.mxu0 %v748
  %v857 = vpop.f32.mrf.mxu0
  %v858 = vadd.f32 0.0, %v857
  %v859 = vpop.f32.mrf.mxu0
  %v860 = vpop.f32.mrf.mxu0
  %v861 = vadd.f32 0.0, %v860
  %v862 = vpop.f32.mrf.mxu0
  %863 = vmatprep.mubr.bf16.mxu0 0
  %864 = vmatmul.mubr.bf16.gmra.mxu0 %v752
  %v865 = vpop.f32.mrf.mxu0
  %v866 = vadd.f32 0.0, %v865
  %v867 = vpop.f32.mrf.mxu0
  %v868 = vpop.f32.mrf.mxu0
  %v869 = vadd.f32 0.0, %v868
  %v870 = vpop.f32.mrf.mxu0
  %871 = vmatprep.mubr.bf16.mxu0 0
  %872 = vmatmul.mubr.bf16.gmra.mxu0 %v761
  %v873 = vpop.f32.mrf.mxu0
  %v874 = vadd.f32 0.0, %v873
  %v875 = vpop.f32.mrf.mxu0
  %v876 = vpop.f32.mrf.mxu0
  %v877 = vadd.f32 0.0, %v876
  %v878 = vpop.f32.mrf.mxu0
  %879 = vmatprep.mubr.bf16.mxu0 0
  %880 = vmatmul.mubr.bf16.gmra.mxu0 %v760
  %v881 = vpop.f32.mrf.mxu0
  %v882 = vadd.f32 0.0, %v881
  %v883 = vpop.f32.mrf.mxu0
  %v884 = vpop.f32.mrf.mxu0
  %v885 = vpop.f32.mrf.mxu0
  %886 = vdwg.mxu0
  %v887 = vadd.f32 %v702, %v850
  %v888 = vadd.f32 %v703, %v853
  %v889 = vadd.f32 %v704, %v858
  %v890 = vadd.f32 %v705, %v861
  %v891 = vadd.f32 %v706, %v866
  %v892 = vadd.f32 %v707, %v869
  %v893 = vadd.f32 %v708, %v874
  %v894 = vadd.f32 %v709, %v877
  %v895 = vadd.f32 %v710, %v882
  %s896 = scalar_lea.vmem %s1, 320
  %v897 = vld [vmem:[%s896] sm:$0xf]
  %v898 = vld [vmem:[%s896 + $0x4] sm:$0xf]
  %v899 = vld [vmem:[%s896 + $0x8] sm:$0xf]
  %v900 = vld [vmem:[%s896 + $0xc] sm:$0xf]
  %v901 = vld [vmem:[%s896 + $0x10] sm:$0xf]
  %v902 = vld [vmem:[%s896 + $0x14] sm:$0xf]
  %v903 = vld [vmem:[%s896 + $0x18] sm:$0xf]
  %v904 = vld [vmem:[%s896 + $0x1c] sm:$0xf]
  %v905 = vld [vmem:[%s896 + $0x20] sm:$0xf]
  %v906 = vld [vmem:[%s896 + $0x24] sm:$0xf]
  %v907 = vld [vmem:[%s896 + $0x28] sm:$0xf]
  %v908 = vld [vmem:[%s896 + $0x2c] sm:$0xf]
  %v909 = vld [vmem:[%s896 + $0x30] sm:$0xf]
  %v910 = vld [vmem:[%s896 + $0x34] sm:$0xf]
  %v911 = vld [vmem:[%s896 + $0x38] sm:$0xf]
  %v912 = vld [vmem:[%s896 + $0x3c] sm:$0xf]
  %v913 = vpack.c.b16 %v73, %v72
  %v914 = vpack.c.b16 %v75, %v74
  %v915 = vpack.c.b16 %v77, %v76
  %v916 = vpack.c.b16 %v79, %v78
  %v917 = vpack.c.b16 %v730, %v730
  %v939 = vunpack.c.l.b16 %v897
  %v940 = vunpack.c.l.b16 %v898
  %v941 = vunpack.c.l.b16 %v899
  %v942 = vunpack.c.l.b16 %v900
  %v943 = vunpack.c.l.b16 %v901
  %v944 = vunpack.c.l.b16 %v902
  %v945 = vunpack.c.l.b16 %v903
  %v946 = vunpack.c.l.b16 %v904
  %v947 = vunpack.c.l.b16 %v905
  %v948 = vunpack.c.l.b16 %v906
  %v949 = vunpack.c.l.b16 %v907
  %v950 = vunpack.c.l.b16 %v908
  %v951 = vunpack.c.l.b16 %v909
  %v952 = vunpack.c.l.b16 %v910
  %v953 = vunpack.c.l.b16 %v911
  %v954 = vunpack.c.l.b16 %v912
  %v955 = vpack.c.b16 %v940, %v939
  %v956 = vpack.c.b16 %v942, %v941
  %v957 = vpack.c.b16 %v944, %v943
  %v958 = vpack.c.b16 %v946, %v945
  %v959 = vpack.c.b16 %v948, %v947
  %v960 = vpack.c.b16 %v950, %v949
  %v961 = vpack.c.b16 %v952, %v951
  %v962 = vpack.c.b16 %v954, %v953
  %971 = vmatprep.subr.bf16.mxu0 0
  %972 = vmatpush1.bf16.msra.mxu0 %v962
  %973 = vmatprep.subr.bf16.mxu0 0
  %974 = vmatpush1.bf16.msra.mxu0 %v961
  %975 = vmatprep.subr.bf16.mxu0 0
  %976 = vmatpush1.bf16.msra.mxu0 %v960
  %977 = vmatprep.subr.bf16.mxu0 0
  %978 = vmatpush1.bf16.msra.mxu0 %v959
  %979 = vmatprep.subr.bf16.mxu0 0
  %980 = vmatpush1.bf16.msra.mxu0 %v958
  %981 = vmatprep.subr.bf16.mxu0 0
  %982 = vmatpush1.bf16.msra.mxu0 %v957
  %983 = vmatprep.subr.bf16.mxu0 0
  %984 = vmatpush1.bf16.msra.mxu0 %v956
  %985 = vmatprep.subr.bf16.mxu0 0
  %986 = vmatpush1.bf16.msra.mxu0 %v955
  %987 = vmatprep.subr.bf16.mxu0 0
  %988 = vmatpush2.bf16.msra.mxu0 0
  %989 = vmatprep.subr.bf16.mxu0 0
  %990 = vmatpush2.bf16.msra.mxu0 0
  %991 = vmatprep.subr.bf16.mxu0 0
  %992 = vmatpush2.bf16.msra.mxu0 0
  %993 = vmatprep.subr.bf16.mxu0 0
  %994 = vmatpush2.bf16.msra.mxu0 0
  %995 = vmatprep.subr.bf16.mxu0 0
  %996 = vmatpush2.bf16.msra.mxu0 0
  %997 = vmatprep.subr.bf16.mxu0 0
  %998 = vmatpush2.bf16.msra.mxu0 0
  %999 = vmatprep.subr.bf16.mxu0 0
  %1000 = vmatpush2.bf16.msra.mxu0 0
  %1001 = vmatprep.subr.bf16.mxu0 0
  %1002 = vmatpush2.bf16.msra.mxu0 0
  %1003 = vmatprep.mubr.bf16.mxu0 0
  %1004 = vmatmul.mubr.bf16.gmra.mxu0 %v913
  %v1005 = vpop.f32.mrf.mxu0
  %v1006 = vadd.f32 0.0, %v1005
  %v1007 = vpop.f32.mrf.mxu0
  %v1008 = vpop.f32.mrf.mxu0
  %v1009 = vadd.f32 0.0, %v1008
  %v1010 = vpop.f32.mrf.mxu0
  %1011 = vmatprep.mubr.bf16.mxu0 0
  %1012 = vmatmul.mubr.bf16.gmra.mxu0 %v914
  %v1013 = vpop.f32.mrf.mxu0
  %v1014 = vadd.f32 0.0, %v1013
  %v1015 = vpop.f32.mrf.mxu0
  %v1016 = vpop.f32.mrf.mxu0
  %v1017 = vadd.f32 0.0, %v1016
  %v1018 = vpop.f32.mrf.mxu0
  %1019 = vmatprep.mubr.bf16.mxu0 0
  %1020 = vmatmul.mubr.bf16.gmra.mxu0 %v915
  %v1021 = vpop.f32.mrf.mxu0
  %v1022 = vadd.f32 0.0, %v1021
  %v1023 = vpop.f32.mrf.mxu0
  %v1024 = vpop.f32.mrf.mxu0
  %v1025 = vadd.f32 0.0, %v1024
  %v1026 = vpop.f32.mrf.mxu0
  %1027 = vmatprep.mubr.bf16.mxu0 0
  %1028 = vmatmul.mubr.bf16.gmra.mxu0 %v916
  %v1029 = vpop.f32.mrf.mxu0
  %v1030 = vadd.f32 0.0, %v1029
  %v1031 = vpop.f32.mrf.mxu0
  %v1032 = vpop.f32.mrf.mxu0
  %v1033 = vadd.f32 0.0, %v1032
  %v1034 = vpop.f32.mrf.mxu0
  %1035 = vmatprep.mubr.bf16.mxu0 0
  %1036 = vmatmul.mubr.bf16.gmra.mxu0 %v917
  %v1037 = vpop.f32.mrf.mxu0
  %v1038 = vadd.f32 0.0, %v1037
  %v1039 = vpop.f32.mrf.mxu0
  %v1040 = vpop.f32.mrf.mxu0
  %v1041 = vpop.f32.mrf.mxu0
  %1042 = vdwg.mxu0
  %v1043 = vadd.f32 %v887, %v1006
  %v1044 = vadd.f32 %v888, %v1009
  %v1045 = vadd.f32 %v889, %v1014
  %v1046 = vadd.f32 %v890, %v1017
  %v1047 = vadd.f32 %v891, %v1022
  %v1048 = vadd.f32 %v892, %v1025
  %v1049 = vadd.f32 %v893, %v1030
  %v1050 = vadd.f32 %v894, %v1033
  %v1051 = vadd.f32 %v895, %v1038
  %v1052 = vld [vmem:[%s0 + $0x4] sm:$0xc]
  %v1053 = vld [vmem:[%s0 + $0x8] sm:$0xf]
  %v1054 = vld [vmem:[%s0 + $0xc] sm:$0xf]
  %v1055 = vld [vmem:[%s0 + $0x10] sm:$0xf]
  %v1056 = vld [vmem:[%s0 + $0x14] sm:$0xf]
  %v1057 = vld [vmem:[%s0 + $0x18] sm:$0xf]
  %v1058 = vld [vmem:[%s0 + $0x1c] sm:$0xf]
  %v1059 = vld [vmem:[%s0 + $0x20] sm:$0xf]
  %v1060 = vld [vmem:[%s0 + $0x24] sm:$0xf]
  %v1061 = vld [vmem:[%s0 + $0x28] sm:$0x3]
  %s1062 = scalar_lea.vmem %s1, 384
  %v1063 = vld [vmem:[%s1062] sm:$0xf]
  %v1064 = vld [vmem:[%s1062 + $0x4] sm:$0xf]
  %v1065 = vld [vmem:[%s1062 + $0x8] sm:$0xf]
  %v1066 = vld [vmem:[%s1062 + $0xc] sm:$0xf]
  %v1067 = vld [vmem:[%s1062 + $0x10] sm:$0xf]
  %v1068 = vld [vmem:[%s1062 + $0x14] sm:$0xf]
  %v1069 = vld [vmem:[%s1062 + $0x18] sm:$0xf]
  %v1070 = vld [vmem:[%s1062 + $0x1c] sm:$0xf]
  %v1071 = vld [vmem:[%s1062 + $0x20] sm:$0xf]
  %v1072 = vld [vmem:[%s1062 + $0x24] sm:$0xf]
  %v1073 = vld [vmem:[%s1062 + $0x28] sm:$0xf]
  %v1074 = vld [vmem:[%s1062 + $0x2c] sm:$0xf]
  %v1075 = vld [vmem:[%s1062 + $0x30] sm:$0xf]
  %v1076 = vld [vmem:[%s1062 + $0x34] sm:$0xf]
  %v1077 = vld [vmem:[%s1062 + $0x38] sm:$0xf]
  %v1078 = vld [vmem:[%s1062 + $0x3c] sm:$0xf]
  %v1089 = vunpack.c.l.b16 %v1052
  %v1090 = vunpack.c.l.b16 %v1053
  %v1091 = vunpack.c.l.b16 %v1054
  %v1092 = vunpack.c.l.b16 %v1055
  %v1093 = vunpack.c.l.b16 %v1056
  %v1094 = vunpack.c.l.b16 %v1057
  %v1095 = vunpack.c.l.b16 %v1058
  %v1096 = vunpack.c.l.b16 %v1059
  %v1097 = vunpack.c.l.b16 %v1060
  %v1098 = vunpack.c.l.b16 %v1061
  %v1099 = vpack.c.b16 %v1090, %v1089
  %v1100 = vpack.c.b16 %v1092, %v1091
  %v1101 = vpack.c.b16 %v1094, %v1093
  %v1102 = vpack.c.b16 %v1096, %v1095
  %v1103 = vpack.c.b16 %v1098, %v1097
  %vm1104 = vcmask 1045504
  %v1105 = vrot.slane %v1099, 2
  %v1106 = vrot.slane %v1100, 2
  %v1107 = vsel %vm1104, %v1105, %v1106
  %v1108 = vrot.slane %v1101, 2
  %v1109 = vsel %vm1104, %v1106, %v1108
  %v1110 = vrot.slane %v1102, 2
  %v1111 = vsel %vm1104, %v1108, %v1110
  %v1112 = vrot.slane %v1103, 2
  %v1113 = vsel %vm1104, %v1110, %v1112
  %v1135 = vunpack.c.l.b16 %v1063
  %v1136 = vunpack.c.l.b16 %v1064
  %v1137 = vunpack.c.l.b16 %v1065
  %v1138 = vunpack.c.l.b16 %v1066
  %v1139 = vunpack.c.l.b16 %v1067
  %v1140 = vunpack.c.l.b16 %v1068
  %v1141 = vunpack.c.l.b16 %v1069
  %v1142 = vunpack.c.l.b16 %v1070
  %v1143 = vunpack.c.l.b16 %v1071
  %v1144 = vunpack.c.l.b16 %v1072
  %v1145 = vunpack.c.l.b16 %v1073
  %v1146 = vunpack.c.l.b16 %v1074
  %v1147 = vunpack.c.l.b16 %v1075
  %v1148 = vunpack.c.l.b16 %v1076
  %v1149 = vunpack.c.l.b16 %v1077
  %v1150 = vunpack.c.l.b16 %v1078
  %v1151 = vpack.c.b16 %v1136, %v1135
  %v1152 = vpack.c.b16 %v1138, %v1137
  %v1153 = vpack.c.b16 %v1140, %v1139
  %v1154 = vpack.c.b16 %v1142, %v1141
  %v1155 = vpack.c.b16 %v1144, %v1143
  %v1156 = vpack.c.b16 %v1146, %v1145
  %v1157 = vpack.c.b16 %v1148, %v1147
  %v1158 = vpack.c.b16 %v1150, %v1149
  %1167 = vmatprep.subr.bf16.mxu0 0
  %1168 = vmatpush1.bf16.msra.mxu0 %v1158
  %1169 = vmatprep.subr.bf16.mxu0 0
  %1170 = vmatpush1.bf16.msra.mxu0 %v1157
  %1171 = vmatprep.subr.bf16.mxu0 0
  %1172 = vmatpush1.bf16.msra.mxu0 %v1156
  %1173 = vmatprep.subr.bf16.mxu0 0
  %1174 = vmatpush1.bf16.msra.mxu0 %v1155
  %1175 = vmatprep.subr.bf16.mxu0 0
  %1176 = vmatpush1.bf16.msra.mxu0 %v1154
  %1177 = vmatprep.subr.bf16.mxu0 0
  %1178 = vmatpush1.bf16.msra.mxu0 %v1153
  %1179 = vmatprep.subr.bf16.mxu0 0
  %1180 = vmatpush1.bf16.msra.mxu0 %v1152
  %1181 = vmatprep.subr.bf16.mxu0 0
  %1182 = vmatpush1.bf16.msra.mxu0 %v1151
  %1183 = vmatprep.subr.bf16.mxu0 0
  %1184 = vmatpush2.bf16.msra.mxu0 0
  %1185 = vmatprep.subr.bf16.mxu0 0
  %1186 = vmatpush2.bf16.msra.mxu0 0
  %1187 = vmatprep.subr.bf16.mxu0 0
  %1188 = vmatpush2.bf16.msra.mxu0 0
  %1189 = vmatprep.subr.bf16.mxu0 0
  %1190 = vmatpush2.bf16.msra.mxu0 0
  %1191 = vmatprep.subr.bf16.mxu0 0
  %1192 = vmatpush2.bf16.msra.mxu0 0
  %1193 = vmatprep.subr.bf16.mxu0 0
  %1194 = vmatpush2.bf16.msra.mxu0 0
  %1195 = vmatprep.subr.bf16.mxu0 0
  %1196 = vmatpush2.bf16.msra.mxu0 0
  %1197 = vmatprep.subr.bf16.mxu0 0
  %1198 = vmatpush2.bf16.msra.mxu0 0
  %1199 = vmatprep.mubr.bf16.mxu0 0
  %1200 = vmatmul.mubr.bf16.gmra.mxu0 %v1107
  %v1201 = vpop.f32.mrf.mxu0
  %v1202 = vadd.f32 0.0, %v1201
  %v1203 = vpop.f32.mrf.mxu0
  %v1204 = vpop.f32.mrf.mxu0
  %v1205 = vadd.f32 0.0, %v1204
  %v1206 = vpop.f32.mrf.mxu0
  %1207 = vmatprep.mubr.bf16.mxu0 0
  %1208 = vmatmul.mubr.bf16.gmra.mxu0 %v1109
  %v1209 = vpop.f32.mrf.mxu0
  %v1210 = vadd.f32 0.0, %v1209
  %v1211 = vpop.f32.mrf.mxu0
  %v1212 = vpop.f32.mrf.mxu0
  %v1213 = vadd.f32 0.0, %v1212
  %v1214 = vpop.f32.mrf.mxu0
  %1215 = vmatprep.mubr.bf16.mxu0 0
  %1216 = vmatmul.mubr.bf16.gmra.mxu0 %v1111
  %v1217 = vpop.f32.mrf.mxu0
  %v1218 = vadd.f32 0.0, %v1217
  %v1219 = vpop.f32.mrf.mxu0
  %v1220 = vpop.f32.mrf.mxu0
  %v1221 = vadd.f32 0.0, %v1220
  %v1222 = vpop.f32.mrf.mxu0
  %1223 = vmatprep.mubr.bf16.mxu0 0
  %1224 = vmatmul.mubr.bf16.gmra.mxu0 %v1113
  %v1225 = vpop.f32.mrf.mxu0
  %v1226 = vadd.f32 0.0, %v1225
  %v1227 = vpop.f32.mrf.mxu0
  %v1228 = vpop.f32.mrf.mxu0
  %v1229 = vadd.f32 0.0, %v1228
  %v1230 = vpop.f32.mrf.mxu0
  %1231 = vmatprep.mubr.bf16.mxu0 0
  %1232 = vmatmul.mubr.bf16.gmra.mxu0 %v1112
  %v1233 = vpop.f32.mrf.mxu0
  %v1234 = vadd.f32 0.0, %v1233
  %v1235 = vpop.f32.mrf.mxu0
  %v1236 = vpop.f32.mrf.mxu0
  %v1237 = vpop.f32.mrf.mxu0
  %1238 = vdwg.mxu0
  %v1239 = vadd.f32 %v1043, %v1202
  %v1240 = vadd.f32 %v1044, %v1205
  %v1241 = vadd.f32 %v1045, %v1210
  %v1242 = vadd.f32 %v1046, %v1213
  %v1243 = vadd.f32 %v1047, %v1218
  %v1244 = vadd.f32 %v1048, %v1221
  %v1245 = vadd.f32 %v1049, %v1226
  %v1246 = vadd.f32 %v1050, %v1229
  %v1247 = vadd.f32 %v1051, %v1234
  %v1248 = vld [vmem:[%s0 + $0x28] sm:$0x7]
  %s1249 = scalar_lea.vmem %s1, 448
  %v1250 = vld [vmem:[%s1249] sm:$0xf]
  %v1251 = vld [vmem:[%s1249 + $0x4] sm:$0xf]
  %v1252 = vld [vmem:[%s1249 + $0x8] sm:$0xf]
  %v1253 = vld [vmem:[%s1249 + $0xc] sm:$0xf]
  %v1254 = vld [vmem:[%s1249 + $0x10] sm:$0xf]
  %v1255 = vld [vmem:[%s1249 + $0x14] sm:$0xf]
  %v1256 = vld [vmem:[%s1249 + $0x18] sm:$0xf]
  %v1257 = vld [vmem:[%s1249 + $0x1c] sm:$0xf]
  %v1258 = vld [vmem:[%s1249 + $0x20] sm:$0xf]
  %v1259 = vld [vmem:[%s1249 + $0x24] sm:$0xf]
  %v1260 = vld [vmem:[%s1249 + $0x28] sm:$0xf]
  %v1261 = vld [vmem:[%s1249 + $0x2c] sm:$0xf]
  %v1262 = vld [vmem:[%s1249 + $0x30] sm:$0xf]
  %v1263 = vld [vmem:[%s1249 + $0x34] sm:$0xf]
  %v1264 = vld [vmem:[%s1249 + $0x38] sm:$0xf]
  %v1265 = vld [vmem:[%s1249 + $0x3c] sm:$0xf]
  %v1267 = vunpack.c.l.b16 %v1248
  %v1268 = vpack.c.b16 %v1267, %v1097
  %vm1269 = vsmask.f32 5376
  %v1271 = vshrl.u32 %v1099, 16
  %v1273 = vrot.slane %v1271, 2
  %v1274 = vshll.u32 %v1099, 16
  %v1276 = vrot.slane %v1274, 3
  %v1277 = vor.u32 %v1273, %v1276
  %v1279 = vshrl.u32 %v1100, 16
  %v1281 = vrot.slane %v1279, 2
  %v1282 = vshll.u32 %v1100, 16
  %v1284 = vrot.slane %v1282, 3
  %v1285 = vor.u32 %v1281, %v1284
  %v1286 = vsel %vm1269, %v1277, %v1285
  %v1288 = vshrl.u32 %v1101, 16
  %v1290 = vrot.slane %v1288, 2
  %v1291 = vshll.u32 %v1101, 16
  %v1293 = vrot.slane %v1291, 3
  %v1294 = vor.u32 %v1290, %v1293
  %v1295 = vsel %vm1269, %v1285, %v1294
  %v1297 = vshrl.u32 %v1102, 16
  %v1299 = vrot.slane %v1297, 2
  %v1300 = vshll.u32 %v1102, 16
  %v1302 = vrot.slane %v1300, 3
  %v1303 = vor.u32 %v1299, %v1302
  %v1304 = vsel %vm1269, %v1294, %v1303
  %v1306 = vshrl.u32 %v1268, 16
  %v1308 = vrot.slane %v1306, 2
  %v1309 = vshll.u32 %v1268, 16
  %v1311 = vrot.slane %v1309, 3
  %v1312 = vor.u32 %v1308, %v1311
  %v1313 = vsel %vm1269, %v1303, %v1312
  %v1335 = vunpack.c.l.b16 %v1250
  %v1336 = vunpack.c.l.b16 %v1251
  %v1337 = vunpack.c.l.b16 %v1252
  %v1338 = vunpack.c.l.b16 %v1253
  %v1339 = vunpack.c.l.b16 %v1254
  %v1340 = vunpack.c.l.b16 %v1255
  %v1341 = vunpack.c.l.b16 %v1256
  %v1342 = vunpack.c.l.b16 %v1257
  %v1343 = vunpack.c.l.b16 %v1258
  %v1344 = vunpack.c.l.b16 %v1259
  %v1345 = vunpack.c.l.b16 %v1260
  %v1346 = vunpack.c.l.b16 %v1261
  %v1347 = vunpack.c.l.b16 %v1262
  %v1348 = vunpack.c.l.b16 %v1263
  %v1349 = vunpack.c.l.b16 %v1264
  %v1350 = vunpack.c.l.b16 %v1265
  %v1351 = vpack.c.b16 %v1336, %v1335
  %v1352 = vpack.c.b16 %v1338, %v1337
  %v1353 = vpack.c.b16 %v1340, %v1339
  %v1354 = vpack.c.b16 %v1342, %v1341
  %v1355 = vpack.c.b16 %v1344, %v1343
  %v1356 = vpack.c.b16 %v1346, %v1345
  %v1357 = vpack.c.b16 %v1348, %v1347
  %v1358 = vpack.c.b16 %v1350, %v1349
  %1367 = vmatprep.subr.bf16.mxu0 0
  %1368 = vmatpush1.bf16.msra.mxu0 %v1358
  %1369 = vmatprep.subr.bf16.mxu0 0
  %1370 = vmatpush1.bf16.msra.mxu0 %v1357
  %1371 = vmatprep.subr.bf16.mxu0 0
  %1372 = vmatpush1.bf16.msra.mxu0 %v1356
  %1373 = vmatprep.subr.bf16.mxu0 0
  %1374 = vmatpush1.bf16.msra.mxu0 %v1355
  %1375 = vmatprep.subr.bf16.mxu0 0
  %1376 = vmatpush1.bf16.msra.mxu0 %v1354
  %1377 = vmatprep.subr.bf16.mxu0 0
  %1378 = vmatpush1.bf16.msra.mxu0 %v1353
  %1379 = vmatprep.subr.bf16.mxu0 0
  %1380 = vmatpush1.bf16.msra.mxu0 %v1352
  %1381 = vmatprep.subr.bf16.mxu0 0
  %1382 = vmatpush1.bf16.msra.mxu0 %v1351
  %1383 = vmatprep.subr.bf16.mxu0 0
  %1384 = vmatpush2.bf16.msra.mxu0 0
  %1385 = vmatprep.subr.bf16.mxu0 0
  %1386 = vmatpush2.bf16.msra.mxu0 0
  %1387 = vmatprep.subr.bf16.mxu0 0
  %1388 = vmatpush2.bf16.msra.mxu0 0
  %1389 = vmatprep.subr.bf16.mxu0 0
  %1390 = vmatpush2.bf16.msra.mxu0 0
  %1391 = vmatprep.subr.bf16.mxu0 0
  %1392 = vmatpush2.bf16.msra.mxu0 0
  %1393 = vmatprep.subr.bf16.mxu0 0
  %1394 = vmatpush2.bf16.msra.mxu0 0
  %1395 = vmatprep.subr.bf16.mxu0 0
  %1396 = vmatpush2.bf16.msra.mxu0 0
  %1397 = vmatprep.subr.bf16.mxu0 0
  %1398 = vmatpush2.bf16.msra.mxu0 0
  %1399 = vmatprep.mubr.bf16.mxu0 0
  %1400 = vmatmul.mubr.bf16.gmra.mxu0 %v1286
  %v1401 = vpop.f32.mrf.mxu0
  %v1402 = vadd.f32 0.0, %v1401
  %v1403 = vpop.f32.mrf.mxu0
  %v1404 = vpop.f32.mrf.mxu0
  %v1405 = vadd.f32 0.0, %v1404
  %v1406 = vpop.f32.mrf.mxu0
  %1407 = vmatprep.mubr.bf16.mxu0 0
  %1408 = vmatmul.mubr.bf16.gmra.mxu0 %v1295
  %v1409 = vpop.f32.mrf.mxu0
  %v1410 = vadd.f32 0.0, %v1409
  %v1411 = vpop.f32.mrf.mxu0
  %v1412 = vpop.f32.mrf.mxu0
  %v1413 = vadd.f32 0.0, %v1412
  %v1414 = vpop.f32.mrf.mxu0
  %1415 = vmatprep.mubr.bf16.mxu0 0
  %1416 = vmatmul.mubr.bf16.gmra.mxu0 %v1304
  %v1417 = vpop.f32.mrf.mxu0
  %v1418 = vadd.f32 0.0, %v1417
  %v1419 = vpop.f32.mrf.mxu0
  %v1420 = vpop.f32.mrf.mxu0
  %v1421 = vadd.f32 0.0, %v1420
  %v1422 = vpop.f32.mrf.mxu0
  %1423 = vmatprep.mubr.bf16.mxu0 0
  %1424 = vmatmul.mubr.bf16.gmra.mxu0 %v1313
  %v1425 = vpop.f32.mrf.mxu0
  %v1426 = vadd.f32 0.0, %v1425
  %v1427 = vpop.f32.mrf.mxu0
  %v1428 = vpop.f32.mrf.mxu0
  %v1429 = vadd.f32 0.0, %v1428
  %v1430 = vpop.f32.mrf.mxu0
  %1431 = vmatprep.mubr.bf16.mxu0 0
  %1432 = vmatmul.mubr.bf16.gmra.mxu0 %v1312
  %v1433 = vpop.f32.mrf.mxu0
  %v1434 = vadd.f32 0.0, %v1433
  %v1435 = vpop.f32.mrf.mxu0
  %v1436 = vpop.f32.mrf.mxu0
  %v1437 = vpop.f32.mrf.mxu0
  %1438 = vdwg.mxu0
  %v1439 = vadd.f32 %v1239, %v1402
  %v1440 = vadd.f32 %v1240, %v1405
  %v1441 = vadd.f32 %v1241, %v1410
  %v1442 = vadd.f32 %v1242, %v1413
  %v1443 = vadd.f32 %v1243, %v1418
  %v1444 = vadd.f32 %v1244, %v1421
  %v1445 = vadd.f32 %v1245, %v1426
  %v1446 = vadd.f32 %v1246, %v1429
  %v1447 = vadd.f32 %v1247, %v1434
  %v1448 = vld [vmem:[%s0 + $0x4] sm:$0x8]
  %s1449 = scalar_lea.vmem %s1, 512
  %v1450 = vld [vmem:[%s1449] sm:$0xf]
  %v1451 = vld [vmem:[%s1449 + $0x4] sm:$0xf]
  %v1452 = vld [vmem:[%s1449 + $0x8] sm:$0xf]
  %v1453 = vld [vmem:[%s1449 + $0xc] sm:$0xf]
  %v1454 = vld [vmem:[%s1449 + $0x10] sm:$0xf]
  %v1455 = vld [vmem:[%s1449 + $0x14] sm:$0xf]
  %v1456 = vld [vmem:[%s1449 + $0x18] sm:$0xf]
  %v1457 = vld [vmem:[%s1449 + $0x1c] sm:$0xf]
  %v1458 = vld [vmem:[%s1449 + $0x20] sm:$0xf]
  %v1459 = vld [vmem:[%s1449 + $0x24] sm:$0xf]
  %v1460 = vld [vmem:[%s1449 + $0x28] sm:$0xf]
  %v1461 = vld [vmem:[%s1449 + $0x2c] sm:$0xf]
  %v1462 = vld [vmem:[%s1449 + $0x30] sm:$0xf]
  %v1463 = vld [vmem:[%s1449 + $0x34] sm:$0xf]
  %v1464 = vld [vmem:[%s1449 + $0x38] sm:$0xf]
  %v1465 = vld [vmem:[%s1449 + $0x3c] sm:$0xf]
  %v1467 = vunpack.c.l.b16 %v1448
  %v1468 = vpack.c.b16 %v1090, %v1467
  %v1469 = vrot.slane %v1468, 3
  %v1470 = vrot.slane %v1100, 3
  %v1471 = vsel %vm567, %v1469, %v1470
  %v1472 = vrot.slane %v1101, 3
  %v1473 = vsel %vm567, %v1470, %v1472
  %v1474 = vrot.slane %v1102, 3
  %v1475 = vsel %vm567, %v1472, %v1474
  %v1476 = vrot.slane %v1268, 3
  %v1477 = vsel %vm567, %v1474, %v1476
  %v1499 = vunpack.c.l.b16 %v1450
  %v1500 = vunpack.c.l.b16 %v1451
  %v1501 = vunpack.c.l.b16 %v1452
  %v1502 = vunpack.c.l.b16 %v1453
  %v1503 = vunpack.c.l.b16 %v1454
  %v1504 = vunpack.c.l.b16 %v1455
  %v1505 = vunpack.c.l.b16 %v1456
  %v1506 = vunpack.c.l.b16 %v1457
  %v1507 = vunpack.c.l.b16 %v1458
  %v1508 = vunpack.c.l.b16 %v1459
  %v1509 = vunpack.c.l.b16 %v1460
  %v1510 = vunpack.c.l.b16 %v1461
  %v1511 = vunpack.c.l.b16 %v1462
  %v1512 = vunpack.c.l.b16 %v1463
  %v1513 = vunpack.c.l.b16 %v1464
  %v1514 = vunpack.c.l.b16 %v1465
  %v1515 = vpack.c.b16 %v1500, %v1499
  %v1516 = vpack.c.b16 %v1502, %v1501
  %v1517 = vpack.c.b16 %v1504, %v1503
  %v1518 = vpack.c.b16 %v1506, %v1505
  %v1519 = vpack.c.b16 %v1508, %v1507
  %v1520 = vpack.c.b16 %v1510, %v1509
  %v1521 = vpack.c.b16 %v1512, %v1511
  %v1522 = vpack.c.b16 %v1514, %v1513
  %1531 = vmatprep.subr.bf16.mxu0 0
  %1532 = vmatpush1.bf16.msra.mxu0 %v1522
  %1533 = vmatprep.subr.bf16.mxu0 0
  %1534 = vmatpush1.bf16.msra.mxu0 %v1521
  %1535 = vmatprep.subr.bf16.mxu0 0
  %1536 = vmatpush1.bf16.msra.mxu0 %v1520
  %1537 = vmatprep.subr.bf16.mxu0 0
  %1538 = vmatpush1.bf16.msra.mxu0 %v1519
  %1539 = vmatprep.subr.bf16.mxu0 0
  %1540 = vmatpush1.bf16.msra.mxu0 %v1518
  %1541 = vmatprep.subr.bf16.mxu0 0
  %1542 = vmatpush1.bf16.msra.mxu0 %v1517
  %1543 = vmatprep.subr.bf16.mxu0 0
  %1544 = vmatpush1.bf16.msra.mxu0 %v1516
  %1545 = vmatprep.subr.bf16.mxu0 0
  %1546 = vmatpush1.bf16.msra.mxu0 %v1515
  %1547 = vmatprep.subr.bf16.mxu0 0
  %1548 = vmatpush2.bf16.msra.mxu0 0
  %1549 = vmatprep.subr.bf16.mxu0 0
  %1550 = vmatpush2.bf16.msra.mxu0 0
  %1551 = vmatprep.subr.bf16.mxu0 0
  %1552 = vmatpush2.bf16.msra.mxu0 0
  %1553 = vmatprep.subr.bf16.mxu0 0
  %1554 = vmatpush2.bf16.msra.mxu0 0
  %1555 = vmatprep.subr.bf16.mxu0 0
  %1556 = vmatpush2.bf16.msra.mxu0 0
  %1557 = vmatprep.subr.bf16.mxu0 0
  %1558 = vmatpush2.bf16.msra.mxu0 0
  %1559 = vmatprep.subr.bf16.mxu0 0
  %1560 = vmatpush2.bf16.msra.mxu0 0
  %1561 = vmatprep.subr.bf16.mxu0 0
  %1562 = vmatpush2.bf16.msra.mxu0 0
  %1563 = vmatprep.mubr.bf16.mxu0 0
  %1564 = vmatmul.mubr.bf16.gmra.mxu0 %v1471
  %v1565 = vpop.f32.mrf.mxu0
  %v1566 = vadd.f32 0.0, %v1565
  %v1567 = vpop.f32.mrf.mxu0
  %v1568 = vpop.f32.mrf.mxu0
  %v1569 = vadd.f32 0.0, %v1568
  %v1570 = vpop.f32.mrf.mxu0
  %1571 = vmatprep.mubr.bf16.mxu0 0
  %1572 = vmatmul.mubr.bf16.gmra.mxu0 %v1473
  %v1573 = vpop.f32.mrf.mxu0
  %v1574 = vadd.f32 0.0, %v1573
  %v1575 = vpop.f32.mrf.mxu0
  %v1576 = vpop.f32.mrf.mxu0
  %v1577 = vadd.f32 0.0, %v1576
  %v1578 = vpop.f32.mrf.mxu0
  %1579 = vmatprep.mubr.bf16.mxu0 0
  %1580 = vmatmul.mubr.bf16.gmra.mxu0 %v1475
  %v1581 = vpop.f32.mrf.mxu0
  %v1582 = vadd.f32 0.0, %v1581
  %v1583 = vpop.f32.mrf.mxu0
  %v1584 = vpop.f32.mrf.mxu0
  %v1585 = vadd.f32 0.0, %v1584
  %v1586 = vpop.f32.mrf.mxu0
  %1587 = vmatprep.mubr.bf16.mxu0 0
  %1588 = vmatmul.mubr.bf16.gmra.mxu0 %v1477
  %v1589 = vpop.f32.mrf.mxu0
  %v1590 = vadd.f32 0.0, %v1589
  %v1591 = vpop.f32.mrf.mxu0
  %v1592 = vpop.f32.mrf.mxu0
  %v1593 = vadd.f32 0.0, %v1592
  %v1594 = vpop.f32.mrf.mxu0
  %1595 = vmatprep.mubr.bf16.mxu0 0
  %1596 = vmatmul.mubr.bf16.gmra.mxu0 %v1476
  %v1597 = vpop.f32.mrf.mxu0
  %v1598 = vadd.f32 0.0, %v1597
  %v1599 = vpop.f32.mrf.mxu0
  %v1600 = vpop.f32.mrf.mxu0
  %v1601 = vpop.f32.mrf.mxu0
  %1602 = vdwg.mxu0
  %v1603 = vadd.f32 %v1439, %v1566
  %v1604 = vadd.f32 %v1440, %v1569
  %v1605 = vadd.f32 %v1441, %v1574
  %v1606 = vadd.f32 %v1442, %v1577
  %v1607 = vadd.f32 %v1443, %v1582
  %v1608 = vadd.f32 %v1444, %v1585
  %v1609 = vadd.f32 %v1445, %v1590
  %v1610 = vadd.f32 %v1446, %v1593
  %v1611 = vadd.f32 %v1447, %v1598
  %v1612 = vld [vmem:[%s2] sm:$0x1]
  %v1614 = vlaneseq
  %v1615 = vshrl.u32 %v1614, 7
  %v1616 = vsub.s32 0, %v1615
  %v1617 = vrot.slane %v1612, %v1616
  %v1619 = vadd.f32 %v1603, %v1617
  %v1620 = vadd.f32 %v1604, %v1617
  %v1621 = vadd.f32 %v1605, %v1617
  %v1622 = vadd.f32 %v1606, %v1617
  %v1623 = vadd.f32 %v1607, %v1617
  %v1624 = vadd.f32 %v1608, %v1617
  %v1625 = vadd.f32 %v1609, %v1617
  %v1626 = vadd.f32 %v1610, %v1617
  %v1627 = vadd.f32 %v1611, %v1617
  %v1628 = vld [vmem:[%s3] sm:$0xff]
  %v1629 = vld [vmem:[%s3 + $0x8] sm:$0xff]
  %v1630 = vld [vmem:[%s3 + $0x10] sm:$0xff]
  %v1631 = vld [vmem:[%s3 + $0x18] sm:$0xff]
  %v1632 = vld [vmem:[%s3 + $0x20] sm:$0xff]
  %v1633 = vld [vmem:[%s3 + $0x28] sm:$0xff]
  %v1634 = vld [vmem:[%s3 + $0x30] sm:$0xff]
  %v1635 = vld [vmem:[%s3 + $0x38] sm:$0xff]
  %v1636 = vld [vmem:[%s3 + $0x40] sm:$0xff]
  %1638 = vset.pattern.permute.xlu0 0
  %1639 = vperm.xlu0 %1638, %v1628
  %v1640 = vpop.permute.xlu0 %1639
  %1643 = vset.pattern.permute.xlu0 0
  %1644 = vperm.xlu0 %1643, %v1629
  %v1645 = vpop.permute.xlu0 %1644
  %1648 = vset.pattern.permute.xlu0 0
  %1649 = vperm.xlu0 %1648, %v1630
  %v1650 = vpop.permute.xlu0 %1649
  %1653 = vset.pattern.permute.xlu0 0
  %1654 = vperm.xlu0 %1653, %v1631
  %v1655 = vpop.permute.xlu0 %1654
  %1658 = vset.pattern.permute.xlu0 0
  %1659 = vperm.xlu0 %1658, %v1632
  %v1660 = vpop.permute.xlu0 %1659
  %1663 = vset.pattern.permute.xlu0 0
  %1664 = vperm.xlu0 %1663, %v1633
  %v1665 = vpop.permute.xlu0 %1664
  %1668 = vset.pattern.permute.xlu0 0
  %1669 = vperm.xlu0 %1668, %v1634
  %v1670 = vpop.permute.xlu0 %1669
  %1673 = vset.pattern.permute.xlu0 0
  %1674 = vperm.xlu0 %1673, %v1635
  %v1675 = vpop.permute.xlu0 %1674
  %1678 = vset.pattern.permute.xlu0 0
  %1679 = vperm.xlu0 %1678, %v1636
  %v1680 = vpop.permute.xlu0 %1679
  %v1682 = vmul.f32 %v1619, %v1640
  %v1683 = vmul.f32 %v1620, %v1645
  %v1684 = vmul.f32 %v1621, %v1650
  %v1685 = vmul.f32 %v1622, %v1655
  %v1686 = vmul.f32 %v1623, %v1660
  %v1687 = vmul.f32 %v1624, %v1665
  %v1688 = vmul.f32 %v1625, %v1670
  %v1689 = vmul.f32 %v1626, %v1675
  %v1690 = vmul.f32 %v1627, %v1680
  %v1691 = vmul.f32 %v1682, %v1682
  %v1692 = vmul.f32 %v1683, %v1683
  %v1693 = vmul.f32 %v1684, %v1684
  %v1694 = vmul.f32 %v1685, %v1685
  %v1695 = vmul.f32 %v1686, %v1686
  %v1696 = vmul.f32 %v1687, %v1687
  %v1697 = vmul.f32 %v1688, %v1688
  %v1698 = vmul.f32 %v1689, %v1689
  %v1699 = vmul.f32 %v1690, %v1690
  %1700 = vadd.xlane.f32.xlu0 %v1691
  %v1701 = vpop.xlane.xlu0 %1700
  %1702 = vadd.xlane.f32.xlu0 %v1692
  %v1703 = vpop.xlane.xlu0 %1702
  %1704 = vadd.xlane.f32.xlu0 %v1693
  %v1705 = vpop.xlane.xlu0 %1704
  %1706 = vadd.xlane.f32.xlu0 %v1694
  %v1707 = vpop.xlane.xlu0 %1706
  %1708 = vadd.xlane.f32.xlu0 %v1695
  %v1709 = vpop.xlane.xlu0 %1708
  %1710 = vadd.xlane.f32.xlu0 %v1696
  %v1711 = vpop.xlane.xlu0 %1710
  %1712 = vadd.xlane.f32.xlu0 %v1697
  %v1713 = vpop.xlane.xlu0 %1712
  %1714 = vadd.xlane.f32.xlu0 %v1698
  %v1715 = vpop.xlane.xlu0 %1714
  %1716 = vadd.xlane.f32.xlu0 %v1699
  %v1717 = vpop.xlane.xlu0 %1716
  %v1718 = vmul.f32 %v1701, 0.03125
  %v1719 = vmul.f32 %v1703, 0.03125
  %v1720 = vmul.f32 %v1705, 0.03125
  %v1721 = vmul.f32 %v1707, 0.03125
  %v1722 = vmul.f32 %v1709, 0.03125
  %v1723 = vmul.f32 %v1711, 0.03125
  %v1724 = vmul.f32 %v1713, 0.03125
  %v1725 = vmul.f32 %v1715, 0.03125
  %v1726 = vmul.f32 %v1717, 0.03125
  %v1727 = vadd.f32 %v1718, 1e-08
  %v1728 = vadd.f32 %v1719, 1e-08
  %v1729 = vadd.f32 %v1720, 1e-08
  %v1730 = vadd.f32 %v1721, 1e-08
  %v1731 = vadd.f32 %v1722, 1e-08
  %v1732 = vadd.f32 %v1723, 1e-08
  %v1733 = vadd.f32 %v1724, 1e-08
  %v1734 = vadd.f32 %v1725, 1e-08
  %v1735 = vadd.f32 %v1726, 1e-08
  %v1736 = vrsqrt.pop %v1727
  %v1737 = vrsqrt.pop %v1728
  %v1738 = vrsqrt.pop %v1729
  %v1739 = vrsqrt.pop %v1730
  %v1740 = vrsqrt.pop %v1731
  %v1741 = vrsqrt.pop %v1732
  %v1742 = vrsqrt.pop %v1733
  %v1743 = vrsqrt.pop %v1734
  %v1744 = vrsqrt.pop %v1735
  %v1745 = vmul.f32 %v1682, %v1736
  %v1746 = vmul.f32 %v1683, %v1737
  %v1747 = vmul.f32 %v1684, %v1738
  %v1748 = vmul.f32 %v1685, %v1739
  %v1749 = vmul.f32 %v1686, %v1740
  %v1750 = vmul.f32 %v1687, %v1741
  %v1751 = vmul.f32 %v1688, %v1742
  %v1752 = vmul.f32 %v1689, %v1743
  %v1753 = vmul.f32 %v1690, %v1744
  %vm1754 = vcmp.ge.f32.partialorder %v1745, 0.0
  %vm1755 = vcmp.ge.f32.partialorder %v1746, 0.0
  %vm1756 = vcmp.ge.f32.partialorder %v1747, 0.0
  %vm1757 = vcmp.ge.f32.partialorder %v1748, 0.0
  %vm1758 = vcmp.ge.f32.partialorder %v1749, 0.0
  %vm1759 = vcmp.ge.f32.partialorder %v1750, 0.0
  %vm1760 = vcmp.ge.f32.partialorder %v1751, 0.0
  %vm1761 = vcmp.ge.f32.partialorder %v1752, 0.0
  %vm1762 = vcmp.ge.f32.partialorder %v1753, 0.0
  %v1763 = vmul.f32 %v1745, 0.2
  %v1764 = vmul.f32 %v1746, 0.2
  %v1765 = vmul.f32 %v1747, 0.2
  %v1766 = vmul.f32 %v1748, 0.2
  %v1767 = vmul.f32 %v1749, 0.2
  %v1768 = vmul.f32 %v1750, 0.2
  %v1769 = vmul.f32 %v1751, 0.2
  %v1770 = vmul.f32 %v1752, 0.2
  %v1771 = vmul.f32 %v1753, 0.2
  %v1772 = vsel %vm1754, %v1745, %v1763
  %v1773 = vsel %vm1755, %v1746, %v1764
  %v1774 = vsel %vm1756, %v1747, %v1765
  %v1775 = vsel %vm1757, %v1748, %v1766
  %v1776 = vsel %vm1758, %v1749, %v1767
  %v1777 = vsel %vm1759, %v1750, %v1768
  %v1778 = vsel %vm1760, %v1751, %v1769
  %v1779 = vsel %vm1761, %v1752, %v1770
  %v1780 = vsel %vm1762, %v1753, %v1771
  %v1781 = vpack.c.bf16 %v1773, %v1772
  %v1782 = vpack.c.bf16 %v1775, %v1774
  %v1783 = vpack.c.bf16 %v1777, %v1776
  %v1784 = vpack.c.bf16 %v1779, %v1778
  %v1785 = vpack.c.bf16 %v1780, %v1780
  %v1791 = vunpack.c.l.b16 %v1781
  %v1792 = vunpack.c.h.b16 %v1781
  %v1793 = vunpack.c.l.b16 %v1782
  %v1794 = vunpack.c.h.b16 %v1782
  %v1795 = vunpack.c.l.b16 %v1783
  %v1796 = vunpack.c.h.b16 %v1783
  %v1797 = vunpack.c.l.b16 %v1784
  %v1798 = vunpack.c.h.b16 %v1784
  %v1799 = vunpack.c.l.b16 %v1785
  %v1800 = vpack.c.b16 %v1791, %v1791
  %v1801 = vpack.c.b16 %v1792, %v1792
  %v1802 = vpack.c.b16 %v1793, %v1793
  %v1803 = vpack.c.b16 %v1794, %v1794
  %v1804 = vpack.c.b16 %v1795, %v1795
  %v1805 = vpack.c.b16 %v1796, %v1796
  %v1806 = vpack.c.b16 %v1797, %v1797
  %v1807 = vpack.c.b16 %v1798, %v1798
  %v1808 = vpack.c.b16 %v1799, %v1799
  %1818 = vst [vmem:[%s4] sm:$0xf] %v1800
  %1819 = vst [vmem:[%s4 + $0x4] sm:$0xf] %v1801
  %1820 = vst [vmem:[%s4 + $0x8] sm:$0xf] %v1802
  %1821 = vst [vmem:[%s4 + $0xc] sm:$0xf] %v1803
  %1822 = vst [vmem:[%s4 + $0x10] sm:$0xf] %v1804
  %1823 = vst [vmem:[%s4 + $0x14] sm:$0xf] %v1805
  %1824 = vst [vmem:[%s4 + $0x18] sm:$0xf] %v1806
  %1825 = vst [vmem:[%s4 + $0x1c] sm:$0xf] %v1807
  %1826 = vst [vmem:[%s4 + $0x20] sm:$0xf] %v1808
  // Predicated region
  $region18: #{forward.12} parent=0 // pred_check
    _
  $region19: #{forward.12} parent=0 // pred_check_branch
    %1828 = sbr.rel (0) target = $region21
  $region20: #{forward.12} parent=0 // pred_region
    _
  $region21: #{forward.12} parent=0 // pred_fallthru
    _
  // Predicated region
  $region22: #{forward.12} parent=0 // pred_check
    _
  $region23: #{forward.12} parent=0 // pred_check_branch
    %1830 = sbr.rel (0) target = $region25
  $region24: #{forward.12} parent=0 // pred_region
    _
  $region25: #{forward.12} parent=0 // pred_fallthru
    _

// kernel: forward.13
$region0: #{forward.13}
  #allocation0 [shape = 'u32[]', space=smem, size = 0x4, offset = 0x4, fixed_abs, tag = 'smem constant byte address 0x4 - core index']
  #allocation1 [shape = 'u32[144,128]{1,0:T(1,128)}', space=vmem, size = 0x12000, scoped, tag = 'internal scratch']
  #allocation2 [shape = 'f32[1,1]{1,0:T(1,128)S(1)}', space=vmem, size = 0x200, scoped, tag = 'scoped memory for forward.13']
  %s0 = inlined_call_operand.vmem [shape: bf16[2,2048], index: 0, kind: input, shape index: {}]
  %s1 = inlined_call_operand.vmem [shape: bf16[2048,128], index: 1, kind: input, shape index: {}]
  %s2 = inlined_call_operand.vmem [shape: f32[1,128], index: 2, kind: input, shape index: {}]
  %s3 = inlined_call_operand.vmem [shape: f32[2,128], index: 3, kind: input, shape index: {}]
  %s4 = inlined_call_operand.vmem [shape: f32[1,128], index: 4, kind: input, shape index: {}]
  %s5 = inlined_call_operand.<no memory space> [shape: f32[1,1], index: 5, kind: input, shape index: {}]
  %s6 = inlined_call_operand.vmem [shape: f32[2,1], index: 6, kind: output, shape index: {}]
  %s7 = sld [smem:[#allocation0]]
  $region34: #{forward.13} parent=0
    _
  %s9 = ssub.s32 1, %s7
  %s10 = scalar_select 0, %s9, %s7
  %v11 = vstv %s5
  %12 = vst [vmem:[#allocation2] sm:$0x1] %v11
  // Predicated region
  $region2: #{forward.13} parent=0 // pred_check
    _
  $region3: #{forward.13} parent=0 // pred_check_branch
    %14 = sbr.rel (0) target = $region5
  $region4: #{forward.13} parent=0 // pred_region
    _
  $region5: #{forward.13} parent=0 // pred_fallthru
    _
  // Predicated region
  $region6: #{forward.13} parent=0 // pred_check
    _
  $region7: #{forward.13} parent=0 // pred_check_branch
    %16 = sbr.rel (0) target = $region9
  $region8: #{forward.13} parent=0 // pred_region
    _
  $region9: #{forward.13} parent=0 // pred_fallthru
    _
  // Predicated region
  $region10: #{forward.13} parent=0 // pred_check
    _
  $region11: #{forward.13} parent=0 // pred_check_branch
    %18 = sbr.rel (0) target = $region13
  $region12: #{forward.13} parent=0 // pred_region
    _
  $region13: #{forward.13} parent=0 // pred_fallthru
    _
  // Predicated region
  $region14: #{forward.13} parent=0 // pred_check
    _
  $region15: #{forward.13} parent=0 // pred_check_branch
    %20 = sbr.rel (0) target = $region17
  $region16: #{forward.13} parent=0 // pred_region
    _
  $region17: #{forward.13} parent=0 // pred_fallthru
    _
  // Predicated region
  $region18: #{forward.13} parent=0 // pred_check
    _
  $region19: #{forward.13} parent=0 // pred_check_branch
    %22 = sbr.rel (0) target = $region21
  $region20: #{forward.13} parent=0 // pred_region
    _
  $region21: #{forward.13} parent=0 // pred_fallthru
    _
  // Predicated region
  $region22: #{forward.13} parent=0 // pred_check
    _
  $region23: #{forward.13} parent=0 // pred_check_branch
    %24 = sbr.rel (0) target = $region25
  $region24: #{forward.13} parent=0 // pred_region
    _
  $region25: #{forward.13} parent=0 // pred_fallthru
    _
  %v26 = vld [vmem:[%s0] sm:$0xff]
  %v27 = vld [vmem:[%s0 + $0x8] sm:$0xff]
  %v28 = vld [vmem:[%s1] sm:$0xf]
  %v29 = vld [vmem:[%s1 + $0x4] sm:$0xf]
  %v30 = vld [vmem:[%s1 + $0x8] sm:$0xf]
  %v31 = vld [vmem:[%s1 + $0xc] sm:$0xf]
  %v32 = vld [vmem:[%s1 + $0x10] sm:$0xf]
  %v33 = vld [vmem:[%s1 + $0x14] sm:$0xf]
  %v34 = vld [vmem:[%s1 + $0x18] sm:$0xf]
  %v35 = vld [vmem:[%s1 + $0x1c] sm:$0xf]
  %v36 = vld [vmem:[%s1 + $0x20] sm:$0xf]
  %v37 = vld [vmem:[%s1 + $0x24] sm:$0xf]
  %v38 = vld [vmem:[%s1 + $0x28] sm:$0xf]
  %v39 = vld [vmem:[%s1 + $0x2c] sm:$0xf]
  %v40 = vld [vmem:[%s1 + $0x30] sm:$0xf]
  %v41 = vld [vmem:[%s1 + $0x34] sm:$0xf]
  %v42 = vld [vmem:[%s1 + $0x38] sm:$0xf]
  %v43 = vld [vmem:[%s1 + $0x3c] sm:$0xf]
  %v44 = vld [vmem:[%s1 + $0x40] sm:$0xf]
  %v45 = vld [vmem:[%s1 + $0x44] sm:$0xf]
  %v46 = vld [vmem:[%s1 + $0x48] sm:$0xf]
  %v47 = vld [vmem:[%s1 + $0x4c] sm:$0xf]
  %v48 = vld [vmem:[%s1 + $0x50] sm:$0xf]
  %v49 = vld [vmem:[%s1 + $0x54] sm:$0xf]
  %v50 = vld [vmem:[%s1 + $0x58] sm:$0xf]
  %v51 = vld [vmem:[%s1 + $0x5c] sm:$0xf]
  %v52 = vld [vmem:[%s1 + $0x60] sm:$0xf]
  %v53 = vld [vmem:[%s1 + $0x64] sm:$0xf]
  %v54 = vld [vmem:[%s1 + $0x68] sm:$0xf]
  %v55 = vld [vmem:[%s1 + $0x6c] sm:$0xf]
  %v56 = vld [vmem:[%s1 + $0x70] sm:$0xf]
  %v57 = vld [vmem:[%s1 + $0x74] sm:$0xf]
  %v58 = vld [vmem:[%s1 + $0x78] sm:$0xf]
  %v59 = vld [vmem:[%s1 + $0x7c] sm:$0xf]
  %v60 = vld [vmem:[%s1 + $0x80] sm:$0xf]
  %v61 = vld [vmem:[%s1 + $0x84] sm:$0xf]
  %v62 = vld [vmem:[%s1 + $0x88] sm:$0xf]
  %v63 = vld [vmem:[%s1 + $0x8c] sm:$0xf]
  %v64 = vld [vmem:[%s1 + $0x90] sm:$0xf]
  %v65 = vld [vmem:[%s1 + $0x94] sm:$0xf]
  %v66 = vld [vmem:[%s1 + $0x98] sm:$0xf]
  %v67 = vld [vmem:[%s1 + $0x9c] sm:$0xf]
  %v68 = vld [vmem:[%s1 + $0xa0] sm:$0xf]
  %v69 = vld [vmem:[%s1 + $0xa4] sm:$0xf]
  %v70 = vld [vmem:[%s1 + $0xa8] sm:$0xf]
  %v71 = vld [vmem:[%s1 + $0xac] sm:$0xf]
  %v72 = vld [vmem:[%s1 + $0xb0] sm:$0xf]
  %v73 = vld [vmem:[%s1 + $0xb4] sm:$0xf]
  %v74 = vld [vmem:[%s1 + $0xb8] sm:$0xf]
  %v75 = vld [vmem:[%s1 + $0xbc] sm:$0xf]
  %v76 = vld [vmem:[%s1 + $0xc0] sm:$0xf]
  %v77 = vld [vmem:[%s1 + $0xc4] sm:$0xf]
  %v78 = vld [vmem:[%s1 + $0xc8] sm:$0xf]
  %v79 = vld [vmem:[%s1 + $0xcc] sm:$0xf]
  %v80 = vld [vmem:[%s1 + $0xd0] sm:$0xf]
  %v81 = vld [vmem:[%s1 + $0xd4] sm:$0xf]
  %v82 = vld [vmem:[%s1 + $0xd8] sm:$0xf]
  %v83 = vld [vmem:[%s1 + $0xdc] sm:$0xf]
  %v84 = vld [vmem:[%s1 + $0xe0] sm:$0xf]
  %v85 = vld [vmem:[%s1 + $0xe4] sm:$0xf]
  %v86 = vld [vmem:[%s1 + $0xe8] sm:$0xf]
  %v87 = vld [vmem:[%s1 + $0xec] sm:$0xf]
  %v88 = vld [vmem:[%s1 + $0xf0] sm:$0xf]
  %v89 = vld [vmem:[%s1 + $0xf4] sm:$0xf]
  %v90 = vld [vmem:[%s1 + $0xf8] sm:$0xf]
  %v91 = vld [vmem:[%s1 + $0xfc] sm:$0xf]
  %v92 = vld [vmem:[%s1 + $0x100] sm:$0xf]
  %v93 = vld [vmem:[%s1 + $0x104] sm:$0xf]
  %v94 = vld [vmem:[%s1 + $0x108] sm:$0xf]
  %v95 = vld [vmem:[%s1 + $0x10c] sm:$0xf]
  %v96 = vld [vmem:[%s1 + $0x110] sm:$0xf]
  %v97 = vld [vmem:[%s1 + $0x114] sm:$0xf]
  %v98 = vld [vmem:[%s1 + $0x118] sm:$0xf]
  %v99 = vld [vmem:[%s1 + $0x11c] sm:$0xf]
  %v100 = vld [vmem:[%s1 + $0x120] sm:$0xf]
  %v101 = vld [vmem:[%s1 + $0x124] sm:$0xf]
  %v102 = vld [vmem:[%s1 + $0x128] sm:$0xf]
  %v103 = vld [vmem:[%s1 + $0x12c] sm:$0xf]
  %v104 = vld [vmem:[%s1 + $0x130] sm:$0xf]
  %v105 = vld [vmem:[%s1 + $0x134] sm:$0xf]
  %v106 = vld [vmem:[%s1 + $0x138] sm:$0xf]
  %v107 = vld [vmem:[%s1 + $0x13c] sm:$0xf]
  %v108 = vld [vmem:[%s1 + $0x140] sm:$0xf]
  %v109 = vld [vmem:[%s1 + $0x144] sm:$0xf]
  %v110 = vld [vmem:[%s1 + $0x148] sm:$0xf]
  %v111 = vld [vmem:[%s1 + $0x14c] sm:$0xf]
  %v112 = vld [vmem:[%s1 + $0x150] sm:$0xf]
  %v113 = vld [vmem:[%s1 + $0x154] sm:$0xf]
  %v114 = vld [vmem:[%s1 + $0x158] sm:$0xf]
  %v115 = vld [vmem:[%s1 + $0x15c] sm:$0xf]
  %v116 = vld [vmem:[%s1 + $0x160] sm:$0xf]
  %v117 = vld [vmem:[%s1 + $0x164] sm:$0xf]
  %v118 = vld [vmem:[%s1 + $0x168] sm:$0xf]
  %v119 = vld [vmem:[%s1 + $0x16c] sm:$0xf]
  %v120 = vld [vmem:[%s1 + $0x170] sm:$0xf]
  %v121 = vld [vmem:[%s1 + $0x174] sm:$0xf]
  %v122 = vld [vmem:[%s1 + $0x178] sm:$0xf]
  %v123 = vld [vmem:[%s1 + $0x17c] sm:$0xf]
  %v124 = vld [vmem:[%s1 + $0x180] sm:$0xf]
  %v125 = vld [vmem:[%s1 + $0x184] sm:$0xf]
  %v126 = vld [vmem:[%s1 + $0x188] sm:$0xf]
  %v127 = vld [vmem:[%s1 + $0x18c] sm:$0xf]
  %v128 = vld [vmem:[%s1 + $0x190] sm:$0xf]
  %v129 = vld [vmem:[%s1 + $0x194] sm:$0xf]
  %v130 = vld [vmem:[%s1 + $0x198] sm:$0xf]
  %v131 = vld [vmem:[%s1 + $0x19c] sm:$0xf]
  %v132 = vld [vmem:[%s1 + $0x1a0] sm:$0xf]
  %v133 = vld [vmem:[%s1 + $0x1a4] sm:$0xf]
  %v134 = vld [vmem:[%s1 + $0x1a8] sm:$0xf]
  %v135 = vld [vmem:[%s1 + $0x1ac] sm:$0xf]
  %v136 = vld [vmem:[%s1 + $0x1b0] sm:$0xf]
  %v137 = vld [vmem:[%s1 + $0x1b4] sm:$0xf]
  %v138 = vld [vmem:[%s1 + $0x1b8] sm:$0xf]
  %v139 = vld [vmem:[%s1 + $0x1bc] sm:$0xf]
  %v140 = vld [vmem:[%s1 + $0x1c0] sm:$0xf]
  %v141 = vld [vmem:[%s1 + $0x1c4] sm:$0xf]
  %v142 = vld [vmem:[%s1 + $0x1c8] sm:$0xf]
  %v143 = vld [vmem:[%s1 + $0x1cc] sm:$0xf]
  %v144 = vld [vmem:[%s1 + $0x1d0] sm:$0xf]
  %v145 = vld [vmem:[%s1 + $0x1d4] sm:$0xf]
  %v146 = vld [vmem:[%s1 + $0x1d8] sm:$0xf]
  %v147 = vld [vmem:[%s1 + $0x1dc] sm:$0xf]
  %v148 = vld [vmem:[%s1 + $0x1e0] sm:$0xf]
  %v149 = vld [vmem:[%s1 + $0x1e4] sm:$0xf]
  %v150 = vld [vmem:[%s1 + $0x1e8] sm:$0xf]
  %v151 = vld [vmem:[%s1 + $0x1ec] sm:$0xf]
  %v152 = vld [vmem:[%s1 + $0x1f0] sm:$0xf]
  %v153 = vld [vmem:[%s1 + $0x1f4] sm:$0xf]
  %v154 = vld [vmem:[%s1 + $0x1f8] sm:$0xf]
  %v155 = vld [vmem:[%s1 + $0x1fc] sm:$0xf]
  %v156 = vld [vmem:[%s1 + $0x200] sm:$0xf]
  %v157 = vld [vmem:[%s1 + $0x204] sm:$0xf]
  %v158 = vld [vmem:[%s1 + $0x208] sm:$0xf]
  %v159 = vld [vmem:[%s1 + $0x20c] sm:$0xf]
  %v160 = vld [vmem:[%s1 + $0x210] sm:$0xf]
  %v161 = vld [vmem:[%s1 + $0x214] sm:$0xf]
  %v162 = vld [vmem:[%s1 + $0x218] sm:$0xf]
  %v163 = vld [vmem:[%s1 + $0x21c] sm:$0xf]
  %v164 = vld [vmem:[%s1 + $0x220] sm:$0xf]
  %v165 = vld [vmem:[%s1 + $0x224] sm:$0xf]
  %v166 = vld [vmem:[%s1 + $0x228] sm:$0xf]
  %v167 = vld [vmem:[%s1 + $0x22c] sm:$0xf]
  %v168 = vld [vmem:[%s1 + $0x230] sm:$0xf]
  %v169 = vld [vmem:[%s1 + $0x234] sm:$0xf]
  %v170 = vld [vmem:[%s1 + $0x238] sm:$0xf]
  %v171 = vld [vmem:[%s1 + $0x23c] sm:$0xf]
  %v172 = vld [vmem:[%s1 + $0x240] sm:$0xf]
  %v173 = vld [vmem:[%s1 + $0x244] sm:$0xf]
  %v174 = vld [vmem:[%s1 + $0x248] sm:$0xf]
  %v175 = vld [vmem:[%s1 + $0x24c] sm:$0xf]
  %v176 = vld [vmem:[%s1 + $0x250] sm:$0xf]
  %v177 = vld [vmem:[%s1 + $0x254] sm:$0xf]
  %v178 = vld [vmem:[%s1 + $0x258] sm:$0xf]
  %v179 = vld [vmem:[%s1 + $0x25c] sm:$0xf]
  %v180 = vld [vmem:[%s1 + $0x260] sm:$0xf]
  %v181 = vld [vmem:[%s1 + $0x264] sm:$0xf]
  %v182 = vld [vmem:[%s1 + $0x268] sm:$0xf]
  %v183 = vld [vmem:[%s1 + $0x26c] sm:$0xf]
  %v184 = vld [vmem:[%s1 + $0x270] sm:$0xf]
  %v185 = vld [vmem:[%s1 + $0x274] sm:$0xf]
  %v186 = vld [vmem:[%s1 + $0x278] sm:$0xf]
  %v187 = vld [vmem:[%s1 + $0x27c] sm:$0xf]
  %v188 = vld [vmem:[%s1 + $0x280] sm:$0xf]
  %v189 = vld [vmem:[%s1 + $0x284] sm:$0xf]
  %v190 = vld [vmem:[%s1 + $0x288] sm:$0xf]
  %v191 = vld [vmem:[%s1 + $0x28c] sm:$0xf]
  %v192 = vld [vmem:[%s1 + $0x290] sm:$0xf]
  %v193 = vld [vmem:[%s1 + $0x294] sm:$0xf]
  %v194 = vld [vmem:[%s1 + $0x298] sm:$0xf]
  %v195 = vld [vmem:[%s1 + $0x29c] sm:$0xf]
  %v196 = vld [vmem:[%s1 + $0x2a0] sm:$0xf]
  %v197 = vld [vmem:[%s1 + $0x2a4] sm:$0xf]
  %v198 = vld [vmem:[%s1 + $0x2a8] sm:$0xf]
  %v199 = vld [vmem:[%s1 + $0x2ac] sm:$0xf]
  %v200 = vld [vmem:[%s1 + $0x2b0] sm:$0xf]
  %v201 = vld [vmem:[%s1 + $0x2b4] sm:$0xf]
  %v202 = vld [vmem:[%s1 + $0x2b8] sm:$0xf]
  %v203 = vld [vmem:[%s1 + $0x2bc] sm:$0xf]
  %v204 = vld [vmem:[%s1 + $0x2c0] sm:$0xf]
  %v205 = vld [vmem:[%s1 + $0x2c4] sm:$0xf]
  %v206 = vld [vmem:[%s1 + $0x2c8] sm:$0xf]
  %v207 = vld [vmem:[%s1 + $0x2cc] sm:$0xf]
  %v208 = vld [vmem:[%s1 + $0x2d0] sm:$0xf]
  %v209 = vld [vmem:[%s1 + $0x2d4] sm:$0xf]
  %v210 = vld [vmem:[%s1 + $0x2d8] sm:$0xf]
  %v211 = vld [vmem:[%s1 + $0x2dc] sm:$0xf]
  %v212 = vld [vmem:[%s1 + $0x2e0] sm:$0xf]
  %v213 = vld [vmem:[%s1 + $0x2e4] sm:$0xf]
  %v214 = vld [vmem:[%s1 + $0x2e8] sm:$0xf]
  %v215 = vld [vmem:[%s1 + $0x2ec] sm:$0xf]
  %v216 = vld [vmem:[%s1 + $0x2f0] sm:$0xf]
  %v217 = vld [vmem:[%s1 + $0x2f4] sm:$0xf]
  %v218 = vld [vmem:[%s1 + $0x2f8] sm:$0xf]
  %v219 = vld [vmem:[%s1 + $0x2fc] sm:$0xf]
  %v220 = vld [vmem:[%s1 + $0x300] sm:$0xf]
  %v221 = vld [vmem:[%s1 + $0x304] sm:$0xf]
  %v222 = vld [vmem:[%s1 + $0x308] sm:$0xf]
  %v223 = vld [vmem:[%s1 + $0x30c] sm:$0xf]
  %v224 = vld [vmem:[%s1 + $0x310] sm:$0xf]
  %v225 = vld [vmem:[%s1 + $0x314] sm:$0xf]
  %v226 = vld [vmem:[%s1 + $0x318] sm:$0xf]
  %v227 = vld [vmem:[%s1 + $0x31c] sm:$0xf]
  %v228 = vld [vmem:[%s1 + $0x320] sm:$0xf]
  %v229 = vld [vmem:[%s1 + $0x324] sm:$0xf]
  %v230 = vld [vmem:[%s1 + $0x328] sm:$0xf]
  %v231 = vld [vmem:[%s1 + $0x32c] sm:$0xf]
  %v232 = vld [vmem:[%s1 + $0x330] sm:$0xf]
  %v233 = vld [vmem:[%s1 + $0x334] sm:$0xf]
  %v234 = vld [vmem:[%s1 + $0x338] sm:$0xf]
  %v235 = vld [vmem:[%s1 + $0x33c] sm:$0xf]
  %v236 = vld [vmem:[%s1 + $0x340] sm:$0xf]
  %v237 = vld [vmem:[%s1 + $0x344] sm:$0xf]
  %v238 = vld [vmem:[%s1 + $0x348] sm:$0xf]
  %v239 = vld [vmem:[%s1 + $0x34c] sm:$0xf]
  %v240 = vld [vmem:[%s1 + $0x350] sm:$0xf]
  %v241 = vld [vmem:[%s1 + $0x354] sm:$0xf]
  %v242 = vld [vmem:[%s1 + $0x358] sm:$0xf]
  %v243 = vld [vmem:[%s1 + $0x35c] sm:$0xf]
  %v244 = vld [vmem:[%s1 + $0x360] sm:$0xf]
  %v245 = vld [vmem:[%s1 + $0x364] sm:$0xf]
  %v246 = vld [vmem:[%s1 + $0x368] sm:$0xf]
  %v247 = vld [vmem:[%s1 + $0x36c] sm:$0xf]
  %v248 = vld [vmem:[%s1 + $0x370] sm:$0xf]
  %v249 = vld [vmem:[%s1 + $0x374] sm:$0xf]
  %v250 = vld [vmem:[%s1 + $0x378] sm:$0xf]
  %v251 = vld [vmem:[%s1 + $0x37c] sm:$0xf]
  %v252 = vld [vmem:[%s1 + $0x380] sm:$0xf]
  %v253 = vld [vmem:[%s1 + $0x384] sm:$0xf]
  %v254 = vld [vmem:[%s1 + $0x388] sm:$0xf]
  %v255 = vld [vmem:[%s1 + $0x38c] sm:$0xf]
  %v256 = vld [vmem:[%s1 + $0x390] sm:$0xf]
  %v257 = vld [vmem:[%s1 + $0x394] sm:$0xf]
  %v258 = vld [vmem:[%s1 + $0x398] sm:$0xf]
  %v259 = vld [vmem:[%s1 + $0x39c] sm:$0xf]
  %v260 = vld [vmem:[%s1 + $0x3a0] sm:$0xf]
  %v261 = vld [vmem:[%s1 + $0x3a4] sm:$0xf]
  %v262 = vld [vmem:[%s1 + $0x3a8] sm:$0xf]
  %v263 = vld [vmem:[%s1 + $0x3ac] sm:$0xf]
  %v264 = vld [vmem:[%s1 + $0x3b0] sm:$0xf]
  %v265 = vld [vmem:[%s1 + $0x3b4] sm:$0xf]
  %v266 = vld [vmem:[%s1 + $0x3b8] sm:$0xf]
  %v267 = vld [vmem:[%s1 + $0x3bc] sm:$0xf]
  %v268 = vld [vmem:[%s1 + $0x3c0] sm:$0xf]
  %v269 = vld [vmem:[%s1 + $0x3c4] sm:$0xf]
  %v270 = vld [vmem:[%s1 + $0x3c8] sm:$0xf]
  %v271 = vld [vmem:[%s1 + $0x3cc] sm:$0xf]
  %v272 = vld [vmem:[%s1 + $0x3d0] sm:$0xf]
  %v273 = vld [vmem:[%s1 + $0x3d4] sm:$0xf]
  %v274 = vld [vmem:[%s1 + $0x3d8] sm:$0xf]
  %v275 = vld [vmem:[%s1 + $0x3dc] sm:$0xf]
  %v276 = vld [vmem:[%s1 + $0x3e0] sm:$0xf]
  %v277 = vld [vmem:[%s1 + $0x3e4] sm:$0xf]
  %v278 = vld [vmem:[%s1 + $0x3e8] sm:$0xf]
  %v279 = vld [vmem:[%s1 + $0x3ec] sm:$0xf]
  %v280 = vld [vmem:[%s1 + $0x3f0] sm:$0xf]
  %v281 = vld [vmem:[%s1 + $0x3f4] sm:$0xf]
  %v282 = vld [vmem:[%s1 + $0x3f8] sm:$0xf]
  %v283 = vld [vmem:[%s1 + $0x3fc] sm:$0xf]
  %v284 = vld [vmem:[%s2] sm:$0x1]
  %v286 = vlaneseq
  %v287 = vshrl.u32 %v286, 7
  %v288 = vsub.s32 0, %v287
  %v289 = vrot.slane %v284, %v288
  %v293 = vcombine.high %v26, %v26
  %v295 = vunpack.c.l.s4 1966171168
  %v296 = vunpack.c.0.s8 %v295
  %v297 = vlaneseq
  %v298 = vshrl.u32 %v297, 7
  %v299 = vsub.s32 %v296, %v298
  %v300 = vrot.slane %v26, %v299
  %v302 = vunpack.c.l.s4 1966171168
  %v303 = vunpack.c.0.s8 %v302
  %v304 = vlaneseq
  %v305 = vshrl.u32 %v304, 7
  %v306 = vsub.s32 %v303, %v305
  %v307 = vrot.slane %v293, %v306
  %v308 = vcombine.high %v300, %v300
  %v309 = vcombine.high %v307, %v307
  %v311 = vunpack.c.l.s4 1966171168
  %v312 = vunpack.c.0.s8 %v311
  %v313 = vlaneseq
  %v314 = vshrl.u32 %v313, 7
  %v315 = vsub.s32 %v312, %v314
  %v316 = vrot.slane %v300, %v315
  %v318 = vunpack.c.l.s4 1966171168
  %v319 = vunpack.c.0.s8 %v318
  %v320 = vlaneseq
  %v321 = vshrl.u32 %v320, 7
  %v322 = vsub.s32 %v319, %v321
  %v323 = vrot.slane %v307, %v322
  %v325 = vunpack.c.l.s4 1966171168
  %v326 = vunpack.c.0.s8 %v325
  %v327 = vlaneseq
  %v328 = vshrl.u32 %v327, 7
  %v329 = vsub.s32 %v326, %v328
  %v330 = vrot.slane %v308, %v329
  %v332 = vunpack.c.l.s4 1966171168
  %v333 = vunpack.c.0.s8 %v332
  %v334 = vlaneseq
  %v335 = vshrl.u32 %v334, 7
  %v336 = vsub.s32 %v333, %v335
  %v337 = vrot.slane %v309, %v336
  %v338 = vcombine.high %v316, %v316
  %v339 = vcombine.high %v323, %v323
  %v340 = vcombine.high %v330, %v330
  %v341 = vcombine.high %v337, %v337
  %v342 = vcombine.high %v27, %v27
  %v344 = vunpack.c.l.s4 1966171168
  %v345 = vunpack.c.0.s8 %v344
  %v346 = vlaneseq
  %v347 = vshrl.u32 %v346, 7
  %v348 = vsub.s32 %v345, %v347
  %v349 = vrot.slane %v27, %v348
  %v351 = vunpack.c.l.s4 1966171168
  %v352 = vunpack.c.0.s8 %v351
  %v353 = vlaneseq
  %v354 = vshrl.u32 %v353, 7
  %v355 = vsub.s32 %v352, %v354
  %v356 = vrot.slane %v342, %v355
  %v357 = vcombine.high %v349, %v349
  %v358 = vcombine.high %v356, %v356
  %v360 = vunpack.c.l.s4 1966171168
  %v361 = vunpack.c.0.s8 %v360
  %v362 = vlaneseq
  %v363 = vshrl.u32 %v362, 7
  %v364 = vsub.s32 %v361, %v363
  %v365 = vrot.slane %v349, %v364
  %v367 = vunpack.c.l.s4 1966171168
  %v368 = vunpack.c.0.s8 %v367
  %v369 = vlaneseq
  %v370 = vshrl.u32 %v369, 7
  %v371 = vsub.s32 %v368, %v370
  %v372 = vrot.slane %v356, %v371
  %v374 = vunpack.c.l.s4 1966171168
  %v375 = vunpack.c.0.s8 %v374
  %v376 = vlaneseq
  %v377 = vshrl.u32 %v376, 7
  %v378 = vsub.s32 %v375, %v377
  %v379 = vrot.slane %v357, %v378
  %v381 = vunpack.c.l.s4 1966171168
  %v382 = vunpack.c.0.s8 %v381
  %v383 = vlaneseq
  %v384 = vshrl.u32 %v383, 7
  %v385 = vsub.s32 %v382, %v384
  %v386 = vrot.slane %v358, %v385
  %v387 = vcombine.high %v365, %v365
  %v388 = vcombine.high %v372, %v372
  %v389 = vcombine.high %v379, %v379
  %v390 = vcombine.high %v386, %v386
  %v663 = vunpack.c.l.b16 %v28
  %v664 = vunpack.c.l.b16 %v29
  %v665 = vunpack.c.l.b16 %v30
  %v666 = vunpack.c.l.b16 %v31
  %v667 = vunpack.c.l.b16 %v32
  %v668 = vunpack.c.l.b16 %v33
  %v669 = vunpack.c.l.b16 %v34
  %v670 = vunpack.c.l.b16 %v35
  %v671 = vunpack.c.l.b16 %v36
  %v672 = vunpack.c.l.b16 %v37
  %v673 = vunpack.c.l.b16 %v38
  %v674 = vunpack.c.l.b16 %v39
  %v675 = vunpack.c.l.b16 %v40
  %v676 = vunpack.c.l.b16 %v41
  %v677 = vunpack.c.l.b16 %v42
  %v678 = vunpack.c.l.b16 %v43
  %v679 = vunpack.c.l.b16 %v44
  %v680 = vunpack.c.l.b16 %v45
  %v681 = vunpack.c.l.b16 %v46
  %v682 = vunpack.c.l.b16 %v47
  %v683 = vunpack.c.l.b16 %v48
  %v684 = vunpack.c.l.b16 %v49
  %v685 = vunpack.c.l.b16 %v50
  %v686 = vunpack.c.l.b16 %v51
  %v687 = vunpack.c.l.b16 %v52
  %v688 = vunpack.c.l.b16 %v53
  %v689 = vunpack.c.l.b16 %v54
  %v690 = vunpack.c.l.b16 %v55
  %v691 = vunpack.c.l.b16 %v56
  %v692 = vunpack.c.l.b16 %v57
  %v693 = vunpack.c.l.b16 %v58
  %v694 = vunpack.c.l.b16 %v59
  %v695 = vunpack.c.l.b16 %v60
  %v696 = vunpack.c.l.b16 %v61
  %v697 = vunpack.c.l.b16 %v62
  %v698 = vunpack.c.l.b16 %v63
  %v699 = vunpack.c.l.b16 %v64
  %v700 = vunpack.c.l.b16 %v65
  %v701 = vunpack.c.l.b16 %v66
  %v702 = vunpack.c.l.b16 %v67
  %v703 = vunpack.c.l.b16 %v68
  %v704 = vunpack.c.l.b16 %v69
  %v705 = vunpack.c.l.b16 %v70
  %v706 = vunpack.c.l.b16 %v71
  %v707 = vunpack.c.l.b16 %v72
  %v708 = vunpack.c.l.b16 %v73
  %v709 = vunpack.c.l.b16 %v74
  %v710 = vunpack.c.l.b16 %v75
  %v711 = vunpack.c.l.b16 %v76
  %v712 = vunpack.c.l.b16 %v77
  %v713 = vunpack.c.l.b16 %v78
  %v714 = vunpack.c.l.b16 %v79
  %v715 = vunpack.c.l.b16 %v80
  %v716 = vunpack.c.l.b16 %v81
  %v717 = vunpack.c.l.b16 %v82
  %v718 = vunpack.c.l.b16 %v83
  %v719 = vunpack.c.l.b16 %v84
  %v720 = vunpack.c.l.b16 %v85
  %v721 = vunpack.c.l.b16 %v86
  %v722 = vunpack.c.l.b16 %v87
  %v723 = vunpack.c.l.b16 %v88
  %v724 = vunpack.c.l.b16 %v89
  %v725 = vunpack.c.l.b16 %v90
  %v726 = vunpack.c.l.b16 %v91
  %v727 = vunpack.c.l.b16 %v92
  %v728 = vunpack.c.l.b16 %v93
  %v729 = vunpack.c.l.b16 %v94
  %v730 = vunpack.c.l.b16 %v95
  %v731 = vunpack.c.l.b16 %v96
  %v732 = vunpack.c.l.b16 %v97
  %v733 = vunpack.c.l.b16 %v98
  %v734 = vunpack.c.l.b16 %v99
  %v735 = vunpack.c.l.b16 %v100
  %v736 = vunpack.c.l.b16 %v101
  %v737 = vunpack.c.l.b16 %v102
  %v738 = vunpack.c.l.b16 %v103
  %v739 = vunpack.c.l.b16 %v104
  %v740 = vunpack.c.l.b16 %v105
  %v741 = vunpack.c.l.b16 %v106
  %v742 = vunpack.c.l.b16 %v107
  %v743 = vunpack.c.l.b16 %v108
  %v744 = vunpack.c.l.b16 %v109
  %v745 = vunpack.c.l.b16 %v110
  %v746 = vunpack.c.l.b16 %v111
  %v747 = vunpack.c.l.b16 %v112
  %v748 = vunpack.c.l.b16 %v113
  %v749 = vunpack.c.l.b16 %v114
  %v750 = vunpack.c.l.b16 %v115
  %v751 = vunpack.c.l.b16 %v116
  %v752 = vunpack.c.l.b16 %v117
  %v753 = vunpack.c.l.b16 %v118
  %v754 = vunpack.c.l.b16 %v119
  %v755 = vunpack.c.l.b16 %v120
  %v756 = vunpack.c.l.b16 %v121
  %v757 = vunpack.c.l.b16 %v122
  %v758 = vunpack.c.l.b16 %v123
  %v759 = vunpack.c.l.b16 %v124
  %v760 = vunpack.c.l.b16 %v125
  %v761 = vunpack.c.l.b16 %v126
  %v762 = vunpack.c.l.b16 %v127
  %v763 = vunpack.c.l.b16 %v128
  %v764 = vunpack.c.l.b16 %v129
  %v765 = vunpack.c.l.b16 %v130
  %v766 = vunpack.c.l.b16 %v131
  %v767 = vunpack.c.l.b16 %v132
  %v768 = vunpack.c.l.b16 %v133
  %v769 = vunpack.c.l.b16 %v134
  %v770 = vunpack.c.l.b16 %v135
  %v771 = vunpack.c.l.b16 %v136
  %v772 = vunpack.c.l.b16 %v137
  %v773 = vunpack.c.l.b16 %v138
  %v774 = vunpack.c.l.b16 %v139
  %v775 = vunpack.c.l.b16 %v140
  %v776 = vunpack.c.l.b16 %v141
  %v777 = vunpack.c.l.b16 %v142
  %v778 = vunpack.c.l.b16 %v143
  %v779 = vunpack.c.l.b16 %v144
  %v780 = vunpack.c.l.b16 %v145
  %v781 = vunpack.c.l.b16 %v146
  %v782 = vunpack.c.l.b16 %v147
  %v783 = vunpack.c.l.b16 %v148
  %v784 = vunpack.c.l.b16 %v149
  %v785 = vunpack.c.l.b16 %v150
  %v786 = vunpack.c.l.b16 %v151
  %v787 = vunpack.c.l.b16 %v152
  %v788 = vunpack.c.l.b16 %v153
  %v789 = vunpack.c.l.b16 %v154
  %v790 = vunpack.c.l.b16 %v155
  %v791 = vunpack.c.l.b16 %v156
  %v792 = vunpack.c.l.b16 %v157
  %v793 = vunpack.c.l.b16 %v158
  %v794 = vunpack.c.l.b16 %v159
  %v795 = vunpack.c.l.b16 %v160
  %v796 = vunpack.c.l.b16 %v161
  %v797 = vunpack.c.l.b16 %v162
  %v798 = vunpack.c.l.b16 %v163
  %v799 = vunpack.c.l.b16 %v164
  %v800 = vunpack.c.l.b16 %v165
  %v801 = vunpack.c.l.b16 %v166
  %v802 = vunpack.c.l.b16 %v167
  %v803 = vunpack.c.l.b16 %v168
  %v804 = vunpack.c.l.b16 %v169
  %v805 = vunpack.c.l.b16 %v170
  %v806 = vunpack.c.l.b16 %v171
  %v807 = vunpack.c.l.b16 %v172
  %v808 = vunpack.c.l.b16 %v173
  %v809 = vunpack.c.l.b16 %v174
  %v810 = vunpack.c.l.b16 %v175
  %v811 = vunpack.c.l.b16 %v176
  %v812 = vunpack.c.l.b16 %v177
  %v813 = vunpack.c.l.b16 %v178
  %v814 = vunpack.c.l.b16 %v179
  %v815 = vunpack.c.l.b16 %v180
  %v816 = vunpack.c.l.b16 %v181
  %v817 = vunpack.c.l.b16 %v182
  %v818 = vunpack.c.l.b16 %v183
  %v819 = vunpack.c.l.b16 %v184
  %v820 = vunpack.c.l.b16 %v185
  %v821 = vunpack.c.l.b16 %v186
  %v822 = vunpack.c.l.b16 %v187
  %v823 = vunpack.c.l.b16 %v188
  %v824 = vunpack.c.l.b16 %v189
  %v825 = vunpack.c.l.b16 %v190
  %v826 = vunpack.c.l.b16 %v191
  %v827 = vunpack.c.l.b16 %v192
  %v828 = vunpack.c.l.b16 %v193
  %v829 = vunpack.c.l.b16 %v194
  %v830 = vunpack.c.l.b16 %v195
  %v831 = vunpack.c.l.b16 %v196
  %v832 = vunpack.c.l.b16 %v197
  %v833 = vunpack.c.l.b16 %v198
  %v834 = vunpack.c.l.b16 %v199
  %v835 = vunpack.c.l.b16 %v200
  %v836 = vunpack.c.l.b16 %v201
  %v837 = vunpack.c.l.b16 %v202
  %v838 = vunpack.c.l.b16 %v203
  %v839 = vunpack.c.l.b16 %v204
  %v840 = vunpack.c.l.b16 %v205
  %v841 = vunpack.c.l.b16 %v206
  %v842 = vunpack.c.l.b16 %v207
  %v843 = vunpack.c.l.b16 %v208
  %v844 = vunpack.c.l.b16 %v209
  %v845 = vunpack.c.l.b16 %v210
  %v846 = vunpack.c.l.b16 %v211
  %v847 = vunpack.c.l.b16 %v212
  %v848 = vunpack.c.l.b16 %v213
  %v849 = vunpack.c.l.b16 %v214
  %v850 = vunpack.c.l.b16 %v215
  %v851 = vunpack.c.l.b16 %v216
  %v852 = vunpack.c.l.b16 %v217
  %v853 = vunpack.c.l.b16 %v218
  %v854 = vunpack.c.l.b16 %v219
  %v855 = vunpack.c.l.b16 %v220
  %v856 = vunpack.c.l.b16 %v221
  %v857 = vunpack.c.l.b16 %v222
  %v858 = vunpack.c.l.b16 %v223
  %v859 = vunpack.c.l.b16 %v224
  %v860 = vunpack.c.l.b16 %v225
  %v861 = vunpack.c.l.b16 %v226
  %v862 = vunpack.c.l.b16 %v227
  %v863 = vunpack.c.l.b16 %v228
  %v864 = vunpack.c.l.b16 %v229
  %v865 = vunpack.c.l.b16 %v230
  %v866 = vunpack.c.l.b16 %v231
  %v867 = vunpack.c.l.b16 %v232
  %v868 = vunpack.c.l.b16 %v233
  %v869 = vunpack.c.l.b16 %v234
  %v870 = vunpack.c.l.b16 %v235
  %v871 = vunpack.c.l.b16 %v236
  %v872 = vunpack.c.l.b16 %v237
  %v873 = vunpack.c.l.b16 %v238
  %v874 = vunpack.c.l.b16 %v239
  %v875 = vunpack.c.l.b16 %v240
  %v876 = vunpack.c.l.b16 %v241
  %v877 = vunpack.c.l.b16 %v242
  %v878 = vunpack.c.l.b16 %v243
  %v879 = vunpack.c.l.b16 %v244
  %v880 = vunpack.c.l.b16 %v245
  %v881 = vunpack.c.l.b16 %v246
  %v882 = vunpack.c.l.b16 %v247
  %v883 = vunpack.c.l.b16 %v248
  %v884 = vunpack.c.l.b16 %v249
  %v885 = vunpack.c.l.b16 %v250
  %v886 = vunpack.c.l.b16 %v251
  %v887 = vunpack.c.l.b16 %v252
  %v888 = vunpack.c.l.b16 %v253
  %v889 = vunpack.c.l.b16 %v254
  %v890 = vunpack.c.l.b16 %v255
  %v891 = vunpack.c.l.b16 %v256
  %v892 = vunpack.c.l.b16 %v257
  %v893 = vunpack.c.l.b16 %v258
  %v894 = vunpack.c.l.b16 %v259
  %v895 = vunpack.c.l.b16 %v260
  %v896 = vunpack.c.l.b16 %v261
  %v897 = vunpack.c.l.b16 %v262
  %v898 = vunpack.c.l.b16 %v263
  %v899 = vunpack.c.l.b16 %v264
  %v900 = vunpack.c.l.b16 %v265
  %v901 = vunpack.c.l.b16 %v266
  %v902 = vunpack.c.l.b16 %v267
  %v903 = vunpack.c.l.b16 %v268
  %v904 = vunpack.c.l.b16 %v269
  %v905 = vunpack.c.l.b16 %v270
  %v906 = vunpack.c.l.b16 %v271
  %v907 = vunpack.c.l.b16 %v272
  %v908 = vunpack.c.l.b16 %v273
  %v909 = vunpack.c.l.b16 %v274
  %v910 = vunpack.c.l.b16 %v275
  %v911 = vunpack.c.l.b16 %v276
  %v912 = vunpack.c.l.b16 %v277
  %v913 = vunpack.c.l.b16 %v278
  %v914 = vunpack.c.l.b16 %v279
  %v915 = vunpack.c.l.b16 %v280
  %v916 = vunpack.c.l.b16 %v281
  %v917 = vunpack.c.l.b16 %v282
  %v918 = vunpack.c.l.b16 %v283
  %v919 = vpack.c.b16 %v664, %v663
  %v920 = vpack.c.b16 %v666, %v665
  %v921 = vpack.c.b16 %v668, %v667
  %v922 = vpack.c.b16 %v670, %v669
  %v923 = vpack.c.b16 %v672, %v671
  %v924 = vpack.c.b16 %v674, %v673
  %v925 = vpack.c.b16 %v676, %v675
  %v926 = vpack.c.b16 %v678, %v677
  %v927 = vpack.c.b16 %v680, %v679
  %v928 = vpack.c.b16 %v682, %v681
  %v929 = vpack.c.b16 %v684, %v683
  %v930 = vpack.c.b16 %v686, %v685
  %v931 = vpack.c.b16 %v688, %v687
  %v932 = vpack.c.b16 %v690, %v689
  %v933 = vpack.c.b16 %v692, %v691
  %v934 = vpack.c.b16 %v694, %v693
  %v935 = vpack.c.b16 %v696, %v695
  %v936 = vpack.c.b16 %v698, %v697
  %v937 = vpack.c.b16 %v700, %v699
  %v938 = vpack.c.b16 %v702, %v701
  %v939 = vpack.c.b16 %v704, %v703
  %v940 = vpack.c.b16 %v706, %v705
  %v941 = vpack.c.b16 %v708, %v707
  %v942 = vpack.c.b16 %v710, %v709
  %v943 = vpack.c.b16 %v712, %v711
  %v944 = vpack.c.b16 %v714, %v713
  %v945 = vpack.c.b16 %v716, %v715
  %v946 = vpack.c.b16 %v718, %v717
  %v947 = vpack.c.b16 %v720, %v719
  %v948 = vpack.c.b16 %v722, %v721
  %v949 = vpack.c.b16 %v724, %v723
  %v950 = vpack.c.b16 %v726, %v725
  %v951 = vpack.c.b16 %v728, %v727
  %v952 = vpack.c.b16 %v730, %v729
  %v953 = vpack.c.b16 %v732, %v731
  %v954 = vpack.c.b16 %v734, %v733
  %v955 = vpack.c.b16 %v736, %v735
  %v956 = vpack.c.b16 %v738, %v737
  %v957 = vpack.c.b16 %v740, %v739
  %v958 = vpack.c.b16 %v742, %v741
  %v959 = vpack.c.b16 %v744, %v743
  %v960 = vpack.c.b16 %v746, %v745
  %v961 = vpack.c.b16 %v748, %v747
  %v962 = vpack.c.b16 %v750, %v749
  %v963 = vpack.c.b16 %v752, %v751
  %v964 = vpack.c.b16 %v754, %v753
  %v965 = vpack.c.b16 %v756, %v755
  %v966 = vpack.c.b16 %v758, %v757
  %v967 = vpack.c.b16 %v760, %v759
  %v968 = vpack.c.b16 %v762, %v761
  %v969 = vpack.c.b16 %v764, %v763
  %v970 = vpack.c.b16 %v766, %v765
  %v971 = vpack.c.b16 %v768, %v767
  %v972 = vpack.c.b16 %v770, %v769
  %v973 = vpack.c.b16 %v772, %v771
  %v974 = vpack.c.b16 %v774, %v773
  %v975 = vpack.c.b16 %v776, %v775
  %v976 = vpack.c.b16 %v778, %v777
  %v977 = vpack.c.b16 %v780, %v779
  %v978 = vpack.c.b16 %v782, %v781
  %v979 = vpack.c.b16 %v784, %v783
  %v980 = vpack.c.b16 %v786, %v785
  %v981 = vpack.c.b16 %v788, %v787
  %v982 = vpack.c.b16 %v790, %v789
  %v983 = vpack.c.b16 %v792, %v791
  %v984 = vpack.c.b16 %v794, %v793
  %v985 = vpack.c.b16 %v796, %v795
  %v986 = vpack.c.b16 %v798, %v797
  %v987 = vpack.c.b16 %v800, %v799
  %v988 = vpack.c.b16 %v802, %v801
  %v989 = vpack.c.b16 %v804, %v803
  %v990 = vpack.c.b16 %v806, %v805
  %v991 = vpack.c.b16 %v808, %v807
  %v992 = vpack.c.b16 %v810, %v809
  %v993 = vpack.c.b16 %v812, %v811
  %v994 = vpack.c.b16 %v814, %v813
  %v995 = vpack.c.b16 %v816, %v815
  %v996 = vpack.c.b16 %v818, %v817
  %v997 = vpack.c.b16 %v820, %v819
  %v998 = vpack.c.b16 %v822, %v821
  %v999 = vpack.c.b16 %v824, %v823
  %v1000 = vpack.c.b16 %v826, %v825
  %v1001 = vpack.c.b16 %v828, %v827
  %v1002 = vpack.c.b16 %v830, %v829
  %v1003 = vpack.c.b16 %v832, %v831
  %v1004 = vpack.c.b16 %v834, %v833
  %v1005 = vpack.c.b16 %v836, %v835
  %v1006 = vpack.c.b16 %v838, %v837
  %v1007 = vpack.c.b16 %v840, %v839
  %v1008 = vpack.c.b16 %v842, %v841
  %v1009 = vpack.c.b16 %v844, %v843
  %v1010 = vpack.c.b16 %v846, %v845
  %v1011 = vpack.c.b16 %v848, %v847
  %v1012 = vpack.c.b16 %v850, %v849
  %v1013 = vpack.c.b16 %v852, %v851
  %v1014 = vpack.c.b16 %v854, %v853
  %v1015 = vpack.c.b16 %v856, %v855
  %v1016 = vpack.c.b16 %v858, %v857
  %v1017 = vpack.c.b16 %v860, %v859
  %v1018 = vpack.c.b16 %v862, %v861
  %v1019 = vpack.c.b16 %v864, %v863
  %v1020 = vpack.c.b16 %v866, %v865
  %v1021 = vpack.c.b16 %v868, %v867
  %v1022 = vpack.c.b16 %v870, %v869
  %v1023 = vpack.c.b16 %v872, %v871
  %v1024 = vpack.c.b16 %v874, %v873
  %v1025 = vpack.c.b16 %v876, %v875
  %v1026 = vpack.c.b16 %v878, %v877
  %v1027 = vpack.c.b16 %v880, %v879
  %v1028 = vpack.c.b16 %v882, %v881
  %v1029 = vpack.c.b16 %v884, %v883
  %v1030 = vpack.c.b16 %v886, %v885
  %v1031 = vpack.c.b16 %v888, %v887
  %v1032 = vpack.c.b16 %v890, %v889
  %v1033 = vpack.c.b16 %v892, %v891
  %v1034 = vpack.c.b16 %v894, %v893
  %v1035 = vpack.c.b16 %v896, %v895
  %v1036 = vpack.c.b16 %v898, %v897
  %v1037 = vpack.c.b16 %v900, %v899
  %v1038 = vpack.c.b16 %v902, %v901
  %v1039 = vpack.c.b16 %v904, %v903
  %v1040 = vpack.c.b16 %v906, %v905
  %v1041 = vpack.c.b16 %v908, %v907
  %v1042 = vpack.c.b16 %v910, %v909
  %v1043 = vpack.c.b16 %v912, %v911
  %v1044 = vpack.c.b16 %v914, %v913
  %v1045 = vpack.c.b16 %v916, %v915
  %v1046 = vpack.c.b16 %v918, %v917
  %1175 = vmatprep.subr.bf16.mxu0 0
  %1176 = vmatpush1.bf16.msra.mxu0 %v926
  %1177 = vmatprep.subr.bf16.mxu0 0
  %1178 = vmatpush1.bf16.msra.mxu0 %v925
  %1179 = vmatprep.subr.bf16.mxu0 0
  %1180 = vmatpush1.bf16.msra.mxu0 %v924
  %1181 = vmatprep.subr.bf16.mxu0 0
  %1182 = vmatpush1.bf16.msra.mxu0 %v923
  %1183 = vmatprep.subr.bf16.mxu0 0
  %1184 = vmatpush1.bf16.msra.mxu0 %v922
  %1185 = vmatprep.subr.bf16.mxu0 0
  %1186 = vmatpush1.bf16.msra.mxu0 %v921
  %1187 = vmatprep.subr.bf16.mxu0 0
  %1188 = vmatpush1.bf16.msra.mxu0 %v920
  %1189 = vmatprep.subr.bf16.mxu0 0
  %1190 = vmatpush1.bf16.msra.mxu0 %v919
  %1191 = vmatprep.subr.bf16.mxu0 0
  %1192 = vmatpush2.bf16.msra.mxu0 %v934
  %1193 = vmatprep.subr.bf16.mxu0 0
  %1194 = vmatpush2.bf16.msra.mxu0 %v933
  %1195 = vmatprep.subr.bf16.mxu0 0
  %1196 = vmatpush2.bf16.msra.mxu0 %v932
  %1197 = vmatprep.subr.bf16.mxu0 0
  %1198 = vmatpush2.bf16.msra.mxu0 %v931
  %1199 = vmatprep.subr.bf16.mxu0 0
  %1200 = vmatpush2.bf16.msra.mxu0 %v930
  %1201 = vmatprep.subr.bf16.mxu0 0
  %1202 = vmatpush2.bf16.msra.mxu0 %v929
  %1203 = vmatprep.subr.bf16.mxu0 0
  %1204 = vmatpush2.bf16.msra.mxu0 %v928
  %1205 = vmatprep.subr.bf16.mxu0 0
  %1206 = vmatpush2.bf16.msra.mxu0 %v927
  %1207 = vmatprep.mubr.bf16.mxu0 %v330
  %1208 = vmatmul.mubr.bf16.gmra.mxu0 %v316
  %v1209 = vpop.f32.mrf.mxu0
  %v1210 = vadd.f32 %v289, %v1209
  %v1211 = vpop.f32.mrf.mxu0
  %v1212 = vpop.f32.mrf.mxu0
  %v1213 = vpop.f32.mrf.mxu0
  %1214 = vdwg.mxu0
  %1215 = vmatprep.subr.bf16.mxu0 0
  %1216 = vmatpush1.bf16.msra.mxu0 %v942
  %1217 = vmatprep.subr.bf16.mxu0 0
  %1218 = vmatpush1.bf16.msra.mxu0 %v941
  %1219 = vmatprep.subr.bf16.mxu0 0
  %1220 = vmatpush1.bf16.msra.mxu0 %v940
  %1221 = vmatprep.subr.bf16.mxu0 0
  %1222 = vmatpush1.bf16.msra.mxu0 %v939
  %1223 = vmatprep.subr.bf16.mxu0 0
  %1224 = vmatpush1.bf16.msra.mxu0 %v938
  %1225 = vmatprep.subr.bf16.mxu0 0
  %1226 = vmatpush1.bf16.msra.mxu0 %v937
  %1227 = vmatprep.subr.bf16.mxu0 0
  %1228 = vmatpush1.bf16.msra.mxu0 %v936
  %1229 = vmatprep.subr.bf16.mxu0 0
  %1230 = vmatpush1.bf16.msra.mxu0 %v935
  %1231 = vmatprep.subr.bf16.mxu0 0
  %1232 = vmatpush2.bf16.msra.mxu0 %v950
  %1233 = vmatprep.subr.bf16.mxu0 0
  %1234 = vmatpush2.bf16.msra.mxu0 %v949
  %1235 = vmatprep.subr.bf16.mxu0 0
  %1236 = vmatpush2.bf16.msra.mxu0 %v948
  %1237 = vmatprep.subr.bf16.mxu0 0
  %1238 = vmatpush2.bf16.msra.mxu0 %v947
  %1239 = vmatprep.subr.bf16.mxu0 0
  %1240 = vmatpush2.bf16.msra.mxu0 %v946
  %1241 = vmatprep.subr.bf16.mxu0 0
  %1242 = vmatpush2.bf16.msra.mxu0 %v945
  %1243 = vmatprep.subr.bf16.mxu0 0
  %1244 = vmatpush2.bf16.msra.mxu0 %v944
  %1245 = vmatprep.subr.bf16.mxu0 0
  %1246 = vmatpush2.bf16.msra.mxu0 %v943
  %1247 = vmatprep.mubr.bf16.mxu0 %v340
  %1248 = vmatmul.mubr.bf16.gmra.mxu0 %v338
  %v1249 = vpop.f32.mrf.mxu0
  %v1250 = vadd.f32 %v1210, %v1249
  %v1251 = vpop.f32.mrf.mxu0
  %v1252 = vpop.f32.mrf.mxu0
  %v1253 = vpop.f32.mrf.mxu0
  %1254 = vdwg.mxu0
  %1255 = vmatprep.subr.bf16.mxu0 0
  %1256 = vmatpush1.bf16.msra.mxu0 %v958
  %1257 = vmatprep.subr.bf16.mxu0 0
  %1258 = vmatpush1.bf16.msra.mxu0 %v957
  %1259 = vmatprep.subr.bf16.mxu0 0
  %1260 = vmatpush1.bf16.msra.mxu0 %v956
  %1261 = vmatprep.subr.bf16.mxu0 0
  %1262 = vmatpush1.bf16.msra.mxu0 %v955
  %1263 = vmatprep.subr.bf16.mxu0 0
  %1264 = vmatpush1.bf16.msra.mxu0 %v954
  %1265 = vmatprep.subr.bf16.mxu0 0
  %1266 = vmatpush1.bf16.msra.mxu0 %v953
  %1267 = vmatprep.subr.bf16.mxu0 0
  %1268 = vmatpush1.bf16.msra.mxu0 %v952
  %1269 = vmatprep.subr.bf16.mxu0 0
  %1270 = vmatpush1.bf16.msra.mxu0 %v951
  %1271 = vmatprep.subr.bf16.mxu0 0
  %1272 = vmatpush2.bf16.msra.mxu0 %v966
  %1273 = vmatprep.subr.bf16.mxu0 0
  %1274 = vmatpush2.bf16.msra.mxu0 %v965
  %1275 = vmatprep.subr.bf16.mxu0 0
  %1276 = vmatpush2.bf16.msra.mxu0 %v964
  %1277 = vmatprep.subr.bf16.mxu0 0
  %1278 = vmatpush2.bf16.msra.mxu0 %v963
  %1279 = vmatprep.subr.bf16.mxu0 0
  %1280 = vmatpush2.bf16.msra.mxu0 %v962
  %1281 = vmatprep.subr.bf16.mxu0 0
  %1282 = vmatpush2.bf16.msra.mxu0 %v961
  %1283 = vmatprep.subr.bf16.mxu0 0
  %1284 = vmatpush2.bf16.msra.mxu0 %v960
  %1285 = vmatprep.subr.bf16.mxu0 0
  %1286 = vmatpush2.bf16.msra.mxu0 %v959
  %1287 = vmatprep.mubr.bf16.mxu0 %v337
  %1288 = vmatmul.mubr.bf16.gmra.mxu0 %v323
  %v1289 = vpop.f32.mrf.mxu0
  %v1290 = vadd.f32 %v1250, %v1289
  %v1291 = vpop.f32.mrf.mxu0
  %v1292 = vpop.f32.mrf.mxu0
  %v1293 = vpop.f32.mrf.mxu0
  %1294 = vdwg.mxu0
  %1295 = vmatprep.subr.bf16.mxu0 0
  %1296 = vmatpush1.bf16.msra.mxu0 %v974
  %1297 = vmatprep.subr.bf16.mxu0 0
  %1298 = vmatpush1.bf16.msra.mxu0 %v973
  %1299 = vmatprep.subr.bf16.mxu0 0
  %1300 = vmatpush1.bf16.msra.mxu0 %v972
  %1301 = vmatprep.subr.bf16.mxu0 0
  %1302 = vmatpush1.bf16.msra.mxu0 %v971
  %1303 = vmatprep.subr.bf16.mxu0 0
  %1304 = vmatpush1.bf16.msra.mxu0 %v970
  %1305 = vmatprep.subr.bf16.mxu0 0
  %1306 = vmatpush1.bf16.msra.mxu0 %v969
  %1307 = vmatprep.subr.bf16.mxu0 0
  %1308 = vmatpush1.bf16.msra.mxu0 %v968
  %1309 = vmatprep.subr.bf16.mxu0 0
  %1310 = vmatpush1.bf16.msra.mxu0 %v967
  %1311 = vmatprep.subr.bf16.mxu0 0
  %1312 = vmatpush2.bf16.msra.mxu0 %v982
  %1313 = vmatprep.subr.bf16.mxu0 0
  %1314 = vmatpush2.bf16.msra.mxu0 %v981
  %1315 = vmatprep.subr.bf16.mxu0 0
  %1316 = vmatpush2.bf16.msra.mxu0 %v980
  %1317 = vmatprep.subr.bf16.mxu0 0
  %1318 = vmatpush2.bf16.msra.mxu0 %v979
  %1319 = vmatprep.subr.bf16.mxu0 0
  %1320 = vmatpush2.bf16.msra.mxu0 %v978
  %1321 = vmatprep.subr.bf16.mxu0 0
  %1322 = vmatpush2.bf16.msra.mxu0 %v977
  %1323 = vmatprep.subr.bf16.mxu0 0
  %1324 = vmatpush2.bf16.msra.mxu0 %v976
  %1325 = vmatprep.subr.bf16.mxu0 0
  %1326 = vmatpush2.bf16.msra.mxu0 %v975
  %1327 = vmatprep.mubr.bf16.mxu0 %v341
  %1328 = vmatmul.mubr.bf16.gmra.mxu0 %v339
  %v1329 = vpop.f32.mrf.mxu0
  %v1330 = vadd.f32 %v1290, %v1329
  %v1331 = vpop.f32.mrf.mxu0
  %v1332 = vpop.f32.mrf.mxu0
  %v1333 = vpop.f32.mrf.mxu0
  %1334 = vdwg.mxu0
  %1335 = vmatprep.subr.bf16.mxu0 0
  %1336 = vmatpush1.bf16.msra.mxu0 %v990
  %1337 = vmatprep.subr.bf16.mxu0 0
  %1338 = vmatpush1.bf16.msra.mxu0 %v989
  %1339 = vmatprep.subr.bf16.mxu0 0
  %1340 = vmatpush1.bf16.msra.mxu0 %v988
  %1341 = vmatprep.subr.bf16.mxu0 0
  %1342 = vmatpush1.bf16.msra.mxu0 %v987
  %1343 = vmatprep.subr.bf16.mxu0 0
  %1344 = vmatpush1.bf16.msra.mxu0 %v986
  %1345 = vmatprep.subr.bf16.mxu0 0
  %1346 = vmatpush1.bf16.msra.mxu0 %v985
  %1347 = vmatprep.subr.bf16.mxu0 0
  %1348 = vmatpush1.bf16.msra.mxu0 %v984
  %1349 = vmatprep.subr.bf16.mxu0 0
  %1350 = vmatpush1.bf16.msra.mxu0 %v983
  %1351 = vmatprep.subr.bf16.mxu0 0
  %1352 = vmatpush2.bf16.msra.mxu0 %v998
  %1353 = vmatprep.subr.bf16.mxu0 0
  %1354 = vmatpush2.bf16.msra.mxu0 %v997
  %1355 = vmatprep.subr.bf16.mxu0 0
  %1356 = vmatpush2.bf16.msra.mxu0 %v996
  %1357 = vmatprep.subr.bf16.mxu0 0
  %1358 = vmatpush2.bf16.msra.mxu0 %v995
  %1359 = vmatprep.subr.bf16.mxu0 0
  %1360 = vmatpush2.bf16.msra.mxu0 %v994
  %1361 = vmatprep.subr.bf16.mxu0 0
  %1362 = vmatpush2.bf16.msra.mxu0 %v993
  %1363 = vmatprep.subr.bf16.mxu0 0
  %1364 = vmatpush2.bf16.msra.mxu0 %v992
  %1365 = vmatprep.subr.bf16.mxu0 0
  %1366 = vmatpush2.bf16.msra.mxu0 %v991
  %1367 = vmatprep.mubr.bf16.mxu0 %v379
  %1368 = vmatmul.mubr.bf16.gmra.mxu0 %v365
  %v1369 = vpop.f32.mrf.mxu0
  %v1370 = vadd.f32 %v1330, %v1369
  %v1371 = vpop.f32.mrf.mxu0
  %v1372 = vpop.f32.mrf.mxu0
  %v1373 = vpop.f32.mrf.mxu0
  %1374 = vdwg.mxu0
  %1375 = vmatprep.subr.bf16.mxu0 0
  %1376 = vmatpush1.bf16.msra.mxu0 %v1006
  %1377 = vmatprep.subr.bf16.mxu0 0
  %1378 = vmatpush1.bf16.msra.mxu0 %v1005
  %1379 = vmatprep.subr.bf16.mxu0 0
  %1380 = vmatpush1.bf16.msra.mxu0 %v1004
  %1381 = vmatprep.subr.bf16.mxu0 0
  %1382 = vmatpush1.bf16.msra.mxu0 %v1003
  %1383 = vmatprep.subr.bf16.mxu0 0
  %1384 = vmatpush1.bf16.msra.mxu0 %v1002
  %1385 = vmatprep.subr.bf16.mxu0 0
  %1386 = vmatpush1.bf16.msra.mxu0 %v1001
  %1387 = vmatprep.subr.bf16.mxu0 0
  %1388 = vmatpush1.bf16.msra.mxu0 %v1000
  %1389 = vmatprep.subr.bf16.mxu0 0
  %1390 = vmatpush1.bf16.msra.mxu0 %v999
  %1391 = vmatprep.subr.bf16.mxu0 0
  %1392 = vmatpush2.bf16.msra.mxu0 %v1014
  %1393 = vmatprep.subr.bf16.mxu0 0
  %1394 = vmatpush2.bf16.msra.mxu0 %v1013
  %1395 = vmatprep.subr.bf16.mxu0 0
  %1396 = vmatpush2.bf16.msra.mxu0 %v1012
  %1397 = vmatprep.subr.bf16.mxu0 0
  %1398 = vmatpush2.bf16.msra.mxu0 %v1011
  %1399 = vmatprep.subr.bf16.mxu0 0
  %1400 = vmatpush2.bf16.msra.mxu0 %v1010
  %1401 = vmatprep.subr.bf16.mxu0 0
  %1402 = vmatpush2.bf16.msra.mxu0 %v1009
  %1403 = vmatprep.subr.bf16.mxu0 0
  %1404 = vmatpush2.bf16.msra.mxu0 %v1008
  %1405 = vmatprep.subr.bf16.mxu0 0
  %1406 = vmatpush2.bf16.msra.mxu0 %v1007
  %1407 = vmatprep.mubr.bf16.mxu0 %v389
  %1408 = vmatmul.mubr.bf16.gmra.mxu0 %v387
  %v1409 = vpop.f32.mrf.mxu0
  %v1410 = vadd.f32 %v1370, %v1409
  %v1411 = vpop.f32.mrf.mxu0
  %v1412 = vpop.f32.mrf.mxu0
  %v1413 = vpop.f32.mrf.mxu0
  %1414 = vdwg.mxu0
  %1415 = vmatprep.subr.bf16.mxu0 0
  %1416 = vmatpush1.bf16.msra.mxu0 %v1022
  %1417 = vmatprep.subr.bf16.mxu0 0
  %1418 = vmatpush1.bf16.msra.mxu0 %v1021
  %1419 = vmatprep.subr.bf16.mxu0 0
  %1420 = vmatpush1.bf16.msra.mxu0 %v1020
  %1421 = vmatprep.subr.bf16.mxu0 0
  %1422 = vmatpush1.bf16.msra.mxu0 %v1019
  %1423 = vmatprep.subr.bf16.mxu0 0
  %1424 = vmatpush1.bf16.msra.mxu0 %v1018
  %1425 = vmatprep.subr.bf16.mxu0 0
  %1426 = vmatpush1.bf16.msra.mxu0 %v1017
  %1427 = vmatprep.subr.bf16.mxu0 0
  %1428 = vmatpush1.bf16.msra.mxu0 %v1016
  %1429 = vmatprep.subr.bf16.mxu0 0
  %1430 = vmatpush1.bf16.msra.mxu0 %v1015
  %1431 = vmatprep.subr.bf16.mxu0 0
  %1432 = vmatpush2.bf16.msra.mxu0 %v1030
  %1433 = vmatprep.subr.bf16.mxu0 0
  %1434 = vmatpush2.bf16.msra.mxu0 %v1029
  %1435 = vmatprep.subr.bf16.mxu0 0
  %1436 = vmatpush2.bf16.msra.mxu0 %v1028
  %1437 = vmatprep.subr.bf16.mxu0 0
  %1438 = vmatpush2.bf16.msra.mxu0 %v1027
  %1439 = vmatprep.subr.bf16.mxu0 0
  %1440 = vmatpush2.bf16.msra.mxu0 %v1026
  %1441 = vmatprep.subr.bf16.mxu0 0
  %1442 = vmatpush2.bf16.msra.mxu0 %v1025
  %1443 = vmatprep.subr.bf16.mxu0 0
  %1444 = vmatpush2.bf16.msra.mxu0 %v1024
  %1445 = vmatprep.subr.bf16.mxu0 0
  %1446 = vmatpush2.bf16.msra.mxu0 %v1023
  %1447 = vmatprep.mubr.bf16.mxu0 %v386
  %1448 = vmatmul.mubr.bf16.gmra.mxu0 %v372
  %v1449 = vpop.f32.mrf.mxu0
  %v1450 = vadd.f32 %v1410, %v1449
  %v1451 = vpop.f32.mrf.mxu0
  %v1452 = vpop.f32.mrf.mxu0
  %v1453 = vpop.f32.mrf.mxu0
  %1454 = vdwg.mxu0
  %1455 = vmatprep.subr.bf16.mxu0 0
  %1456 = vmatpush1.bf16.msra.mxu0 %v1038
  %1457 = vmatprep.subr.bf16.mxu0 0
  %1458 = vmatpush1.bf16.msra.mxu0 %v1037
  %1459 = vmatprep.subr.bf16.mxu0 0
  %1460 = vmatpush1.bf16.msra.mxu0 %v1036
  %1461 = vmatprep.subr.bf16.mxu0 0
  %1462 = vmatpush1.bf16.msra.mxu0 %v1035
  %1463 = vmatprep.subr.bf16.mxu0 0
  %1464 = vmatpush1.bf16.msra.mxu0 %v1034
  %1465 = vmatprep.subr.bf16.mxu0 0
  %1466 = vmatpush1.bf16.msra.mxu0 %v1033
  %1467 = vmatprep.subr.bf16.mxu0 0
  %1468 = vmatpush1.bf16.msra.mxu0 %v1032
  %1469 = vmatprep.subr.bf16.mxu0 0
  %1470 = vmatpush1.bf16.msra.mxu0 %v1031
  %1471 = vmatprep.subr.bf16.mxu0 0
  %1472 = vmatpush2.bf16.msra.mxu0 %v1046
  %1473 = vmatprep.subr.bf16.mxu0 0
  %1474 = vmatpush2.bf16.msra.mxu0 %v1045
  %1475 = vmatprep.subr.bf16.mxu0 0
  %1476 = vmatpush2.bf16.msra.mxu0 %v1044
  %1477 = vmatprep.subr.bf16.mxu0 0
  %1478 = vmatpush2.bf16.msra.mxu0 %v1043
  %1479 = vmatprep.subr.bf16.mxu0 0
  %1480 = vmatpush2.bf16.msra.mxu0 %v1042
  %1481 = vmatprep.subr.bf16.mxu0 0
  %1482 = vmatpush2.bf16.msra.mxu0 %v1041
  %1483 = vmatprep.subr.bf16.mxu0 0
  %1484 = vmatpush2.bf16.msra.mxu0 %v1040
  %1485 = vmatprep.subr.bf16.mxu0 0
  %1486 = vmatpush2.bf16.msra.mxu0 %v1039
  %1487 = vmatprep.mubr.bf16.mxu0 %v390
  %1488 = vmatmul.mubr.bf16.gmra.mxu0 %v388
  %v1489 = vpop.f32.mrf.mxu0
  %v1490 = vadd.f32 %v1450, %v1489
  %v1491 = vpop.f32.mrf.mxu0
  %v1492 = vpop.f32.mrf.mxu0
  %v1493 = vpop.f32.mrf.mxu0
  %1494 = vdwg.mxu0
  %v1495 = vmul.f32 %v1490, %v1490
  %vm1496 = vcmask 1041408
  %v1497 = vsel %vm1496, %v1495, 0.0
  %1498 = vadd.xlane.f32.xlu0 %v1497
  %v1499 = vpop.xlane.xlu0 %1498
  %v1500 = vmul.f32 %v1499, 0.03125
  %v1501 = vadd.f32 %v1500, 1e-08
  %v1502 = vrsqrt.pop %v1501
  %v1503 = vmul.f32 %v1490, %v1502
  %vm1504 = vcmp.ge.f32.partialorder %v1503, 0.0
  %v1505 = vmul.f32 %v1503, 0.2
  %v1506 = vsel %vm1504, %v1503, %v1505
  %v1507 = vld [vmem:[%s3] sm:$0x3]
  %v1508 = vmul.f32 %v1507, %v1507
  %v1509 = vsel %vm1496, %v1508, 0.0
  %1510 = vadd.xlane.f32.xlu0 %v1509
  %v1511 = vpop.xlane.xlu0 %1510
  %v1512 = vmax.f32 %v1511, 1e-24
  %v1513 = vrsqrt.pop %v1512
  %v1514 = vmul.f32 %v1507, %v1513
  %v1515 = vld [vmem:[%s4] sm:$0x1]
  %v1517 = vlaneseq
  %v1518 = vshrl.u32 %v1517, 7
  %v1519 = vsub.s32 0, %v1518
  %v1520 = vrot.slane %v1515, %v1519
  %v1522 = vadd.f32 %v1514, %v1520
  %v1523 = vmul.f32 %v1506, %v1522
  %v1524 = vsel %vm1496, %v1523, 0.0
  %1525 = vadd.xlane.f32.xlu0 %v1524
  %v1526 = vpop.xlane.xlu0 %1525
  %v1527 = vld [vmem:[#allocation2] sm:$0x1]
  %v1529 = vlaneseq
  %v1530 = vshrl.u32 %v1529, 7
  %v1531 = vsub.s32 0, %v1530
  %v1532 = vrot.slane %v1527, %v1531
  %v1534 = vadd.f32 %v1526, %v1532
  %vm1535 = vcmask 1024
  %1536 = vst.msk [vmem:[%s6] sm:$0x3] %vm1535, %v1534
  // Predicated region
  $region26: #{forward.13} parent=0 // pred_check
    _
  $region27: #{forward.13} parent=0 // pred_check_branch
    %1538 = sbr.rel (0) target = $region29
  $region28: #{forward.13} parent=0 // pred_region
    _
  $region29: #{forward.13} parent=0 // pred_fallthru
    _
  // Predicated region
  $region30: #{forward.13} parent=0 // pred_check
    _
  $region31: #{forward.13} parent=0 // pred_check_branch
    %1540 = sbr.rel (0) target = $region33
  $region32: #{forward.13} parent=0 // pred_region
    _
  $region33: #{forward.13} parent=0 // pred_fallthru
    _

</llo_original>
